<compile_context>
chip_gen: v6e
topology: v6e:2x2x1
jax: 0.10.0
libtpu: 0.0.40
codegen_flags: <defaults>
</compile_context>

<pallas_src>
import numpy as np
import jax
import jax.numpy as jnp
from jax.experimental import pallas as pl
from jax.experimental.pallas import tpu as pltpu

NUM_CLASSES = 7
BN_EPS = 1e-5


def _round_up(n, m):
    return (n + m - 1) // m * m


def _soc_cnn_kernel(x_ref, w1p_ref, b1p_ref, w2p_ref, b2f_ref,
                    w3_ref, b3_ref, w4_ref, b4_ref, out_ref):
    f32 = jnp.float32
    bf16 = jnp.bfloat16

    xb = x_ref[...]                                            # (TB, 64*K) bf16, BN folded

    # --- Conv2d(K,64,3,p=1) [+BN folded] + ReLU + MaxPool2d(2,2) -------------------
    # One dense matmul per pooled row; columns permuted so the 2x2 pool is 3 aligned
    # maxima over 256-lane slices.  Bias is per-output-pixel (boundary aware) so it is
    # added before the max; ReLU commutes with max so it is applied after.
    rows = []
    for pi in range(4):
        y = jnp.dot(xb, w1p_ref[pi], preferred_element_type=f32)      # (TB, 1024)
        y = y + b1p_ref[pi:pi + 1, :]
        p = jnp.maximum(jnp.maximum(y[:, 0:256], y[:, 256:512]),
                        jnp.maximum(y[:, 512:768], y[:, 768:1024]))   # (TB, 256)
        rows.append(jnp.maximum(p, 0.0).astype(bf16))
    pooled1 = jnp.concatenate(rows, axis=1)                           # (TB, 1024)

    # --- Conv2d(64,128,3,p=1) + ReLU + MaxPool2d(2,2) ------------------------------
    # Single dense matmul over the whole 4x4x64 pooled map; zero padding baked into
    # the weight.  Per-channel bias and ReLU deferred until after the pooling max.
    y2 = jnp.dot(pooled1, w2p_ref[...], preferred_element_type=f32)   # (TB, 2048)
    p2 = jnp.maximum(jnp.maximum(y2[:, 0:512], y2[:, 512:1024]),
                     jnp.maximum(y2[:, 1024:1536], y2[:, 1536:2048])) # (TB, 512)
    feats = jnp.maximum(p2 + b2f_ref[...], 0.0).astype(bf16)          # (h,w,c) flatten

    # --- Linear(512,256) + ReLU (Dropout = identity), Linear(256, 7 -> 128 pad) ----
    hid = jnp.maximum(
        jnp.dot(feats, w3_ref[...], preferred_element_type=f32) + b3_ref[...], 0.0)
    logits = jnp.dot(hid.astype(bf16), w4_ref[...],
                     preferred_element_type=f32) + b4_ref[...]
    out_ref[...] = logits.astype(out_ref.dtype)                       # lane-dense (TB,128)


def _const_spec(shape):
    zeros = (0,) * len(shape)
    return pl.BlockSpec(shape, lambda b, _z=zeros: _z)


def segmented_object_classifier_forward(x, params, in_channels, *, tb=None):
    """Forward pass.  x: NCHW (B, K, 8, 8) or flattened (B, K*64), like the module."""
    if x.ndim == 2:
        x = x.reshape(x.shape[0], in_channels, 8, 8)
    B, K, H, W = x.shape
    assert (H, W) == (8, 8) and K == in_channels
    kcols = H * W * K
    # glue: NCHW -> NHWC -> (B, H*W*K) so conv1 sees (h, w, c) columns; bf16 input DMA.
    x_flat = jnp.transpose(x, (0, 2, 3, 1)).reshape(B, kcols).astype(jnp.bfloat16)

    if tb is None:
        tb = min(128, _round_up(B, 16))          # batch tile, multiple of 16
        # prefer >= 2 grid steps when the batch allows (v7x megacore split).
        if B > 16 and _round_up(B, tb) // tb < 2:
            tb = max(16, _round_up(_round_up(B, 16) // 2, 16))
    b_pad = _round_up(B, tb)
    if b_pad != B:
        x_flat = jnp.pad(x_flat, ((0, b_pad - B), (0, 0)))
    n_steps = b_pad // tb

    flops = 2 * b_pad * (4 * kcols * 1024 + 1024 * 2048 + 512 * 256 + 256 * 128)
    bytes_accessed = (b_pad * kcols * 2 + b_pad * 128 * 4
                      + (4 * kcols * 1024 + 1024 * 2048 + 512 * 256 + 256 * 128) * 2
                      + (4 * 1024 + 512 + 256 + 128) * 4)

    out = pl.pallas_call(
        _soc_cnn_kernel,
        out_shape=jax.ShapeDtypeStruct((b_pad, 128), jnp.float32),
        grid=(n_steps,),
        in_specs=[
            pl.BlockSpec((tb, kcols), lambda b: (b, 0)),             # x (bf16)
            _const_spec((4, kcols, 1024)), _const_spec((4, 1024)),   # conv1 dense + bias
            _const_spec((1024, 2048)), _const_spec((1, 512)),        # conv2 dense + bias
            _const_spec((512, 256)), _const_spec((1, 256)),          # fc1
            _const_spec((256, 128)), _const_spec((1, 128)),          # fc2 (padded)
        ],
        out_specs=pl.BlockSpec((tb, 128), lambda b: (b, 0)),
        compiler_params=pltpu.CompilerParams(
            dimension_semantics=("parallel",),
            vmem_limit_bytes=48 * 1024 * 1024),
        cost_estimate=pl.CostEstimate(flops=flops, transcendentals=0,
                                      bytes_accessed=bytes_accessed),
    )(x_flat, params["w1p"], params["b1p"], params["w2p"], params["b2f"],
      params["w3_bf"], params["b3"], params["w4_pad"], params["b4_pad"])
    return out[:B, :NUM_CLASSES]


def _pack_kernel_params(p, K, num_classes):
    """Kernel-layout copies of the weights (built once, outside the kernel)."""
    bf16 = jnp.bfloat16
    kcols = 64 * K
    w1 = np.asarray(p["w1"], np.float32)                 # (3, 3, K, 64) HWIO
    b1 = np.asarray(p["b1"], np.float32).reshape(64)
    bn_scale = np.asarray(p["bn_scale"], np.float32).reshape(K)
    bn_bias = np.asarray(p["bn_bias"], np.float32).reshape(K)

    # conv1 dense, per POOLED row pi: (64K, 1024).  Output column layout:
    #   segment s = dh*2+dw (pixel within the 2x2 pool window), then pj*64 + co.
    # BN scale folded into the weight rows; BN bias + conv bias folded into a
    # boundary-aware per-output-pixel bias b1p of shape (4, 1024).
    w1p = np.zeros((4, kcols, 1024), np.float32)
    b1p = np.zeros((4, 1024), np.float32)
    for h in range(8):
        pi, dh = h // 2, h % 2
        for w in range(8):
            pj, dw = w // 2, w % 2
            cbase = (dh * 2 + dw) * 256 + pj * 64
            b1p[pi, cbase:cbase + 64] = b1
            for kh in range(3):
                hi = h + kh - 1
                if not 0 <= hi < 8:
                    continue
                for kw in range(3):
                    wi = w + kw - 1
                    if not 0 <= wi < 8:
                        continue
                    r0 = (hi * 8 + wi) * K
                    w1p[pi, r0:r0 + K, cbase:cbase + 64] = w1[kh, kw] * bn_scale[:, None]
                    b1p[pi, cbase:cbase + 64] += bn_bias @ w1[kh, kw]

    # conv2 dense over the whole 4x4x64 pooled map: (1024, 2048).  Output columns:
    #   segment s2 = di*2+dj (pixel within the final 2x2 pool window), then
    #   (i2*2+j2)*128 + co, matching the (h, w, c) flatten order of fc1's rows.
    w2 = np.asarray(p["w2"], np.float32)                  # (3, 3, 64, 128)
    b2 = np.asarray(p["b2"], np.float32).reshape(128)
    w2p = np.zeros((1024, 2048), np.float32)
    for oi in range(4):
        i2, di = oi // 2, oi % 2
        for oj in range(4):
            j2, dj = oj // 2, oj % 2
            cbase = (di * 2 + dj) * 512 + (i2 * 2 + j2) * 128
            for kh in range(3):
                pi = oi + kh - 1
                if not 0 <= pi < 4:
                    continue
                for kw in range(3):
                    pj = oj + kw - 1
                    if not 0 <= pj < 4:
                        continue
                    r0 = (pi * 4 + pj) * 64
                    w2p[r0:r0 + 64, cbase:cbase + 128] = w2[kh, kw]
    b2f = np.tile(b2, 4).reshape(1, 512)

    w4_pad = np.zeros((256, 128), np.float32)
    w4_pad[:, :num_classes] = np.asarray(p["w4"], np.float32)
    b4_pad = np.zeros((1, 128), np.float32)
    b4_pad[0, :num_classes] = np.asarray(p["b4"], np.float32).reshape(-1)

    return dict(
        w1p=jnp.asarray(w1p, bf16), b1p=jnp.asarray(b1p, jnp.float32),
        w2p=jnp.asarray(w2p, bf16), b2f=jnp.asarray(b2f, jnp.float32),
        w3_bf=jnp.asarray(p["w3"], bf16), b3=jnp.asarray(p["b3"], jnp.float32),
        w4_pad=jnp.asarray(w4_pad, bf16), b4_pad=jnp.asarray(b4_pad, jnp.float32))


def init_params(key, in_channels, num_classes=NUM_CLASSES):
    K = in_channels
    ks = jax.random.split(key, 10)
    # BatchNorm2d(K): gamma=1, beta=0 (fresh nn.BatchNorm2d); synthetic running stats.
    gamma = jnp.ones((K,), jnp.float32)
    beta = jnp.zeros((K,), jnp.float32)
    running_mean = 0.1 * jax.random.normal(ks[0], (K,), jnp.float32)
    running_var = 1.0 + 0.1 * jax.random.uniform(ks[1], (K,), jnp.float32)
    bn_scale = gamma / jnp.sqrt(running_var + BN_EPS)
    bn_bias = beta - running_mean * bn_scale

    def uinit(k, shape, fan_in):
        bound = 1.0 / (fan_in ** 0.5)
        return jax.random.uniform(k, shape, jnp.float32, -bound, bound)

    w1 = uinit(ks[2], (3, 3, K, 64), 9 * K)        # HWIO
    b1 = uinit(ks[3], (1, 64), 9 * K)
    w2 = uinit(ks[4], (3, 3, 64, 128), 9 * 64)
    b2 = uinit(ks[5], (1, 128), 9 * 64)
    w3 = uinit(ks[6], (512, 256), 512)             # rows in (h, w, c) flatten order
    b3 = uinit(ks[7], (1, 256), 512)
    w4 = uinit(ks[8], (256, num_classes), 256)
    b4 = uinit(ks[9], (1, num_classes), 256)

    params = dict(bn_scale=bn_scale.reshape(1, K), bn_bias=bn_bias.reshape(1, K),
                  w1=w1, b1=b1, w2=w2, b2=b2, w3=w3, b3=b3, w4=w4, b4=b4)
    params.update(_pack_kernel_params(params, K, num_classes))
    return params


def reference_forward(x_nchw, params):
    """Pure-JAX f32 reference (same eval-mode semantics) for validation."""
    x = jnp.transpose(x_nchw, (0, 2, 3, 1)).astype(jnp.float32)      # NHWC
    x = x * params["bn_scale"][0] + params["bn_bias"][0]
    dn = ("NHWC", "HWIO", "NHWC")
    hi = jax.lax.Precision.HIGHEST
    y = jax.lax.conv_general_dilated(x, params["w1"], (1, 1), "SAME",
                                     dimension_numbers=dn, precision=hi) + params["b1"][0]
    y = jnp.maximum(y, 0.0)
    y = jax.lax.reduce_window(y, -jnp.inf, jax.lax.max, (1, 2, 2, 1), (1, 2, 2, 1), "VALID")
    y = jax.lax.conv_general_dilated(y, params["w2"], (1, 1), "SAME",
                                     dimension_numbers=dn, precision=hi) + params["b2"][0]
    y = jnp.maximum(y, 0.0)
    y = jax.lax.reduce_window(y, -jnp.inf, jax.lax.max, (1, 2, 2, 1), (1, 2, 2, 1), "VALID")
    f = y.reshape(y.shape[0], -1)                                    # (h, w, c) flatten
    h = jnp.maximum(jnp.dot(f, params["w3"], precision=hi) + params["b3"][0], 0.0)
    return jnp.dot(h, params["w4"], precision=hi) + params["b4"][0]


if __name__ == "__main__":
    in_channels = 4   # scattering coefficient channels
    batch = 2
    key = jax.random.PRNGKey(0)
    k_x, k_p = jax.random.split(key)
    params = init_params(k_p, in_channels)
    x = jax.random.normal(k_x, (batch, in_channels, 8, 8), jnp.float32)  # NCHW, like PyTorch

    out = segmented_object_classifier_forward(x, params, in_channels)
    out = jax.block_until_ready(out)

    ref = reference_forward(x, params)
    assert out.shape == (batch, NUM_CLASSES)
    err = float(jnp.max(jnp.abs(out - ref)))
    # bf16 matmul inputs (BN folded into bf16 conv1 weights) / f32 accumulation vs. an
    # f32 reference: tolerance chosen accordingly (observed error ~1e-3 at these scales).
    if not jnp.allclose(out, ref, atol=3e-2, rtol=3e-2):
        raise AssertionError(f"kernel/reference mismatch, max abs err {err}")
    print("KERNEL_OK")
</pallas_src>

<mosaic_0001>
module attributes {stable_mosaic.version = 11 : i64} {
  func.func @_soc_cnn_kernel(%arg0: i32, %arg1: memref<16x256xbf16, #tpu.memory_space<vmem>>, %arg2: memref<4x256x1024xbf16, #tpu.memory_space<vmem>>, %arg3: memref<4x1024xf32, #tpu.memory_space<vmem>>, %arg4: memref<1024x2048xbf16, #tpu.memory_space<vmem>>, %arg5: memref<1x512xf32, #tpu.memory_space<vmem>>, %arg6: memref<512x256xbf16, #tpu.memory_space<vmem>>, %arg7: memref<1x256xf32, #tpu.memory_space<vmem>>, %arg8: memref<256x128xbf16, #tpu.memory_space<vmem>>, %arg9: memref<1x128xf32, #tpu.memory_space<vmem>>, %arg10: memref<16x128xf32, #tpu.memory_space<vmem>>) attributes {dimension_semantics = [#tpu.dimension_semantics<parallel>], iteration_bounds = array<i64: 1>, scalar_prefetch = 0 : i64, scratch_operands = 0 : i64, tpu.core_type = #tpu.core_type<tc>, window_params = [{transform_indices = @transform_0, window_bounds = array<i64: 16, 256>}, {pipeline_mode = #tpu.pipeline_mode<synchronous>, transform_indices = @transform_1, window_bounds = array<i64: 4, 256, 1024>}, {pipeline_mode = #tpu.pipeline_mode<synchronous>, transform_indices = @transform_2, window_bounds = array<i64: 4, 1024>}, {pipeline_mode = #tpu.pipeline_mode<synchronous>, transform_indices = @transform_3, window_bounds = array<i64: 1024, 2048>}, {pipeline_mode = #tpu.pipeline_mode<synchronous>, transform_indices = @transform_4, window_bounds = array<i64: 1, 512>}, {pipeline_mode = #tpu.pipeline_mode<synchronous>, transform_indices = @transform_5, window_bounds = array<i64: 512, 256>}, {pipeline_mode = #tpu.pipeline_mode<synchronous>, transform_indices = @transform_6, window_bounds = array<i64: 1, 256>}, {pipeline_mode = #tpu.pipeline_mode<synchronous>, transform_indices = @transform_7, window_bounds = array<i64: 256, 128>}, {pipeline_mode = #tpu.pipeline_mode<synchronous>, transform_indices = @transform_8, window_bounds = array<i64: 1, 128>}, {transform_indices = @transform_9, window_bounds = array<i64: 16, 128>}]} {
    %c0 = arith.constant 0 : index
    %c0_0 = arith.constant 0 : index
    %0 = vector.load %arg1[%c0, %c0_0] : memref<16x256xbf16, #tpu.memory_space<vmem>>, vector<16x256xbf16>
    %c0_1 = arith.constant 0 : index
    %c0_2 = arith.constant 0 : index
    %c0_3 = arith.constant 0 : index
    %1 = vector.load %arg2[%c0_1, %c0_2, %c0_3] : memref<4x256x1024xbf16, #tpu.memory_space<vmem>>, vector<1x256x1024xbf16>
    %2 = vector.shape_cast %1 : vector<1x256x1024xbf16> to vector<256x1024xbf16>
    %cst = arith.constant dense<0.000000e+00> : vector<16x1024xf32>
    %3 = tpu.matmul %0, %2, %cst {dimension_numbers = #tpu.dot_dimension_numbers<[1], [0], [0], [1], [0, 0, 1, 1], [], []>} : vector<16x256xbf16>, vector<256x1024xbf16>, vector<16x1024xf32> -> vector<16x1024xf32>
    %c0_4 = arith.constant 0 : index
    %c0_5 = arith.constant 0 : index
    %4 = vector.load %arg3[%c0_4, %c0_5] : memref<4x1024xf32, #tpu.memory_space<vmem>>, vector<1x1024xf32>
    %5 = vector.broadcast %4 : vector<1x1024xf32> to vector<16x1024xf32>
    %6 = arith.addf %3, %5 : vector<16x1024xf32>
    %7 = vector.extract_strided_slice %6 {offsets = [0, 0], sizes = [16, 256], strides = [1, 1]} : vector<16x1024xf32> to vector<16x256xf32>
    %8 = vector.extract_strided_slice %6 {offsets = [0, 256], sizes = [16, 256], strides = [1, 1]} : vector<16x1024xf32> to vector<16x256xf32>
    %9 = arith.maximumf %7, %8 : vector<16x256xf32>
    %10 = vector.extract_strided_slice %6 {offsets = [0, 512], sizes = [16, 256], strides = [1, 1]} : vector<16x1024xf32> to vector<16x256xf32>
    %11 = vector.extract_strided_slice %6 {offsets = [0, 768], sizes = [16, 256], strides = [1, 1]} : vector<16x1024xf32> to vector<16x256xf32>
    %12 = arith.maximumf %10, %11 : vector<16x256xf32>
    %13 = arith.maximumf %9, %12 : vector<16x256xf32>
    %cst_6 = arith.constant 0.000000e+00 : f32
    %14 = vector.broadcast %cst_6 : f32 to vector<16x256xf32>
    %15 = arith.maximumf %13, %14 : vector<16x256xf32>
    %16 = arith.truncf %15 : vector<16x256xf32> to vector<16x256xbf16>
    %c1 = arith.constant 1 : index
    %c0_7 = arith.constant 0 : index
    %c0_8 = arith.constant 0 : index
    %17 = vector.load %arg2[%c1, %c0_7, %c0_8] : memref<4x256x1024xbf16, #tpu.memory_space<vmem>>, vector<1x256x1024xbf16>
    %18 = vector.shape_cast %17 : vector<1x256x1024xbf16> to vector<256x1024xbf16>
    %cst_9 = arith.constant dense<0.000000e+00> : vector<16x1024xf32>
    %19 = tpu.matmul %0, %18, %cst_9 {dimension_numbers = #tpu.dot_dimension_numbers<[1], [0], [0], [1], [0, 0, 1, 1], [], []>} : vector<16x256xbf16>, vector<256x1024xbf16>, vector<16x1024xf32> -> vector<16x1024xf32>
    %c1_10 = arith.constant 1 : index
    %c0_11 = arith.constant 0 : index
    %20 = vector.load %arg3[%c1_10, %c0_11] : memref<4x1024xf32, #tpu.memory_space<vmem>>, vector<1x1024xf32>
    %21 = vector.broadcast %20 : vector<1x1024xf32> to vector<16x1024xf32>
    %22 = arith.addf %19, %21 : vector<16x1024xf32>
    %23 = vector.extract_strided_slice %22 {offsets = [0, 0], sizes = [16, 256], strides = [1, 1]} : vector<16x1024xf32> to vector<16x256xf32>
    %24 = vector.extract_strided_slice %22 {offsets = [0, 256], sizes = [16, 256], strides = [1, 1]} : vector<16x1024xf32> to vector<16x256xf32>
    %25 = arith.maximumf %23, %24 : vector<16x256xf32>
    %26 = vector.extract_strided_slice %22 {offsets = [0, 512], sizes = [16, 256], strides = [1, 1]} : vector<16x1024xf32> to vector<16x256xf32>
    %27 = vector.extract_strided_slice %22 {offsets = [0, 768], sizes = [16, 256], strides = [1, 1]} : vector<16x1024xf32> to vector<16x256xf32>
    %28 = arith.maximumf %26, %27 : vector<16x256xf32>
    %29 = arith.maximumf %25, %28 : vector<16x256xf32>
    %cst_12 = arith.constant 0.000000e+00 : f32
    %30 = vector.broadcast %cst_12 : f32 to vector<16x256xf32>
    %31 = arith.maximumf %29, %30 : vector<16x256xf32>
    %32 = arith.truncf %31 : vector<16x256xf32> to vector<16x256xbf16>
    %c2 = arith.constant 2 : index
    %c0_13 = arith.constant 0 : index
    %c0_14 = arith.constant 0 : index
    %33 = vector.load %arg2[%c2, %c0_13, %c0_14] : memref<4x256x1024xbf16, #tpu.memory_space<vmem>>, vector<1x256x1024xbf16>
    %34 = vector.shape_cast %33 : vector<1x256x1024xbf16> to vector<256x1024xbf16>
    %cst_15 = arith.constant dense<0.000000e+00> : vector<16x1024xf32>
    %35 = tpu.matmul %0, %34, %cst_15 {dimension_numbers = #tpu.dot_dimension_numbers<[1], [0], [0], [1], [0, 0, 1, 1], [], []>} : vector<16x256xbf16>, vector<256x1024xbf16>, vector<16x1024xf32> -> vector<16x1024xf32>
    %c2_16 = arith.constant 2 : index
    %c0_17 = arith.constant 0 : index
    %36 = vector.load %arg3[%c2_16, %c0_17] : memref<4x1024xf32, #tpu.memory_space<vmem>>, vector<1x1024xf32>
    %37 = vector.broadcast %36 : vector<1x1024xf32> to vector<16x1024xf32>
    %38 = arith.addf %35, %37 : vector<16x1024xf32>
    %39 = vector.extract_strided_slice %38 {offsets = [0, 0], sizes = [16, 256], strides = [1, 1]} : vector<16x1024xf32> to vector<16x256xf32>
    %40 = vector.extract_strided_slice %38 {offsets = [0, 256], sizes = [16, 256], strides = [1, 1]} : vector<16x1024xf32> to vector<16x256xf32>
    %41 = arith.maximumf %39, %40 : vector<16x256xf32>
    %42 = vector.extract_strided_slice %38 {offsets = [0, 512], sizes = [16, 256], strides = [1, 1]} : vector<16x1024xf32> to vector<16x256xf32>
    %43 = vector.extract_strided_slice %38 {offsets = [0, 768], sizes = [16, 256], strides = [1, 1]} : vector<16x1024xf32> to vector<16x256xf32>
    %44 = arith.maximumf %42, %43 : vector<16x256xf32>
    %45 = arith.maximumf %41, %44 : vector<16x256xf32>
    %cst_18 = arith.constant 0.000000e+00 : f32
    %46 = vector.broadcast %cst_18 : f32 to vector<16x256xf32>
    %47 = arith.maximumf %45, %46 : vector<16x256xf32>
    %48 = arith.truncf %47 : vector<16x256xf32> to vector<16x256xbf16>
    %c3 = arith.constant 3 : index
    %c0_19 = arith.constant 0 : index
    %c0_20 = arith.constant 0 : index
    %49 = vector.load %arg2[%c3, %c0_19, %c0_20] : memref<4x256x1024xbf16, #tpu.memory_space<vmem>>, vector<1x256x1024xbf16>
    %50 = vector.shape_cast %49 : vector<1x256x1024xbf16> to vector<256x1024xbf16>
    %cst_21 = arith.constant dense<0.000000e+00> : vector<16x1024xf32>
    %51 = tpu.matmul %0, %50, %cst_21 {dimension_numbers = #tpu.dot_dimension_numbers<[1], [0], [0], [1], [0, 0, 1, 1], [], []>} : vector<16x256xbf16>, vector<256x1024xbf16>, vector<16x1024xf32> -> vector<16x1024xf32>
    %c3_22 = arith.constant 3 : index
    %c0_23 = arith.constant 0 : index
    %52 = vector.load %arg3[%c3_22, %c0_23] : memref<4x1024xf32, #tpu.memory_space<vmem>>, vector<1x1024xf32>
    %53 = vector.broadcast %52 : vector<1x1024xf32> to vector<16x1024xf32>
    %54 = arith.addf %51, %53 : vector<16x1024xf32>
    %55 = vector.extract_strided_slice %54 {offsets = [0, 0], sizes = [16, 256], strides = [1, 1]} : vector<16x1024xf32> to vector<16x256xf32>
    %56 = vector.extract_strided_slice %54 {offsets = [0, 256], sizes = [16, 256], strides = [1, 1]} : vector<16x1024xf32> to vector<16x256xf32>
    %57 = arith.maximumf %55, %56 : vector<16x256xf32>
    %58 = vector.extract_strided_slice %54 {offsets = [0, 512], sizes = [16, 256], strides = [1, 1]} : vector<16x1024xf32> to vector<16x256xf32>
    %59 = vector.extract_strided_slice %54 {offsets = [0, 768], sizes = [16, 256], strides = [1, 1]} : vector<16x1024xf32> to vector<16x256xf32>
    %60 = arith.maximumf %58, %59 : vector<16x256xf32>
    %61 = arith.maximumf %57, %60 : vector<16x256xf32>
    %cst_24 = arith.constant 0.000000e+00 : f32
    %62 = vector.broadcast %cst_24 : f32 to vector<16x256xf32>
    %63 = arith.maximumf %61, %62 : vector<16x256xf32>
    %64 = arith.truncf %63 : vector<16x256xf32> to vector<16x256xbf16>
    %65 = tpu.concatenate %16, %32, %48, %64 in 1 : vector<16x256xbf16>, vector<16x256xbf16>, vector<16x256xbf16>, vector<16x256xbf16> -> vector<16x1024xbf16>
    %c0_25 = arith.constant 0 : index
    %c0_26 = arith.constant 0 : index
    %66 = vector.load %arg4[%c0_25, %c0_26] : memref<1024x2048xbf16, #tpu.memory_space<vmem>>, vector<1024x2048xbf16>
    %cst_27 = arith.constant dense<0.000000e+00> : vector<16x2048xf32>
    %67 = tpu.matmul %65, %66, %cst_27 {dimension_numbers = #tpu.dot_dimension_numbers<[1], [0], [0], [1], [0, 0, 1, 1], [], []>} : vector<16x1024xbf16>, vector<1024x2048xbf16>, vector<16x2048xf32> -> vector<16x2048xf32>
    %68 = vector.extract_strided_slice %67 {offsets = [0, 0], sizes = [16, 512], strides = [1, 1]} : vector<16x2048xf32> to vector<16x512xf32>
    %69 = vector.extract_strided_slice %67 {offsets = [0, 512], sizes = [16, 512], strides = [1, 1]} : vector<16x2048xf32> to vector<16x512xf32>
    %70 = arith.maximumf %68, %69 : vector<16x512xf32>
    %71 = vector.extract_strided_slice %67 {offsets = [0, 1024], sizes = [16, 512], strides = [1, 1]} : vector<16x2048xf32> to vector<16x512xf32>
    %72 = vector.extract_strided_slice %67 {offsets = [0, 1536], sizes = [16, 512], strides = [1, 1]} : vector<16x2048xf32> to vector<16x512xf32>
    %73 = arith.maximumf %71, %72 : vector<16x512xf32>
    %74 = arith.maximumf %70, %73 : vector<16x512xf32>
    %c0_28 = arith.constant 0 : index
    %c0_29 = arith.constant 0 : index
    %75 = vector.load %arg5[%c0_28, %c0_29] : memref<1x512xf32, #tpu.memory_space<vmem>>, vector<1x512xf32>
    %76 = vector.broadcast %75 : vector<1x512xf32> to vector<16x512xf32>
    %77 = arith.addf %74, %76 : vector<16x512xf32>
    %cst_30 = arith.constant 0.000000e+00 : f32
    %78 = vector.broadcast %cst_30 : f32 to vector<16x512xf32>
    %79 = arith.maximumf %77, %78 : vector<16x512xf32>
    %80 = arith.truncf %79 : vector<16x512xf32> to vector<16x512xbf16>
    %c0_31 = arith.constant 0 : index
    %c0_32 = arith.constant 0 : index
    %81 = vector.load %arg6[%c0_31, %c0_32] : memref<512x256xbf16, #tpu.memory_space<vmem>>, vector<512x256xbf16>
    %cst_33 = arith.constant dense<0.000000e+00> : vector<16x256xf32>
    %82 = tpu.matmul %80, %81, %cst_33 {dimension_numbers = #tpu.dot_dimension_numbers<[1], [0], [0], [1], [0, 0, 1, 1], [], []>} : vector<16x512xbf16>, vector<512x256xbf16>, vector<16x256xf32> -> vector<16x256xf32>
    %c0_34 = arith.constant 0 : index
    %c0_35 = arith.constant 0 : index
    %83 = vector.load %arg7[%c0_34, %c0_35] : memref<1x256xf32, #tpu.memory_space<vmem>>, vector<1x256xf32>
    %84 = vector.broadcast %83 : vector<1x256xf32> to vector<16x256xf32>
    %85 = arith.addf %82, %84 : vector<16x256xf32>
    %cst_36 = arith.constant 0.000000e+00 : f32
    %86 = vector.broadcast %cst_36 : f32 to vector<16x256xf32>
    %87 = arith.maximumf %85, %86 : vector<16x256xf32>
    %88 = arith.truncf %87 : vector<16x256xf32> to vector<16x256xbf16>
    %c0_37 = arith.constant 0 : index
    %c0_38 = arith.constant 0 : index
    %89 = vector.load %arg8[%c0_37, %c0_38] : memref<256x128xbf16, #tpu.memory_space<vmem>>, vector<256x128xbf16>
    %cst_39 = arith.constant dense<0.000000e+00> : vector<16x128xf32>
    %90 = tpu.matmul %88, %89, %cst_39 {dimension_numbers = #tpu.dot_dimension_numbers<[1], [0], [0], [1], [0, 0, 1, 1], [], []>} : vector<16x256xbf16>, vector<256x128xbf16>, vector<16x128xf32> -> vector<16x128xf32>
    %c0_40 = arith.constant 0 : index
    %c0_41 = arith.constant 0 : index
    %91 = vector.load %arg9[%c0_40, %c0_41] : memref<1x128xf32, #tpu.memory_space<vmem>>, vector<1x128xf32>
    %92 = vector.broadcast %91 : vector<1x128xf32> to vector<16x128xf32>
    %93 = arith.addf %90, %92 : vector<16x128xf32>
    %c0_42 = arith.constant 0 : index
    %c0_43 = arith.constant 0 : index
    %94 = vector.load %arg10[%c0_42, %c0_43] : memref<16x128xf32, #tpu.memory_space<vmem>>, vector<16x128xf32>
    tpu.vector_store %arg10[%c0_42, %c0_43], %93 {strides = array<i32>} : memref<16x128xf32, #tpu.memory_space<vmem>>, vector<16x128xf32>,
    return
  }
  func.func @transform_0(%arg0: i32) -> (i32, i32) {
    %c0_i32 = arith.constant 0 : i32
    %c0_i32_0 = arith.constant 0 : i32
    return %arg0, %c0_i32 : i32, i32
  }
  func.func @transform_1(%arg0: i32) -> (i32, i32, i32) {
    %c0_i32 = arith.constant 0 : i32
    %c0_i32_0 = arith.constant 0 : i32
    %c0_i32_1 = arith.constant 0 : i32
    %c0_i32_2 = arith.constant 0 : i32
    return %c0_i32, %c0_i32_0, %c0_i32_1 : i32, i32, i32
  }
  func.func @transform_2(%arg0: i32) -> (i32, i32) {
    %c0_i32 = arith.constant 0 : i32
    %c0_i32_0 = arith.constant 0 : i32
    %c0_i32_1 = arith.constant 0 : i32
    return %c0_i32, %c0_i32_0 : i32, i32
  }
  func.func @transform_3(%arg0: i32) -> (i32, i32) {
    %c0_i32 = arith.constant 0 : i32
    %c0_i32_0 = arith.constant 0 : i32
    %c0_i32_1 = arith.constant 0 : i32
    return %c0_i32, %c0_i32_0 : i32, i32
  }
  func.func @transform_4(%arg0: i32) -> (i32, i32) {
    %c0_i32 = arith.constant 0 : i32
    %c0_i32_0 = arith.constant 0 : i32
    %c0_i32_1 = arith.constant 0 : i32
    return %c0_i32, %c0_i32_0 : i32, i32
  }
  func.func @transform_5(%arg0: i32) -> (i32, i32) {
    %c0_i32 = arith.constant 0 : i32
    %c0_i32_0 = arith.constant 0 : i32
    %c0_i32_1 = arith.constant 0 : i32
    return %c0_i32, %c0_i32_0 : i32, i32
  }
  func.func @transform_6(%arg0: i32) -> (i32, i32) {
    %c0_i32 = arith.constant 0 : i32
    %c0_i32_0 = arith.constant 0 : i32
    %c0_i32_1 = arith.constant 0 : i32
    return %c0_i32, %c0_i32_0 : i32, i32
  }
  func.func @transform_7(%arg0: i32) -> (i32, i32) {
    %c0_i32 = arith.constant 0 : i32
    %c0_i32_0 = arith.constant 0 : i32
    %c0_i32_1 = arith.constant 0 : i32
    return %c0_i32, %c0_i32_0 : i32, i32
  }
  func.func @transform_8(%arg0: i32) -> (i32, i32) {
    %c0_i32 = arith.constant 0 : i32
    %c0_i32_0 = arith.constant 0 : i32
    %c0_i32_1 = arith.constant 0 : i32
    return %c0_i32, %c0_i32_0 : i32, i32
  }
  func.func @transform_9(%arg0: i32) -> (i32, i32) {
    %c0_i32 = arith.constant 0 : i32
    %c0_i32_0 = arith.constant 0 : i32
    return %arg0, %c0_i32 : i32, i32
  }
}

</mosaic_0001>

<llo_original>
// kernel: tpu_custom_call.1
$region0: #{tpu_custom_call.1}
  #allocation0 [shape = 'u32[]', space=smem, size = 0x4, offset = 0x4, fixed_abs, tag = 'smem constant byte address 0x4 - core index']
  #allocation1 [shape = 'u32[144,128]{1,0:T(1,128)}', space=vmem, size = 0x12000, scoped, tag = 'internal scratch']
  %s0 = inlined_call_operand.hbm [shape: bf16[16,256], index: 0, kind: input, shape index: {}]
  %s1 = inlined_call_operand.hbm [shape: bf16[4,256,1024], index: 1, kind: input, shape index: {}]
  %s2 = inlined_call_operand.hbm [shape: f32[4,1024], index: 2, kind: input, shape index: {}]
  %s3 = inlined_call_operand.hbm [shape: bf16[1024,2048], index: 3, kind: input, shape index: {}]
  %s4 = inlined_call_operand.hbm [shape: f32[1,512], index: 4, kind: input, shape index: {}]
  %s5 = inlined_call_operand.hbm [shape: bf16[512,256], index: 5, kind: input, shape index: {}]
  %s6 = inlined_call_operand.hbm [shape: f32[1,256], index: 6, kind: input, shape index: {}]
  %s7 = inlined_call_operand.hbm [shape: bf16[256,128], index: 7, kind: input, shape index: {}]
  %s8 = inlined_call_operand.hbm [shape: f32[1,128], index: 8, kind: input, shape index: {}]
  %s9 = inlined_call_operand.hbm [shape: f32[16,128], index: 9, kind: output, shape index: {}]
  %s10 = sld [smem:[#allocation0]]
  $region82: #{tpu_custom_call.1} parent=0
    _
  %s12 = ssub.s32 1, %s10
  %s13 = scalar_select 0, %s12, %s10
  $region1: #{tpu_custom_call.1} parent=0
    #allocation2 [shape = 'u8[8192]{0}', space=vmem, size = 0x2000, scoped, tag = 'input window, operand 0, single buffered']
    #allocation3 [shape = 's32[1]{0}', space=sflag, size = 0x4, scoped, tag = 'scoped memory for tpu_custom_call.1']
    #allocation4 [shape = 's32[1]{0}', space=sflag, size = 0x4, scoped, tag = 'scoped memory for tpu_custom_call.1']
    #allocation5 [shape = 'u8[2097152]{0}', space=vmem, size = 0x200000, scoped, tag = 'input window, operand 1, single buffered']
    #allocation6 [shape = 's32[1]{0}', space=sflag, size = 0x4, scoped, tag = 'scoped memory for tpu_custom_call.1']
    #allocation7 [shape = 'u8[16384]{0}', space=vmem, size = 0x4000, scoped, tag = 'input window, operand 2, single buffered']
    #allocation8 [shape = 'u8[4194304]{0}', space=vmem, size = 0x400000, scoped, tag = 'input window, operand 3, single buffered']
    #allocation9 [shape = 's32[1]{0}', space=sflag, size = 0x4, scoped, tag = 'scoped memory for tpu_custom_call.1']
    #allocation10 [shape = 'u8[2048]{0}', space=vmem, size = 0x800, scoped, tag = 'input window, operand 4, single buffered']
    #allocation11 [shape = 'u8[262144]{0}', space=vmem, size = 0x40000, scoped, tag = 'input window, operand 5, single buffered']
    #allocation12 [shape = 's32[1]{0}', space=sflag, size = 0x4, scoped, tag = 'scoped memory for tpu_custom_call.1']
    #allocation13 [shape = 'u8[1024]{0}', space=vmem, size = 0x400, scoped, tag = 'input window, operand 6, single buffered']
    #allocation14 [shape = 'u8[65536]{0}', space=vmem, size = 0x10000, scoped, tag = 'input window, operand 7, single buffered']
    #allocation15 [shape = 's32[1]{0}', space=sflag, size = 0x4, scoped, tag = 'scoped memory for tpu_custom_call.1']
    #allocation16 [shape = 'u8[512]{0}', space=vmem, size = 0x400, scoped, tag = 'input window, operand 8, single buffered']
    #allocation17 [shape = 'u8[8192]{0}', space=vmem, size = 0x2000, scoped, tag = 'output window, operand 0, single buffered']
    %14 = vsyncpa [#allocation3], 0
    %15 = vsyncpa [#allocation6], 0
    %16 = vsyncpa [#allocation9], 0
    %17 = vsyncpa [#allocation12], 0
    %18 = vsyncpa [#allocation15], 0
    %19 = vsyncpa [#allocation4], 0
    // Predicated region
    $region2: #{tpu_custom_call.1} parent=1 // pred_check
      _
    $region3: #{tpu_custom_call.1} parent=1 // pred_check_branch
      %21 = sbr.rel (0) target = $region5
    $region4: #{tpu_custom_call.1} parent=1 // pred_region
      %s23 = ssub.s32 256, 256
      %24 = vsyncadd [#allocation3], %s23
      %s25 = sshll.u32 [#allocation2], 4
      %s26 = int_to_ptr.vmem [resolvable:$true] %s25
      %31 = dma.hbm_to_vmem [thread:$0]  %s0, 256, %s26, [#allocation3], 128, 128, 8
    $region5: #{tpu_custom_call.1} parent=1 // pred_fallthru
      _
    // Predicated region
    $region6: #{tpu_custom_call.1} parent=1 // pred_check
      _
    $region7: #{tpu_custom_call.1} parent=1 // pred_check_branch
      %33 = sbr.rel (0) target = $region9
    $region8: #{tpu_custom_call.1} parent=1 // pred_region
      %s35 = ssub.s32 65536, 65536
      %36 = vsyncadd [#allocation6], %s35
      %s37 = sshll.u32 [#allocation5], 4
      %s38 = int_to_ptr.vmem [resolvable:$true] %s37
      %43 = dma.hbm_to_vmem [thread:$0]  %s1, 65536, %s38, [#allocation6], 512, 512, 32
    $region9: #{tpu_custom_call.1} parent=1 // pred_fallthru
      _
    // Predicated region
    $region10: #{tpu_custom_call.1} parent=1 // pred_check
      _
    $region11: #{tpu_custom_call.1} parent=1 // pred_check_branch
      %45 = sbr.rel (0) target = $region13
    $region12: #{tpu_custom_call.1} parent=1 // pred_region
      %s47 = ssub.s32 512, 512
      %48 = vsyncadd [#allocation6], %s47
      %s50 = sshll.u32 [#allocation7], 4
      %s51 = int_to_ptr.vmem [resolvable:$true] %s50
      %53 = dma.hbm_to_vmem [thread:$0]  %s2, 512, %s51, [#allocation6]
    $region13: #{tpu_custom_call.1} parent=1 // pred_fallthru
      _
    // Predicated region
    $region14: #{tpu_custom_call.1} parent=1 // pred_check
      _
    $region15: #{tpu_custom_call.1} parent=1 // pred_check_branch
      %55 = sbr.rel (0) target = $region17
    $region16: #{tpu_custom_call.1} parent=1 // pred_region
      %s57 = ssub.s32 131072, 131072
      %58 = vsyncadd [#allocation9], %s57
      %s59 = sshll.u32 [#allocation8], 4
      %s60 = int_to_ptr.vmem [resolvable:$true] %s59
      %65 = dma.hbm_to_vmem [thread:$0]  %s3, 131072, %s60, [#allocation9], 1024, 1024, 64
    $region17: #{tpu_custom_call.1} parent=1 // pred_fallthru
      _
    // Predicated region
    $region18: #{tpu_custom_call.1} parent=1 // pred_check
      _
    $region19: #{tpu_custom_call.1} parent=1 // pred_check_branch
      %67 = sbr.rel (0) target = $region21
    $region20: #{tpu_custom_call.1} parent=1 // pred_region
      %s69 = ssub.s32 64, 64
      %70 = vsyncadd [#allocation9], %s69
      %s72 = sshll.u32 [#allocation10], 4
      %s73 = int_to_ptr.vmem [resolvable:$true] %s72
      %75 = dma.hbm_to_vmem [thread:$0]  %s4, 64, %s73, [#allocation9]
    $region21: #{tpu_custom_call.1} parent=1 // pred_fallthru
      _
    // Predicated region
    $region22: #{tpu_custom_call.1} parent=1 // pred_check
      _
    $region23: #{tpu_custom_call.1} parent=1 // pred_check_branch
      %77 = sbr.rel (0) target = $region25
    $region24: #{tpu_custom_call.1} parent=1 // pred_region
      %s79 = ssub.s32 8192, 8192
      %80 = vsyncadd [#allocation12], %s79
      %s81 = sshll.u32 [#allocation11], 4
      %s82 = int_to_ptr.vmem [resolvable:$true] %s81
      %87 = dma.hbm_to_vmem [thread:$0]  %s5, 8192, %s82, [#allocation12], 128, 128, 8
    $region25: #{tpu_custom_call.1} parent=1 // pred_fallthru
      _
    // Predicated region
    $region26: #{tpu_custom_call.1} parent=1 // pred_check
      _
    $region27: #{tpu_custom_call.1} parent=1 // pred_check_branch
      %89 = sbr.rel (0) target = $region29
    $region28: #{tpu_custom_call.1} parent=1 // pred_region
      %s91 = ssub.s32 32, 32
      %92 = vsyncadd [#allocation12], %s91
      %s94 = sshll.u32 [#allocation13], 4
      %s95 = int_to_ptr.vmem [resolvable:$true] %s94
      %97 = dma.hbm_to_vmem [thread:$0]  %s6, 32, %s95, [#allocation12]
    $region29: #{tpu_custom_call.1} parent=1 // pred_fallthru
      _
    // Predicated region
    $region30: #{tpu_custom_call.1} parent=1 // pred_check
      _
    $region31: #{tpu_custom_call.1} parent=1 // pred_check_branch
      %99 = sbr.rel (0) target = $region33
    $region32: #{tpu_custom_call.1} parent=1 // pred_region
      %s101 = ssub.s32 2048, 2048
      %102 = vsyncadd [#allocation15], %s101
      %s103 = sshll.u32 [#allocation14], 4
      %s104 = int_to_ptr.vmem [resolvable:$true] %s103
      %109 = dma.hbm_to_vmem [thread:$0]  %s7, 2048, %s104, [#allocation15], 64, 64, 4
    $region33: #{tpu_custom_call.1} parent=1 // pred_fallthru
      _
    // Predicated region
    $region34: #{tpu_custom_call.1} parent=1 // pred_check
      _
    $region35: #{tpu_custom_call.1} parent=1 // pred_check_branch
      %111 = sbr.rel (0) target = $region37
    $region36: #{tpu_custom_call.1} parent=1 // pred_region
      %s113 = ssub.s32 16, 16
      %114 = vsyncadd [#allocation15], %s113
      %s116 = sshll.u32 [#allocation16], 4
      %s117 = int_to_ptr.vmem [resolvable:$true] %s116
      %119 = dma.hbm_to_vmem [thread:$0]  %s8, 16, %s117, [#allocation15]
    $region37: #{tpu_custom_call.1} parent=1 // pred_fallthru
      _
    // Predicated region
    $region38: #{tpu_custom_call.1} parent=1 // pred_check
      _
    $region39: #{tpu_custom_call.1} parent=1 // pred_check_branch
      %121 = sbr.rel (0) target = $region41
    $region40: #{tpu_custom_call.1} parent=1 // pred_region
      %122 = dma.done [#allocation3], 256
    $region41: #{tpu_custom_call.1} parent=1 // pred_fallthru
      _
    // Predicated region
    $region42: #{tpu_custom_call.1} parent=1 // pred_check
      _
    $region43: #{tpu_custom_call.1} parent=1 // pred_check_branch
      %124 = sbr.rel (0) target = $region45
    $region44: #{tpu_custom_call.1} parent=1 // pred_region
      %125 = dma.done [#allocation6], 65536
    $region45: #{tpu_custom_call.1} parent=1 // pred_fallthru
      _
    // Predicated region
    $region46: #{tpu_custom_call.1} parent=1 // pred_check
      _
    $region47: #{tpu_custom_call.1} parent=1 // pred_check_branch
      %127 = sbr.rel (0) target = $region49
    $region48: #{tpu_custom_call.1} parent=1 // pred_region
      %128 = dma.done [#allocation6], 512
    $region49: #{tpu_custom_call.1} parent=1 // pred_fallthru
      _
    // Predicated region
    $region50: #{tpu_custom_call.1} parent=1 // pred_check
      _
    $region51: #{tpu_custom_call.1} parent=1 // pred_check_branch
      %130 = sbr.rel (0) target = $region53
    $region52: #{tpu_custom_call.1} parent=1 // pred_region
      %131 = dma.done [#allocation9], 131072
    $region53: #{tpu_custom_call.1} parent=1 // pred_fallthru
      _
    // Predicated region
    $region54: #{tpu_custom_call.1} parent=1 // pred_check
      _
    $region55: #{tpu_custom_call.1} parent=1 // pred_check_branch
      %133 = sbr.rel (0) target = $region57
    $region56: #{tpu_custom_call.1} parent=1 // pred_region
      %134 = dma.done [#allocation9], 64
    $region57: #{tpu_custom_call.1} parent=1 // pred_fallthru
      _
    // Predicated region
    $region58: #{tpu_custom_call.1} parent=1 // pred_check
      _
    $region59: #{tpu_custom_call.1} parent=1 // pred_check_branch
      %136 = sbr.rel (0) target = $region61
    $region60: #{tpu_custom_call.1} parent=1 // pred_region
      %137 = dma.done [#allocation12], 8192
    $region61: #{tpu_custom_call.1} parent=1 // pred_fallthru
      _
    // Predicated region
    $region62: #{tpu_custom_call.1} parent=1 // pred_check
      _
    $region63: #{tpu_custom_call.1} parent=1 // pred_check_branch
      %139 = sbr.rel (0) target = $region65
    $region64: #{tpu_custom_call.1} parent=1 // pred_region
      %140 = dma.done [#allocation12], 32
    $region65: #{tpu_custom_call.1} parent=1 // pred_fallthru
      _
    // Predicated region
    $region66: #{tpu_custom_call.1} parent=1 // pred_check
      _
    $region67: #{tpu_custom_call.1} parent=1 // pred_check_branch
      %142 = sbr.rel (0) target = $region69
    $region68: #{tpu_custom_call.1} parent=1 // pred_region
      %143 = dma.done [#allocation15], 2048
    $region69: #{tpu_custom_call.1} parent=1 // pred_fallthru
      _
    // Predicated region
    $region70: #{tpu_custom_call.1} parent=1 // pred_check
      _
    $region71: #{tpu_custom_call.1} parent=1 // pred_check_branch
      %145 = sbr.rel (0) target = $region73
    $region72: #{tpu_custom_call.1} parent=1 // pred_region
      %146 = dma.done [#allocation15], 16
    $region73: #{tpu_custom_call.1} parent=1 // pred_fallthru
      _
    %v148 = vld [vmem:[#allocation2] sm:$0xff]
    %v149 = vld [vmem:[#allocation2 + $0x8] sm:$0xff]
    %v150 = vld [vmem:[#allocation5] sm:$0xff]
    %v151 = vld [vmem:[#allocation5 + $0x8] sm:$0xff]
    %v152 = vld [vmem:[#allocation5 + $0x10] sm:$0xff]
    %v153 = vld [vmem:[#allocation5 + $0x18] sm:$0xff]
    %v154 = vld [vmem:[#allocation5 + $0x20] sm:$0xff]
    %v155 = vld [vmem:[#allocation5 + $0x28] sm:$0xff]
    %v156 = vld [vmem:[#allocation5 + $0x30] sm:$0xff]
    %v157 = vld [vmem:[#allocation5 + $0x38] sm:$0xff]
    %v158 = vld [vmem:[#allocation5 + $0x40] sm:$0xff]
    %v159 = vld [vmem:[#allocation5 + $0x48] sm:$0xff]
    %v160 = vld [vmem:[#allocation5 + $0x50] sm:$0xff]
    %v161 = vld [vmem:[#allocation5 + $0x58] sm:$0xff]
    %v162 = vld [vmem:[#allocation5 + $0x60] sm:$0xff]
    %v163 = vld [vmem:[#allocation5 + $0x68] sm:$0xff]
    %v164 = vld [vmem:[#allocation5 + $0x70] sm:$0xff]
    %v165 = vld [vmem:[#allocation5 + $0x78] sm:$0xff]
    %v166 = vld [vmem:[#allocation5 + $0x80] sm:$0xff]
    %v167 = vld [vmem:[#allocation5 + $0x88] sm:$0xff]
    %v168 = vld [vmem:[#allocation5 + $0x90] sm:$0xff]
    %v169 = vld [vmem:[#allocation5 + $0x98] sm:$0xff]
    %v170 = vld [vmem:[#allocation5 + $0xa0] sm:$0xff]
    %v171 = vld [vmem:[#allocation5 + $0xa8] sm:$0xff]
    %v172 = vld [vmem:[#allocation5 + $0xb0] sm:$0xff]
    %v173 = vld [vmem:[#allocation5 + $0xb8] sm:$0xff]
    %v174 = vld [vmem:[#allocation5 + $0xc0] sm:$0xff]
    %v175 = vld [vmem:[#allocation5 + $0xc8] sm:$0xff]
    %v176 = vld [vmem:[#allocation5 + $0xd0] sm:$0xff]
    %v177 = vld [vmem:[#allocation5 + $0xd8] sm:$0xff]
    %v178 = vld [vmem:[#allocation5 + $0xe0] sm:$0xff]
    %v179 = vld [vmem:[#allocation5 + $0xe8] sm:$0xff]
    %v180 = vld [vmem:[#allocation5 + $0xf0] sm:$0xff]
    %v181 = vld [vmem:[#allocation5 + $0xf8] sm:$0xff]
    %v182 = vld [vmem:[#allocation5 + $0x100] sm:$0xff]
    %v183 = vld [vmem:[#allocation5 + $0x108] sm:$0xff]
    %v184 = vld [vmem:[#allocation5 + $0x110] sm:$0xff]
    %v185 = vld [vmem:[#allocation5 + $0x118] sm:$0xff]
    %v186 = vld [vmem:[#allocation5 + $0x120] sm:$0xff]
    %v187 = vld [vmem:[#allocation5 + $0x128] sm:$0xff]
    %v188 = vld [vmem:[#allocation5 + $0x130] sm:$0xff]
    %v189 = vld [vmem:[#allocation5 + $0x138] sm:$0xff]
    %v190 = vld [vmem:[#allocation5 + $0x140] sm:$0xff]
    %v191 = vld [vmem:[#allocation5 + $0x148] sm:$0xff]
    %v192 = vld [vmem:[#allocation5 + $0x150] sm:$0xff]
    %v193 = vld [vmem:[#allocation5 + $0x158] sm:$0xff]
    %v194 = vld [vmem:[#allocation5 + $0x160] sm:$0xff]
    %v195 = vld [vmem:[#allocation5 + $0x168] sm:$0xff]
    %v196 = vld [vmem:[#allocation5 + $0x170] sm:$0xff]
    %v197 = vld [vmem:[#allocation5 + $0x178] sm:$0xff]
    %v198 = vld [vmem:[#allocation5 + $0x180] sm:$0xff]
    %v199 = vld [vmem:[#allocation5 + $0x188] sm:$0xff]
    %v200 = vld [vmem:[#allocation5 + $0x190] sm:$0xff]
    %v201 = vld [vmem:[#allocation5 + $0x198] sm:$0xff]
    %v202 = vld [vmem:[#allocation5 + $0x1a0] sm:$0xff]
    %v203 = vld [vmem:[#allocation5 + $0x1a8] sm:$0xff]
    %v204 = vld [vmem:[#allocation5 + $0x1b0] sm:$0xff]
    %v205 = vld [vmem:[#allocation5 + $0x1b8] sm:$0xff]
    %v206 = vld [vmem:[#allocation5 + $0x1c0] sm:$0xff]
    %v207 = vld [vmem:[#allocation5 + $0x1c8] sm:$0xff]
    %v208 = vld [vmem:[#allocation5 + $0x1d0] sm:$0xff]
    %v209 = vld [vmem:[#allocation5 + $0x1d8] sm:$0xff]
    %v210 = vld [vmem:[#allocation5 + $0x1e0] sm:$0xff]
    %v211 = vld [vmem:[#allocation5 + $0x1e8] sm:$0xff]
    %v212 = vld [vmem:[#allocation5 + $0x1f0] sm:$0xff]
    %v213 = vld [vmem:[#allocation5 + $0x1f8] sm:$0xff]
    %v214 = vld [vmem:[#allocation5 + $0x200] sm:$0xff]
    %v215 = vld [vmem:[#allocation5 + $0x208] sm:$0xff]
    %v216 = vld [vmem:[#allocation5 + $0x210] sm:$0xff]
    %v217 = vld [vmem:[#allocation5 + $0x218] sm:$0xff]
    %v218 = vld [vmem:[#allocation5 + $0x220] sm:$0xff]
    %v219 = vld [vmem:[#allocation5 + $0x228] sm:$0xff]
    %v220 = vld [vmem:[#allocation5 + $0x230] sm:$0xff]
    %v221 = vld [vmem:[#allocation5 + $0x238] sm:$0xff]
    %v222 = vld [vmem:[#allocation5 + $0x240] sm:$0xff]
    %v223 = vld [vmem:[#allocation5 + $0x248] sm:$0xff]
    %v224 = vld [vmem:[#allocation5 + $0x250] sm:$0xff]
    %v225 = vld [vmem:[#allocation5 + $0x258] sm:$0xff]
    %v226 = vld [vmem:[#allocation5 + $0x260] sm:$0xff]
    %v227 = vld [vmem:[#allocation5 + $0x268] sm:$0xff]
    %v228 = vld [vmem:[#allocation5 + $0x270] sm:$0xff]
    %v229 = vld [vmem:[#allocation5 + $0x278] sm:$0xff]
    %v230 = vld [vmem:[#allocation5 + $0x280] sm:$0xff]
    %v231 = vld [vmem:[#allocation5 + $0x288] sm:$0xff]
    %v232 = vld [vmem:[#allocation5 + $0x290] sm:$0xff]
    %v233 = vld [vmem:[#allocation5 + $0x298] sm:$0xff]
    %v234 = vld [vmem:[#allocation5 + $0x2a0] sm:$0xff]
    %v235 = vld [vmem:[#allocation5 + $0x2a8] sm:$0xff]
    %v236 = vld [vmem:[#allocation5 + $0x2b0] sm:$0xff]
    %v237 = vld [vmem:[#allocation5 + $0x2b8] sm:$0xff]
    %v238 = vld [vmem:[#allocation5 + $0x2c0] sm:$0xff]
    %v239 = vld [vmem:[#allocation5 + $0x2c8] sm:$0xff]
    %v240 = vld [vmem:[#allocation5 + $0x2d0] sm:$0xff]
    %v241 = vld [vmem:[#allocation5 + $0x2d8] sm:$0xff]
    %v242 = vld [vmem:[#allocation5 + $0x2e0] sm:$0xff]
    %v243 = vld [vmem:[#allocation5 + $0x2e8] sm:$0xff]
    %v244 = vld [vmem:[#allocation5 + $0x2f0] sm:$0xff]
    %v245 = vld [vmem:[#allocation5 + $0x2f8] sm:$0xff]
    %v246 = vld [vmem:[#allocation5 + $0x300] sm:$0xff]
    %v247 = vld [vmem:[#allocation5 + $0x308] sm:$0xff]
    %v248 = vld [vmem:[#allocation5 + $0x310] sm:$0xff]
    %v249 = vld [vmem:[#allocation5 + $0x318] sm:$0xff]
    %v250 = vld [vmem:[#allocation5 + $0x320] sm:$0xff]
    %v251 = vld [vmem:[#allocation5 + $0x328] sm:$0xff]
    %v252 = vld [vmem:[#allocation5 + $0x330] sm:$0xff]
    %v253 = vld [vmem:[#allocation5 + $0x338] sm:$0xff]
    %v254 = vld [vmem:[#allocation5 + $0x340] sm:$0xff]
    %v255 = vld [vmem:[#allocation5 + $0x348] sm:$0xff]
    %v256 = vld [vmem:[#allocation5 + $0x350] sm:$0xff]
    %v257 = vld [vmem:[#allocation5 + $0x358] sm:$0xff]
    %v258 = vld [vmem:[#allocation5 + $0x360] sm:$0xff]
    %v259 = vld [vmem:[#allocation5 + $0x368] sm:$0xff]
    %v260 = vld [vmem:[#allocation5 + $0x370] sm:$0xff]
    %v261 = vld [vmem:[#allocation5 + $0x378] sm:$0xff]
    %v262 = vld [vmem:[#allocation5 + $0x380] sm:$0xff]
    %v263 = vld [vmem:[#allocation5 + $0x388] sm:$0xff]
    %v264 = vld [vmem:[#allocation5 + $0x390] sm:$0xff]
    %v265 = vld [vmem:[#allocation5 + $0x398] sm:$0xff]
    %v266 = vld [vmem:[#allocation5 + $0x3a0] sm:$0xff]
    %v267 = vld [vmem:[#allocation5 + $0x3a8] sm:$0xff]
    %v268 = vld [vmem:[#allocation5 + $0x3b0] sm:$0xff]
    %v269 = vld [vmem:[#allocation5 + $0x3b8] sm:$0xff]
    %v270 = vld [vmem:[#allocation5 + $0x3c0] sm:$0xff]
    %v271 = vld [vmem:[#allocation5 + $0x3c8] sm:$0xff]
    %v272 = vld [vmem:[#allocation5 + $0x3d0] sm:$0xff]
    %v273 = vld [vmem:[#allocation5 + $0x3d8] sm:$0xff]
    %v274 = vld [vmem:[#allocation5 + $0x3e0] sm:$0xff]
    %v275 = vld [vmem:[#allocation5 + $0x3e8] sm:$0xff]
    %v276 = vld [vmem:[#allocation5 + $0x3f0] sm:$0xff]
    %v277 = vld [vmem:[#allocation5 + $0x3f8] sm:$0xff]
    %v278 = vld [vmem:[#allocation7] ss:$4 sm:$0xff]
    %v280 = vlaneseq
    %v281 = vshrl.u32 %v280, 7
    %v282 = vsub.s32 0, %v281
    %v283 = vrot.slane %v278, %v282
    %v284 = vlaneseq
    %v285 = vshrl.u32 %v284, 7
    %v286 = vsub.s32 1, %v285
    %v287 = vrot.slane %v278, %v286
    %v288 = vlaneseq
    %v289 = vshrl.u32 %v288, 7
    %v290 = vsub.s32 2, %v289
    %v291 = vrot.slane %v278, %v290
    %v292 = vlaneseq
    %v293 = vshrl.u32 %v292, 7
    %v294 = vsub.s32 3, %v293
    %v295 = vrot.slane %v278, %v294
    %v296 = vlaneseq
    %v297 = vshrl.u32 %v296, 7
    %v298 = vsub.s32 4, %v297
    %v299 = vrot.slane %v278, %v298
    %v300 = vlaneseq
    %v301 = vshrl.u32 %v300, 7
    %v302 = vsub.s32 5, %v301
    %v303 = vrot.slane %v278, %v302
    %v304 = vlaneseq
    %v305 = vshrl.u32 %v304, 7
    %v306 = vsub.s32 6, %v305
    %v307 = vrot.slane %v278, %v306
    %v308 = vlaneseq
    %v309 = vshrl.u32 %v308, 7
    %v310 = vsub.s32 7, %v309
    %v311 = vrot.slane %v278, %v310
    %v322 = vunpack.c.l.b16 %v148
    %v323 = vunpack.c.h.b16 %v148
    %v324 = vunpack.c.l.b16 %v149
    %v325 = vunpack.c.h.b16 %v149
    %v326 = vpack.c.b16 %v324, %v322
    %v327 = vpack.c.b16 %v325, %v323
    %v458 = vunpack.c.l.b16 %v150
    %v459 = vunpack.c.h.b16 %v150
    %v460 = vunpack.c.l.b16 %v151
    %v461 = vunpack.c.h.b16 %v151
    %v462 = vunpack.c.l.b16 %v152
    %v463 = vunpack.c.h.b16 %v152
    %v464 = vunpack.c.l.b16 %v153
    %v465 = vunpack.c.h.b16 %v153
    %v466 = vunpack.c.l.b16 %v154
    %v467 = vunpack.c.h.b16 %v154
    %v468 = vunpack.c.l.b16 %v155
    %v469 = vunpack.c.h.b16 %v155
    %v470 = vunpack.c.l.b16 %v156
    %v471 = vunpack.c.h.b16 %v156
    %v472 = vunpack.c.l.b16 %v157
    %v473 = vunpack.c.h.b16 %v157
    %v474 = vunpack.c.l.b16 %v158
    %v475 = vunpack.c.h.b16 %v158
    %v476 = vunpack.c.l.b16 %v159
    %v477 = vunpack.c.h.b16 %v159
    %v478 = vunpack.c.l.b16 %v160
    %v479 = vunpack.c.h.b16 %v160
    %v480 = vunpack.c.l.b16 %v161
    %v481 = vunpack.c.h.b16 %v161
    %v482 = vunpack.c.l.b16 %v162
    %v483 = vunpack.c.h.b16 %v162
    %v484 = vunpack.c.l.b16 %v163
    %v485 = vunpack.c.h.b16 %v163
    %v486 = vunpack.c.l.b16 %v164
    %v487 = vunpack.c.h.b16 %v164
    %v488 = vunpack.c.l.b16 %v165
    %v489 = vunpack.c.h.b16 %v165
    %v490 = vunpack.c.l.b16 %v166
    %v491 = vunpack.c.h.b16 %v166
    %v492 = vunpack.c.l.b16 %v167
    %v493 = vunpack.c.h.b16 %v167
    %v494 = vunpack.c.l.b16 %v168
    %v495 = vunpack.c.h.b16 %v168
    %v496 = vunpack.c.l.b16 %v169
    %v497 = vunpack.c.h.b16 %v169
    %v498 = vunpack.c.l.b16 %v170
    %v499 = vunpack.c.h.b16 %v170
    %v500 = vunpack.c.l.b16 %v171
    %v501 = vunpack.c.h.b16 %v171
    %v502 = vunpack.c.l.b16 %v172
    %v503 = vunpack.c.h.b16 %v172
    %v504 = vunpack.c.l.b16 %v173
    %v505 = vunpack.c.h.b16 %v173
    %v506 = vunpack.c.l.b16 %v174
    %v507 = vunpack.c.h.b16 %v174
    %v508 = vunpack.c.l.b16 %v175
    %v509 = vunpack.c.h.b16 %v175
    %v510 = vunpack.c.l.b16 %v176
    %v511 = vunpack.c.h.b16 %v176
    %v512 = vunpack.c.l.b16 %v177
    %v513 = vunpack.c.h.b16 %v177
    %v514 = vunpack.c.l.b16 %v178
    %v515 = vunpack.c.h.b16 %v178
    %v516 = vunpack.c.l.b16 %v179
    %v517 = vunpack.c.h.b16 %v179
    %v518 = vunpack.c.l.b16 %v180
    %v519 = vunpack.c.h.b16 %v180
    %v520 = vunpack.c.l.b16 %v181
    %v521 = vunpack.c.h.b16 %v181
    %v522 = vunpack.c.l.b16 %v182
    %v523 = vunpack.c.h.b16 %v182
    %v524 = vunpack.c.l.b16 %v183
    %v525 = vunpack.c.h.b16 %v183
    %v526 = vunpack.c.l.b16 %v184
    %v527 = vunpack.c.h.b16 %v184
    %v528 = vunpack.c.l.b16 %v185
    %v529 = vunpack.c.h.b16 %v185
    %v530 = vunpack.c.l.b16 %v186
    %v531 = vunpack.c.h.b16 %v186
    %v532 = vunpack.c.l.b16 %v187
    %v533 = vunpack.c.h.b16 %v187
    %v534 = vunpack.c.l.b16 %v188
    %v535 = vunpack.c.h.b16 %v188
    %v536 = vunpack.c.l.b16 %v189
    %v537 = vunpack.c.h.b16 %v189
    %v538 = vunpack.c.l.b16 %v190
    %v539 = vunpack.c.h.b16 %v190
    %v540 = vunpack.c.l.b16 %v191
    %v541 = vunpack.c.h.b16 %v191
    %v542 = vunpack.c.l.b16 %v192
    %v543 = vunpack.c.h.b16 %v192
    %v544 = vunpack.c.l.b16 %v193
    %v545 = vunpack.c.h.b16 %v193
    %v546 = vunpack.c.l.b16 %v194
    %v547 = vunpack.c.h.b16 %v194
    %v548 = vunpack.c.l.b16 %v195
    %v549 = vunpack.c.h.b16 %v195
    %v550 = vunpack.c.l.b16 %v196
    %v551 = vunpack.c.h.b16 %v196
    %v552 = vunpack.c.l.b16 %v197
    %v553 = vunpack.c.h.b16 %v197
    %v554 = vunpack.c.l.b16 %v198
    %v555 = vunpack.c.h.b16 %v198
    %v556 = vunpack.c.l.b16 %v199
    %v557 = vunpack.c.h.b16 %v199
    %v558 = vunpack.c.l.b16 %v200
    %v559 = vunpack.c.h.b16 %v200
    %v560 = vunpack.c.l.b16 %v201
    %v561 = vunpack.c.h.b16 %v201
    %v562 = vunpack.c.l.b16 %v202
    %v563 = vunpack.c.h.b16 %v202
    %v564 = vunpack.c.l.b16 %v203
    %v565 = vunpack.c.h.b16 %v203
    %v566 = vunpack.c.l.b16 %v204
    %v567 = vunpack.c.h.b16 %v204
    %v568 = vunpack.c.l.b16 %v205
    %v569 = vunpack.c.h.b16 %v205
    %v570 = vunpack.c.l.b16 %v206
    %v571 = vunpack.c.h.b16 %v206
    %v572 = vunpack.c.l.b16 %v207
    %v573 = vunpack.c.h.b16 %v207
    %v574 = vunpack.c.l.b16 %v208
    %v575 = vunpack.c.h.b16 %v208
    %v576 = vunpack.c.l.b16 %v209
    %v577 = vunpack.c.h.b16 %v209
    %v578 = vunpack.c.l.b16 %v210
    %v579 = vunpack.c.h.b16 %v210
    %v580 = vunpack.c.l.b16 %v211
    %v581 = vunpack.c.h.b16 %v211
    %v582 = vunpack.c.l.b16 %v212
    %v583 = vunpack.c.h.b16 %v212
    %v584 = vunpack.c.l.b16 %v213
    %v585 = vunpack.c.h.b16 %v213
    %v586 = vunpack.c.l.b16 %v214
    %v587 = vunpack.c.h.b16 %v214
    %v588 = vunpack.c.l.b16 %v215
    %v589 = vunpack.c.h.b16 %v215
    %v590 = vunpack.c.l.b16 %v216
    %v591 = vunpack.c.h.b16 %v216
    %v592 = vunpack.c.l.b16 %v217
    %v593 = vunpack.c.h.b16 %v217
    %v594 = vunpack.c.l.b16 %v218
    %v595 = vunpack.c.h.b16 %v218
    %v596 = vunpack.c.l.b16 %v219
    %v597 = vunpack.c.h.b16 %v219
    %v598 = vunpack.c.l.b16 %v220
    %v599 = vunpack.c.h.b16 %v220
    %v600 = vunpack.c.l.b16 %v221
    %v601 = vunpack.c.h.b16 %v221
    %v602 = vunpack.c.l.b16 %v222
    %v603 = vunpack.c.h.b16 %v222
    %v604 = vunpack.c.l.b16 %v223
    %v605 = vunpack.c.h.b16 %v223
    %v606 = vunpack.c.l.b16 %v224
    %v607 = vunpack.c.h.b16 %v224
    %v608 = vunpack.c.l.b16 %v225
    %v609 = vunpack.c.h.b16 %v225
    %v610 = vunpack.c.l.b16 %v226
    %v611 = vunpack.c.h.b16 %v226
    %v612 = vunpack.c.l.b16 %v227
    %v613 = vunpack.c.h.b16 %v227
    %v614 = vunpack.c.l.b16 %v228
    %v615 = vunpack.c.h.b16 %v228
    %v616 = vunpack.c.l.b16 %v229
    %v617 = vunpack.c.h.b16 %v229
    %v618 = vunpack.c.l.b16 %v230
    %v619 = vunpack.c.h.b16 %v230
    %v620 = vunpack.c.l.b16 %v231
    %v621 = vunpack.c.h.b16 %v231
    %v622 = vunpack.c.l.b16 %v232
    %v623 = vunpack.c.h.b16 %v232
    %v624 = vunpack.c.l.b16 %v233
    %v625 = vunpack.c.h.b16 %v233
    %v626 = vunpack.c.l.b16 %v234
    %v627 = vunpack.c.h.b16 %v234
    %v628 = vunpack.c.l.b16 %v235
    %v629 = vunpack.c.h.b16 %v235
    %v630 = vunpack.c.l.b16 %v236
    %v631 = vunpack.c.h.b16 %v236
    %v632 = vunpack.c.l.b16 %v237
    %v633 = vunpack.c.h.b16 %v237
    %v634 = vunpack.c.l.b16 %v238
    %v635 = vunpack.c.h.b16 %v238
    %v636 = vunpack.c.l.b16 %v239
    %v637 = vunpack.c.h.b16 %v239
    %v638 = vunpack.c.l.b16 %v240
    %v639 = vunpack.c.h.b16 %v240
    %v640 = vunpack.c.l.b16 %v241
    %v641 = vunpack.c.h.b16 %v241
    %v642 = vunpack.c.l.b16 %v242
    %v643 = vunpack.c.h.b16 %v242
    %v644 = vunpack.c.l.b16 %v243
    %v645 = vunpack.c.h.b16 %v243
    %v646 = vunpack.c.l.b16 %v244
    %v647 = vunpack.c.h.b16 %v244
    %v648 = vunpack.c.l.b16 %v245
    %v649 = vunpack.c.h.b16 %v245
    %v650 = vunpack.c.l.b16 %v246
    %v651 = vunpack.c.h.b16 %v246
    %v652 = vunpack.c.l.b16 %v247
    %v653 = vunpack.c.h.b16 %v247
    %v654 = vunpack.c.l.b16 %v248
    %v655 = vunpack.c.h.b16 %v248
    %v656 = vunpack.c.l.b16 %v249
    %v657 = vunpack.c.h.b16 %v249
    %v658 = vunpack.c.l.b16 %v250
    %v659 = vunpack.c.h.b16 %v250
    %v660 = vunpack.c.l.b16 %v251
    %v661 = vunpack.c.h.b16 %v251
    %v662 = vunpack.c.l.b16 %v252
    %v663 = vunpack.c.h.b16 %v252
    %v664 = vunpack.c.l.b16 %v253
    %v665 = vunpack.c.h.b16 %v253
    %v666 = vunpack.c.l.b16 %v254
    %v667 = vunpack.c.h.b16 %v254
    %v668 = vunpack.c.l.b16 %v255
    %v669 = vunpack.c.h.b16 %v255
    %v670 = vunpack.c.l.b16 %v256
    %v671 = vunpack.c.h.b16 %v256
    %v672 = vunpack.c.l.b16 %v257
    %v673 = vunpack.c.h.b16 %v257
    %v674 = vunpack.c.l.b16 %v258
    %v675 = vunpack.c.h.b16 %v258
    %v676 = vunpack.c.l.b16 %v259
    %v677 = vunpack.c.h.b16 %v259
    %v678 = vunpack.c.l.b16 %v260
    %v679 = vunpack.c.h.b16 %v260
    %v680 = vunpack.c.l.b16 %v261
    %v681 = vunpack.c.h.b16 %v261
    %v682 = vunpack.c.l.b16 %v262
    %v683 = vunpack.c.h.b16 %v262
    %v684 = vunpack.c.l.b16 %v263
    %v685 = vunpack.c.h.b16 %v263
    %v686 = vunpack.c.l.b16 %v264
    %v687 = vunpack.c.h.b16 %v264
    %v688 = vunpack.c.l.b16 %v265
    %v689 = vunpack.c.h.b16 %v265
    %v690 = vunpack.c.l.b16 %v266
    %v691 = vunpack.c.h.b16 %v266
    %v692 = vunpack.c.l.b16 %v267
    %v693 = vunpack.c.h.b16 %v267
    %v694 = vunpack.c.l.b16 %v268
    %v695 = vunpack.c.h.b16 %v268
    %v696 = vunpack.c.l.b16 %v269
    %v697 = vunpack.c.h.b16 %v269
    %v698 = vunpack.c.l.b16 %v270
    %v699 = vunpack.c.h.b16 %v270
    %v700 = vunpack.c.l.b16 %v271
    %v701 = vunpack.c.h.b16 %v271
    %v702 = vunpack.c.l.b16 %v272
    %v703 = vunpack.c.h.b16 %v272
    %v704 = vunpack.c.l.b16 %v273
    %v705 = vunpack.c.h.b16 %v273
    %v706 = vunpack.c.l.b16 %v274
    %v707 = vunpack.c.h.b16 %v274
    %v708 = vunpack.c.l.b16 %v275
    %v709 = vunpack.c.h.b16 %v275
    %v710 = vunpack.c.l.b16 %v276
    %v711 = vunpack.c.h.b16 %v276
    %v712 = vunpack.c.l.b16 %v277
    %v713 = vunpack.c.h.b16 %v277
    %v714 = vpack.c.b16 %v466, %v458
    %v715 = vpack.c.b16 %v467, %v459
    %v716 = vpack.c.b16 %v468, %v460
    %v717 = vpack.c.b16 %v469, %v461
    %v718 = vpack.c.b16 %v470, %v462
    %v719 = vpack.c.b16 %v471, %v463
    %v720 = vpack.c.b16 %v472, %v464
    %v721 = vpack.c.b16 %v473, %v465
    %v722 = vpack.c.b16 %v482, %v474
    %v723 = vpack.c.b16 %v483, %v475
    %v724 = vpack.c.b16 %v484, %v476
    %v725 = vpack.c.b16 %v485, %v477
    %v726 = vpack.c.b16 %v486, %v478
    %v727 = vpack.c.b16 %v487, %v479
    %v728 = vpack.c.b16 %v488, %v480
    %v729 = vpack.c.b16 %v489, %v481
    %v730 = vpack.c.b16 %v498, %v490
    %v731 = vpack.c.b16 %v499, %v491
    %v732 = vpack.c.b16 %v500, %v492
    %v733 = vpack.c.b16 %v501, %v493
    %v734 = vpack.c.b16 %v502, %v494
    %v735 = vpack.c.b16 %v503, %v495
    %v736 = vpack.c.b16 %v504, %v496
    %v737 = vpack.c.b16 %v505, %v497
    %v738 = vpack.c.b16 %v514, %v506
    %v739 = vpack.c.b16 %v515, %v507
    %v740 = vpack.c.b16 %v516, %v508
    %v741 = vpack.c.b16 %v517, %v509
    %v742 = vpack.c.b16 %v518, %v510
    %v743 = vpack.c.b16 %v519, %v511
    %v744 = vpack.c.b16 %v520, %v512
    %v745 = vpack.c.b16 %v521, %v513
    %v746 = vpack.c.b16 %v530, %v522
    %v747 = vpack.c.b16 %v531, %v523
    %v748 = vpack.c.b16 %v532, %v524
    %v749 = vpack.c.b16 %v533, %v525
    %v750 = vpack.c.b16 %v534, %v526
    %v751 = vpack.c.b16 %v535, %v527
    %v752 = vpack.c.b16 %v536, %v528
    %v753 = vpack.c.b16 %v537, %v529
    %v754 = vpack.c.b16 %v546, %v538
    %v755 = vpack.c.b16 %v547, %v539
    %v756 = vpack.c.b16 %v548, %v540
    %v757 = vpack.c.b16 %v549, %v541
    %v758 = vpack.c.b16 %v550, %v542
    %v759 = vpack.c.b16 %v551, %v543
    %v760 = vpack.c.b16 %v552, %v544
    %v761 = vpack.c.b16 %v553, %v545
    %v762 = vpack.c.b16 %v562, %v554
    %v763 = vpack.c.b16 %v563, %v555
    %v764 = vpack.c.b16 %v564, %v556
    %v765 = vpack.c.b16 %v565, %v557
    %v766 = vpack.c.b16 %v566, %v558
    %v767 = vpack.c.b16 %v567, %v559
    %v768 = vpack.c.b16 %v568, %v560
    %v769 = vpack.c.b16 %v569, %v561
    %v770 = vpack.c.b16 %v578, %v570
    %v771 = vpack.c.b16 %v579, %v571
    %v772 = vpack.c.b16 %v580, %v572
    %v773 = vpack.c.b16 %v581, %v573
    %v774 = vpack.c.b16 %v582, %v574
    %v775 = vpack.c.b16 %v583, %v575
    %v776 = vpack.c.b16 %v584, %v576
    %v777 = vpack.c.b16 %v585, %v577
    %v778 = vpack.c.b16 %v594, %v586
    %v779 = vpack.c.b16 %v595, %v587
    %v780 = vpack.c.b16 %v596, %v588
    %v781 = vpack.c.b16 %v597, %v589
    %v782 = vpack.c.b16 %v598, %v590
    %v783 = vpack.c.b16 %v599, %v591
    %v784 = vpack.c.b16 %v600, %v592
    %v785 = vpack.c.b16 %v601, %v593
    %v786 = vpack.c.b16 %v610, %v602
    %v787 = vpack.c.b16 %v611, %v603
    %v788 = vpack.c.b16 %v612, %v604
    %v789 = vpack.c.b16 %v613, %v605
    %v790 = vpack.c.b16 %v614, %v606
    %v791 = vpack.c.b16 %v615, %v607
    %v792 = vpack.c.b16 %v616, %v608
    %v793 = vpack.c.b16 %v617, %v609
    %v794 = vpack.c.b16 %v626, %v618
    %v795 = vpack.c.b16 %v627, %v619
    %v796 = vpack.c.b16 %v628, %v620
    %v797 = vpack.c.b16 %v629, %v621
    %v798 = vpack.c.b16 %v630, %v622
    %v799 = vpack.c.b16 %v631, %v623
    %v800 = vpack.c.b16 %v632, %v624
    %v801 = vpack.c.b16 %v633, %v625
    %v802 = vpack.c.b16 %v642, %v634
    %v803 = vpack.c.b16 %v643, %v635
    %v804 = vpack.c.b16 %v644, %v636
    %v805 = vpack.c.b16 %v645, %v637
    %v806 = vpack.c.b16 %v646, %v638
    %v807 = vpack.c.b16 %v647, %v639
    %v808 = vpack.c.b16 %v648, %v640
    %v809 = vpack.c.b16 %v649, %v641
    %v810 = vpack.c.b16 %v658, %v650
    %v811 = vpack.c.b16 %v659, %v651
    %v812 = vpack.c.b16 %v660, %v652
    %v813 = vpack.c.b16 %v661, %v653
    %v814 = vpack.c.b16 %v662, %v654
    %v815 = vpack.c.b16 %v663, %v655
    %v816 = vpack.c.b16 %v664, %v656
    %v817 = vpack.c.b16 %v665, %v657
    %v818 = vpack.c.b16 %v674, %v666
    %v819 = vpack.c.b16 %v675, %v667
    %v820 = vpack.c.b16 %v676, %v668
    %v821 = vpack.c.b16 %v677, %v669
    %v822 = vpack.c.b16 %v678, %v670
    %v823 = vpack.c.b16 %v679, %v671
    %v824 = vpack.c.b16 %v680, %v672
    %v825 = vpack.c.b16 %v681, %v673
    %v826 = vpack.c.b16 %v690, %v682
    %v827 = vpack.c.b16 %v691, %v683
    %v828 = vpack.c.b16 %v692, %v684
    %v829 = vpack.c.b16 %v693, %v685
    %v830 = vpack.c.b16 %v694, %v686
    %v831 = vpack.c.b16 %v695, %v687
    %v832 = vpack.c.b16 %v696, %v688
    %v833 = vpack.c.b16 %v697, %v689
    %v834 = vpack.c.b16 %v706, %v698
    %v835 = vpack.c.b16 %v707, %v699
    %v836 = vpack.c.b16 %v708, %v700
    %v837 = vpack.c.b16 %v709, %v701
    %v838 = vpack.c.b16 %v710, %v702
    %v839 = vpack.c.b16 %v711, %v703
    %v840 = vpack.c.b16 %v712, %v704
    %v841 = vpack.c.b16 %v713, %v705
    %970 = vmatprep.subr.bf16.mxu0 %v771
    %971 = vmatpush1.bf16.msra.mxu0 %v770
    %972 = vmatprep.subr.bf16.mxu0 %v763
    %973 = vmatpush1.bf16.msra.mxu0 %v762
    %974 = vmatprep.subr.bf16.mxu0 %v755
    %975 = vmatpush1.bf16.msra.mxu0 %v754
    %976 = vmatprep.subr.bf16.mxu0 %v747
    %977 = vmatpush1.bf16.msra.mxu0 %v746
    %978 = vmatprep.subr.bf16.mxu0 %v739
    %979 = vmatpush1.bf16.msra.mxu0 %v738
    %980 = vmatprep.subr.bf16.mxu0 %v731
    %981 = vmatpush1.bf16.msra.mxu0 %v730
    %982 = vmatprep.subr.bf16.mxu0 %v723
    %983 = vmatpush1.bf16.msra.mxu0 %v722
    %984 = vmatprep.subr.bf16.mxu0 %v715
    %985 = vmatpush1.bf16.msra.mxu0 %v714
    %986 = vmatprep.subr.bf16.mxu0 %v835
    %987 = vmatpush2.bf16.msra.mxu0 %v834
    %988 = vmatprep.subr.bf16.mxu0 %v827
    %989 = vmatpush2.bf16.msra.mxu0 %v826
    %990 = vmatprep.subr.bf16.mxu0 %v819
    %991 = vmatpush2.bf16.msra.mxu0 %v818
    %992 = vmatprep.subr.bf16.mxu0 %v811
    %993 = vmatpush2.bf16.msra.mxu0 %v810
    %994 = vmatprep.subr.bf16.mxu0 %v803
    %995 = vmatpush2.bf16.msra.mxu0 %v802
    %996 = vmatprep.subr.bf16.mxu0 %v795
    %997 = vmatpush2.bf16.msra.mxu0 %v794
    %998 = vmatprep.subr.bf16.mxu0 %v787
    %999 = vmatpush2.bf16.msra.mxu0 %v786
    %1000 = vmatprep.subr.bf16.mxu0 %v779
    %1001 = vmatpush2.bf16.msra.mxu0 %v778
    %1002 = vmatprep.mubr.bf16.mxu0 %v327
    %1003 = vmatmul.mubr.bf16.gmra.mxu0 %v326
    %v1004 = vpop.f32.mrf.mxu0
    %v1005 = vadd.f32 %v283, %v1004
    %v1006 = vpop.f32.mrf.mxu0
    %v1007 = vadd.f32 %v287, %v1006
    %v1008 = vpop.f32.mrf.mxu0
    %v1009 = vadd.f32 %v283, %v1008
    %v1010 = vpop.f32.mrf.mxu0
    %v1011 = vadd.f32 %v287, %v1010
    %1012 = vdwg.mxu0
    %1013 = vmatprep.subr.bf16.mxu0 %v773
    %1014 = vmatpush1.bf16.msra.mxu0 %v772
    %1015 = vmatprep.subr.bf16.mxu0 %v765
    %1016 = vmatpush1.bf16.msra.mxu0 %v764
    %1017 = vmatprep.subr.bf16.mxu0 %v757
    %1018 = vmatpush1.bf16.msra.mxu0 %v756
    %1019 = vmatprep.subr.bf16.mxu0 %v749
    %1020 = vmatpush1.bf16.msra.mxu0 %v748
    %1021 = vmatprep.subr.bf16.mxu0 %v741
    %1022 = vmatpush1.bf16.msra.mxu0 %v740
    %1023 = vmatprep.subr.bf16.mxu0 %v733
    %1024 = vmatpush1.bf16.msra.mxu0 %v732
    %1025 = vmatprep.subr.bf16.mxu0 %v725
    %1026 = vmatpush1.bf16.msra.mxu0 %v724
    %1027 = vmatprep.subr.bf16.mxu0 %v717
    %1028 = vmatpush1.bf16.msra.mxu0 %v716
    %1029 = vmatprep.subr.bf16.mxu0 %v837
    %1030 = vmatpush2.bf16.msra.mxu0 %v836
    %1031 = vmatprep.subr.bf16.mxu0 %v829
    %1032 = vmatpush2.bf16.msra.mxu0 %v828
    %1033 = vmatprep.subr.bf16.mxu0 %v821
    %1034 = vmatpush2.bf16.msra.mxu0 %v820
    %1035 = vmatprep.subr.bf16.mxu0 %v813
    %1036 = vmatpush2.bf16.msra.mxu0 %v812
    %1037 = vmatprep.subr.bf16.mxu0 %v805
    %1038 = vmatpush2.bf16.msra.mxu0 %v804
    %1039 = vmatprep.subr.bf16.mxu0 %v797
    %1040 = vmatpush2.bf16.msra.mxu0 %v796
    %1041 = vmatprep.subr.bf16.mxu0 %v789
    %1042 = vmatpush2.bf16.msra.mxu0 %v788
    %1043 = vmatprep.subr.bf16.mxu0 %v781
    %1044 = vmatpush2.bf16.msra.mxu0 %v780
    %1045 = vmatprep.mubr.bf16.mxu0 %v327
    %1046 = vmatmul.mubr.bf16.gmra.mxu0 %v326
    %v1047 = vpop.f32.mrf.mxu0
    %v1048 = vadd.f32 %v291, %v1047
    %v1049 = vpop.f32.mrf.mxu0
    %v1050 = vadd.f32 %v295, %v1049
    %v1051 = vpop.f32.mrf.mxu0
    %v1052 = vadd.f32 %v291, %v1051
    %v1053 = vpop.f32.mrf.mxu0
    %v1054 = vadd.f32 %v295, %v1053
    %1055 = vdwg.mxu0
    %1056 = vmatprep.subr.bf16.mxu0 %v775
    %1057 = vmatpush1.bf16.msra.mxu0 %v774
    %1058 = vmatprep.subr.bf16.mxu0 %v767
    %1059 = vmatpush1.bf16.msra.mxu0 %v766
    %1060 = vmatprep.subr.bf16.mxu0 %v759
    %1061 = vmatpush1.bf16.msra.mxu0 %v758
    %1062 = vmatprep.subr.bf16.mxu0 %v751
    %1063 = vmatpush1.bf16.msra.mxu0 %v750
    %1064 = vmatprep.subr.bf16.mxu0 %v743
    %1065 = vmatpush1.bf16.msra.mxu0 %v742
    %1066 = vmatprep.subr.bf16.mxu0 %v735
    %1067 = vmatpush1.bf16.msra.mxu0 %v734
    %1068 = vmatprep.subr.bf16.mxu0 %v727
    %1069 = vmatpush1.bf16.msra.mxu0 %v726
    %1070 = vmatprep.subr.bf16.mxu0 %v719
    %1071 = vmatpush1.bf16.msra.mxu0 %v718
    %1072 = vmatprep.subr.bf16.mxu0 %v839
    %1073 = vmatpush2.bf16.msra.mxu0 %v838
    %1074 = vmatprep.subr.bf16.mxu0 %v831
    %1075 = vmatpush2.bf16.msra.mxu0 %v830
    %1076 = vmatprep.subr.bf16.mxu0 %v823
    %1077 = vmatpush2.bf16.msra.mxu0 %v822
    %1078 = vmatprep.subr.bf16.mxu0 %v815
    %1079 = vmatpush2.bf16.msra.mxu0 %v814
    %1080 = vmatprep.subr.bf16.mxu0 %v807
    %1081 = vmatpush2.bf16.msra.mxu0 %v806
    %1082 = vmatprep.subr.bf16.mxu0 %v799
    %1083 = vmatpush2.bf16.msra.mxu0 %v798
    %1084 = vmatprep.subr.bf16.mxu0 %v791
    %1085 = vmatpush2.bf16.msra.mxu0 %v790
    %1086 = vmatprep.subr.bf16.mxu0 %v783
    %1087 = vmatpush2.bf16.msra.mxu0 %v782
    %1088 = vmatprep.mubr.bf16.mxu0 %v327
    %1089 = vmatmul.mubr.bf16.gmra.mxu0 %v326
    %v1090 = vpop.f32.mrf.mxu0
    %v1091 = vadd.f32 %v299, %v1090
    %v1092 = vpop.f32.mrf.mxu0
    %v1093 = vadd.f32 %v303, %v1092
    %v1094 = vpop.f32.mrf.mxu0
    %v1095 = vadd.f32 %v299, %v1094
    %v1096 = vpop.f32.mrf.mxu0
    %v1097 = vadd.f32 %v303, %v1096
    %1098 = vdwg.mxu0
    %1099 = vmatprep.subr.bf16.mxu0 %v777
    %1100 = vmatpush1.bf16.msra.mxu0 %v776
    %1101 = vmatprep.subr.bf16.mxu0 %v769
    %1102 = vmatpush1.bf16.msra.mxu0 %v768
    %1103 = vmatprep.subr.bf16.mxu0 %v761
    %1104 = vmatpush1.bf16.msra.mxu0 %v760
    %1105 = vmatprep.subr.bf16.mxu0 %v753
    %1106 = vmatpush1.bf16.msra.mxu0 %v752
    %1107 = vmatprep.subr.bf16.mxu0 %v745
    %1108 = vmatpush1.bf16.msra.mxu0 %v744
    %1109 = vmatprep.subr.bf16.mxu0 %v737
    %1110 = vmatpush1.bf16.msra.mxu0 %v736
    %1111 = vmatprep.subr.bf16.mxu0 %v729
    %1112 = vmatpush1.bf16.msra.mxu0 %v728
    %1113 = vmatprep.subr.bf16.mxu0 %v721
    %1114 = vmatpush1.bf16.msra.mxu0 %v720
    %1115 = vmatprep.subr.bf16.mxu0 %v841
    %1116 = vmatpush2.bf16.msra.mxu0 %v840
    %1117 = vmatprep.subr.bf16.mxu0 %v833
    %1118 = vmatpush2.bf16.msra.mxu0 %v832
    %1119 = vmatprep.subr.bf16.mxu0 %v825
    %1120 = vmatpush2.bf16.msra.mxu0 %v824
    %1121 = vmatprep.subr.bf16.mxu0 %v817
    %1122 = vmatpush2.bf16.msra.mxu0 %v816
    %1123 = vmatprep.subr.bf16.mxu0 %v809
    %1124 = vmatpush2.bf16.msra.mxu0 %v808
    %1125 = vmatprep.subr.bf16.mxu0 %v801
    %1126 = vmatpush2.bf16.msra.mxu0 %v800
    %1127 = vmatprep.subr.bf16.mxu0 %v793
    %1128 = vmatpush2.bf16.msra.mxu0 %v792
    %1129 = vmatprep.subr.bf16.mxu0 %v785
    %1130 = vmatpush2.bf16.msra.mxu0 %v784
    %1131 = vmatprep.mubr.bf16.mxu0 %v327
    %1132 = vmatmul.mubr.bf16.gmra.mxu0 %v326
    %v1133 = vpop.f32.mrf.mxu0
    %v1134 = vadd.f32 %v307, %v1133
    %v1135 = vpop.f32.mrf.mxu0
    %v1136 = vadd.f32 %v311, %v1135
    %v1137 = vpop.f32.mrf.mxu0
    %v1138 = vadd.f32 %v307, %v1137
    %v1139 = vpop.f32.mrf.mxu0
    %v1140 = vadd.f32 %v311, %v1139
    %1141 = vdwg.mxu0
    %v1142 = vmax.f32 %v1005, %v1048
    %v1143 = vmax.f32 %v1007, %v1050
    %v1144 = vmax.f32 %v1009, %v1052
    %v1145 = vmax.f32 %v1011, %v1054
    %v1146 = vmax.f32 %v1091, %v1134
    %v1147 = vmax.f32 %v1093, %v1136
    %v1148 = vmax.f32 %v1095, %v1138
    %v1149 = vmax.f32 %v1097, %v1140
    %v1150 = vmax.f32 %v1142, %v1146
    %v1151 = vmax.f32 %v1143, %v1147
    %v1152 = vmax.f32 %v1144, %v1148
    %v1153 = vmax.f32 %v1145, %v1149
    %v1154 = vmax.f32 %v1150, 0.0
    %v1155 = vmax.f32 %v1151, 0.0
    %v1156 = vmax.f32 %v1152, 0.0
    %v1157 = vmax.f32 %v1153, 0.0
    %v1158 = vpack.c.bf16 %v1156, %v1154
    %v1159 = vpack.c.bf16 %v1157, %v1155
    %s1160 = scalar_lea.vmem [#allocation5], 1024
    %v1161 = vld [vmem:[%s1160] sm:$0xff]
    %v1162 = vld [vmem:[%s1160 + $0x8] sm:$0xff]
    %v1163 = vld [vmem:[%s1160 + $0x10] sm:$0xff]
    %v1164 = vld [vmem:[%s1160 + $0x18] sm:$0xff]
    %v1165 = vld [vmem:[%s1160 + $0x20] sm:$0xff]
    %v1166 = vld [vmem:[%s1160 + $0x28] sm:$0xff]
    %v1167 = vld [vmem:[%s1160 + $0x30] sm:$0xff]
    %v1168 = vld [vmem:[%s1160 + $0x38] sm:$0xff]
    %v1169 = vld [vmem:[%s1160 + $0x40] sm:$0xff]
    %v1170 = vld [vmem:[%s1160 + $0x48] sm:$0xff]
    %v1171 = vld [vmem:[%s1160 + $0x50] sm:$0xff]
    %v1172 = vld [vmem:[%s1160 + $0x58] sm:$0xff]
    %v1173 = vld [vmem:[%s1160 + $0x60] sm:$0xff]
    %v1174 = vld [vmem:[%s1160 + $0x68] sm:$0xff]
    %v1175 = vld [vmem:[%s1160 + $0x70] sm:$0xff]
    %v1176 = vld [vmem:[%s1160 + $0x78] sm:$0xff]
    %v1177 = vld [vmem:[%s1160 + $0x80] sm:$0xff]
    %v1178 = vld [vmem:[%s1160 + $0x88] sm:$0xff]
    %v1179 = vld [vmem:[%s1160 + $0x90] sm:$0xff]
    %v1180 = vld [vmem:[%s1160 + $0x98] sm:$0xff]
    %v1181 = vld [vmem:[%s1160 + $0xa0] sm:$0xff]
    %v1182 = vld [vmem:[%s1160 + $0xa8] sm:$0xff]
    %v1183 = vld [vmem:[%s1160 + $0xb0] sm:$0xff]
    %v1184 = vld [vmem:[%s1160 + $0xb8] sm:$0xff]
    %v1185 = vld [vmem:[%s1160 + $0xc0] sm:$0xff]
    %v1186 = vld [vmem:[%s1160 + $0xc8] sm:$0xff]
    %v1187 = vld [vmem:[%s1160 + $0xd0] sm:$0xff]
    %v1188 = vld [vmem:[%s1160 + $0xd8] sm:$0xff]
    %v1189 = vld [vmem:[%s1160 + $0xe0] sm:$0xff]
    %v1190 = vld [vmem:[%s1160 + $0xe8] sm:$0xff]
    %v1191 = vld [vmem:[%s1160 + $0xf0] sm:$0xff]
    %v1192 = vld [vmem:[%s1160 + $0xf8] sm:$0xff]
    %v1193 = vld [vmem:[%s1160 + $0x100] sm:$0xff]
    %v1194 = vld [vmem:[%s1160 + $0x108] sm:$0xff]
    %v1195 = vld [vmem:[%s1160 + $0x110] sm:$0xff]
    %v1196 = vld [vmem:[%s1160 + $0x118] sm:$0xff]
    %v1197 = vld [vmem:[%s1160 + $0x120] sm:$0xff]
    %v1198 = vld [vmem:[%s1160 + $0x128] sm:$0xff]
    %v1199 = vld [vmem:[%s1160 + $0x130] sm:$0xff]
    %v1200 = vld [vmem:[%s1160 + $0x138] sm:$0xff]
    %v1201 = vld [vmem:[%s1160 + $0x140] sm:$0xff]
    %v1202 = vld [vmem:[%s1160 + $0x148] sm:$0xff]
    %v1203 = vld [vmem:[%s1160 + $0x150] sm:$0xff]
    %v1204 = vld [vmem:[%s1160 + $0x158] sm:$0xff]
    %v1205 = vld [vmem:[%s1160 + $0x160] sm:$0xff]
    %v1206 = vld [vmem:[%s1160 + $0x168] sm:$0xff]
    %v1207 = vld [vmem:[%s1160 + $0x170] sm:$0xff]
    %v1208 = vld [vmem:[%s1160 + $0x178] sm:$0xff]
    %v1209 = vld [vmem:[%s1160 + $0x180] sm:$0xff]
    %v1210 = vld [vmem:[%s1160 + $0x188] sm:$0xff]
    %v1211 = vld [vmem:[%s1160 + $0x190] sm:$0xff]
    %v1212 = vld [vmem:[%s1160 + $0x198] sm:$0xff]
    %v1213 = vld [vmem:[%s1160 + $0x1a0] sm:$0xff]
    %v1214 = vld [vmem:[%s1160 + $0x1a8] sm:$0xff]
    %v1215 = vld [vmem:[%s1160 + $0x1b0] sm:$0xff]
    %v1216 = vld [vmem:[%s1160 + $0x1b8] sm:$0xff]
    %v1217 = vld [vmem:[%s1160 + $0x1c0] sm:$0xff]
    %v1218 = vld [vmem:[%s1160 + $0x1c8] sm:$0xff]
    %v1219 = vld [vmem:[%s1160 + $0x1d0] sm:$0xff]
    %v1220 = vld [vmem:[%s1160 + $0x1d8] sm:$0xff]
    %v1221 = vld [vmem:[%s1160 + $0x1e0] sm:$0xff]
    %v1222 = vld [vmem:[%s1160 + $0x1e8] sm:$0xff]
    %v1223 = vld [vmem:[%s1160 + $0x1f0] sm:$0xff]
    %v1224 = vld [vmem:[%s1160 + $0x1f8] sm:$0xff]
    %v1225 = vld [vmem:[%s1160 + $0x200] sm:$0xff]
    %v1226 = vld [vmem:[%s1160 + $0x208] sm:$0xff]
    %v1227 = vld [vmem:[%s1160 + $0x210] sm:$0xff]
    %v1228 = vld [vmem:[%s1160 + $0x218] sm:$0xff]
    %v1229 = vld [vmem:[%s1160 + $0x220] sm:$0xff]
    %v1230 = vld [vmem:[%s1160 + $0x228] sm:$0xff]
    %v1231 = vld [vmem:[%s1160 + $0x230] sm:$0xff]
    %v1232 = vld [vmem:[%s1160 + $0x238] sm:$0xff]
    %v1233 = vld [vmem:[%s1160 + $0x240] sm:$0xff]
    %v1234 = vld [vmem:[%s1160 + $0x248] sm:$0xff]
    %v1235 = vld [vmem:[%s1160 + $0x250] sm:$0xff]
    %v1236 = vld [vmem:[%s1160 + $0x258] sm:$0xff]
    %v1237 = vld [vmem:[%s1160 + $0x260] sm:$0xff]
    %v1238 = vld [vmem:[%s1160 + $0x268] sm:$0xff]
    %v1239 = vld [vmem:[%s1160 + $0x270] sm:$0xff]
    %v1240 = vld [vmem:[%s1160 + $0x278] sm:$0xff]
    %v1241 = vld [vmem:[%s1160 + $0x280] sm:$0xff]
    %v1242 = vld [vmem:[%s1160 + $0x288] sm:$0xff]
    %v1243 = vld [vmem:[%s1160 + $0x290] sm:$0xff]
    %v1244 = vld [vmem:[%s1160 + $0x298] sm:$0xff]
    %v1245 = vld [vmem:[%s1160 + $0x2a0] sm:$0xff]
    %v1246 = vld [vmem:[%s1160 + $0x2a8] sm:$0xff]
    %v1247 = vld [vmem:[%s1160 + $0x2b0] sm:$0xff]
    %v1248 = vld [vmem:[%s1160 + $0x2b8] sm:$0xff]
    %v1249 = vld [vmem:[%s1160 + $0x2c0] sm:$0xff]
    %v1250 = vld [vmem:[%s1160 + $0x2c8] sm:$0xff]
    %v1251 = vld [vmem:[%s1160 + $0x2d0] sm:$0xff]
    %v1252 = vld [vmem:[%s1160 + $0x2d8] sm:$0xff]
    %v1253 = vld [vmem:[%s1160 + $0x2e0] sm:$0xff]
    %v1254 = vld [vmem:[%s1160 + $0x2e8] sm:$0xff]
    %v1255 = vld [vmem:[%s1160 + $0x2f0] sm:$0xff]
    %v1256 = vld [vmem:[%s1160 + $0x2f8] sm:$0xff]
    %v1257 = vld [vmem:[%s1160 + $0x300] sm:$0xff]
    %v1258 = vld [vmem:[%s1160 + $0x308] sm:$0xff]
    %v1259 = vld [vmem:[%s1160 + $0x310] sm:$0xff]
    %v1260 = vld [vmem:[%s1160 + $0x318] sm:$0xff]
    %v1261 = vld [vmem:[%s1160 + $0x320] sm:$0xff]
    %v1262 = vld [vmem:[%s1160 + $0x328] sm:$0xff]
    %v1263 = vld [vmem:[%s1160 + $0x330] sm:$0xff]
    %v1264 = vld [vmem:[%s1160 + $0x338] sm:$0xff]
    %v1265 = vld [vmem:[%s1160 + $0x340] sm:$0xff]
    %v1266 = vld [vmem:[%s1160 + $0x348] sm:$0xff]
    %v1267 = vld [vmem:[%s1160 + $0x350] sm:$0xff]
    %v1268 = vld [vmem:[%s1160 + $0x358] sm:$0xff]
    %v1269 = vld [vmem:[%s1160 + $0x360] sm:$0xff]
    %v1270 = vld [vmem:[%s1160 + $0x368] sm:$0xff]
    %v1271 = vld [vmem:[%s1160 + $0x370] sm:$0xff]
    %v1272 = vld [vmem:[%s1160 + $0x378] sm:$0xff]
    %v1273 = vld [vmem:[%s1160 + $0x380] sm:$0xff]
    %v1274 = vld [vmem:[%s1160 + $0x388] sm:$0xff]
    %v1275 = vld [vmem:[%s1160 + $0x390] sm:$0xff]
    %v1276 = vld [vmem:[%s1160 + $0x398] sm:$0xff]
    %v1277 = vld [vmem:[%s1160 + $0x3a0] sm:$0xff]
    %v1278 = vld [vmem:[%s1160 + $0x3a8] sm:$0xff]
    %v1279 = vld [vmem:[%s1160 + $0x3b0] sm:$0xff]
    %v1280 = vld [vmem:[%s1160 + $0x3b8] sm:$0xff]
    %v1281 = vld [vmem:[%s1160 + $0x3c0] sm:$0xff]
    %v1282 = vld [vmem:[%s1160 + $0x3c8] sm:$0xff]
    %v1283 = vld [vmem:[%s1160 + $0x3d0] sm:$0xff]
    %v1284 = vld [vmem:[%s1160 + $0x3d8] sm:$0xff]
    %v1285 = vld [vmem:[%s1160 + $0x3e0] sm:$0xff]
    %v1286 = vld [vmem:[%s1160 + $0x3e8] sm:$0xff]
    %v1287 = vld [vmem:[%s1160 + $0x3f0] sm:$0xff]
    %v1288 = vld [vmem:[%s1160 + $0x3f8] sm:$0xff]
    %s1289 = scalar_lea.vmem [#allocation7], 1
    %v1290 = vld [vmem:[%s1289] ss:$4 sm:$0xff]
    %v1292 = vlaneseq
    %v1293 = vshrl.u32 %v1292, 7
    %v1294 = vsub.s32 0, %v1293
    %v1295 = vrot.slane %v1290, %v1294
    %v1296 = vlaneseq
    %v1297 = vshrl.u32 %v1296, 7
    %v1298 = vsub.s32 1, %v1297
    %v1299 = vrot.slane %v1290, %v1298
    %v1300 = vlaneseq
    %v1301 = vshrl.u32 %v1300, 7
    %v1302 = vsub.s32 2, %v1301
    %v1303 = vrot.slane %v1290, %v1302
    %v1304 = vlaneseq
    %v1305 = vshrl.u32 %v1304, 7
    %v1306 = vsub.s32 3, %v1305
    %v1307 = vrot.slane %v1290, %v1306
    %v1308 = vlaneseq
    %v1309 = vshrl.u32 %v1308, 7
    %v1310 = vsub.s32 4, %v1309
    %v1311 = vrot.slane %v1290, %v1310
    %v1312 = vlaneseq
    %v1313 = vshrl.u32 %v1312, 7
    %v1314 = vsub.s32 5, %v1313
    %v1315 = vrot.slane %v1290, %v1314
    %v1316 = vlaneseq
    %v1317 = vshrl.u32 %v1316, 7
    %v1318 = vsub.s32 6, %v1317
    %v1319 = vrot.slane %v1290, %v1318
    %v1320 = vlaneseq
    %v1321 = vshrl.u32 %v1320, 7
    %v1322 = vsub.s32 7, %v1321
    %v1323 = vrot.slane %v1290, %v1322
    %v1460 = vunpack.c.l.b16 %v1161
    %v1461 = vunpack.c.h.b16 %v1161
    %v1462 = vunpack.c.l.b16 %v1162
    %v1463 = vunpack.c.h.b16 %v1162
    %v1464 = vunpack.c.l.b16 %v1163
    %v1465 = vunpack.c.h.b16 %v1163
    %v1466 = vunpack.c.l.b16 %v1164
    %v1467 = vunpack.c.h.b16 %v1164
    %v1468 = vunpack.c.l.b16 %v1165
    %v1469 = vunpack.c.h.b16 %v1165
    %v1470 = vunpack.c.l.b16 %v1166
    %v1471 = vunpack.c.h.b16 %v1166
    %v1472 = vunpack.c.l.b16 %v1167
    %v1473 = vunpack.c.h.b16 %v1167
    %v1474 = vunpack.c.l.b16 %v1168
    %v1475 = vunpack.c.h.b16 %v1168
    %v1476 = vunpack.c.l.b16 %v1169
    %v1477 = vunpack.c.h.b16 %v1169
    %v1478 = vunpack.c.l.b16 %v1170
    %v1479 = vunpack.c.h.b16 %v1170
    %v1480 = vunpack.c.l.b16 %v1171
    %v1481 = vunpack.c.h.b16 %v1171
    %v1482 = vunpack.c.l.b16 %v1172
    %v1483 = vunpack.c.h.b16 %v1172
    %v1484 = vunpack.c.l.b16 %v1173
    %v1485 = vunpack.c.h.b16 %v1173
    %v1486 = vunpack.c.l.b16 %v1174
    %v1487 = vunpack.c.h.b16 %v1174
    %v1488 = vunpack.c.l.b16 %v1175
    %v1489 = vunpack.c.h.b16 %v1175
    %v1490 = vunpack.c.l.b16 %v1176
    %v1491 = vunpack.c.h.b16 %v1176
    %v1492 = vunpack.c.l.b16 %v1177
    %v1493 = vunpack.c.h.b16 %v1177
    %v1494 = vunpack.c.l.b16 %v1178
    %v1495 = vunpack.c.h.b16 %v1178
    %v1496 = vunpack.c.l.b16 %v1179
    %v1497 = vunpack.c.h.b16 %v1179
    %v1498 = vunpack.c.l.b16 %v1180
    %v1499 = vunpack.c.h.b16 %v1180
    %v1500 = vunpack.c.l.b16 %v1181
    %v1501 = vunpack.c.h.b16 %v1181
    %v1502 = vunpack.c.l.b16 %v1182
    %v1503 = vunpack.c.h.b16 %v1182
    %v1504 = vunpack.c.l.b16 %v1183
    %v1505 = vunpack.c.h.b16 %v1183
    %v1506 = vunpack.c.l.b16 %v1184
    %v1507 = vunpack.c.h.b16 %v1184
    %v1508 = vunpack.c.l.b16 %v1185
    %v1509 = vunpack.c.h.b16 %v1185
    %v1510 = vunpack.c.l.b16 %v1186
    %v1511 = vunpack.c.h.b16 %v1186
    %v1512 = vunpack.c.l.b16 %v1187
    %v1513 = vunpack.c.h.b16 %v1187
    %v1514 = vunpack.c.l.b16 %v1188
    %v1515 = vunpack.c.h.b16 %v1188
    %v1516 = vunpack.c.l.b16 %v1189
    %v1517 = vunpack.c.h.b16 %v1189
    %v1518 = vunpack.c.l.b16 %v1190
    %v1519 = vunpack.c.h.b16 %v1190
    %v1520 = vunpack.c.l.b16 %v1191
    %v1521 = vunpack.c.h.b16 %v1191
    %v1522 = vunpack.c.l.b16 %v1192
    %v1523 = vunpack.c.h.b16 %v1192
    %v1524 = vunpack.c.l.b16 %v1193
    %v1525 = vunpack.c.h.b16 %v1193
    %v1526 = vunpack.c.l.b16 %v1194
    %v1527 = vunpack.c.h.b16 %v1194
    %v1528 = vunpack.c.l.b16 %v1195
    %v1529 = vunpack.c.h.b16 %v1195
    %v1530 = vunpack.c.l.b16 %v1196
    %v1531 = vunpack.c.h.b16 %v1196
    %v1532 = vunpack.c.l.b16 %v1197
    %v1533 = vunpack.c.h.b16 %v1197
    %v1534 = vunpack.c.l.b16 %v1198
    %v1535 = vunpack.c.h.b16 %v1198
    %v1536 = vunpack.c.l.b16 %v1199
    %v1537 = vunpack.c.h.b16 %v1199
    %v1538 = vunpack.c.l.b16 %v1200
    %v1539 = vunpack.c.h.b16 %v1200
    %v1540 = vunpack.c.l.b16 %v1201
    %v1541 = vunpack.c.h.b16 %v1201
    %v1542 = vunpack.c.l.b16 %v1202
    %v1543 = vunpack.c.h.b16 %v1202
    %v1544 = vunpack.c.l.b16 %v1203
    %v1545 = vunpack.c.h.b16 %v1203
    %v1546 = vunpack.c.l.b16 %v1204
    %v1547 = vunpack.c.h.b16 %v1204
    %v1548 = vunpack.c.l.b16 %v1205
    %v1549 = vunpack.c.h.b16 %v1205
    %v1550 = vunpack.c.l.b16 %v1206
    %v1551 = vunpack.c.h.b16 %v1206
    %v1552 = vunpack.c.l.b16 %v1207
    %v1553 = vunpack.c.h.b16 %v1207
    %v1554 = vunpack.c.l.b16 %v1208
    %v1555 = vunpack.c.h.b16 %v1208
    %v1556 = vunpack.c.l.b16 %v1209
    %v1557 = vunpack.c.h.b16 %v1209
    %v1558 = vunpack.c.l.b16 %v1210
    %v1559 = vunpack.c.h.b16 %v1210
    %v1560 = vunpack.c.l.b16 %v1211
    %v1561 = vunpack.c.h.b16 %v1211
    %v1562 = vunpack.c.l.b16 %v1212
    %v1563 = vunpack.c.h.b16 %v1212
    %v1564 = vunpack.c.l.b16 %v1213
    %v1565 = vunpack.c.h.b16 %v1213
    %v1566 = vunpack.c.l.b16 %v1214
    %v1567 = vunpack.c.h.b16 %v1214
    %v1568 = vunpack.c.l.b16 %v1215
    %v1569 = vunpack.c.h.b16 %v1215
    %v1570 = vunpack.c.l.b16 %v1216
    %v1571 = vunpack.c.h.b16 %v1216
    %v1572 = vunpack.c.l.b16 %v1217
    %v1573 = vunpack.c.h.b16 %v1217
    %v1574 = vunpack.c.l.b16 %v1218
    %v1575 = vunpack.c.h.b16 %v1218
    %v1576 = vunpack.c.l.b16 %v1219
    %v1577 = vunpack.c.h.b16 %v1219
    %v1578 = vunpack.c.l.b16 %v1220
    %v1579 = vunpack.c.h.b16 %v1220
    %v1580 = vunpack.c.l.b16 %v1221
    %v1581 = vunpack.c.h.b16 %v1221
    %v1582 = vunpack.c.l.b16 %v1222
    %v1583 = vunpack.c.h.b16 %v1222
    %v1584 = vunpack.c.l.b16 %v1223
    %v1585 = vunpack.c.h.b16 %v1223
    %v1586 = vunpack.c.l.b16 %v1224
    %v1587 = vunpack.c.h.b16 %v1224
    %v1588 = vunpack.c.l.b16 %v1225
    %v1589 = vunpack.c.h.b16 %v1225
    %v1590 = vunpack.c.l.b16 %v1226
    %v1591 = vunpack.c.h.b16 %v1226
    %v1592 = vunpack.c.l.b16 %v1227
    %v1593 = vunpack.c.h.b16 %v1227
    %v1594 = vunpack.c.l.b16 %v1228
    %v1595 = vunpack.c.h.b16 %v1228
    %v1596 = vunpack.c.l.b16 %v1229
    %v1597 = vunpack.c.h.b16 %v1229
    %v1598 = vunpack.c.l.b16 %v1230
    %v1599 = vunpack.c.h.b16 %v1230
    %v1600 = vunpack.c.l.b16 %v1231
    %v1601 = vunpack.c.h.b16 %v1231
    %v1602 = vunpack.c.l.b16 %v1232
    %v1603 = vunpack.c.h.b16 %v1232
    %v1604 = vunpack.c.l.b16 %v1233
    %v1605 = vunpack.c.h.b16 %v1233
    %v1606 = vunpack.c.l.b16 %v1234
    %v1607 = vunpack.c.h.b16 %v1234
    %v1608 = vunpack.c.l.b16 %v1235
    %v1609 = vunpack.c.h.b16 %v1235
    %v1610 = vunpack.c.l.b16 %v1236
    %v1611 = vunpack.c.h.b16 %v1236
    %v1612 = vunpack.c.l.b16 %v1237
    %v1613 = vunpack.c.h.b16 %v1237
    %v1614 = vunpack.c.l.b16 %v1238
    %v1615 = vunpack.c.h.b16 %v1238
    %v1616 = vunpack.c.l.b16 %v1239
    %v1617 = vunpack.c.h.b16 %v1239
    %v1618 = vunpack.c.l.b16 %v1240
    %v1619 = vunpack.c.h.b16 %v1240
    %v1620 = vunpack.c.l.b16 %v1241
    %v1621 = vunpack.c.h.b16 %v1241
    %v1622 = vunpack.c.l.b16 %v1242
    %v1623 = vunpack.c.h.b16 %v1242
    %v1624 = vunpack.c.l.b16 %v1243
    %v1625 = vunpack.c.h.b16 %v1243
    %v1626 = vunpack.c.l.b16 %v1244
    %v1627 = vunpack.c.h.b16 %v1244
    %v1628 = vunpack.c.l.b16 %v1245
    %v1629 = vunpack.c.h.b16 %v1245
    %v1630 = vunpack.c.l.b16 %v1246
    %v1631 = vunpack.c.h.b16 %v1246
    %v1632 = vunpack.c.l.b16 %v1247
    %v1633 = vunpack.c.h.b16 %v1247
    %v1634 = vunpack.c.l.b16 %v1248
    %v1635 = vunpack.c.h.b16 %v1248
    %v1636 = vunpack.c.l.b16 %v1249
    %v1637 = vunpack.c.h.b16 %v1249
    %v1638 = vunpack.c.l.b16 %v1250
    %v1639 = vunpack.c.h.b16 %v1250
    %v1640 = vunpack.c.l.b16 %v1251
    %v1641 = vunpack.c.h.b16 %v1251
    %v1642 = vunpack.c.l.b16 %v1252
    %v1643 = vunpack.c.h.b16 %v1252
    %v1644 = vunpack.c.l.b16 %v1253
    %v1645 = vunpack.c.h.b16 %v1253
    %v1646 = vunpack.c.l.b16 %v1254
    %v1647 = vunpack.c.h.b16 %v1254
    %v1648 = vunpack.c.l.b16 %v1255
    %v1649 = vunpack.c.h.b16 %v1255
    %v1650 = vunpack.c.l.b16 %v1256
    %v1651 = vunpack.c.h.b16 %v1256
    %v1652 = vunpack.c.l.b16 %v1257
    %v1653 = vunpack.c.h.b16 %v1257
    %v1654 = vunpack.c.l.b16 %v1258
    %v1655 = vunpack.c.h.b16 %v1258
    %v1656 = vunpack.c.l.b16 %v1259
    %v1657 = vunpack.c.h.b16 %v1259
    %v1658 = vunpack.c.l.b16 %v1260
    %v1659 = vunpack.c.h.b16 %v1260
    %v1660 = vunpack.c.l.b16 %v1261
    %v1661 = vunpack.c.h.b16 %v1261
    %v1662 = vunpack.c.l.b16 %v1262
    %v1663 = vunpack.c.h.b16 %v1262
    %v1664 = vunpack.c.l.b16 %v1263
    %v1665 = vunpack.c.h.b16 %v1263
    %v1666 = vunpack.c.l.b16 %v1264
    %v1667 = vunpack.c.h.b16 %v1264
    %v1668 = vunpack.c.l.b16 %v1265
    %v1669 = vunpack.c.h.b16 %v1265
    %v1670 = vunpack.c.l.b16 %v1266
    %v1671 = vunpack.c.h.b16 %v1266
    %v1672 = vunpack.c.l.b16 %v1267
    %v1673 = vunpack.c.h.b16 %v1267
    %v1674 = vunpack.c.l.b16 %v1268
    %v1675 = vunpack.c.h.b16 %v1268
    %v1676 = vunpack.c.l.b16 %v1269
    %v1677 = vunpack.c.h.b16 %v1269
    %v1678 = vunpack.c.l.b16 %v1270
    %v1679 = vunpack.c.h.b16 %v1270
    %v1680 = vunpack.c.l.b16 %v1271
    %v1681 = vunpack.c.h.b16 %v1271
    %v1682 = vunpack.c.l.b16 %v1272
    %v1683 = vunpack.c.h.b16 %v1272
    %v1684 = vunpack.c.l.b16 %v1273
    %v1685 = vunpack.c.h.b16 %v1273
    %v1686 = vunpack.c.l.b16 %v1274
    %v1687 = vunpack.c.h.b16 %v1274
    %v1688 = vunpack.c.l.b16 %v1275
    %v1689 = vunpack.c.h.b16 %v1275
    %v1690 = vunpack.c.l.b16 %v1276
    %v1691 = vunpack.c.h.b16 %v1276
    %v1692 = vunpack.c.l.b16 %v1277
    %v1693 = vunpack.c.h.b16 %v1277
    %v1694 = vunpack.c.l.b16 %v1278
    %v1695 = vunpack.c.h.b16 %v1278
    %v1696 = vunpack.c.l.b16 %v1279
    %v1697 = vunpack.c.h.b16 %v1279
    %v1698 = vunpack.c.l.b16 %v1280
    %v1699 = vunpack.c.h.b16 %v1280
    %v1700 = vunpack.c.l.b16 %v1281
    %v1701 = vunpack.c.h.b16 %v1281
    %v1702 = vunpack.c.l.b16 %v1282
    %v1703 = vunpack.c.h.b16 %v1282
    %v1704 = vunpack.c.l.b16 %v1283
    %v1705 = vunpack.c.h.b16 %v1283
    %v1706 = vunpack.c.l.b16 %v1284
    %v1707 = vunpack.c.h.b16 %v1284
    %v1708 = vunpack.c.l.b16 %v1285
    %v1709 = vunpack.c.h.b16 %v1285
    %v1710 = vunpack.c.l.b16 %v1286
    %v1711 = vunpack.c.h.b16 %v1286
    %v1712 = vunpack.c.l.b16 %v1287
    %v1713 = vunpack.c.h.b16 %v1287
    %v1714 = vunpack.c.l.b16 %v1288
    %v1715 = vunpack.c.h.b16 %v1288
    %v1716 = vpack.c.b16 %v1468, %v1460
    %v1717 = vpack.c.b16 %v1469, %v1461
    %v1718 = vpack.c.b16 %v1470, %v1462
    %v1719 = vpack.c.b16 %v1471, %v1463
    %v1720 = vpack.c.b16 %v1472, %v1464
    %v1721 = vpack.c.b16 %v1473, %v1465
    %v1722 = vpack.c.b16 %v1474, %v1466
    %v1723 = vpack.c.b16 %v1475, %v1467
    %v1724 = vpack.c.b16 %v1484, %v1476
    %v1725 = vpack.c.b16 %v1485, %v1477
    %v1726 = vpack.c.b16 %v1486, %v1478
    %v1727 = vpack.c.b16 %v1487, %v1479
    %v1728 = vpack.c.b16 %v1488, %v1480
    %v1729 = vpack.c.b16 %v1489, %v1481
    %v1730 = vpack.c.b16 %v1490, %v1482
    %v1731 = vpack.c.b16 %v1491, %v1483
    %v1732 = vpack.c.b16 %v1500, %v1492
    %v1733 = vpack.c.b16 %v1501, %v1493
    %v1734 = vpack.c.b16 %v1502, %v1494
    %v1735 = vpack.c.b16 %v1503, %v1495
    %v1736 = vpack.c.b16 %v1504, %v1496
    %v1737 = vpack.c.b16 %v1505, %v1497
    %v1738 = vpack.c.b16 %v1506, %v1498
    %v1739 = vpack.c.b16 %v1507, %v1499
    %v1740 = vpack.c.b16 %v1516, %v1508
    %v1741 = vpack.c.b16 %v1517, %v1509
    %v1742 = vpack.c.b16 %v1518, %v1510
    %v1743 = vpack.c.b16 %v1519, %v1511
    %v1744 = vpack.c.b16 %v1520, %v1512
    %v1745 = vpack.c.b16 %v1521, %v1513
    %v1746 = vpack.c.b16 %v1522, %v1514
    %v1747 = vpack.c.b16 %v1523, %v1515
    %v1748 = vpack.c.b16 %v1532, %v1524
    %v1749 = vpack.c.b16 %v1533, %v1525
    %v1750 = vpack.c.b16 %v1534, %v1526
    %v1751 = vpack.c.b16 %v1535, %v1527
    %v1752 = vpack.c.b16 %v1536, %v1528
    %v1753 = vpack.c.b16 %v1537, %v1529
    %v1754 = vpack.c.b16 %v1538, %v1530
    %v1755 = vpack.c.b16 %v1539, %v1531
    %v1756 = vpack.c.b16 %v1548, %v1540
    %v1757 = vpack.c.b16 %v1549, %v1541
    %v1758 = vpack.c.b16 %v1550, %v1542
    %v1759 = vpack.c.b16 %v1551, %v1543
    %v1760 = vpack.c.b16 %v1552, %v1544
    %v1761 = vpack.c.b16 %v1553, %v1545
    %v1762 = vpack.c.b16 %v1554, %v1546
    %v1763 = vpack.c.b16 %v1555, %v1547
    %v1764 = vpack.c.b16 %v1564, %v1556
    %v1765 = vpack.c.b16 %v1565, %v1557
    %v1766 = vpack.c.b16 %v1566, %v1558
    %v1767 = vpack.c.b16 %v1567, %v1559
    %v1768 = vpack.c.b16 %v1568, %v1560
    %v1769 = vpack.c.b16 %v1569, %v1561
    %v1770 = vpack.c.b16 %v1570, %v1562
    %v1771 = vpack.c.b16 %v1571, %v1563
    %v1772 = vpack.c.b16 %v1580, %v1572
    %v1773 = vpack.c.b16 %v1581, %v1573
    %v1774 = vpack.c.b16 %v1582, %v1574
    %v1775 = vpack.c.b16 %v1583, %v1575
    %v1776 = vpack.c.b16 %v1584, %v1576
    %v1777 = vpack.c.b16 %v1585, %v1577
    %v1778 = vpack.c.b16 %v1586, %v1578
    %v1779 = vpack.c.b16 %v1587, %v1579
    %v1780 = vpack.c.b16 %v1596, %v1588
    %v1781 = vpack.c.b16 %v1597, %v1589
    %v1782 = vpack.c.b16 %v1598, %v1590
    %v1783 = vpack.c.b16 %v1599, %v1591
    %v1784 = vpack.c.b16 %v1600, %v1592
    %v1785 = vpack.c.b16 %v1601, %v1593
    %v1786 = vpack.c.b16 %v1602, %v1594
    %v1787 = vpack.c.b16 %v1603, %v1595
    %v1788 = vpack.c.b16 %v1612, %v1604
    %v1789 = vpack.c.b16 %v1613, %v1605
    %v1790 = vpack.c.b16 %v1614, %v1606
    %v1791 = vpack.c.b16 %v1615, %v1607
    %v1792 = vpack.c.b16 %v1616, %v1608
    %v1793 = vpack.c.b16 %v1617, %v1609
    %v1794 = vpack.c.b16 %v1618, %v1610
    %v1795 = vpack.c.b16 %v1619, %v1611
    %v1796 = vpack.c.b16 %v1628, %v1620
    %v1797 = vpack.c.b16 %v1629, %v1621
    %v1798 = vpack.c.b16 %v1630, %v1622
    %v1799 = vpack.c.b16 %v1631, %v1623
    %v1800 = vpack.c.b16 %v1632, %v1624
    %v1801 = vpack.c.b16 %v1633, %v1625
    %v1802 = vpack.c.b16 %v1634, %v1626
    %v1803 = vpack.c.b16 %v1635, %v1627
    %v1804 = vpack.c.b16 %v1644, %v1636
    %v1805 = vpack.c.b16 %v1645, %v1637
    %v1806 = vpack.c.b16 %v1646, %v1638
    %v1807 = vpack.c.b16 %v1647, %v1639
    %v1808 = vpack.c.b16 %v1648, %v1640
    %v1809 = vpack.c.b16 %v1649, %v1641
    %v1810 = vpack.c.b16 %v1650, %v1642
    %v1811 = vpack.c.b16 %v1651, %v1643
    %v1812 = vpack.c.b16 %v1660, %v1652
    %v1813 = vpack.c.b16 %v1661, %v1653
    %v1814 = vpack.c.b16 %v1662, %v1654
    %v1815 = vpack.c.b16 %v1663, %v1655
    %v1816 = vpack.c.b16 %v1664, %v1656
    %v1817 = vpack.c.b16 %v1665, %v1657
    %v1818 = vpack.c.b16 %v1666, %v1658
    %v1819 = vpack.c.b16 %v1667, %v1659
    %v1820 = vpack.c.b16 %v1676, %v1668
    %v1821 = vpack.c.b16 %v1677, %v1669
    %v1822 = vpack.c.b16 %v1678, %v1670
    %v1823 = vpack.c.b16 %v1679, %v1671
    %v1824 = vpack.c.b16 %v1680, %v1672
    %v1825 = vpack.c.b16 %v1681, %v1673
    %v1826 = vpack.c.b16 %v1682, %v1674
    %v1827 = vpack.c.b16 %v1683, %v1675
    %v1828 = vpack.c.b16 %v1692, %v1684
    %v1829 = vpack.c.b16 %v1693, %v1685
    %v1830 = vpack.c.b16 %v1694, %v1686
    %v1831 = vpack.c.b16 %v1695, %v1687
    %v1832 = vpack.c.b16 %v1696, %v1688
    %v1833 = vpack.c.b16 %v1697, %v1689
    %v1834 = vpack.c.b16 %v1698, %v1690
    %v1835 = vpack.c.b16 %v1699, %v1691
    %v1836 = vpack.c.b16 %v1708, %v1700
    %v1837 = vpack.c.b16 %v1709, %v1701
    %v1838 = vpack.c.b16 %v1710, %v1702
    %v1839 = vpack.c.b16 %v1711, %v1703
    %v1840 = vpack.c.b16 %v1712, %v1704
    %v1841 = vpack.c.b16 %v1713, %v1705
    %v1842 = vpack.c.b16 %v1714, %v1706
    %v1843 = vpack.c.b16 %v1715, %v1707
    %1972 = vmatprep.subr.bf16.mxu0 %v1773
    %1973 = vmatpush1.bf16.msra.mxu0 %v1772
    %1974 = vmatprep.subr.bf16.mxu0 %v1765
    %1975 = vmatpush1.bf16.msra.mxu0 %v1764
    %1976 = vmatprep.subr.bf16.mxu0 %v1757
    %1977 = vmatpush1.bf16.msra.mxu0 %v1756
    %1978 = vmatprep.subr.bf16.mxu0 %v1749
    %1979 = vmatpush1.bf16.msra.mxu0 %v1748
    %1980 = vmatprep.subr.bf16.mxu0 %v1741
    %1981 = vmatpush1.bf16.msra.mxu0 %v1740
    %1982 = vmatprep.subr.bf16.mxu0 %v1733
    %1983 = vmatpush1.bf16.msra.mxu0 %v1732
    %1984 = vmatprep.subr.bf16.mxu0 %v1725
    %1985 = vmatpush1.bf16.msra.mxu0 %v1724
    %1986 = vmatprep.subr.bf16.mxu0 %v1717
    %1987 = vmatpush1.bf16.msra.mxu0 %v1716
    %1988 = vmatprep.subr.bf16.mxu0 %v1837
    %1989 = vmatpush2.bf16.msra.mxu0 %v1836
    %1990 = vmatprep.subr.bf16.mxu0 %v1829
    %1991 = vmatpush2.bf16.msra.mxu0 %v1828
    %1992 = vmatprep.subr.bf16.mxu0 %v1821
    %1993 = vmatpush2.bf16.msra.mxu0 %v1820
    %1994 = vmatprep.subr.bf16.mxu0 %v1813
    %1995 = vmatpush2.bf16.msra.mxu0 %v1812
    %1996 = vmatprep.subr.bf16.mxu0 %v1805
    %1997 = vmatpush2.bf16.msra.mxu0 %v1804
    %1998 = vmatprep.subr.bf16.mxu0 %v1797
    %1999 = vmatpush2.bf16.msra.mxu0 %v1796
    %2000 = vmatprep.subr.bf16.mxu0 %v1789
    %2001 = vmatpush2.bf16.msra.mxu0 %v1788
    %2002 = vmatprep.subr.bf16.mxu0 %v1781
    %2003 = vmatpush2.bf16.msra.mxu0 %v1780
    %2004 = vmatprep.mubr.bf16.mxu0 %v327
    %2005 = vmatmul.mubr.bf16.gmra.mxu0 %v326
    %v2006 = vpop.f32.mrf.mxu0
    %v2007 = vadd.f32 %v1295, %v2006
    %v2008 = vpop.f32.mrf.mxu0
    %v2009 = vadd.f32 %v1299, %v2008
    %v2010 = vpop.f32.mrf.mxu0
    %v2011 = vadd.f32 %v1295, %v2010
    %v2012 = vpop.f32.mrf.mxu0
    %v2013 = vadd.f32 %v1299, %v2012
    %2014 = vdwg.mxu0
    %2015 = vmatprep.subr.bf16.mxu0 %v1775
    %2016 = vmatpush1.bf16.msra.mxu0 %v1774
    %2017 = vmatprep.subr.bf16.mxu0 %v1767
    %2018 = vmatpush1.bf16.msra.mxu0 %v1766
    %2019 = vmatprep.subr.bf16.mxu0 %v1759
    %2020 = vmatpush1.bf16.msra.mxu0 %v1758
    %2021 = vmatprep.subr.bf16.mxu0 %v1751
    %2022 = vmatpush1.bf16.msra.mxu0 %v1750
    %2023 = vmatprep.subr.bf16.mxu0 %v1743
    %2024 = vmatpush1.bf16.msra.mxu0 %v1742
    %2025 = vmatprep.subr.bf16.mxu0 %v1735
    %2026 = vmatpush1.bf16.msra.mxu0 %v1734
    %2027 = vmatprep.subr.bf16.mxu0 %v1727
    %2028 = vmatpush1.bf16.msra.mxu0 %v1726
    %2029 = vmatprep.subr.bf16.mxu0 %v1719
    %2030 = vmatpush1.bf16.msra.mxu0 %v1718
    %2031 = vmatprep.subr.bf16.mxu0 %v1839
    %2032 = vmatpush2.bf16.msra.mxu0 %v1838
    %2033 = vmatprep.subr.bf16.mxu0 %v1831
    %2034 = vmatpush2.bf16.msra.mxu0 %v1830
    %2035 = vmatprep.subr.bf16.mxu0 %v1823
    %2036 = vmatpush2.bf16.msra.mxu0 %v1822
    %2037 = vmatprep.subr.bf16.mxu0 %v1815
    %2038 = vmatpush2.bf16.msra.mxu0 %v1814
    %2039 = vmatprep.subr.bf16.mxu0 %v1807
    %2040 = vmatpush2.bf16.msra.mxu0 %v1806
    %2041 = vmatprep.subr.bf16.mxu0 %v1799
    %2042 = vmatpush2.bf16.msra.mxu0 %v1798
    %2043 = vmatprep.subr.bf16.mxu0 %v1791
    %2044 = vmatpush2.bf16.msra.mxu0 %v1790
    %2045 = vmatprep.subr.bf16.mxu0 %v1783
    %2046 = vmatpush2.bf16.msra.mxu0 %v1782
    %2047 = vmatprep.mubr.bf16.mxu0 %v327
    %2048 = vmatmul.mubr.bf16.gmra.mxu0 %v326
    %v2049 = vpop.f32.mrf.mxu0
    %v2050 = vadd.f32 %v1303, %v2049
    %v2051 = vpop.f32.mrf.mxu0
    %v2052 = vadd.f32 %v1307, %v2051
    %v2053 = vpop.f32.mrf.mxu0
    %v2054 = vadd.f32 %v1303, %v2053
    %v2055 = vpop.f32.mrf.mxu0
    %v2056 = vadd.f32 %v1307, %v2055
    %2057 = vdwg.mxu0
    %2058 = vmatprep.subr.bf16.mxu0 %v1777
    %2059 = vmatpush1.bf16.msra.mxu0 %v1776
    %2060 = vmatprep.subr.bf16.mxu0 %v1769
    %2061 = vmatpush1.bf16.msra.mxu0 %v1768
    %2062 = vmatprep.subr.bf16.mxu0 %v1761
    %2063 = vmatpush1.bf16.msra.mxu0 %v1760
    %2064 = vmatprep.subr.bf16.mxu0 %v1753
    %2065 = vmatpush1.bf16.msra.mxu0 %v1752
    %2066 = vmatprep.subr.bf16.mxu0 %v1745
    %2067 = vmatpush1.bf16.msra.mxu0 %v1744
    %2068 = vmatprep.subr.bf16.mxu0 %v1737
    %2069 = vmatpush1.bf16.msra.mxu0 %v1736
    %2070 = vmatprep.subr.bf16.mxu0 %v1729
    %2071 = vmatpush1.bf16.msra.mxu0 %v1728
    %2072 = vmatprep.subr.bf16.mxu0 %v1721
    %2073 = vmatpush1.bf16.msra.mxu0 %v1720
    %2074 = vmatprep.subr.bf16.mxu0 %v1841
    %2075 = vmatpush2.bf16.msra.mxu0 %v1840
    %2076 = vmatprep.subr.bf16.mxu0 %v1833
    %2077 = vmatpush2.bf16.msra.mxu0 %v1832
    %2078 = vmatprep.subr.bf16.mxu0 %v1825
    %2079 = vmatpush2.bf16.msra.mxu0 %v1824
    %2080 = vmatprep.subr.bf16.mxu0 %v1817
    %2081 = vmatpush2.bf16.msra.mxu0 %v1816
    %2082 = vmatprep.subr.bf16.mxu0 %v1809
    %2083 = vmatpush2.bf16.msra.mxu0 %v1808
    %2084 = vmatprep.subr.bf16.mxu0 %v1801
    %2085 = vmatpush2.bf16.msra.mxu0 %v1800
    %2086 = vmatprep.subr.bf16.mxu0 %v1793
    %2087 = vmatpush2.bf16.msra.mxu0 %v1792
    %2088 = vmatprep.subr.bf16.mxu0 %v1785
    %2089 = vmatpush2.bf16.msra.mxu0 %v1784
    %2090 = vmatprep.mubr.bf16.mxu0 %v327
    %2091 = vmatmul.mubr.bf16.gmra.mxu0 %v326
    %v2092 = vpop.f32.mrf.mxu0
    %v2093 = vadd.f32 %v1311, %v2092
    %v2094 = vpop.f32.mrf.mxu0
    %v2095 = vadd.f32 %v1315, %v2094
    %v2096 = vpop.f32.mrf.mxu0
    %v2097 = vadd.f32 %v1311, %v2096
    %v2098 = vpop.f32.mrf.mxu0
    %v2099 = vadd.f32 %v1315, %v2098
    %2100 = vdwg.mxu0
    %2101 = vmatprep.subr.bf16.mxu0 %v1779
    %2102 = vmatpush1.bf16.msra.mxu0 %v1778
    %2103 = vmatprep.subr.bf16.mxu0 %v1771
    %2104 = vmatpush1.bf16.msra.mxu0 %v1770
    %2105 = vmatprep.subr.bf16.mxu0 %v1763
    %2106 = vmatpush1.bf16.msra.mxu0 %v1762
    %2107 = vmatprep.subr.bf16.mxu0 %v1755
    %2108 = vmatpush1.bf16.msra.mxu0 %v1754
    %2109 = vmatprep.subr.bf16.mxu0 %v1747
    %2110 = vmatpush1.bf16.msra.mxu0 %v1746
    %2111 = vmatprep.subr.bf16.mxu0 %v1739
    %2112 = vmatpush1.bf16.msra.mxu0 %v1738
    %2113 = vmatprep.subr.bf16.mxu0 %v1731
    %2114 = vmatpush1.bf16.msra.mxu0 %v1730
    %2115 = vmatprep.subr.bf16.mxu0 %v1723
    %2116 = vmatpush1.bf16.msra.mxu0 %v1722
    %2117 = vmatprep.subr.bf16.mxu0 %v1843
    %2118 = vmatpush2.bf16.msra.mxu0 %v1842
    %2119 = vmatprep.subr.bf16.mxu0 %v1835
    %2120 = vmatpush2.bf16.msra.mxu0 %v1834
    %2121 = vmatprep.subr.bf16.mxu0 %v1827
    %2122 = vmatpush2.bf16.msra.mxu0 %v1826
    %2123 = vmatprep.subr.bf16.mxu0 %v1819
    %2124 = vmatpush2.bf16.msra.mxu0 %v1818
    %2125 = vmatprep.subr.bf16.mxu0 %v1811
    %2126 = vmatpush2.bf16.msra.mxu0 %v1810
    %2127 = vmatprep.subr.bf16.mxu0 %v1803
    %2128 = vmatpush2.bf16.msra.mxu0 %v1802
    %2129 = vmatprep.subr.bf16.mxu0 %v1795
    %2130 = vmatpush2.bf16.msra.mxu0 %v1794
    %2131 = vmatprep.subr.bf16.mxu0 %v1787
    %2132 = vmatpush2.bf16.msra.mxu0 %v1786
    %2133 = vmatprep.mubr.bf16.mxu0 %v327
    %2134 = vmatmul.mubr.bf16.gmra.mxu0 %v326
    %v2135 = vpop.f32.mrf.mxu0
    %v2136 = vadd.f32 %v1319, %v2135
    %v2137 = vpop.f32.mrf.mxu0
    %v2138 = vadd.f32 %v1323, %v2137
    %v2139 = vpop.f32.mrf.mxu0
    %v2140 = vadd.f32 %v1319, %v2139
    %v2141 = vpop.f32.mrf.mxu0
    %v2142 = vadd.f32 %v1323, %v2141
    %2143 = vdwg.mxu0
    %v2144 = vmax.f32 %v2007, %v2050
    %v2145 = vmax.f32 %v2009, %v2052
    %v2146 = vmax.f32 %v2011, %v2054
    %v2147 = vmax.f32 %v2013, %v2056
    %v2148 = vmax.f32 %v2093, %v2136
    %v2149 = vmax.f32 %v2095, %v2138
    %v2150 = vmax.f32 %v2097, %v2140
    %v2151 = vmax.f32 %v2099, %v2142
    %v2152 = vmax.f32 %v2144, %v2148
    %v2153 = vmax.f32 %v2145, %v2149
    %v2154 = vmax.f32 %v2146, %v2150
    %v2155 = vmax.f32 %v2147, %v2151
    %v2156 = vmax.f32 %v2152, 0.0
    %v2157 = vmax.f32 %v2153, 0.0
    %v2158 = vmax.f32 %v2154, 0.0
    %v2159 = vmax.f32 %v2155, 0.0
    %v2160 = vpack.c.bf16 %v2158, %v2156
    %v2161 = vpack.c.bf16 %v2159, %v2157
    %s2162 = scalar_lea.vmem [#allocation5], 2048
    %v2163 = vld [vmem:[%s2162] sm:$0xff]
    %v2164 = vld [vmem:[%s2162 + $0x8] sm:$0xff]
    %v2165 = vld [vmem:[%s2162 + $0x10] sm:$0xff]
    %v2166 = vld [vmem:[%s2162 + $0x18] sm:$0xff]
    %v2167 = vld [vmem:[%s2162 + $0x20] sm:$0xff]
    %v2168 = vld [vmem:[%s2162 + $0x28] sm:$0xff]
    %v2169 = vld [vmem:[%s2162 + $0x30] sm:$0xff]
    %v2170 = vld [vmem:[%s2162 + $0x38] sm:$0xff]
    %v2171 = vld [vmem:[%s2162 + $0x40] sm:$0xff]
    %v2172 = vld [vmem:[%s2162 + $0x48] sm:$0xff]
    %v2173 = vld [vmem:[%s2162 + $0x50] sm:$0xff]
    %v2174 = vld [vmem:[%s2162 + $0x58] sm:$0xff]
    %v2175 = vld [vmem:[%s2162 + $0x60] sm:$0xff]
    %v2176 = vld [vmem:[%s2162 + $0x68] sm:$0xff]
    %v2177 = vld [vmem:[%s2162 + $0x70] sm:$0xff]
    %v2178 = vld [vmem:[%s2162 + $0x78] sm:$0xff]
    %v2179 = vld [vmem:[%s2162 + $0x80] sm:$0xff]
    %v2180 = vld [vmem:[%s2162 + $0x88] sm:$0xff]
    %v2181 = vld [vmem:[%s2162 + $0x90] sm:$0xff]
    %v2182 = vld [vmem:[%s2162 + $0x98] sm:$0xff]
    %v2183 = vld [vmem:[%s2162 + $0xa0] sm:$0xff]
    %v2184 = vld [vmem:[%s2162 + $0xa8] sm:$0xff]
    %v2185 = vld [vmem:[%s2162 + $0xb0] sm:$0xff]
    %v2186 = vld [vmem:[%s2162 + $0xb8] sm:$0xff]
    %v2187 = vld [vmem:[%s2162 + $0xc0] sm:$0xff]
    %v2188 = vld [vmem:[%s2162 + $0xc8] sm:$0xff]
    %v2189 = vld [vmem:[%s2162 + $0xd0] sm:$0xff]
    %v2190 = vld [vmem:[%s2162 + $0xd8] sm:$0xff]
    %v2191 = vld [vmem:[%s2162 + $0xe0] sm:$0xff]
    %v2192 = vld [vmem:[%s2162 + $0xe8] sm:$0xff]
    %v2193 = vld [vmem:[%s2162 + $0xf0] sm:$0xff]
    %v2194 = vld [vmem:[%s2162 + $0xf8] sm:$0xff]
    %v2195 = vld [vmem:[%s2162 + $0x100] sm:$0xff]
    %v2196 = vld [vmem:[%s2162 + $0x108] sm:$0xff]
    %v2197 = vld [vmem:[%s2162 + $0x110] sm:$0xff]
    %v2198 = vld [vmem:[%s2162 + $0x118] sm:$0xff]
    %v2199 = vld [vmem:[%s2162 + $0x120] sm:$0xff]
    %v2200 = vld [vmem:[%s2162 + $0x128] sm:$0xff]
    %v2201 = vld [vmem:[%s2162 + $0x130] sm:$0xff]
    %v2202 = vld [vmem:[%s2162 + $0x138] sm:$0xff]
    %v2203 = vld [vmem:[%s2162 + $0x140] sm:$0xff]
    %v2204 = vld [vmem:[%s2162 + $0x148] sm:$0xff]
    %v2205 = vld [vmem:[%s2162 + $0x150] sm:$0xff]
    %v2206 = vld [vmem:[%s2162 + $0x158] sm:$0xff]
    %v2207 = vld [vmem:[%s2162 + $0x160] sm:$0xff]
    %v2208 = vld [vmem:[%s2162 + $0x168] sm:$0xff]
    %v2209 = vld [vmem:[%s2162 + $0x170] sm:$0xff]
    %v2210 = vld [vmem:[%s2162 + $0x178] sm:$0xff]
    %v2211 = vld [vmem:[%s2162 + $0x180] sm:$0xff]
    %v2212 = vld [vmem:[%s2162 + $0x188] sm:$0xff]
    %v2213 = vld [vmem:[%s2162 + $0x190] sm:$0xff]
    %v2214 = vld [vmem:[%s2162 + $0x198] sm:$0xff]
    %v2215 = vld [vmem:[%s2162 + $0x1a0] sm:$0xff]
    %v2216 = vld [vmem:[%s2162 + $0x1a8] sm:$0xff]
    %v2217 = vld [vmem:[%s2162 + $0x1b0] sm:$0xff]
    %v2218 = vld [vmem:[%s2162 + $0x1b8] sm:$0xff]
    %v2219 = vld [vmem:[%s2162 + $0x1c0] sm:$0xff]
    %v2220 = vld [vmem:[%s2162 + $0x1c8] sm:$0xff]
    %v2221 = vld [vmem:[%s2162 + $0x1d0] sm:$0xff]
    %v2222 = vld [vmem:[%s2162 + $0x1d8] sm:$0xff]
    %v2223 = vld [vmem:[%s2162 + $0x1e0] sm:$0xff]
    %v2224 = vld [vmem:[%s2162 + $0x1e8] sm:$0xff]
    %v2225 = vld [vmem:[%s2162 + $0x1f0] sm:$0xff]
    %v2226 = vld [vmem:[%s2162 + $0x1f8] sm:$0xff]
    %v2227 = vld [vmem:[%s2162 + $0x200] sm:$0xff]
    %v2228 = vld [vmem:[%s2162 + $0x208] sm:$0xff]
    %v2229 = vld [vmem:[%s2162 + $0x210] sm:$0xff]
    %v2230 = vld [vmem:[%s2162 + $0x218] sm:$0xff]
    %v2231 = vld [vmem:[%s2162 + $0x220] sm:$0xff]
    %v2232 = vld [vmem:[%s2162 + $0x228] sm:$0xff]
    %v2233 = vld [vmem:[%s2162 + $0x230] sm:$0xff]
    %v2234 = vld [vmem:[%s2162 + $0x238] sm:$0xff]
    %v2235 = vld [vmem:[%s2162 + $0x240] sm:$0xff]
    %v2236 = vld [vmem:[%s2162 + $0x248] sm:$0xff]
    %v2237 = vld [vmem:[%s2162 + $0x250] sm:$0xff]
    %v2238 = vld [vmem:[%s2162 + $0x258] sm:$0xff]
    %v2239 = vld [vmem:[%s2162 + $0x260] sm:$0xff]
    %v2240 = vld [vmem:[%s2162 + $0x268] sm:$0xff]
    %v2241 = vld [vmem:[%s2162 + $0x270] sm:$0xff]
    %v2242 = vld [vmem:[%s2162 + $0x278] sm:$0xff]
    %v2243 = vld [vmem:[%s2162 + $0x280] sm:$0xff]
    %v2244 = vld [vmem:[%s2162 + $0x288] sm:$0xff]
    %v2245 = vld [vmem:[%s2162 + $0x290] sm:$0xff]
    %v2246 = vld [vmem:[%s2162 + $0x298] sm:$0xff]
    %v2247 = vld [vmem:[%s2162 + $0x2a0] sm:$0xff]
    %v2248 = vld [vmem:[%s2162 + $0x2a8] sm:$0xff]
    %v2249 = vld [vmem:[%s2162 + $0x2b0] sm:$0xff]
    %v2250 = vld [vmem:[%s2162 + $0x2b8] sm:$0xff]
    %v2251 = vld [vmem:[%s2162 + $0x2c0] sm:$0xff]
    %v2252 = vld [vmem:[%s2162 + $0x2c8] sm:$0xff]
    %v2253 = vld [vmem:[%s2162 + $0x2d0] sm:$0xff]
    %v2254 = vld [vmem:[%s2162 + $0x2d8] sm:$0xff]
    %v2255 = vld [vmem:[%s2162 + $0x2e0] sm:$0xff]
    %v2256 = vld [vmem:[%s2162 + $0x2e8] sm:$0xff]
    %v2257 = vld [vmem:[%s2162 + $0x2f0] sm:$0xff]
    %v2258 = vld [vmem:[%s2162 + $0x2f8] sm:$0xff]
    %v2259 = vld [vmem:[%s2162 + $0x300] sm:$0xff]
    %v2260 = vld [vmem:[%s2162 + $0x308] sm:$0xff]
    %v2261 = vld [vmem:[%s2162 + $0x310] sm:$0xff]
    %v2262 = vld [vmem:[%s2162 + $0x318] sm:$0xff]
    %v2263 = vld [vmem:[%s2162 + $0x320] sm:$0xff]
    %v2264 = vld [vmem:[%s2162 + $0x328] sm:$0xff]
    %v2265 = vld [vmem:[%s2162 + $0x330] sm:$0xff]
    %v2266 = vld [vmem:[%s2162 + $0x338] sm:$0xff]
    %v2267 = vld [vmem:[%s2162 + $0x340] sm:$0xff]
    %v2268 = vld [vmem:[%s2162 + $0x348] sm:$0xff]
    %v2269 = vld [vmem:[%s2162 + $0x350] sm:$0xff]
    %v2270 = vld [vmem:[%s2162 + $0x358] sm:$0xff]
    %v2271 = vld [vmem:[%s2162 + $0x360] sm:$0xff]
    %v2272 = vld [vmem:[%s2162 + $0x368] sm:$0xff]
    %v2273 = vld [vmem:[%s2162 + $0x370] sm:$0xff]
    %v2274 = vld [vmem:[%s2162 + $0x378] sm:$0xff]
    %v2275 = vld [vmem:[%s2162 + $0x380] sm:$0xff]
    %v2276 = vld [vmem:[%s2162 + $0x388] sm:$0xff]
    %v2277 = vld [vmem:[%s2162 + $0x390] sm:$0xff]
    %v2278 = vld [vmem:[%s2162 + $0x398] sm:$0xff]
    %v2279 = vld [vmem:[%s2162 + $0x3a0] sm:$0xff]
    %v2280 = vld [vmem:[%s2162 + $0x3a8] sm:$0xff]
    %v2281 = vld [vmem:[%s2162 + $0x3b0] sm:$0xff]
    %v2282 = vld [vmem:[%s2162 + $0x3b8] sm:$0xff]
    %v2283 = vld [vmem:[%s2162 + $0x3c0] sm:$0xff]
    %v2284 = vld [vmem:[%s2162 + $0x3c8] sm:$0xff]
    %v2285 = vld [vmem:[%s2162 + $0x3d0] sm:$0xff]
    %v2286 = vld [vmem:[%s2162 + $0x3d8] sm:$0xff]
    %v2287 = vld [vmem:[%s2162 + $0x3e0] sm:$0xff]
    %v2288 = vld [vmem:[%s2162 + $0x3e8] sm:$0xff]
    %v2289 = vld [vmem:[%s2162 + $0x3f0] sm:$0xff]
    %v2290 = vld [vmem:[%s2162 + $0x3f8] sm:$0xff]
    %s2291 = scalar_lea.vmem [#allocation7], 2
    %v2292 = vld [vmem:[%s2291] ss:$4 sm:$0xff]
    %v2294 = vlaneseq
    %v2295 = vshrl.u32 %v2294, 7
    %v2296 = vsub.s32 0, %v2295
    %v2297 = vrot.slane %v2292, %v2296
    %v2298 = vlaneseq
    %v2299 = vshrl.u32 %v2298, 7
    %v2300 = vsub.s32 1, %v2299
    %v2301 = vrot.slane %v2292, %v2300
    %v2302 = vlaneseq
    %v2303 = vshrl.u32 %v2302, 7
    %v2304 = vsub.s32 2, %v2303
    %v2305 = vrot.slane %v2292, %v2304
    %v2306 = vlaneseq
    %v2307 = vshrl.u32 %v2306, 7
    %v2308 = vsub.s32 3, %v2307
    %v2309 = vrot.slane %v2292, %v2308
    %v2310 = vlaneseq
    %v2311 = vshrl.u32 %v2310, 7
    %v2312 = vsub.s32 4, %v2311
    %v2313 = vrot.slane %v2292, %v2312
    %v2314 = vlaneseq
    %v2315 = vshrl.u32 %v2314, 7
    %v2316 = vsub.s32 5, %v2315
    %v2317 = vrot.slane %v2292, %v2316
    %v2318 = vlaneseq
    %v2319 = vshrl.u32 %v2318, 7
    %v2320 = vsub.s32 6, %v2319
    %v2321 = vrot.slane %v2292, %v2320
    %v2322 = vlaneseq
    %v2323 = vshrl.u32 %v2322, 7
    %v2324 = vsub.s32 7, %v2323
    %v2325 = vrot.slane %v2292, %v2324
    %v2462 = vunpack.c.l.b16 %v2163
    %v2463 = vunpack.c.h.b16 %v2163
    %v2464 = vunpack.c.l.b16 %v2164
    %v2465 = vunpack.c.h.b16 %v2164
    %v2466 = vunpack.c.l.b16 %v2165
    %v2467 = vunpack.c.h.b16 %v2165
    %v2468 = vunpack.c.l.b16 %v2166
    %v2469 = vunpack.c.h.b16 %v2166
    %v2470 = vunpack.c.l.b16 %v2167
    %v2471 = vunpack.c.h.b16 %v2167
    %v2472 = vunpack.c.l.b16 %v2168
    %v2473 = vunpack.c.h.b16 %v2168
    %v2474 = vunpack.c.l.b16 %v2169
    %v2475 = vunpack.c.h.b16 %v2169
    %v2476 = vunpack.c.l.b16 %v2170
    %v2477 = vunpack.c.h.b16 %v2170
    %v2478 = vunpack.c.l.b16 %v2171
    %v2479 = vunpack.c.h.b16 %v2171
    %v2480 = vunpack.c.l.b16 %v2172
    %v2481 = vunpack.c.h.b16 %v2172
    %v2482 = vunpack.c.l.b16 %v2173
    %v2483 = vunpack.c.h.b16 %v2173
    %v2484 = vunpack.c.l.b16 %v2174
    %v2485 = vunpack.c.h.b16 %v2174
    %v2486 = vunpack.c.l.b16 %v2175
    %v2487 = vunpack.c.h.b16 %v2175
    %v2488 = vunpack.c.l.b16 %v2176
    %v2489 = vunpack.c.h.b16 %v2176
    %v2490 = vunpack.c.l.b16 %v2177
    %v2491 = vunpack.c.h.b16 %v2177
    %v2492 = vunpack.c.l.b16 %v2178
    %v2493 = vunpack.c.h.b16 %v2178
    %v2494 = vunpack.c.l.b16 %v2179
    %v2495 = vunpack.c.h.b16 %v2179
    %v2496 = vunpack.c.l.b16 %v2180
    %v2497 = vunpack.c.h.b16 %v2180
    %v2498 = vunpack.c.l.b16 %v2181
    %v2499 = vunpack.c.h.b16 %v2181
    %v2500 = vunpack.c.l.b16 %v2182
    %v2501 = vunpack.c.h.b16 %v2182
    %v2502 = vunpack.c.l.b16 %v2183
    %v2503 = vunpack.c.h.b16 %v2183
    %v2504 = vunpack.c.l.b16 %v2184
    %v2505 = vunpack.c.h.b16 %v2184
    %v2506 = vunpack.c.l.b16 %v2185
    %v2507 = vunpack.c.h.b16 %v2185
    %v2508 = vunpack.c.l.b16 %v2186
    %v2509 = vunpack.c.h.b16 %v2186
    %v2510 = vunpack.c.l.b16 %v2187
    %v2511 = vunpack.c.h.b16 %v2187
    %v2512 = vunpack.c.l.b16 %v2188
    %v2513 = vunpack.c.h.b16 %v2188
    %v2514 = vunpack.c.l.b16 %v2189
    %v2515 = vunpack.c.h.b16 %v2189
    %v2516 = vunpack.c.l.b16 %v2190
    %v2517 = vunpack.c.h.b16 %v2190
    %v2518 = vunpack.c.l.b16 %v2191
    %v2519 = vunpack.c.h.b16 %v2191
    %v2520 = vunpack.c.l.b16 %v2192
    %v2521 = vunpack.c.h.b16 %v2192
    %v2522 = vunpack.c.l.b16 %v2193
    %v2523 = vunpack.c.h.b16 %v2193
    %v2524 = vunpack.c.l.b16 %v2194
    %v2525 = vunpack.c.h.b16 %v2194
    %v2526 = vunpack.c.l.b16 %v2195
    %v2527 = vunpack.c.h.b16 %v2195
    %v2528 = vunpack.c.l.b16 %v2196
    %v2529 = vunpack.c.h.b16 %v2196
    %v2530 = vunpack.c.l.b16 %v2197
    %v2531 = vunpack.c.h.b16 %v2197
    %v2532 = vunpack.c.l.b16 %v2198
    %v2533 = vunpack.c.h.b16 %v2198
    %v2534 = vunpack.c.l.b16 %v2199
    %v2535 = vunpack.c.h.b16 %v2199
    %v2536 = vunpack.c.l.b16 %v2200
    %v2537 = vunpack.c.h.b16 %v2200
    %v2538 = vunpack.c.l.b16 %v2201
    %v2539 = vunpack.c.h.b16 %v2201
    %v2540 = vunpack.c.l.b16 %v2202
    %v2541 = vunpack.c.h.b16 %v2202
    %v2542 = vunpack.c.l.b16 %v2203
    %v2543 = vunpack.c.h.b16 %v2203
    %v2544 = vunpack.c.l.b16 %v2204
    %v2545 = vunpack.c.h.b16 %v2204
    %v2546 = vunpack.c.l.b16 %v2205
    %v2547 = vunpack.c.h.b16 %v2205
    %v2548 = vunpack.c.l.b16 %v2206
    %v2549 = vunpack.c.h.b16 %v2206
    %v2550 = vunpack.c.l.b16 %v2207
    %v2551 = vunpack.c.h.b16 %v2207
    %v2552 = vunpack.c.l.b16 %v2208
    %v2553 = vunpack.c.h.b16 %v2208
    %v2554 = vunpack.c.l.b16 %v2209
    %v2555 = vunpack.c.h.b16 %v2209
    %v2556 = vunpack.c.l.b16 %v2210
    %v2557 = vunpack.c.h.b16 %v2210
    %v2558 = vunpack.c.l.b16 %v2211
    %v2559 = vunpack.c.h.b16 %v2211
    %v2560 = vunpack.c.l.b16 %v2212
    %v2561 = vunpack.c.h.b16 %v2212
    %v2562 = vunpack.c.l.b16 %v2213
    %v2563 = vunpack.c.h.b16 %v2213
    %v2564 = vunpack.c.l.b16 %v2214
    %v2565 = vunpack.c.h.b16 %v2214
    %v2566 = vunpack.c.l.b16 %v2215
    %v2567 = vunpack.c.h.b16 %v2215
    %v2568 = vunpack.c.l.b16 %v2216
    %v2569 = vunpack.c.h.b16 %v2216
    %v2570 = vunpack.c.l.b16 %v2217
    %v2571 = vunpack.c.h.b16 %v2217
    %v2572 = vunpack.c.l.b16 %v2218
    %v2573 = vunpack.c.h.b16 %v2218
    %v2574 = vunpack.c.l.b16 %v2219
    %v2575 = vunpack.c.h.b16 %v2219
    %v2576 = vunpack.c.l.b16 %v2220
    %v2577 = vunpack.c.h.b16 %v2220
    %v2578 = vunpack.c.l.b16 %v2221
    %v2579 = vunpack.c.h.b16 %v2221
    %v2580 = vunpack.c.l.b16 %v2222
    %v2581 = vunpack.c.h.b16 %v2222
    %v2582 = vunpack.c.l.b16 %v2223
    %v2583 = vunpack.c.h.b16 %v2223
    %v2584 = vunpack.c.l.b16 %v2224
    %v2585 = vunpack.c.h.b16 %v2224
    %v2586 = vunpack.c.l.b16 %v2225
    %v2587 = vunpack.c.h.b16 %v2225
    %v2588 = vunpack.c.l.b16 %v2226
    %v2589 = vunpack.c.h.b16 %v2226
    %v2590 = vunpack.c.l.b16 %v2227
    %v2591 = vunpack.c.h.b16 %v2227
    %v2592 = vunpack.c.l.b16 %v2228
    %v2593 = vunpack.c.h.b16 %v2228
    %v2594 = vunpack.c.l.b16 %v2229
    %v2595 = vunpack.c.h.b16 %v2229
    %v2596 = vunpack.c.l.b16 %v2230
    %v2597 = vunpack.c.h.b16 %v2230
    %v2598 = vunpack.c.l.b16 %v2231
    %v2599 = vunpack.c.h.b16 %v2231
    %v2600 = vunpack.c.l.b16 %v2232
    %v2601 = vunpack.c.h.b16 %v2232
    %v2602 = vunpack.c.l.b16 %v2233
    %v2603 = vunpack.c.h.b16 %v2233
    %v2604 = vunpack.c.l.b16 %v2234
    %v2605 = vunpack.c.h.b16 %v2234
    %v2606 = vunpack.c.l.b16 %v2235
    %v2607 = vunpack.c.h.b16 %v2235
    %v2608 = vunpack.c.l.b16 %v2236
    %v2609 = vunpack.c.h.b16 %v2236
    %v2610 = vunpack.c.l.b16 %v2237
    %v2611 = vunpack.c.h.b16 %v2237
    %v2612 = vunpack.c.l.b16 %v2238
    %v2613 = vunpack.c.h.b16 %v2238
    %v2614 = vunpack.c.l.b16 %v2239
    %v2615 = vunpack.c.h.b16 %v2239
    %v2616 = vunpack.c.l.b16 %v2240
    %v2617 = vunpack.c.h.b16 %v2240
    %v2618 = vunpack.c.l.b16 %v2241
    %v2619 = vunpack.c.h.b16 %v2241
    %v2620 = vunpack.c.l.b16 %v2242
    %v2621 = vunpack.c.h.b16 %v2242
    %v2622 = vunpack.c.l.b16 %v2243
    %v2623 = vunpack.c.h.b16 %v2243
    %v2624 = vunpack.c.l.b16 %v2244
    %v2625 = vunpack.c.h.b16 %v2244
    %v2626 = vunpack.c.l.b16 %v2245
    %v2627 = vunpack.c.h.b16 %v2245
    %v2628 = vunpack.c.l.b16 %v2246
    %v2629 = vunpack.c.h.b16 %v2246
    %v2630 = vunpack.c.l.b16 %v2247
    %v2631 = vunpack.c.h.b16 %v2247
    %v2632 = vunpack.c.l.b16 %v2248
    %v2633 = vunpack.c.h.b16 %v2248
    %v2634 = vunpack.c.l.b16 %v2249
    %v2635 = vunpack.c.h.b16 %v2249
    %v2636 = vunpack.c.l.b16 %v2250
    %v2637 = vunpack.c.h.b16 %v2250
    %v2638 = vunpack.c.l.b16 %v2251
    %v2639 = vunpack.c.h.b16 %v2251
    %v2640 = vunpack.c.l.b16 %v2252
    %v2641 = vunpack.c.h.b16 %v2252
    %v2642 = vunpack.c.l.b16 %v2253
    %v2643 = vunpack.c.h.b16 %v2253
    %v2644 = vunpack.c.l.b16 %v2254
    %v2645 = vunpack.c.h.b16 %v2254
    %v2646 = vunpack.c.l.b16 %v2255
    %v2647 = vunpack.c.h.b16 %v2255
    %v2648 = vunpack.c.l.b16 %v2256
    %v2649 = vunpack.c.h.b16 %v2256
    %v2650 = vunpack.c.l.b16 %v2257
    %v2651 = vunpack.c.h.b16 %v2257
    %v2652 = vunpack.c.l.b16 %v2258
    %v2653 = vunpack.c.h.b16 %v2258
    %v2654 = vunpack.c.l.b16 %v2259
    %v2655 = vunpack.c.h.b16 %v2259
    %v2656 = vunpack.c.l.b16 %v2260
    %v2657 = vunpack.c.h.b16 %v2260
    %v2658 = vunpack.c.l.b16 %v2261
    %v2659 = vunpack.c.h.b16 %v2261
    %v2660 = vunpack.c.l.b16 %v2262
    %v2661 = vunpack.c.h.b16 %v2262
    %v2662 = vunpack.c.l.b16 %v2263
    %v2663 = vunpack.c.h.b16 %v2263
    %v2664 = vunpack.c.l.b16 %v2264
    %v2665 = vunpack.c.h.b16 %v2264
    %v2666 = vunpack.c.l.b16 %v2265
    %v2667 = vunpack.c.h.b16 %v2265
    %v2668 = vunpack.c.l.b16 %v2266
    %v2669 = vunpack.c.h.b16 %v2266
    %v2670 = vunpack.c.l.b16 %v2267
    %v2671 = vunpack.c.h.b16 %v2267
    %v2672 = vunpack.c.l.b16 %v2268
    %v2673 = vunpack.c.h.b16 %v2268
    %v2674 = vunpack.c.l.b16 %v2269
    %v2675 = vunpack.c.h.b16 %v2269
    %v2676 = vunpack.c.l.b16 %v2270
    %v2677 = vunpack.c.h.b16 %v2270
    %v2678 = vunpack.c.l.b16 %v2271
    %v2679 = vunpack.c.h.b16 %v2271
    %v2680 = vunpack.c.l.b16 %v2272
    %v2681 = vunpack.c.h.b16 %v2272
    %v2682 = vunpack.c.l.b16 %v2273
    %v2683 = vunpack.c.h.b16 %v2273
    %v2684 = vunpack.c.l.b16 %v2274
    %v2685 = vunpack.c.h.b16 %v2274
    %v2686 = vunpack.c.l.b16 %v2275
    %v2687 = vunpack.c.h.b16 %v2275
    %v2688 = vunpack.c.l.b16 %v2276
    %v2689 = vunpack.c.h.b16 %v2276
    %v2690 = vunpack.c.l.b16 %v2277
    %v2691 = vunpack.c.h.b16 %v2277
    %v2692 = vunpack.c.l.b16 %v2278
    %v2693 = vunpack.c.h.b16 %v2278
    %v2694 = vunpack.c.l.b16 %v2279
    %v2695 = vunpack.c.h.b16 %v2279
    %v2696 = vunpack.c.l.b16 %v2280
    %v2697 = vunpack.c.h.b16 %v2280
    %v2698 = vunpack.c.l.b16 %v2281
    %v2699 = vunpack.c.h.b16 %v2281
    %v2700 = vunpack.c.l.b16 %v2282
    %v2701 = vunpack.c.h.b16 %v2282
    %v2702 = vunpack.c.l.b16 %v2283
    %v2703 = vunpack.c.h.b16 %v2283
    %v2704 = vunpack.c.l.b16 %v2284
    %v2705 = vunpack.c.h.b16 %v2284
    %v2706 = vunpack.c.l.b16 %v2285
    %v2707 = vunpack.c.h.b16 %v2285
    %v2708 = vunpack.c.l.b16 %v2286
    %v2709 = vunpack.c.h.b16 %v2286
    %v2710 = vunpack.c.l.b16 %v2287
    %v2711 = vunpack.c.h.b16 %v2287
    %v2712 = vunpack.c.l.b16 %v2288
    %v2713 = vunpack.c.h.b16 %v2288
    %v2714 = vunpack.c.l.b16 %v2289
    %v2715 = vunpack.c.h.b16 %v2289
    %v2716 = vunpack.c.l.b16 %v2290
    %v2717 = vunpack.c.h.b16 %v2290
    %v2718 = vpack.c.b16 %v2470, %v2462
    %v2719 = vpack.c.b16 %v2471, %v2463
    %v2720 = vpack.c.b16 %v2472, %v2464
    %v2721 = vpack.c.b16 %v2473, %v2465
    %v2722 = vpack.c.b16 %v2474, %v2466
    %v2723 = vpack.c.b16 %v2475, %v2467
    %v2724 = vpack.c.b16 %v2476, %v2468
    %v2725 = vpack.c.b16 %v2477, %v2469
    %v2726 = vpack.c.b16 %v2486, %v2478
    %v2727 = vpack.c.b16 %v2487, %v2479
    %v2728 = vpack.c.b16 %v2488, %v2480
    %v2729 = vpack.c.b16 %v2489, %v2481
    %v2730 = vpack.c.b16 %v2490, %v2482
    %v2731 = vpack.c.b16 %v2491, %v2483
    %v2732 = vpack.c.b16 %v2492, %v2484
    %v2733 = vpack.c.b16 %v2493, %v2485
    %v2734 = vpack.c.b16 %v2502, %v2494
    %v2735 = vpack.c.b16 %v2503, %v2495
    %v2736 = vpack.c.b16 %v2504, %v2496
    %v2737 = vpack.c.b16 %v2505, %v2497
    %v2738 = vpack.c.b16 %v2506, %v2498
    %v2739 = vpack.c.b16 %v2507, %v2499
    %v2740 = vpack.c.b16 %v2508, %v2500
    %v2741 = vpack.c.b16 %v2509, %v2501
    %v2742 = vpack.c.b16 %v2518, %v2510
    %v2743 = vpack.c.b16 %v2519, %v2511
    %v2744 = vpack.c.b16 %v2520, %v2512
    %v2745 = vpack.c.b16 %v2521, %v2513
    %v2746 = vpack.c.b16 %v2522, %v2514
    %v2747 = vpack.c.b16 %v2523, %v2515
    %v2748 = vpack.c.b16 %v2524, %v2516
    %v2749 = vpack.c.b16 %v2525, %v2517
    %v2750 = vpack.c.b16 %v2534, %v2526
    %v2751 = vpack.c.b16 %v2535, %v2527
    %v2752 = vpack.c.b16 %v2536, %v2528
    %v2753 = vpack.c.b16 %v2537, %v2529
    %v2754 = vpack.c.b16 %v2538, %v2530
    %v2755 = vpack.c.b16 %v2539, %v2531
    %v2756 = vpack.c.b16 %v2540, %v2532
    %v2757 = vpack.c.b16 %v2541, %v2533
    %v2758 = vpack.c.b16 %v2550, %v2542
    %v2759 = vpack.c.b16 %v2551, %v2543
    %v2760 = vpack.c.b16 %v2552, %v2544
    %v2761 = vpack.c.b16 %v2553, %v2545
    %v2762 = vpack.c.b16 %v2554, %v2546
    %v2763 = vpack.c.b16 %v2555, %v2547
    %v2764 = vpack.c.b16 %v2556, %v2548
    %v2765 = vpack.c.b16 %v2557, %v2549
    %v2766 = vpack.c.b16 %v2566, %v2558
    %v2767 = vpack.c.b16 %v2567, %v2559
    %v2768 = vpack.c.b16 %v2568, %v2560
    %v2769 = vpack.c.b16 %v2569, %v2561
    %v2770 = vpack.c.b16 %v2570, %v2562
    %v2771 = vpack.c.b16 %v2571, %v2563
    %v2772 = vpack.c.b16 %v2572, %v2564
    %v2773 = vpack.c.b16 %v2573, %v2565
    %v2774 = vpack.c.b16 %v2582, %v2574
    %v2775 = vpack.c.b16 %v2583, %v2575
    %v2776 = vpack.c.b16 %v2584, %v2576
    %v2777 = vpack.c.b16 %v2585, %v2577
    %v2778 = vpack.c.b16 %v2586, %v2578
    %v2779 = vpack.c.b16 %v2587, %v2579
    %v2780 = vpack.c.b16 %v2588, %v2580
    %v2781 = vpack.c.b16 %v2589, %v2581
    %v2782 = vpack.c.b16 %v2598, %v2590
    %v2783 = vpack.c.b16 %v2599, %v2591
    %v2784 = vpack.c.b16 %v2600, %v2592
    %v2785 = vpack.c.b16 %v2601, %v2593
    %v2786 = vpack.c.b16 %v2602, %v2594
    %v2787 = vpack.c.b16 %v2603, %v2595
    %v2788 = vpack.c.b16 %v2604, %v2596
    %v2789 = vpack.c.b16 %v2605, %v2597
    %v2790 = vpack.c.b16 %v2614, %v2606
    %v2791 = vpack.c.b16 %v2615, %v2607
    %v2792 = vpack.c.b16 %v2616, %v2608
    %v2793 = vpack.c.b16 %v2617, %v2609
    %v2794 = vpack.c.b16 %v2618, %v2610
    %v2795 = vpack.c.b16 %v2619, %v2611
    %v2796 = vpack.c.b16 %v2620, %v2612
    %v2797 = vpack.c.b16 %v2621, %v2613
    %v2798 = vpack.c.b16 %v2630, %v2622
    %v2799 = vpack.c.b16 %v2631, %v2623
    %v2800 = vpack.c.b16 %v2632, %v2624
    %v2801 = vpack.c.b16 %v2633, %v2625
    %v2802 = vpack.c.b16 %v2634, %v2626
    %v2803 = vpack.c.b16 %v2635, %v2627
    %v2804 = vpack.c.b16 %v2636, %v2628
    %v2805 = vpack.c.b16 %v2637, %v2629
    %v2806 = vpack.c.b16 %v2646, %v2638
    %v2807 = vpack.c.b16 %v2647, %v2639
    %v2808 = vpack.c.b16 %v2648, %v2640
    %v2809 = vpack.c.b16 %v2649, %v2641
    %v2810 = vpack.c.b16 %v2650, %v2642
    %v2811 = vpack.c.b16 %v2651, %v2643
    %v2812 = vpack.c.b16 %v2652, %v2644
    %v2813 = vpack.c.b16 %v2653, %v2645
    %v2814 = vpack.c.b16 %v2662, %v2654
    %v2815 = vpack.c.b16 %v2663, %v2655
    %v2816 = vpack.c.b16 %v2664, %v2656
    %v2817 = vpack.c.b16 %v2665, %v2657
    %v2818 = vpack.c.b16 %v2666, %v2658
    %v2819 = vpack.c.b16 %v2667, %v2659
    %v2820 = vpack.c.b16 %v2668, %v2660
    %v2821 = vpack.c.b16 %v2669, %v2661
    %v2822 = vpack.c.b16 %v2678, %v2670
    %v2823 = vpack.c.b16 %v2679, %v2671
    %v2824 = vpack.c.b16 %v2680, %v2672
    %v2825 = vpack.c.b16 %v2681, %v2673
    %v2826 = vpack.c.b16 %v2682, %v2674
    %v2827 = vpack.c.b16 %v2683, %v2675
    %v2828 = vpack.c.b16 %v2684, %v2676
    %v2829 = vpack.c.b16 %v2685, %v2677
    %v2830 = vpack.c.b16 %v2694, %v2686
    %v2831 = vpack.c.b16 %v2695, %v2687
    %v2832 = vpack.c.b16 %v2696, %v2688
    %v2833 = vpack.c.b16 %v2697, %v2689
    %v2834 = vpack.c.b16 %v2698, %v2690
    %v2835 = vpack.c.b16 %v2699, %v2691
    %v2836 = vpack.c.b16 %v2700, %v2692
    %v2837 = vpack.c.b16 %v2701, %v2693
    %v2838 = vpack.c.b16 %v2710, %v2702
    %v2839 = vpack.c.b16 %v2711, %v2703
    %v2840 = vpack.c.b16 %v2712, %v2704
    %v2841 = vpack.c.b16 %v2713, %v2705
    %v2842 = vpack.c.b16 %v2714, %v2706
    %v2843 = vpack.c.b16 %v2715, %v2707
    %v2844 = vpack.c.b16 %v2716, %v2708
    %v2845 = vpack.c.b16 %v2717, %v2709
    %2974 = vmatprep.subr.bf16.mxu0 %v2775
    %2975 = vmatpush1.bf16.msra.mxu0 %v2774
    %2976 = vmatprep.subr.bf16.mxu0 %v2767
    %2977 = vmatpush1.bf16.msra.mxu0 %v2766
    %2978 = vmatprep.subr.bf16.mxu0 %v2759
    %2979 = vmatpush1.bf16.msra.mxu0 %v2758
    %2980 = vmatprep.subr.bf16.mxu0 %v2751
    %2981 = vmatpush1.bf16.msra.mxu0 %v2750
    %2982 = vmatprep.subr.bf16.mxu0 %v2743
    %2983 = vmatpush1.bf16.msra.mxu0 %v2742
    %2984 = vmatprep.subr.bf16.mxu0 %v2735
    %2985 = vmatpush1.bf16.msra.mxu0 %v2734
    %2986 = vmatprep.subr.bf16.mxu0 %v2727
    %2987 = vmatpush1.bf16.msra.mxu0 %v2726
    %2988 = vmatprep.subr.bf16.mxu0 %v2719
    %2989 = vmatpush1.bf16.msra.mxu0 %v2718
    %2990 = vmatprep.subr.bf16.mxu0 %v2839
    %2991 = vmatpush2.bf16.msra.mxu0 %v2838
    %2992 = vmatprep.subr.bf16.mxu0 %v2831
    %2993 = vmatpush2.bf16.msra.mxu0 %v2830
    %2994 = vmatprep.subr.bf16.mxu0 %v2823
    %2995 = vmatpush2.bf16.msra.mxu0 %v2822
    %2996 = vmatprep.subr.bf16.mxu0 %v2815
    %2997 = vmatpush2.bf16.msra.mxu0 %v2814
    %2998 = vmatprep.subr.bf16.mxu0 %v2807
    %2999 = vmatpush2.bf16.msra.mxu0 %v2806
    %3000 = vmatprep.subr.bf16.mxu0 %v2799
    %3001 = vmatpush2.bf16.msra.mxu0 %v2798
    %3002 = vmatprep.subr.bf16.mxu0 %v2791
    %3003 = vmatpush2.bf16.msra.mxu0 %v2790
    %3004 = vmatprep.subr.bf16.mxu0 %v2783
    %3005 = vmatpush2.bf16.msra.mxu0 %v2782
    %3006 = vmatprep.mubr.bf16.mxu0 %v327
    %3007 = vmatmul.mubr.bf16.gmra.mxu0 %v326
    %v3008 = vpop.f32.mrf.mxu0
    %v3009 = vadd.f32 %v2297, %v3008
    %v3010 = vpop.f32.mrf.mxu0
    %v3011 = vadd.f32 %v2301, %v3010
    %v3012 = vpop.f32.mrf.mxu0
    %v3013 = vadd.f32 %v2297, %v3012
    %v3014 = vpop.f32.mrf.mxu0
    %v3015 = vadd.f32 %v2301, %v3014
    %3016 = vdwg.mxu0
    %3017 = vmatprep.subr.bf16.mxu0 %v2777
    %3018 = vmatpush1.bf16.msra.mxu0 %v2776
    %3019 = vmatprep.subr.bf16.mxu0 %v2769
    %3020 = vmatpush1.bf16.msra.mxu0 %v2768
    %3021 = vmatprep.subr.bf16.mxu0 %v2761
    %3022 = vmatpush1.bf16.msra.mxu0 %v2760
    %3023 = vmatprep.subr.bf16.mxu0 %v2753
    %3024 = vmatpush1.bf16.msra.mxu0 %v2752
    %3025 = vmatprep.subr.bf16.mxu0 %v2745
    %3026 = vmatpush1.bf16.msra.mxu0 %v2744
    %3027 = vmatprep.subr.bf16.mxu0 %v2737
    %3028 = vmatpush1.bf16.msra.mxu0 %v2736
    %3029 = vmatprep.subr.bf16.mxu0 %v2729
    %3030 = vmatpush1.bf16.msra.mxu0 %v2728
    %3031 = vmatprep.subr.bf16.mxu0 %v2721
    %3032 = vmatpush1.bf16.msra.mxu0 %v2720
    %3033 = vmatprep.subr.bf16.mxu0 %v2841
    %3034 = vmatpush2.bf16.msra.mxu0 %v2840
    %3035 = vmatprep.subr.bf16.mxu0 %v2833
    %3036 = vmatpush2.bf16.msra.mxu0 %v2832
    %3037 = vmatprep.subr.bf16.mxu0 %v2825
    %3038 = vmatpush2.bf16.msra.mxu0 %v2824
    %3039 = vmatprep.subr.bf16.mxu0 %v2817
    %3040 = vmatpush2.bf16.msra.mxu0 %v2816
    %3041 = vmatprep.subr.bf16.mxu0 %v2809
    %3042 = vmatpush2.bf16.msra.mxu0 %v2808
    %3043 = vmatprep.subr.bf16.mxu0 %v2801
    %3044 = vmatpush2.bf16.msra.mxu0 %v2800
    %3045 = vmatprep.subr.bf16.mxu0 %v2793
    %3046 = vmatpush2.bf16.msra.mxu0 %v2792
    %3047 = vmatprep.subr.bf16.mxu0 %v2785
    %3048 = vmatpush2.bf16.msra.mxu0 %v2784
    %3049 = vmatprep.mubr.bf16.mxu0 %v327
    %3050 = vmatmul.mubr.bf16.gmra.mxu0 %v326
    %v3051 = vpop.f32.mrf.mxu0
    %v3052 = vadd.f32 %v2305, %v3051
    %v3053 = vpop.f32.mrf.mxu0
    %v3054 = vadd.f32 %v2309, %v3053
    %v3055 = vpop.f32.mrf.mxu0
    %v3056 = vadd.f32 %v2305, %v3055
    %v3057 = vpop.f32.mrf.mxu0
    %v3058 = vadd.f32 %v2309, %v3057
    %3059 = vdwg.mxu0
    %3060 = vmatprep.subr.bf16.mxu0 %v2779
    %3061 = vmatpush1.bf16.msra.mxu0 %v2778
    %3062 = vmatprep.subr.bf16.mxu0 %v2771
    %3063 = vmatpush1.bf16.msra.mxu0 %v2770
    %3064 = vmatprep.subr.bf16.mxu0 %v2763
    %3065 = vmatpush1.bf16.msra.mxu0 %v2762
    %3066 = vmatprep.subr.bf16.mxu0 %v2755
    %3067 = vmatpush1.bf16.msra.mxu0 %v2754
    %3068 = vmatprep.subr.bf16.mxu0 %v2747
    %3069 = vmatpush1.bf16.msra.mxu0 %v2746
    %3070 = vmatprep.subr.bf16.mxu0 %v2739
    %3071 = vmatpush1.bf16.msra.mxu0 %v2738
    %3072 = vmatprep.subr.bf16.mxu0 %v2731
    %3073 = vmatpush1.bf16.msra.mxu0 %v2730
    %3074 = vmatprep.subr.bf16.mxu0 %v2723
    %3075 = vmatpush1.bf16.msra.mxu0 %v2722
    %3076 = vmatprep.subr.bf16.mxu0 %v2843
    %3077 = vmatpush2.bf16.msra.mxu0 %v2842
    %3078 = vmatprep.subr.bf16.mxu0 %v2835
    %3079 = vmatpush2.bf16.msra.mxu0 %v2834
    %3080 = vmatprep.subr.bf16.mxu0 %v2827
    %3081 = vmatpush2.bf16.msra.mxu0 %v2826
    %3082 = vmatprep.subr.bf16.mxu0 %v2819
    %3083 = vmatpush2.bf16.msra.mxu0 %v2818
    %3084 = vmatprep.subr.bf16.mxu0 %v2811
    %3085 = vmatpush2.bf16.msra.mxu0 %v2810
    %3086 = vmatprep.subr.bf16.mxu0 %v2803
    %3087 = vmatpush2.bf16.msra.mxu0 %v2802
    %3088 = vmatprep.subr.bf16.mxu0 %v2795
    %3089 = vmatpush2.bf16.msra.mxu0 %v2794
    %3090 = vmatprep.subr.bf16.mxu0 %v2787
    %3091 = vmatpush2.bf16.msra.mxu0 %v2786
    %3092 = vmatprep.mubr.bf16.mxu0 %v327
    %3093 = vmatmul.mubr.bf16.gmra.mxu0 %v326
    %v3094 = vpop.f32.mrf.mxu0
    %v3095 = vadd.f32 %v2313, %v3094
    %v3096 = vpop.f32.mrf.mxu0
    %v3097 = vadd.f32 %v2317, %v3096
    %v3098 = vpop.f32.mrf.mxu0
    %v3099 = vadd.f32 %v2313, %v3098
    %v3100 = vpop.f32.mrf.mxu0
    %v3101 = vadd.f32 %v2317, %v3100
    %3102 = vdwg.mxu0
    %3103 = vmatprep.subr.bf16.mxu0 %v2781
    %3104 = vmatpush1.bf16.msra.mxu0 %v2780
    %3105 = vmatprep.subr.bf16.mxu0 %v2773
    %3106 = vmatpush1.bf16.msra.mxu0 %v2772
    %3107 = vmatprep.subr.bf16.mxu0 %v2765
    %3108 = vmatpush1.bf16.msra.mxu0 %v2764
    %3109 = vmatprep.subr.bf16.mxu0 %v2757
    %3110 = vmatpush1.bf16.msra.mxu0 %v2756
    %3111 = vmatprep.subr.bf16.mxu0 %v2749
    %3112 = vmatpush1.bf16.msra.mxu0 %v2748
    %3113 = vmatprep.subr.bf16.mxu0 %v2741
    %3114 = vmatpush1.bf16.msra.mxu0 %v2740
    %3115 = vmatprep.subr.bf16.mxu0 %v2733
    %3116 = vmatpush1.bf16.msra.mxu0 %v2732
    %3117 = vmatprep.subr.bf16.mxu0 %v2725
    %3118 = vmatpush1.bf16.msra.mxu0 %v2724
    %3119 = vmatprep.subr.bf16.mxu0 %v2845
    %3120 = vmatpush2.bf16.msra.mxu0 %v2844
    %3121 = vmatprep.subr.bf16.mxu0 %v2837
    %3122 = vmatpush2.bf16.msra.mxu0 %v2836
    %3123 = vmatprep.subr.bf16.mxu0 %v2829
    %3124 = vmatpush2.bf16.msra.mxu0 %v2828
    %3125 = vmatprep.subr.bf16.mxu0 %v2821
    %3126 = vmatpush2.bf16.msra.mxu0 %v2820
    %3127 = vmatprep.subr.bf16.mxu0 %v2813
    %3128 = vmatpush2.bf16.msra.mxu0 %v2812
    %3129 = vmatprep.subr.bf16.mxu0 %v2805
    %3130 = vmatpush2.bf16.msra.mxu0 %v2804
    %3131 = vmatprep.subr.bf16.mxu0 %v2797
    %3132 = vmatpush2.bf16.msra.mxu0 %v2796
    %3133 = vmatprep.subr.bf16.mxu0 %v2789
    %3134 = vmatpush2.bf16.msra.mxu0 %v2788
    %3135 = vmatprep.mubr.bf16.mxu0 %v327
    %3136 = vmatmul.mubr.bf16.gmra.mxu0 %v326
    %v3137 = vpop.f32.mrf.mxu0
    %v3138 = vadd.f32 %v2321, %v3137
    %v3139 = vpop.f32.mrf.mxu0
    %v3140 = vadd.f32 %v2325, %v3139
    %v3141 = vpop.f32.mrf.mxu0
    %v3142 = vadd.f32 %v2321, %v3141
    %v3143 = vpop.f32.mrf.mxu0
    %v3144 = vadd.f32 %v2325, %v3143
    %3145 = vdwg.mxu0
    %v3146 = vmax.f32 %v3009, %v3052
    %v3147 = vmax.f32 %v3011, %v3054
    %v3148 = vmax.f32 %v3013, %v3056
    %v3149 = vmax.f32 %v3015, %v3058
    %v3150 = vmax.f32 %v3095, %v3138
    %v3151 = vmax.f32 %v3097, %v3140
    %v3152 = vmax.f32 %v3099, %v3142
    %v3153 = vmax.f32 %v3101, %v3144
    %v3154 = vmax.f32 %v3146, %v3150
    %v3155 = vmax.f32 %v3147, %v3151
    %v3156 = vmax.f32 %v3148, %v3152
    %v3157 = vmax.f32 %v3149, %v3153
    %v3158 = vmax.f32 %v3154, 0.0
    %v3159 = vmax.f32 %v3155, 0.0
    %v3160 = vmax.f32 %v3156, 0.0
    %v3161 = vmax.f32 %v3157, 0.0
    %v3162 = vpack.c.bf16 %v3160, %v3158
    %v3163 = vpack.c.bf16 %v3161, %v3159
    %s3164 = scalar_lea.vmem [#allocation5], 3072
    %v3165 = vld [vmem:[%s3164] sm:$0xff]
    %v3166 = vld [vmem:[%s3164 + $0x8] sm:$0xff]
    %v3167 = vld [vmem:[%s3164 + $0x10] sm:$0xff]
    %v3168 = vld [vmem:[%s3164 + $0x18] sm:$0xff]
    %v3169 = vld [vmem:[%s3164 + $0x20] sm:$0xff]
    %v3170 = vld [vmem:[%s3164 + $0x28] sm:$0xff]
    %v3171 = vld [vmem:[%s3164 + $0x30] sm:$0xff]
    %v3172 = vld [vmem:[%s3164 + $0x38] sm:$0xff]
    %v3173 = vld [vmem:[%s3164 + $0x40] sm:$0xff]
    %v3174 = vld [vmem:[%s3164 + $0x48] sm:$0xff]
    %v3175 = vld [vmem:[%s3164 + $0x50] sm:$0xff]
    %v3176 = vld [vmem:[%s3164 + $0x58] sm:$0xff]
    %v3177 = vld [vmem:[%s3164 + $0x60] sm:$0xff]
    %v3178 = vld [vmem:[%s3164 + $0x68] sm:$0xff]
    %v3179 = vld [vmem:[%s3164 + $0x70] sm:$0xff]
    %v3180 = vld [vmem:[%s3164 + $0x78] sm:$0xff]
    %v3181 = vld [vmem:[%s3164 + $0x80] sm:$0xff]
    %v3182 = vld [vmem:[%s3164 + $0x88] sm:$0xff]
    %v3183 = vld [vmem:[%s3164 + $0x90] sm:$0xff]
    %v3184 = vld [vmem:[%s3164 + $0x98] sm:$0xff]
    %v3185 = vld [vmem:[%s3164 + $0xa0] sm:$0xff]
    %v3186 = vld [vmem:[%s3164 + $0xa8] sm:$0xff]
    %v3187 = vld [vmem:[%s3164 + $0xb0] sm:$0xff]
    %v3188 = vld [vmem:[%s3164 + $0xb8] sm:$0xff]
    %v3189 = vld [vmem:[%s3164 + $0xc0] sm:$0xff]
    %v3190 = vld [vmem:[%s3164 + $0xc8] sm:$0xff]
    %v3191 = vld [vmem:[%s3164 + $0xd0] sm:$0xff]
    %v3192 = vld [vmem:[%s3164 + $0xd8] sm:$0xff]
    %v3193 = vld [vmem:[%s3164 + $0xe0] sm:$0xff]
    %v3194 = vld [vmem:[%s3164 + $0xe8] sm:$0xff]
    %v3195 = vld [vmem:[%s3164 + $0xf0] sm:$0xff]
    %v3196 = vld [vmem:[%s3164 + $0xf8] sm:$0xff]
    %v3197 = vld [vmem:[%s3164 + $0x100] sm:$0xff]
    %v3198 = vld [vmem:[%s3164 + $0x108] sm:$0xff]
    %v3199 = vld [vmem:[%s3164 + $0x110] sm:$0xff]
    %v3200 = vld [vmem:[%s3164 + $0x118] sm:$0xff]
    %v3201 = vld [vmem:[%s3164 + $0x120] sm:$0xff]
    %v3202 = vld [vmem:[%s3164 + $0x128] sm:$0xff]
    %v3203 = vld [vmem:[%s3164 + $0x130] sm:$0xff]
    %v3204 = vld [vmem:[%s3164 + $0x138] sm:$0xff]
    %v3205 = vld [vmem:[%s3164 + $0x140] sm:$0xff]
    %v3206 = vld [vmem:[%s3164 + $0x148] sm:$0xff]
    %v3207 = vld [vmem:[%s3164 + $0x150] sm:$0xff]
    %v3208 = vld [vmem:[%s3164 + $0x158] sm:$0xff]
    %v3209 = vld [vmem:[%s3164 + $0x160] sm:$0xff]
    %v3210 = vld [vmem:[%s3164 + $0x168] sm:$0xff]
    %v3211 = vld [vmem:[%s3164 + $0x170] sm:$0xff]
    %v3212 = vld [vmem:[%s3164 + $0x178] sm:$0xff]
    %v3213 = vld [vmem:[%s3164 + $0x180] sm:$0xff]
    %v3214 = vld [vmem:[%s3164 + $0x188] sm:$0xff]
    %v3215 = vld [vmem:[%s3164 + $0x190] sm:$0xff]
    %v3216 = vld [vmem:[%s3164 + $0x198] sm:$0xff]
    %v3217 = vld [vmem:[%s3164 + $0x1a0] sm:$0xff]
    %v3218 = vld [vmem:[%s3164 + $0x1a8] sm:$0xff]
    %v3219 = vld [vmem:[%s3164 + $0x1b0] sm:$0xff]
    %v3220 = vld [vmem:[%s3164 + $0x1b8] sm:$0xff]
    %v3221 = vld [vmem:[%s3164 + $0x1c0] sm:$0xff]
    %v3222 = vld [vmem:[%s3164 + $0x1c8] sm:$0xff]
    %v3223 = vld [vmem:[%s3164 + $0x1d0] sm:$0xff]
    %v3224 = vld [vmem:[%s3164 + $0x1d8] sm:$0xff]
    %v3225 = vld [vmem:[%s3164 + $0x1e0] sm:$0xff]
    %v3226 = vld [vmem:[%s3164 + $0x1e8] sm:$0xff]
    %v3227 = vld [vmem:[%s3164 + $0x1f0] sm:$0xff]
    %v3228 = vld [vmem:[%s3164 + $0x1f8] sm:$0xff]
    %v3229 = vld [vmem:[%s3164 + $0x200] sm:$0xff]
    %v3230 = vld [vmem:[%s3164 + $0x208] sm:$0xff]
    %v3231 = vld [vmem:[%s3164 + $0x210] sm:$0xff]
    %v3232 = vld [vmem:[%s3164 + $0x218] sm:$0xff]
    %v3233 = vld [vmem:[%s3164 + $0x220] sm:$0xff]
    %v3234 = vld [vmem:[%s3164 + $0x228] sm:$0xff]
    %v3235 = vld [vmem:[%s3164 + $0x230] sm:$0xff]
    %v3236 = vld [vmem:[%s3164 + $0x238] sm:$0xff]
    %v3237 = vld [vmem:[%s3164 + $0x240] sm:$0xff]
    %v3238 = vld [vmem:[%s3164 + $0x248] sm:$0xff]
    %v3239 = vld [vmem:[%s3164 + $0x250] sm:$0xff]
    %v3240 = vld [vmem:[%s3164 + $0x258] sm:$0xff]
    %v3241 = vld [vmem:[%s3164 + $0x260] sm:$0xff]
    %v3242 = vld [vmem:[%s3164 + $0x268] sm:$0xff]
    %v3243 = vld [vmem:[%s3164 + $0x270] sm:$0xff]
    %v3244 = vld [vmem:[%s3164 + $0x278] sm:$0xff]
    %v3245 = vld [vmem:[%s3164 + $0x280] sm:$0xff]
    %v3246 = vld [vmem:[%s3164 + $0x288] sm:$0xff]
    %v3247 = vld [vmem:[%s3164 + $0x290] sm:$0xff]
    %v3248 = vld [vmem:[%s3164 + $0x298] sm:$0xff]
    %v3249 = vld [vmem:[%s3164 + $0x2a0] sm:$0xff]
    %v3250 = vld [vmem:[%s3164 + $0x2a8] sm:$0xff]
    %v3251 = vld [vmem:[%s3164 + $0x2b0] sm:$0xff]
    %v3252 = vld [vmem:[%s3164 + $0x2b8] sm:$0xff]
    %v3253 = vld [vmem:[%s3164 + $0x2c0] sm:$0xff]
    %v3254 = vld [vmem:[%s3164 + $0x2c8] sm:$0xff]
    %v3255 = vld [vmem:[%s3164 + $0x2d0] sm:$0xff]
    %v3256 = vld [vmem:[%s3164 + $0x2d8] sm:$0xff]
    %v3257 = vld [vmem:[%s3164 + $0x2e0] sm:$0xff]
    %v3258 = vld [vmem:[%s3164 + $0x2e8] sm:$0xff]
    %v3259 = vld [vmem:[%s3164 + $0x2f0] sm:$0xff]
    %v3260 = vld [vmem:[%s3164 + $0x2f8] sm:$0xff]
    %v3261 = vld [vmem:[%s3164 + $0x300] sm:$0xff]
    %v3262 = vld [vmem:[%s3164 + $0x308] sm:$0xff]
    %v3263 = vld [vmem:[%s3164 + $0x310] sm:$0xff]
    %v3264 = vld [vmem:[%s3164 + $0x318] sm:$0xff]
    %v3265 = vld [vmem:[%s3164 + $0x320] sm:$0xff]
    %v3266 = vld [vmem:[%s3164 + $0x328] sm:$0xff]
    %v3267 = vld [vmem:[%s3164 + $0x330] sm:$0xff]
    %v3268 = vld [vmem:[%s3164 + $0x338] sm:$0xff]
    %v3269 = vld [vmem:[%s3164 + $0x340] sm:$0xff]
    %v3270 = vld [vmem:[%s3164 + $0x348] sm:$0xff]
    %v3271 = vld [vmem:[%s3164 + $0x350] sm:$0xff]
    %v3272 = vld [vmem:[%s3164 + $0x358] sm:$0xff]
    %v3273 = vld [vmem:[%s3164 + $0x360] sm:$0xff]
    %v3274 = vld [vmem:[%s3164 + $0x368] sm:$0xff]
    %v3275 = vld [vmem:[%s3164 + $0x370] sm:$0xff]
    %v3276 = vld [vmem:[%s3164 + $0x378] sm:$0xff]
    %v3277 = vld [vmem:[%s3164 + $0x380] sm:$0xff]
    %v3278 = vld [vmem:[%s3164 + $0x388] sm:$0xff]
    %v3279 = vld [vmem:[%s3164 + $0x390] sm:$0xff]
    %v3280 = vld [vmem:[%s3164 + $0x398] sm:$0xff]
    %v3281 = vld [vmem:[%s3164 + $0x3a0] sm:$0xff]
    %v3282 = vld [vmem:[%s3164 + $0x3a8] sm:$0xff]
    %v3283 = vld [vmem:[%s3164 + $0x3b0] sm:$0xff]
    %v3284 = vld [vmem:[%s3164 + $0x3b8] sm:$0xff]
    %v3285 = vld [vmem:[%s3164 + $0x3c0] sm:$0xff]
    %v3286 = vld [vmem:[%s3164 + $0x3c8] sm:$0xff]
    %v3287 = vld [vmem:[%s3164 + $0x3d0] sm:$0xff]
    %v3288 = vld [vmem:[%s3164 + $0x3d8] sm:$0xff]
    %v3289 = vld [vmem:[%s3164 + $0x3e0] sm:$0xff]
    %v3290 = vld [vmem:[%s3164 + $0x3e8] sm:$0xff]
    %v3291 = vld [vmem:[%s3164 + $0x3f0] sm:$0xff]
    %v3292 = vld [vmem:[%s3164 + $0x3f8] sm:$0xff]
    %s3293 = scalar_lea.vmem [#allocation7], 3
    %v3294 = vld [vmem:[%s3293] ss:$4 sm:$0xff]
    %v3296 = vlaneseq
    %v3297 = vshrl.u32 %v3296, 7
    %v3298 = vsub.s32 0, %v3297
    %v3299 = vrot.slane %v3294, %v3298
    %v3300 = vlaneseq
    %v3301 = vshrl.u32 %v3300, 7
    %v3302 = vsub.s32 1, %v3301
    %v3303 = vrot.slane %v3294, %v3302
    %v3304 = vlaneseq
    %v3305 = vshrl.u32 %v3304, 7
    %v3306 = vsub.s32 2, %v3305
    %v3307 = vrot.slane %v3294, %v3306
    %v3308 = vlaneseq
    %v3309 = vshrl.u32 %v3308, 7
    %v3310 = vsub.s32 3, %v3309
    %v3311 = vrot.slane %v3294, %v3310
    %v3312 = vlaneseq
    %v3313 = vshrl.u32 %v3312, 7
    %v3314 = vsub.s32 4, %v3313
    %v3315 = vrot.slane %v3294, %v3314
    %v3316 = vlaneseq
    %v3317 = vshrl.u32 %v3316, 7
    %v3318 = vsub.s32 5, %v3317
    %v3319 = vrot.slane %v3294, %v3318
    %v3320 = vlaneseq
    %v3321 = vshrl.u32 %v3320, 7
    %v3322 = vsub.s32 6, %v3321
    %v3323 = vrot.slane %v3294, %v3322
    %v3324 = vlaneseq
    %v3325 = vshrl.u32 %v3324, 7
    %v3326 = vsub.s32 7, %v3325
    %v3327 = vrot.slane %v3294, %v3326
    %v3464 = vunpack.c.l.b16 %v3165
    %v3465 = vunpack.c.h.b16 %v3165
    %v3466 = vunpack.c.l.b16 %v3166
    %v3467 = vunpack.c.h.b16 %v3166
    %v3468 = vunpack.c.l.b16 %v3167
    %v3469 = vunpack.c.h.b16 %v3167
    %v3470 = vunpack.c.l.b16 %v3168
    %v3471 = vunpack.c.h.b16 %v3168
    %v3472 = vunpack.c.l.b16 %v3169
    %v3473 = vunpack.c.h.b16 %v3169
    %v3474 = vunpack.c.l.b16 %v3170
    %v3475 = vunpack.c.h.b16 %v3170
    %v3476 = vunpack.c.l.b16 %v3171
    %v3477 = vunpack.c.h.b16 %v3171
    %v3478 = vunpack.c.l.b16 %v3172
    %v3479 = vunpack.c.h.b16 %v3172
    %v3480 = vunpack.c.l.b16 %v3173
    %v3481 = vunpack.c.h.b16 %v3173
    %v3482 = vunpack.c.l.b16 %v3174
    %v3483 = vunpack.c.h.b16 %v3174
    %v3484 = vunpack.c.l.b16 %v3175
    %v3485 = vunpack.c.h.b16 %v3175
    %v3486 = vunpack.c.l.b16 %v3176
    %v3487 = vunpack.c.h.b16 %v3176
    %v3488 = vunpack.c.l.b16 %v3177
    %v3489 = vunpack.c.h.b16 %v3177
    %v3490 = vunpack.c.l.b16 %v3178
    %v3491 = vunpack.c.h.b16 %v3178
    %v3492 = vunpack.c.l.b16 %v3179
    %v3493 = vunpack.c.h.b16 %v3179
    %v3494 = vunpack.c.l.b16 %v3180
    %v3495 = vunpack.c.h.b16 %v3180
    %v3496 = vunpack.c.l.b16 %v3181
    %v3497 = vunpack.c.h.b16 %v3181
    %v3498 = vunpack.c.l.b16 %v3182
    %v3499 = vunpack.c.h.b16 %v3182
    %v3500 = vunpack.c.l.b16 %v3183
    %v3501 = vunpack.c.h.b16 %v3183
    %v3502 = vunpack.c.l.b16 %v3184
    %v3503 = vunpack.c.h.b16 %v3184
    %v3504 = vunpack.c.l.b16 %v3185
    %v3505 = vunpack.c.h.b16 %v3185
    %v3506 = vunpack.c.l.b16 %v3186
    %v3507 = vunpack.c.h.b16 %v3186
    %v3508 = vunpack.c.l.b16 %v3187
    %v3509 = vunpack.c.h.b16 %v3187
    %v3510 = vunpack.c.l.b16 %v3188
    %v3511 = vunpack.c.h.b16 %v3188
    %v3512 = vunpack.c.l.b16 %v3189
    %v3513 = vunpack.c.h.b16 %v3189
    %v3514 = vunpack.c.l.b16 %v3190
    %v3515 = vunpack.c.h.b16 %v3190
    %v3516 = vunpack.c.l.b16 %v3191
    %v3517 = vunpack.c.h.b16 %v3191
    %v3518 = vunpack.c.l.b16 %v3192
    %v3519 = vunpack.c.h.b16 %v3192
    %v3520 = vunpack.c.l.b16 %v3193
    %v3521 = vunpack.c.h.b16 %v3193
    %v3522 = vunpack.c.l.b16 %v3194
    %v3523 = vunpack.c.h.b16 %v3194
    %v3524 = vunpack.c.l.b16 %v3195
    %v3525 = vunpack.c.h.b16 %v3195
    %v3526 = vunpack.c.l.b16 %v3196
    %v3527 = vunpack.c.h.b16 %v3196
    %v3528 = vunpack.c.l.b16 %v3197
    %v3529 = vunpack.c.h.b16 %v3197
    %v3530 = vunpack.c.l.b16 %v3198
    %v3531 = vunpack.c.h.b16 %v3198
    %v3532 = vunpack.c.l.b16 %v3199
    %v3533 = vunpack.c.h.b16 %v3199
    %v3534 = vunpack.c.l.b16 %v3200
    %v3535 = vunpack.c.h.b16 %v3200
    %v3536 = vunpack.c.l.b16 %v3201
    %v3537 = vunpack.c.h.b16 %v3201
    %v3538 = vunpack.c.l.b16 %v3202
    %v3539 = vunpack.c.h.b16 %v3202
    %v3540 = vunpack.c.l.b16 %v3203
    %v3541 = vunpack.c.h.b16 %v3203
    %v3542 = vunpack.c.l.b16 %v3204
    %v3543 = vunpack.c.h.b16 %v3204
    %v3544 = vunpack.c.l.b16 %v3205
    %v3545 = vunpack.c.h.b16 %v3205
    %v3546 = vunpack.c.l.b16 %v3206
    %v3547 = vunpack.c.h.b16 %v3206
    %v3548 = vunpack.c.l.b16 %v3207
    %v3549 = vunpack.c.h.b16 %v3207
    %v3550 = vunpack.c.l.b16 %v3208
    %v3551 = vunpack.c.h.b16 %v3208
    %v3552 = vunpack.c.l.b16 %v3209
    %v3553 = vunpack.c.h.b16 %v3209
    %v3554 = vunpack.c.l.b16 %v3210
    %v3555 = vunpack.c.h.b16 %v3210
    %v3556 = vunpack.c.l.b16 %v3211
    %v3557 = vunpack.c.h.b16 %v3211
    %v3558 = vunpack.c.l.b16 %v3212
    %v3559 = vunpack.c.h.b16 %v3212
    %v3560 = vunpack.c.l.b16 %v3213
    %v3561 = vunpack.c.h.b16 %v3213
    %v3562 = vunpack.c.l.b16 %v3214
    %v3563 = vunpack.c.h.b16 %v3214
    %v3564 = vunpack.c.l.b16 %v3215
    %v3565 = vunpack.c.h.b16 %v3215
    %v3566 = vunpack.c.l.b16 %v3216
    %v3567 = vunpack.c.h.b16 %v3216
    %v3568 = vunpack.c.l.b16 %v3217
    %v3569 = vunpack.c.h.b16 %v3217
    %v3570 = vunpack.c.l.b16 %v3218
    %v3571 = vunpack.c.h.b16 %v3218
    %v3572 = vunpack.c.l.b16 %v3219
    %v3573 = vunpack.c.h.b16 %v3219
    %v3574 = vunpack.c.l.b16 %v3220
    %v3575 = vunpack.c.h.b16 %v3220
    %v3576 = vunpack.c.l.b16 %v3221
    %v3577 = vunpack.c.h.b16 %v3221
    %v3578 = vunpack.c.l.b16 %v3222
    %v3579 = vunpack.c.h.b16 %v3222
    %v3580 = vunpack.c.l.b16 %v3223
    %v3581 = vunpack.c.h.b16 %v3223
    %v3582 = vunpack.c.l.b16 %v3224
    %v3583 = vunpack.c.h.b16 %v3224
    %v3584 = vunpack.c.l.b16 %v3225
    %v3585 = vunpack.c.h.b16 %v3225
    %v3586 = vunpack.c.l.b16 %v3226
    %v3587 = vunpack.c.h.b16 %v3226
    %v3588 = vunpack.c.l.b16 %v3227
    %v3589 = vunpack.c.h.b16 %v3227
    %v3590 = vunpack.c.l.b16 %v3228
    %v3591 = vunpack.c.h.b16 %v3228
    %v3592 = vunpack.c.l.b16 %v3229
    %v3593 = vunpack.c.h.b16 %v3229
    %v3594 = vunpack.c.l.b16 %v3230
    %v3595 = vunpack.c.h.b16 %v3230
    %v3596 = vunpack.c.l.b16 %v3231
    %v3597 = vunpack.c.h.b16 %v3231
    %v3598 = vunpack.c.l.b16 %v3232
    %v3599 = vunpack.c.h.b16 %v3232
    %v3600 = vunpack.c.l.b16 %v3233
    %v3601 = vunpack.c.h.b16 %v3233
    %v3602 = vunpack.c.l.b16 %v3234
    %v3603 = vunpack.c.h.b16 %v3234
    %v3604 = vunpack.c.l.b16 %v3235
    %v3605 = vunpack.c.h.b16 %v3235
    %v3606 = vunpack.c.l.b16 %v3236
    %v3607 = vunpack.c.h.b16 %v3236
    %v3608 = vunpack.c.l.b16 %v3237
    %v3609 = vunpack.c.h.b16 %v3237
    %v3610 = vunpack.c.l.b16 %v3238
    %v3611 = vunpack.c.h.b16 %v3238
    %v3612 = vunpack.c.l.b16 %v3239
    %v3613 = vunpack.c.h.b16 %v3239
    %v3614 = vunpack.c.l.b16 %v3240
    %v3615 = vunpack.c.h.b16 %v3240
    %v3616 = vunpack.c.l.b16 %v3241
    %v3617 = vunpack.c.h.b16 %v3241
    %v3618 = vunpack.c.l.b16 %v3242
    %v3619 = vunpack.c.h.b16 %v3242
    %v3620 = vunpack.c.l.b16 %v3243
    %v3621 = vunpack.c.h.b16 %v3243
    %v3622 = vunpack.c.l.b16 %v3244
    %v3623 = vunpack.c.h.b16 %v3244
    %v3624 = vunpack.c.l.b16 %v3245
    %v3625 = vunpack.c.h.b16 %v3245
    %v3626 = vunpack.c.l.b16 %v3246
    %v3627 = vunpack.c.h.b16 %v3246
    %v3628 = vunpack.c.l.b16 %v3247
    %v3629 = vunpack.c.h.b16 %v3247
    %v3630 = vunpack.c.l.b16 %v3248
    %v3631 = vunpack.c.h.b16 %v3248
    %v3632 = vunpack.c.l.b16 %v3249
    %v3633 = vunpack.c.h.b16 %v3249
    %v3634 = vunpack.c.l.b16 %v3250
    %v3635 = vunpack.c.h.b16 %v3250
    %v3636 = vunpack.c.l.b16 %v3251
    %v3637 = vunpack.c.h.b16 %v3251
    %v3638 = vunpack.c.l.b16 %v3252
    %v3639 = vunpack.c.h.b16 %v3252
    %v3640 = vunpack.c.l.b16 %v3253
    %v3641 = vunpack.c.h.b16 %v3253
    %v3642 = vunpack.c.l.b16 %v3254
    %v3643 = vunpack.c.h.b16 %v3254
    %v3644 = vunpack.c.l.b16 %v3255
    %v3645 = vunpack.c.h.b16 %v3255
    %v3646 = vunpack.c.l.b16 %v3256
    %v3647 = vunpack.c.h.b16 %v3256
    %v3648 = vunpack.c.l.b16 %v3257
    %v3649 = vunpack.c.h.b16 %v3257
    %v3650 = vunpack.c.l.b16 %v3258
    %v3651 = vunpack.c.h.b16 %v3258
    %v3652 = vunpack.c.l.b16 %v3259
    %v3653 = vunpack.c.h.b16 %v3259
    %v3654 = vunpack.c.l.b16 %v3260
    %v3655 = vunpack.c.h.b16 %v3260
    %v3656 = vunpack.c.l.b16 %v3261
    %v3657 = vunpack.c.h.b16 %v3261
    %v3658 = vunpack.c.l.b16 %v3262
    %v3659 = vunpack.c.h.b16 %v3262
    %v3660 = vunpack.c.l.b16 %v3263
    %v3661 = vunpack.c.h.b16 %v3263
    %v3662 = vunpack.c.l.b16 %v3264
    %v3663 = vunpack.c.h.b16 %v3264
    %v3664 = vunpack.c.l.b16 %v3265
    %v3665 = vunpack.c.h.b16 %v3265
    %v3666 = vunpack.c.l.b16 %v3266
    %v3667 = vunpack.c.h.b16 %v3266
    %v3668 = vunpack.c.l.b16 %v3267
    %v3669 = vunpack.c.h.b16 %v3267
    %v3670 = vunpack.c.l.b16 %v3268
    %v3671 = vunpack.c.h.b16 %v3268
    %v3672 = vunpack.c.l.b16 %v3269
    %v3673 = vunpack.c.h.b16 %v3269
    %v3674 = vunpack.c.l.b16 %v3270
    %v3675 = vunpack.c.h.b16 %v3270
    %v3676 = vunpack.c.l.b16 %v3271
    %v3677 = vunpack.c.h.b16 %v3271
    %v3678 = vunpack.c.l.b16 %v3272
    %v3679 = vunpack.c.h.b16 %v3272
    %v3680 = vunpack.c.l.b16 %v3273
    %v3681 = vunpack.c.h.b16 %v3273
    %v3682 = vunpack.c.l.b16 %v3274
    %v3683 = vunpack.c.h.b16 %v3274
    %v3684 = vunpack.c.l.b16 %v3275
    %v3685 = vunpack.c.h.b16 %v3275
    %v3686 = vunpack.c.l.b16 %v3276
    %v3687 = vunpack.c.h.b16 %v3276
    %v3688 = vunpack.c.l.b16 %v3277
    %v3689 = vunpack.c.h.b16 %v3277
    %v3690 = vunpack.c.l.b16 %v3278
    %v3691 = vunpack.c.h.b16 %v3278
    %v3692 = vunpack.c.l.b16 %v3279
    %v3693 = vunpack.c.h.b16 %v3279
    %v3694 = vunpack.c.l.b16 %v3280
    %v3695 = vunpack.c.h.b16 %v3280
    %v3696 = vunpack.c.l.b16 %v3281
    %v3697 = vunpack.c.h.b16 %v3281
    %v3698 = vunpack.c.l.b16 %v3282
    %v3699 = vunpack.c.h.b16 %v3282
    %v3700 = vunpack.c.l.b16 %v3283
    %v3701 = vunpack.c.h.b16 %v3283
    %v3702 = vunpack.c.l.b16 %v3284
    %v3703 = vunpack.c.h.b16 %v3284
    %v3704 = vunpack.c.l.b16 %v3285
    %v3705 = vunpack.c.h.b16 %v3285
    %v3706 = vunpack.c.l.b16 %v3286
    %v3707 = vunpack.c.h.b16 %v3286
    %v3708 = vunpack.c.l.b16 %v3287
    %v3709 = vunpack.c.h.b16 %v3287
    %v3710 = vunpack.c.l.b16 %v3288
    %v3711 = vunpack.c.h.b16 %v3288
    %v3712 = vunpack.c.l.b16 %v3289
    %v3713 = vunpack.c.h.b16 %v3289
    %v3714 = vunpack.c.l.b16 %v3290
    %v3715 = vunpack.c.h.b16 %v3290
    %v3716 = vunpack.c.l.b16 %v3291
    %v3717 = vunpack.c.h.b16 %v3291
    %v3718 = vunpack.c.l.b16 %v3292
    %v3719 = vunpack.c.h.b16 %v3292
    %v3720 = vpack.c.b16 %v3472, %v3464
    %v3721 = vpack.c.b16 %v3473, %v3465
    %v3722 = vpack.c.b16 %v3474, %v3466
    %v3723 = vpack.c.b16 %v3475, %v3467
    %v3724 = vpack.c.b16 %v3476, %v3468
    %v3725 = vpack.c.b16 %v3477, %v3469
    %v3726 = vpack.c.b16 %v3478, %v3470
    %v3727 = vpack.c.b16 %v3479, %v3471
    %v3728 = vpack.c.b16 %v3488, %v3480
    %v3729 = vpack.c.b16 %v3489, %v3481
    %v3730 = vpack.c.b16 %v3490, %v3482
    %v3731 = vpack.c.b16 %v3491, %v3483
    %v3732 = vpack.c.b16 %v3492, %v3484
    %v3733 = vpack.c.b16 %v3493, %v3485
    %v3734 = vpack.c.b16 %v3494, %v3486
    %v3735 = vpack.c.b16 %v3495, %v3487
    %v3736 = vpack.c.b16 %v3504, %v3496
    %v3737 = vpack.c.b16 %v3505, %v3497
    %v3738 = vpack.c.b16 %v3506, %v3498
    %v3739 = vpack.c.b16 %v3507, %v3499
    %v3740 = vpack.c.b16 %v3508, %v3500
    %v3741 = vpack.c.b16 %v3509, %v3501
    %v3742 = vpack.c.b16 %v3510, %v3502
    %v3743 = vpack.c.b16 %v3511, %v3503
    %v3744 = vpack.c.b16 %v3520, %v3512
    %v3745 = vpack.c.b16 %v3521, %v3513
    %v3746 = vpack.c.b16 %v3522, %v3514
    %v3747 = vpack.c.b16 %v3523, %v3515
    %v3748 = vpack.c.b16 %v3524, %v3516
    %v3749 = vpack.c.b16 %v3525, %v3517
    %v3750 = vpack.c.b16 %v3526, %v3518
    %v3751 = vpack.c.b16 %v3527, %v3519
    %v3752 = vpack.c.b16 %v3536, %v3528
    %v3753 = vpack.c.b16 %v3537, %v3529
    %v3754 = vpack.c.b16 %v3538, %v3530
    %v3755 = vpack.c.b16 %v3539, %v3531
    %v3756 = vpack.c.b16 %v3540, %v3532
    %v3757 = vpack.c.b16 %v3541, %v3533
    %v3758 = vpack.c.b16 %v3542, %v3534
    %v3759 = vpack.c.b16 %v3543, %v3535
    %v3760 = vpack.c.b16 %v3552, %v3544
    %v3761 = vpack.c.b16 %v3553, %v3545
    %v3762 = vpack.c.b16 %v3554, %v3546
    %v3763 = vpack.c.b16 %v3555, %v3547
    %v3764 = vpack.c.b16 %v3556, %v3548
    %v3765 = vpack.c.b16 %v3557, %v3549
    %v3766 = vpack.c.b16 %v3558, %v3550
    %v3767 = vpack.c.b16 %v3559, %v3551
    %v3768 = vpack.c.b16 %v3568, %v3560
    %v3769 = vpack.c.b16 %v3569, %v3561
    %v3770 = vpack.c.b16 %v3570, %v3562
    %v3771 = vpack.c.b16 %v3571, %v3563
    %v3772 = vpack.c.b16 %v3572, %v3564
    %v3773 = vpack.c.b16 %v3573, %v3565
    %v3774 = vpack.c.b16 %v3574, %v3566
    %v3775 = vpack.c.b16 %v3575, %v3567
    %v3776 = vpack.c.b16 %v3584, %v3576
    %v3777 = vpack.c.b16 %v3585, %v3577
    %v3778 = vpack.c.b16 %v3586, %v3578
    %v3779 = vpack.c.b16 %v3587, %v3579
    %v3780 = vpack.c.b16 %v3588, %v3580
    %v3781 = vpack.c.b16 %v3589, %v3581
    %v3782 = vpack.c.b16 %v3590, %v3582
    %v3783 = vpack.c.b16 %v3591, %v3583
    %v3784 = vpack.c.b16 %v3600, %v3592
    %v3785 = vpack.c.b16 %v3601, %v3593
    %v3786 = vpack.c.b16 %v3602, %v3594
    %v3787 = vpack.c.b16 %v3603, %v3595
    %v3788 = vpack.c.b16 %v3604, %v3596
    %v3789 = vpack.c.b16 %v3605, %v3597
    %v3790 = vpack.c.b16 %v3606, %v3598
    %v3791 = vpack.c.b16 %v3607, %v3599
    %v3792 = vpack.c.b16 %v3616, %v3608
    %v3793 = vpack.c.b16 %v3617, %v3609
    %v3794 = vpack.c.b16 %v3618, %v3610
    %v3795 = vpack.c.b16 %v3619, %v3611
    %v3796 = vpack.c.b16 %v3620, %v3612
    %v3797 = vpack.c.b16 %v3621, %v3613
    %v3798 = vpack.c.b16 %v3622, %v3614
    %v3799 = vpack.c.b16 %v3623, %v3615
    %v3800 = vpack.c.b16 %v3632, %v3624
    %v3801 = vpack.c.b16 %v3633, %v3625
    %v3802 = vpack.c.b16 %v3634, %v3626
    %v3803 = vpack.c.b16 %v3635, %v3627
    %v3804 = vpack.c.b16 %v3636, %v3628
    %v3805 = vpack.c.b16 %v3637, %v3629
    %v3806 = vpack.c.b16 %v3638, %v3630
    %v3807 = vpack.c.b16 %v3639, %v3631
    %v3808 = vpack.c.b16 %v3648, %v3640
    %v3809 = vpack.c.b16 %v3649, %v3641
    %v3810 = vpack.c.b16 %v3650, %v3642
    %v3811 = vpack.c.b16 %v3651, %v3643
    %v3812 = vpack.c.b16 %v3652, %v3644
    %v3813 = vpack.c.b16 %v3653, %v3645
    %v3814 = vpack.c.b16 %v3654, %v3646
    %v3815 = vpack.c.b16 %v3655, %v3647
    %v3816 = vpack.c.b16 %v3664, %v3656
    %v3817 = vpack.c.b16 %v3665, %v3657
    %v3818 = vpack.c.b16 %v3666, %v3658
    %v3819 = vpack.c.b16 %v3667, %v3659
    %v3820 = vpack.c.b16 %v3668, %v3660
    %v3821 = vpack.c.b16 %v3669, %v3661
    %v3822 = vpack.c.b16 %v3670, %v3662
    %v3823 = vpack.c.b16 %v3671, %v3663
    %v3824 = vpack.c.b16 %v3680, %v3672
    %v3825 = vpack.c.b16 %v3681, %v3673
    %v3826 = vpack.c.b16 %v3682, %v3674
    %v3827 = vpack.c.b16 %v3683, %v3675
    %v3828 = vpack.c.b16 %v3684, %v3676
    %v3829 = vpack.c.b16 %v3685, %v3677
    %v3830 = vpack.c.b16 %v3686, %v3678
    %v3831 = vpack.c.b16 %v3687, %v3679
    %v3832 = vpack.c.b16 %v3696, %v3688
    %v3833 = vpack.c.b16 %v3697, %v3689
    %v3834 = vpack.c.b16 %v3698, %v3690
    %v3835 = vpack.c.b16 %v3699, %v3691
    %v3836 = vpack.c.b16 %v3700, %v3692
    %v3837 = vpack.c.b16 %v3701, %v3693
    %v3838 = vpack.c.b16 %v3702, %v3694
    %v3839 = vpack.c.b16 %v3703, %v3695
    %v3840 = vpack.c.b16 %v3712, %v3704
    %v3841 = vpack.c.b16 %v3713, %v3705
    %v3842 = vpack.c.b16 %v3714, %v3706
    %v3843 = vpack.c.b16 %v3715, %v3707
    %v3844 = vpack.c.b16 %v3716, %v3708
    %v3845 = vpack.c.b16 %v3717, %v3709
    %v3846 = vpack.c.b16 %v3718, %v3710
    %v3847 = vpack.c.b16 %v3719, %v3711
    %3976 = vmatprep.subr.bf16.mxu0 %v3777
    %3977 = vmatpush1.bf16.msra.mxu0 %v3776
    %3978 = vmatprep.subr.bf16.mxu0 %v3769
    %3979 = vmatpush1.bf16.msra.mxu0 %v3768
    %3980 = vmatprep.subr.bf16.mxu0 %v3761
    %3981 = vmatpush1.bf16.msra.mxu0 %v3760
    %3982 = vmatprep.subr.bf16.mxu0 %v3753
    %3983 = vmatpush1.bf16.msra.mxu0 %v3752
    %3984 = vmatprep.subr.bf16.mxu0 %v3745
    %3985 = vmatpush1.bf16.msra.mxu0 %v3744
    %3986 = vmatprep.subr.bf16.mxu0 %v3737
    %3987 = vmatpush1.bf16.msra.mxu0 %v3736
    %3988 = vmatprep.subr.bf16.mxu0 %v3729
    %3989 = vmatpush1.bf16.msra.mxu0 %v3728
    %3990 = vmatprep.subr.bf16.mxu0 %v3721
    %3991 = vmatpush1.bf16.msra.mxu0 %v3720
    %3992 = vmatprep.subr.bf16.mxu0 %v3841
    %3993 = vmatpush2.bf16.msra.mxu0 %v3840
    %3994 = vmatprep.subr.bf16.mxu0 %v3833
    %3995 = vmatpush2.bf16.msra.mxu0 %v3832
    %3996 = vmatprep.subr.bf16.mxu0 %v3825
    %3997 = vmatpush2.bf16.msra.mxu0 %v3824
    %3998 = vmatprep.subr.bf16.mxu0 %v3817
    %3999 = vmatpush2.bf16.msra.mxu0 %v3816
    %4000 = vmatprep.subr.bf16.mxu0 %v3809
    %4001 = vmatpush2.bf16.msra.mxu0 %v3808
    %4002 = vmatprep.subr.bf16.mxu0 %v3801
    %4003 = vmatpush2.bf16.msra.mxu0 %v3800
    %4004 = vmatprep.subr.bf16.mxu0 %v3793
    %4005 = vmatpush2.bf16.msra.mxu0 %v3792
    %4006 = vmatprep.subr.bf16.mxu0 %v3785
    %4007 = vmatpush2.bf16.msra.mxu0 %v3784
    %4008 = vmatprep.mubr.bf16.mxu0 %v327
    %4009 = vmatmul.mubr.bf16.gmra.mxu0 %v326
    %v4010 = vpop.f32.mrf.mxu0
    %v4011 = vadd.f32 %v3299, %v4010
    %v4012 = vpop.f32.mrf.mxu0
    %v4013 = vadd.f32 %v3303, %v4012
    %v4014 = vpop.f32.mrf.mxu0
    %v4015 = vadd.f32 %v3299, %v4014
    %v4016 = vpop.f32.mrf.mxu0
    %v4017 = vadd.f32 %v3303, %v4016
    %4018 = vdwg.mxu0
    %4019 = vmatprep.subr.bf16.mxu0 %v3779
    %4020 = vmatpush1.bf16.msra.mxu0 %v3778
    %4021 = vmatprep.subr.bf16.mxu0 %v3771
    %4022 = vmatpush1.bf16.msra.mxu0 %v3770
    %4023 = vmatprep.subr.bf16.mxu0 %v3763
    %4024 = vmatpush1.bf16.msra.mxu0 %v3762
    %4025 = vmatprep.subr.bf16.mxu0 %v3755
    %4026 = vmatpush1.bf16.msra.mxu0 %v3754
    %4027 = vmatprep.subr.bf16.mxu0 %v3747
    %4028 = vmatpush1.bf16.msra.mxu0 %v3746
    %4029 = vmatprep.subr.bf16.mxu0 %v3739
    %4030 = vmatpush1.bf16.msra.mxu0 %v3738
    %4031 = vmatprep.subr.bf16.mxu0 %v3731
    %4032 = vmatpush1.bf16.msra.mxu0 %v3730
    %4033 = vmatprep.subr.bf16.mxu0 %v3723
    %4034 = vmatpush1.bf16.msra.mxu0 %v3722
    %4035 = vmatprep.subr.bf16.mxu0 %v3843
    %4036 = vmatpush2.bf16.msra.mxu0 %v3842
    %4037 = vmatprep.subr.bf16.mxu0 %v3835
    %4038 = vmatpush2.bf16.msra.mxu0 %v3834
    %4039 = vmatprep.subr.bf16.mxu0 %v3827
    %4040 = vmatpush2.bf16.msra.mxu0 %v3826
    %4041 = vmatprep.subr.bf16.mxu0 %v3819
    %4042 = vmatpush2.bf16.msra.mxu0 %v3818
    %4043 = vmatprep.subr.bf16.mxu0 %v3811
    %4044 = vmatpush2.bf16.msra.mxu0 %v3810
    %4045 = vmatprep.subr.bf16.mxu0 %v3803
    %4046 = vmatpush2.bf16.msra.mxu0 %v3802
    %4047 = vmatprep.subr.bf16.mxu0 %v3795
    %4048 = vmatpush2.bf16.msra.mxu0 %v3794
    %4049 = vmatprep.subr.bf16.mxu0 %v3787
    %4050 = vmatpush2.bf16.msra.mxu0 %v3786
    %4051 = vmatprep.mubr.bf16.mxu0 %v327
    %4052 = vmatmul.mubr.bf16.gmra.mxu0 %v326
    %v4053 = vpop.f32.mrf.mxu0
    %v4054 = vadd.f32 %v3307, %v4053
    %v4055 = vpop.f32.mrf.mxu0
    %v4056 = vadd.f32 %v3311, %v4055
    %v4057 = vpop.f32.mrf.mxu0
    %v4058 = vadd.f32 %v3307, %v4057
    %v4059 = vpop.f32.mrf.mxu0
    %v4060 = vadd.f32 %v3311, %v4059
    %4061 = vdwg.mxu0
    %4062 = vmatprep.subr.bf16.mxu0 %v3781
    %4063 = vmatpush1.bf16.msra.mxu0 %v3780
    %4064 = vmatprep.subr.bf16.mxu0 %v3773
    %4065 = vmatpush1.bf16.msra.mxu0 %v3772
    %4066 = vmatprep.subr.bf16.mxu0 %v3765
    %4067 = vmatpush1.bf16.msra.mxu0 %v3764
    %4068 = vmatprep.subr.bf16.mxu0 %v3757
    %4069 = vmatpush1.bf16.msra.mxu0 %v3756
    %4070 = vmatprep.subr.bf16.mxu0 %v3749
    %4071 = vmatpush1.bf16.msra.mxu0 %v3748
    %4072 = vmatprep.subr.bf16.mxu0 %v3741
    %4073 = vmatpush1.bf16.msra.mxu0 %v3740
    %4074 = vmatprep.subr.bf16.mxu0 %v3733
    %4075 = vmatpush1.bf16.msra.mxu0 %v3732
    %4076 = vmatprep.subr.bf16.mxu0 %v3725
    %4077 = vmatpush1.bf16.msra.mxu0 %v3724
    %4078 = vmatprep.subr.bf16.mxu0 %v3845
    %4079 = vmatpush2.bf16.msra.mxu0 %v3844
    %4080 = vmatprep.subr.bf16.mxu0 %v3837
    %4081 = vmatpush2.bf16.msra.mxu0 %v3836
    %4082 = vmatprep.subr.bf16.mxu0 %v3829
    %4083 = vmatpush2.bf16.msra.mxu0 %v3828
    %4084 = vmatprep.subr.bf16.mxu0 %v3821
    %4085 = vmatpush2.bf16.msra.mxu0 %v3820
    %4086 = vmatprep.subr.bf16.mxu0 %v3813
    %4087 = vmatpush2.bf16.msra.mxu0 %v3812
    %4088 = vmatprep.subr.bf16.mxu0 %v3805
    %4089 = vmatpush2.bf16.msra.mxu0 %v3804
    %4090 = vmatprep.subr.bf16.mxu0 %v3797
    %4091 = vmatpush2.bf16.msra.mxu0 %v3796
    %4092 = vmatprep.subr.bf16.mxu0 %v3789
    %4093 = vmatpush2.bf16.msra.mxu0 %v3788
    %4094 = vmatprep.mubr.bf16.mxu0 %v327
    %4095 = vmatmul.mubr.bf16.gmra.mxu0 %v326
    %v4096 = vpop.f32.mrf.mxu0
    %v4097 = vadd.f32 %v3315, %v4096
    %v4098 = vpop.f32.mrf.mxu0
    %v4099 = vadd.f32 %v3319, %v4098
    %v4100 = vpop.f32.mrf.mxu0
    %v4101 = vadd.f32 %v3315, %v4100
    %v4102 = vpop.f32.mrf.mxu0
    %v4103 = vadd.f32 %v3319, %v4102
    %4104 = vdwg.mxu0
    %4105 = vmatprep.subr.bf16.mxu0 %v3783
    %4106 = vmatpush1.bf16.msra.mxu0 %v3782
    %4107 = vmatprep.subr.bf16.mxu0 %v3775
    %4108 = vmatpush1.bf16.msra.mxu0 %v3774
    %4109 = vmatprep.subr.bf16.mxu0 %v3767
    %4110 = vmatpush1.bf16.msra.mxu0 %v3766
    %4111 = vmatprep.subr.bf16.mxu0 %v3759
    %4112 = vmatpush1.bf16.msra.mxu0 %v3758
    %4113 = vmatprep.subr.bf16.mxu0 %v3751
    %4114 = vmatpush1.bf16.msra.mxu0 %v3750
    %4115 = vmatprep.subr.bf16.mxu0 %v3743
    %4116 = vmatpush1.bf16.msra.mxu0 %v3742
    %4117 = vmatprep.subr.bf16.mxu0 %v3735
    %4118 = vmatpush1.bf16.msra.mxu0 %v3734
    %4119 = vmatprep.subr.bf16.mxu0 %v3727
    %4120 = vmatpush1.bf16.msra.mxu0 %v3726
    %4121 = vmatprep.subr.bf16.mxu0 %v3847
    %4122 = vmatpush2.bf16.msra.mxu0 %v3846
    %4123 = vmatprep.subr.bf16.mxu0 %v3839
    %4124 = vmatpush2.bf16.msra.mxu0 %v3838
    %4125 = vmatprep.subr.bf16.mxu0 %v3831
    %4126 = vmatpush2.bf16.msra.mxu0 %v3830
    %4127 = vmatprep.subr.bf16.mxu0 %v3823
    %4128 = vmatpush2.bf16.msra.mxu0 %v3822
    %4129 = vmatprep.subr.bf16.mxu0 %v3815
    %4130 = vmatpush2.bf16.msra.mxu0 %v3814
    %4131 = vmatprep.subr.bf16.mxu0 %v3807
    %4132 = vmatpush2.bf16.msra.mxu0 %v3806
    %4133 = vmatprep.subr.bf16.mxu0 %v3799
    %4134 = vmatpush2.bf16.msra.mxu0 %v3798
    %4135 = vmatprep.subr.bf16.mxu0 %v3791
    %4136 = vmatpush2.bf16.msra.mxu0 %v3790
    %4137 = vmatprep.mubr.bf16.mxu0 %v327
    %4138 = vmatmul.mubr.bf16.gmra.mxu0 %v326
    %v4139 = vpop.f32.mrf.mxu0
    %v4140 = vadd.f32 %v3323, %v4139
    %v4141 = vpop.f32.mrf.mxu0
    %v4142 = vadd.f32 %v3327, %v4141
    %v4143 = vpop.f32.mrf.mxu0
    %v4144 = vadd.f32 %v3323, %v4143
    %v4145 = vpop.f32.mrf.mxu0
    %v4146 = vadd.f32 %v3327, %v4145
    %4147 = vdwg.mxu0
    %v4148 = vmax.f32 %v4011, %v4054
    %v4149 = vmax.f32 %v4013, %v4056
    %v4150 = vmax.f32 %v4015, %v4058
    %v4151 = vmax.f32 %v4017, %v4060
    %v4152 = vmax.f32 %v4097, %v4140
    %v4153 = vmax.f32 %v4099, %v4142
    %v4154 = vmax.f32 %v4101, %v4144
    %v4155 = vmax.f32 %v4103, %v4146
    %v4156 = vmax.f32 %v4148, %v4152
    %v4157 = vmax.f32 %v4149, %v4153
    %v4158 = vmax.f32 %v4150, %v4154
    %v4159 = vmax.f32 %v4151, %v4155
    %v4160 = vmax.f32 %v4156, 0.0
    %v4161 = vmax.f32 %v4157, 0.0
    %v4162 = vmax.f32 %v4158, 0.0
    %v4163 = vmax.f32 %v4159, 0.0
    %v4164 = vpack.c.bf16 %v4162, %v4160
    %v4165 = vpack.c.bf16 %v4163, %v4161
    %v4166 = vld [vmem:[#allocation8] sm:$0xff]
    %v4167 = vld [vmem:[#allocation8 + $0x8] sm:$0xff]
    %v4168 = vld [vmem:[#allocation8 + $0x10] sm:$0xff]
    %v4169 = vld [vmem:[#allocation8 + $0x18] sm:$0xff]
    %v4170 = vld [vmem:[#allocation8 + $0x20] sm:$0xff]
    %v4171 = vld [vmem:[#allocation8 + $0x28] sm:$0xff]
    %v4172 = vld [vmem:[#allocation8 + $0x30] sm:$0xff]
    %v4173 = vld [vmem:[#allocation8 + $0x38] sm:$0xff]
    %v4174 = vld [vmem:[#allocation8 + $0x40] sm:$0xff]
    %v4175 = vld [vmem:[#allocation8 + $0x48] sm:$0xff]
    %v4176 = vld [vmem:[#allocation8 + $0x50] sm:$0xff]
    %v4177 = vld [vmem:[#allocation8 + $0x58] sm:$0xff]
    %v4178 = vld [vmem:[#allocation8 + $0x60] sm:$0xff]
    %v4179 = vld [vmem:[#allocation8 + $0x68] sm:$0xff]
    %v4180 = vld [vmem:[#allocation8 + $0x70] sm:$0xff]
    %v4181 = vld [vmem:[#allocation8 + $0x78] sm:$0xff]
    %v4182 = vld [vmem:[#allocation8 + $0x80] sm:$0xff]
    %v4183 = vld [vmem:[#allocation8 + $0x88] sm:$0xff]
    %v4184 = vld [vmem:[#allocation8 + $0x90] sm:$0xff]
    %v4185 = vld [vmem:[#allocation8 + $0x98] sm:$0xff]
    %v4186 = vld [vmem:[#allocation8 + $0xa0] sm:$0xff]
    %v4187 = vld [vmem:[#allocation8 + $0xa8] sm:$0xff]
    %v4188 = vld [vmem:[#allocation8 + $0xb0] sm:$0xff]
    %v4189 = vld [vmem:[#allocation8 + $0xb8] sm:$0xff]
    %v4190 = vld [vmem:[#allocation8 + $0xc0] sm:$0xff]
    %v4191 = vld [vmem:[#allocation8 + $0xc8] sm:$0xff]
    %v4192 = vld [vmem:[#allocation8 + $0xd0] sm:$0xff]
    %v4193 = vld [vmem:[#allocation8 + $0xd8] sm:$0xff]
    %v4194 = vld [vmem:[#allocation8 + $0xe0] sm:$0xff]
    %v4195 = vld [vmem:[#allocation8 + $0xe8] sm:$0xff]
    %v4196 = vld [vmem:[#allocation8 + $0xf0] sm:$0xff]
    %v4197 = vld [vmem:[#allocation8 + $0xf8] sm:$0xff]
    %v4198 = vld [vmem:[#allocation8 + $0x100] sm:$0xff]
    %v4199 = vld [vmem:[#allocation8 + $0x108] sm:$0xff]
    %v4200 = vld [vmem:[#allocation8 + $0x110] sm:$0xff]
    %v4201 = vld [vmem:[#allocation8 + $0x118] sm:$0xff]
    %v4202 = vld [vmem:[#allocation8 + $0x120] sm:$0xff]
    %v4203 = vld [vmem:[#allocation8 + $0x128] sm:$0xff]
    %v4204 = vld [vmem:[#allocation8 + $0x130] sm:$0xff]
    %v4205 = vld [vmem:[#allocation8 + $0x138] sm:$0xff]
    %v4206 = vld [vmem:[#allocation8 + $0x140] sm:$0xff]
    %v4207 = vld [vmem:[#allocation8 + $0x148] sm:$0xff]
    %v4208 = vld [vmem:[#allocation8 + $0x150] sm:$0xff]
    %v4209 = vld [vmem:[#allocation8 + $0x158] sm:$0xff]
    %v4210 = vld [vmem:[#allocation8 + $0x160] sm:$0xff]
    %v4211 = vld [vmem:[#allocation8 + $0x168] sm:$0xff]
    %v4212 = vld [vmem:[#allocation8 + $0x170] sm:$0xff]
    %v4213 = vld [vmem:[#allocation8 + $0x178] sm:$0xff]
    %v4214 = vld [vmem:[#allocation8 + $0x180] sm:$0xff]
    %v4215 = vld [vmem:[#allocation8 + $0x188] sm:$0xff]
    %v4216 = vld [vmem:[#allocation8 + $0x190] sm:$0xff]
    %v4217 = vld [vmem:[#allocation8 + $0x198] sm:$0xff]
    %v4218 = vld [vmem:[#allocation8 + $0x1a0] sm:$0xff]
    %v4219 = vld [vmem:[#allocation8 + $0x1a8] sm:$0xff]
    %v4220 = vld [vmem:[#allocation8 + $0x1b0] sm:$0xff]
    %v4221 = vld [vmem:[#allocation8 + $0x1b8] sm:$0xff]
    %v4222 = vld [vmem:[#allocation8 + $0x1c0] sm:$0xff]
    %v4223 = vld [vmem:[#allocation8 + $0x1c8] sm:$0xff]
    %v4224 = vld [vmem:[#allocation8 + $0x1d0] sm:$0xff]
    %v4225 = vld [vmem:[#allocation8 + $0x1d8] sm:$0xff]
    %v4226 = vld [vmem:[#allocation8 + $0x1e0] sm:$0xff]
    %v4227 = vld [vmem:[#allocation8 + $0x1e8] sm:$0xff]
    %v4228 = vld [vmem:[#allocation8 + $0x1f0] sm:$0xff]
    %v4229 = vld [vmem:[#allocation8 + $0x1f8] sm:$0xff]
    %v4230 = vld [vmem:[#allocation8 + $0x200] sm:$0xff]
    %v4231 = vld [vmem:[#allocation8 + $0x208] sm:$0xff]
    %v4232 = vld [vmem:[#allocation8 + $0x210] sm:$0xff]
    %v4233 = vld [vmem:[#allocation8 + $0x218] sm:$0xff]
    %v4234 = vld [vmem:[#allocation8 + $0x220] sm:$0xff]
    %v4235 = vld [vmem:[#allocation8 + $0x228] sm:$0xff]
    %v4236 = vld [vmem:[#allocation8 + $0x230] sm:$0xff]
    %v4237 = vld [vmem:[#allocation8 + $0x238] sm:$0xff]
    %v4238 = vld [vmem:[#allocation8 + $0x240] sm:$0xff]
    %v4239 = vld [vmem:[#allocation8 + $0x248] sm:$0xff]
    %v4240 = vld [vmem:[#allocation8 + $0x250] sm:$0xff]
    %v4241 = vld [vmem:[#allocation8 + $0x258] sm:$0xff]
    %v4242 = vld [vmem:[#allocation8 + $0x260] sm:$0xff]
    %v4243 = vld [vmem:[#allocation8 + $0x268] sm:$0xff]
    %v4244 = vld [vmem:[#allocation8 + $0x270] sm:$0xff]
    %v4245 = vld [vmem:[#allocation8 + $0x278] sm:$0xff]
    %v4246 = vld [vmem:[#allocation8 + $0x280] sm:$0xff]
    %v4247 = vld [vmem:[#allocation8 + $0x288] sm:$0xff]
    %v4248 = vld [vmem:[#allocation8 + $0x290] sm:$0xff]
    %v4249 = vld [vmem:[#allocation8 + $0x298] sm:$0xff]
    %v4250 = vld [vmem:[#allocation8 + $0x2a0] sm:$0xff]
    %v4251 = vld [vmem:[#allocation8 + $0x2a8] sm:$0xff]
    %v4252 = vld [vmem:[#allocation8 + $0x2b0] sm:$0xff]
    %v4253 = vld [vmem:[#allocation8 + $0x2b8] sm:$0xff]
    %v4254 = vld [vmem:[#allocation8 + $0x2c0] sm:$0xff]
    %v4255 = vld [vmem:[#allocation8 + $0x2c8] sm:$0xff]
    %v4256 = vld [vmem:[#allocation8 + $0x2d0] sm:$0xff]
    %v4257 = vld [vmem:[#allocation8 + $0x2d8] sm:$0xff]
    %v4258 = vld [vmem:[#allocation8 + $0x2e0] sm:$0xff]
    %v4259 = vld [vmem:[#allocation8 + $0x2e8] sm:$0xff]
    %v4260 = vld [vmem:[#allocation8 + $0x2f0] sm:$0xff]
    %v4261 = vld [vmem:[#allocation8 + $0x2f8] sm:$0xff]
    %v4262 = vld [vmem:[#allocation8 + $0x300] sm:$0xff]
    %v4263 = vld [vmem:[#allocation8 + $0x308] sm:$0xff]
    %v4264 = vld [vmem:[#allocation8 + $0x310] sm:$0xff]
    %v4265 = vld [vmem:[#allocation8 + $0x318] sm:$0xff]
    %v4266 = vld [vmem:[#allocation8 + $0x320] sm:$0xff]
    %v4267 = vld [vmem:[#allocation8 + $0x328] sm:$0xff]
    %v4268 = vld [vmem:[#allocation8 + $0x330] sm:$0xff]
    %v4269 = vld [vmem:[#allocation8 + $0x338] sm:$0xff]
    %v4270 = vld [vmem:[#allocation8 + $0x340] sm:$0xff]
    %v4271 = vld [vmem:[#allocation8 + $0x348] sm:$0xff]
    %v4272 = vld [vmem:[#allocation8 + $0x350] sm:$0xff]
    %v4273 = vld [vmem:[#allocation8 + $0x358] sm:$0xff]
    %v4274 = vld [vmem:[#allocation8 + $0x360] sm:$0xff]
    %v4275 = vld [vmem:[#allocation8 + $0x368] sm:$0xff]
    %v4276 = vld [vmem:[#allocation8 + $0x370] sm:$0xff]
    %v4277 = vld [vmem:[#allocation8 + $0x378] sm:$0xff]
    %v4278 = vld [vmem:[#allocation8 + $0x380] sm:$0xff]
    %v4279 = vld [vmem:[#allocation8 + $0x388] sm:$0xff]
    %v4280 = vld [vmem:[#allocation8 + $0x390] sm:$0xff]
    %v4281 = vld [vmem:[#allocation8 + $0x398] sm:$0xff]
    %v4282 = vld [vmem:[#allocation8 + $0x3a0] sm:$0xff]
    %v4283 = vld [vmem:[#allocation8 + $0x3a8] sm:$0xff]
    %v4284 = vld [vmem:[#allocation8 + $0x3b0] sm:$0xff]
    %v4285 = vld [vmem:[#allocation8 + $0x3b8] sm:$0xff]
    %v4286 = vld [vmem:[#allocation8 + $0x3c0] sm:$0xff]
    %v4287 = vld [vmem:[#allocation8 + $0x3c8] sm:$0xff]
    %v4288 = vld [vmem:[#allocation8 + $0x3d0] sm:$0xff]
    %v4289 = vld [vmem:[#allocation8 + $0x3d8] sm:$0xff]
    %v4290 = vld [vmem:[#allocation8 + $0x3e0] sm:$0xff]
    %v4291 = vld [vmem:[#allocation8 + $0x3e8] sm:$0xff]
    %v4292 = vld [vmem:[#allocation8 + $0x3f0] sm:$0xff]
    %v4293 = vld [vmem:[#allocation8 + $0x3f8] sm:$0xff]
    %v4294 = vld [vmem:[#allocation8 + $0x400] sm:$0xff]
    %v4295 = vld [vmem:[#allocation8 + $0x408] sm:$0xff]
    %v4296 = vld [vmem:[#allocation8 + $0x410] sm:$0xff]
    %v4297 = vld [vmem:[#allocation8 + $0x418] sm:$0xff]
    %v4298 = vld [vmem:[#allocation8 + $0x420] sm:$0xff]
    %v4299 = vld [vmem:[#allocation8 + $0x428] sm:$0xff]
    %v4300 = vld [vmem:[#allocation8 + $0x430] sm:$0xff]
    %v4301 = vld [vmem:[#allocation8 + $0x438] sm:$0xff]
    %v4302 = vld [vmem:[#allocation8 + $0x440] sm:$0xff]
    %v4303 = vld [vmem:[#allocation8 + $0x448] sm:$0xff]
    %v4304 = vld [vmem:[#allocation8 + $0x450] sm:$0xff]
    %v4305 = vld [vmem:[#allocation8 + $0x458] sm:$0xff]
    %v4306 = vld [vmem:[#allocation8 + $0x460] sm:$0xff]
    %v4307 = vld [vmem:[#allocation8 + $0x468] sm:$0xff]
    %v4308 = vld [vmem:[#allocation8 + $0x470] sm:$0xff]
    %v4309 = vld [vmem:[#allocation8 + $0x478] sm:$0xff]
    %v4310 = vld [vmem:[#allocation8 + $0x480] sm:$0xff]
    %v4311 = vld [vmem:[#allocation8 + $0x488] sm:$0xff]
    %v4312 = vld [vmem:[#allocation8 + $0x490] sm:$0xff]
    %v4313 = vld [vmem:[#allocation8 + $0x498] sm:$0xff]
    %v4314 = vld [vmem:[#allocation8 + $0x4a0] sm:$0xff]
    %v4315 = vld [vmem:[#allocation8 + $0x4a8] sm:$0xff]
    %v4316 = vld [vmem:[#allocation8 + $0x4b0] sm:$0xff]
    %v4317 = vld [vmem:[#allocation8 + $0x4b8] sm:$0xff]
    %v4318 = vld [vmem:[#allocation8 + $0x4c0] sm:$0xff]
    %v4319 = vld [vmem:[#allocation8 + $0x4c8] sm:$0xff]
    %v4320 = vld [vmem:[#allocation8 + $0x4d0] sm:$0xff]
    %v4321 = vld [vmem:[#allocation8 + $0x4d8] sm:$0xff]
    %v4322 = vld [vmem:[#allocation8 + $0x4e0] sm:$0xff]
    %v4323 = vld [vmem:[#allocation8 + $0x4e8] sm:$0xff]
    %v4324 = vld [vmem:[#allocation8 + $0x4f0] sm:$0xff]
    %v4325 = vld [vmem:[#allocation8 + $0x4f8] sm:$0xff]
    %v4326 = vld [vmem:[#allocation8 + $0x500] sm:$0xff]
    %v4327 = vld [vmem:[#allocation8 + $0x508] sm:$0xff]
    %v4328 = vld [vmem:[#allocation8 + $0x510] sm:$0xff]
    %v4329 = vld [vmem:[#allocation8 + $0x518] sm:$0xff]
    %v4330 = vld [vmem:[#allocation8 + $0x520] sm:$0xff]
    %v4331 = vld [vmem:[#allocation8 + $0x528] sm:$0xff]
    %v4332 = vld [vmem:[#allocation8 + $0x530] sm:$0xff]
    %v4333 = vld [vmem:[#allocation8 + $0x538] sm:$0xff]
    %v4334 = vld [vmem:[#allocation8 + $0x540] sm:$0xff]
    %v4335 = vld [vmem:[#allocation8 + $0x548] sm:$0xff]
    %v4336 = vld [vmem:[#allocation8 + $0x550] sm:$0xff]
    %v4337 = vld [vmem:[#allocation8 + $0x558] sm:$0xff]
    %v4338 = vld [vmem:[#allocation8 + $0x560] sm:$0xff]
    %v4339 = vld [vmem:[#allocation8 + $0x568] sm:$0xff]
    %v4340 = vld [vmem:[#allocation8 + $0x570] sm:$0xff]
    %v4341 = vld [vmem:[#allocation8 + $0x578] sm:$0xff]
    %v4342 = vld [vmem:[#allocation8 + $0x580] sm:$0xff]
    %v4343 = vld [vmem:[#allocation8 + $0x588] sm:$0xff]
    %v4344 = vld [vmem:[#allocation8 + $0x590] sm:$0xff]
    %v4345 = vld [vmem:[#allocation8 + $0x598] sm:$0xff]
    %v4346 = vld [vmem:[#allocation8 + $0x5a0] sm:$0xff]
    %v4347 = vld [vmem:[#allocation8 + $0x5a8] sm:$0xff]
    %v4348 = vld [vmem:[#allocation8 + $0x5b0] sm:$0xff]
    %v4349 = vld [vmem:[#allocation8 + $0x5b8] sm:$0xff]
    %v4350 = vld [vmem:[#allocation8 + $0x5c0] sm:$0xff]
    %v4351 = vld [vmem:[#allocation8 + $0x5c8] sm:$0xff]
    %v4352 = vld [vmem:[#allocation8 + $0x5d0] sm:$0xff]
    %v4353 = vld [vmem:[#allocation8 + $0x5d8] sm:$0xff]
    %v4354 = vld [vmem:[#allocation8 + $0x5e0] sm:$0xff]
    %v4355 = vld [vmem:[#allocation8 + $0x5e8] sm:$0xff]
    %v4356 = vld [vmem:[#allocation8 + $0x5f0] sm:$0xff]
    %v4357 = vld [vmem:[#allocation8 + $0x5f8] sm:$0xff]
    %v4358 = vld [vmem:[#allocation8 + $0x600] sm:$0xff]
    %v4359 = vld [vmem:[#allocation8 + $0x608] sm:$0xff]
    %v4360 = vld [vmem:[#allocation8 + $0x610] sm:$0xff]
    %v4361 = vld [vmem:[#allocation8 + $0x618] sm:$0xff]
    %v4362 = vld [vmem:[#allocation8 + $0x620] sm:$0xff]
    %v4363 = vld [vmem:[#allocation8 + $0x628] sm:$0xff]
    %v4364 = vld [vmem:[#allocation8 + $0x630] sm:$0xff]
    %v4365 = vld [vmem:[#allocation8 + $0x638] sm:$0xff]
    %v4366 = vld [vmem:[#allocation8 + $0x640] sm:$0xff]
    %v4367 = vld [vmem:[#allocation8 + $0x648] sm:$0xff]
    %v4368 = vld [vmem:[#allocation8 + $0x650] sm:$0xff]
    %v4369 = vld [vmem:[#allocation8 + $0x658] sm:$0xff]
    %v4370 = vld [vmem:[#allocation8 + $0x660] sm:$0xff]
    %v4371 = vld [vmem:[#allocation8 + $0x668] sm:$0xff]
    %v4372 = vld [vmem:[#allocation8 + $0x670] sm:$0xff]
    %v4373 = vld [vmem:[#allocation8 + $0x678] sm:$0xff]
    %v4374 = vld [vmem:[#allocation8 + $0x680] sm:$0xff]
    %v4375 = vld [vmem:[#allocation8 + $0x688] sm:$0xff]
    %v4376 = vld [vmem:[#allocation8 + $0x690] sm:$0xff]
    %v4377 = vld [vmem:[#allocation8 + $0x698] sm:$0xff]
    %v4378 = vld [vmem:[#allocation8 + $0x6a0] sm:$0xff]
    %v4379 = vld [vmem:[#allocation8 + $0x6a8] sm:$0xff]
    %v4380 = vld [vmem:[#allocation8 + $0x6b0] sm:$0xff]
    %v4381 = vld [vmem:[#allocation8 + $0x6b8] sm:$0xff]
    %v4382 = vld [vmem:[#allocation8 + $0x6c0] sm:$0xff]
    %v4383 = vld [vmem:[#allocation8 + $0x6c8] sm:$0xff]
    %v4384 = vld [vmem:[#allocation8 + $0x6d0] sm:$0xff]
    %v4385 = vld [vmem:[#allocation8 + $0x6d8] sm:$0xff]
    %v4386 = vld [vmem:[#allocation8 + $0x6e0] sm:$0xff]
    %v4387 = vld [vmem:[#allocation8 + $0x6e8] sm:$0xff]
    %v4388 = vld [vmem:[#allocation8 + $0x6f0] sm:$0xff]
    %v4389 = vld [vmem:[#allocation8 + $0x6f8] sm:$0xff]
    %v4390 = vld [vmem:[#allocation8 + $0x700] sm:$0xff]
    %v4391 = vld [vmem:[#allocation8 + $0x708] sm:$0xff]
    %v4392 = vld [vmem:[#allocation8 + $0x710] sm:$0xff]
    %v4393 = vld [vmem:[#allocation8 + $0x718] sm:$0xff]
    %v4394 = vld [vmem:[#allocation8 + $0x720] sm:$0xff]
    %v4395 = vld [vmem:[#allocation8 + $0x728] sm:$0xff]
    %v4396 = vld [vmem:[#allocation8 + $0x730] sm:$0xff]
    %v4397 = vld [vmem:[#allocation8 + $0x738] sm:$0xff]
    %v4398 = vld [vmem:[#allocation8 + $0x740] sm:$0xff]
    %v4399 = vld [vmem:[#allocation8 + $0x748] sm:$0xff]
    %v4400 = vld [vmem:[#allocation8 + $0x750] sm:$0xff]
    %v4401 = vld [vmem:[#allocation8 + $0x758] sm:$0xff]
    %v4402 = vld [vmem:[#allocation8 + $0x760] sm:$0xff]
    %v4403 = vld [vmem:[#allocation8 + $0x768] sm:$0xff]
    %v4404 = vld [vmem:[#allocation8 + $0x770] sm:$0xff]
    %v4405 = vld [vmem:[#allocation8 + $0x778] sm:$0xff]
    %v4406 = vld [vmem:[#allocation8 + $0x780] sm:$0xff]
    %v4407 = vld [vmem:[#allocation8 + $0x788] sm:$0xff]
    %v4408 = vld [vmem:[#allocation8 + $0x790] sm:$0xff]
    %v4409 = vld [vmem:[#allocation8 + $0x798] sm:$0xff]
    %v4410 = vld [vmem:[#allocation8 + $0x7a0] sm:$0xff]
    %v4411 = vld [vmem:[#allocation8 + $0x7a8] sm:$0xff]
    %v4412 = vld [vmem:[#allocation8 + $0x7b0] sm:$0xff]
    %v4413 = vld [vmem:[#allocation8 + $0x7b8] sm:$0xff]
    %v4414 = vld [vmem:[#allocation8 + $0x7c0] sm:$0xff]
    %v4415 = vld [vmem:[#allocation8 + $0x7c8] sm:$0xff]
    %v4416 = vld [vmem:[#allocation8 + $0x7d0] sm:$0xff]
    %v4417 = vld [vmem:[#allocation8 + $0x7d8] sm:$0xff]
    %v4418 = vld [vmem:[#allocation8 + $0x7e0] sm:$0xff]
    %v4419 = vld [vmem:[#allocation8 + $0x7e8] sm:$0xff]
    %v4420 = vld [vmem:[#allocation8 + $0x7f0] sm:$0xff]
    %v4421 = vld [vmem:[#allocation8 + $0x7f8] sm:$0xff]
    %v4422 = vld [vmem:[#allocation8 + $0x800] sm:$0xff]
    %v4423 = vld [vmem:[#allocation8 + $0x808] sm:$0xff]
    %v4424 = vld [vmem:[#allocation8 + $0x810] sm:$0xff]
    %v4425 = vld [vmem:[#allocation8 + $0x818] sm:$0xff]
    %v4426 = vld [vmem:[#allocation8 + $0x820] sm:$0xff]
    %v4427 = vld [vmem:[#allocation8 + $0x828] sm:$0xff]
    %v4428 = vld [vmem:[#allocation8 + $0x830] sm:$0xff]
    %v4429 = vld [vmem:[#allocation8 + $0x838] sm:$0xff]
    %v4430 = vld [vmem:[#allocation8 + $0x840] sm:$0xff]
    %v4431 = vld [vmem:[#allocation8 + $0x848] sm:$0xff]
    %v4432 = vld [vmem:[#allocation8 + $0x850] sm:$0xff]
    %v4433 = vld [vmem:[#allocation8 + $0x858] sm:$0xff]
    %v4434 = vld [vmem:[#allocation8 + $0x860] sm:$0xff]
    %v4435 = vld [vmem:[#allocation8 + $0x868] sm:$0xff]
    %v4436 = vld [vmem:[#allocation8 + $0x870] sm:$0xff]
    %v4437 = vld [vmem:[#allocation8 + $0x878] sm:$0xff]
    %v4438 = vld [vmem:[#allocation8 + $0x880] sm:$0xff]
    %v4439 = vld [vmem:[#allocation8 + $0x888] sm:$0xff]
    %v4440 = vld [vmem:[#allocation8 + $0x890] sm:$0xff]
    %v4441 = vld [vmem:[#allocation8 + $0x898] sm:$0xff]
    %v4442 = vld [vmem:[#allocation8 + $0x8a0] sm:$0xff]
    %v4443 = vld [vmem:[#allocation8 + $0x8a8] sm:$0xff]
    %v4444 = vld [vmem:[#allocation8 + $0x8b0] sm:$0xff]
    %v4445 = vld [vmem:[#allocation8 + $0x8b8] sm:$0xff]
    %v4446 = vld [vmem:[#allocation8 + $0x8c0] sm:$0xff]
    %v4447 = vld [vmem:[#allocation8 + $0x8c8] sm:$0xff]
    %v4448 = vld [vmem:[#allocation8 + $0x8d0] sm:$0xff]
    %v4449 = vld [vmem:[#allocation8 + $0x8d8] sm:$0xff]
    %v4450 = vld [vmem:[#allocation8 + $0x8e0] sm:$0xff]
    %v4451 = vld [vmem:[#allocation8 + $0x8e8] sm:$0xff]
    %v4452 = vld [vmem:[#allocation8 + $0x8f0] sm:$0xff]
    %v4453 = vld [vmem:[#allocation8 + $0x8f8] sm:$0xff]
    %v4454 = vld [vmem:[#allocation8 + $0x900] sm:$0xff]
    %v4455 = vld [vmem:[#allocation8 + $0x908] sm:$0xff]
    %v4456 = vld [vmem:[#allocation8 + $0x910] sm:$0xff]
    %v4457 = vld [vmem:[#allocation8 + $0x918] sm:$0xff]
    %v4458 = vld [vmem:[#allocation8 + $0x920] sm:$0xff]
    %v4459 = vld [vmem:[#allocation8 + $0x928] sm:$0xff]
    %v4460 = vld [vmem:[#allocation8 + $0x930] sm:$0xff]
    %v4461 = vld [vmem:[#allocation8 + $0x938] sm:$0xff]
    %v4462 = vld [vmem:[#allocation8 + $0x940] sm:$0xff]
    %v4463 = vld [vmem:[#allocation8 + $0x948] sm:$0xff]
    %v4464 = vld [vmem:[#allocation8 + $0x950] sm:$0xff]
    %v4465 = vld [vmem:[#allocation8 + $0x958] sm:$0xff]
    %v4466 = vld [vmem:[#allocation8 + $0x960] sm:$0xff]
    %v4467 = vld [vmem:[#allocation8 + $0x968] sm:$0xff]
    %v4468 = vld [vmem:[#allocation8 + $0x970] sm:$0xff]
    %v4469 = vld [vmem:[#allocation8 + $0x978] sm:$0xff]
    %v4470 = vld [vmem:[#allocation8 + $0x980] sm:$0xff]
    %v4471 = vld [vmem:[#allocation8 + $0x988] sm:$0xff]
    %v4472 = vld [vmem:[#allocation8 + $0x990] sm:$0xff]
    %v4473 = vld [vmem:[#allocation8 + $0x998] sm:$0xff]
    %v4474 = vld [vmem:[#allocation8 + $0x9a0] sm:$0xff]
    %v4475 = vld [vmem:[#allocation8 + $0x9a8] sm:$0xff]
    %v4476 = vld [vmem:[#allocation8 + $0x9b0] sm:$0xff]
    %v4477 = vld [vmem:[#allocation8 + $0x9b8] sm:$0xff]
    %v4478 = vld [vmem:[#allocation8 + $0x9c0] sm:$0xff]
    %v4479 = vld [vmem:[#allocation8 + $0x9c8] sm:$0xff]
    %v4480 = vld [vmem:[#allocation8 + $0x9d0] sm:$0xff]
    %v4481 = vld [vmem:[#allocation8 + $0x9d8] sm:$0xff]
    %v4482 = vld [vmem:[#allocation8 + $0x9e0] sm:$0xff]
    %v4483 = vld [vmem:[#allocation8 + $0x9e8] sm:$0xff]
    %v4484 = vld [vmem:[#allocation8 + $0x9f0] sm:$0xff]
    %v4485 = vld [vmem:[#allocation8 + $0x9f8] sm:$0xff]
    %v4486 = vld [vmem:[#allocation8 + $0xa00] sm:$0xff]
    %v4487 = vld [vmem:[#allocation8 + $0xa08] sm:$0xff]
    %v4488 = vld [vmem:[#allocation8 + $0xa10] sm:$0xff]
    %v4489 = vld [vmem:[#allocation8 + $0xa18] sm:$0xff]
    %v4490 = vld [vmem:[#allocation8 + $0xa20] sm:$0xff]
    %v4491 = vld [vmem:[#allocation8 + $0xa28] sm:$0xff]
    %v4492 = vld [vmem:[#allocation8 + $0xa30] sm:$0xff]
    %v4493 = vld [vmem:[#allocation8 + $0xa38] sm:$0xff]
    %v4494 = vld [vmem:[#allocation8 + $0xa40] sm:$0xff]
    %v4495 = vld [vmem:[#allocation8 + $0xa48] sm:$0xff]
    %v4496 = vld [vmem:[#allocation8 + $0xa50] sm:$0xff]
    %v4497 = vld [vmem:[#allocation8 + $0xa58] sm:$0xff]
    %v4498 = vld [vmem:[#allocation8 + $0xa60] sm:$0xff]
    %v4499 = vld [vmem:[#allocation8 + $0xa68] sm:$0xff]
    %v4500 = vld [vmem:[#allocation8 + $0xa70] sm:$0xff]
    %v4501 = vld [vmem:[#allocation8 + $0xa78] sm:$0xff]
    %v4502 = vld [vmem:[#allocation8 + $0xa80] sm:$0xff]
    %v4503 = vld [vmem:[#allocation8 + $0xa88] sm:$0xff]
    %v4504 = vld [vmem:[#allocation8 + $0xa90] sm:$0xff]
    %v4505 = vld [vmem:[#allocation8 + $0xa98] sm:$0xff]
    %v4506 = vld [vmem:[#allocation8 + $0xaa0] sm:$0xff]
    %v4507 = vld [vmem:[#allocation8 + $0xaa8] sm:$0xff]
    %v4508 = vld [vmem:[#allocation8 + $0xab0] sm:$0xff]
    %v4509 = vld [vmem:[#allocation8 + $0xab8] sm:$0xff]
    %v4510 = vld [vmem:[#allocation8 + $0xac0] sm:$0xff]
    %v4511 = vld [vmem:[#allocation8 + $0xac8] sm:$0xff]
    %v4512 = vld [vmem:[#allocation8 + $0xad0] sm:$0xff]
    %v4513 = vld [vmem:[#allocation8 + $0xad8] sm:$0xff]
    %v4514 = vld [vmem:[#allocation8 + $0xae0] sm:$0xff]
    %v4515 = vld [vmem:[#allocation8 + $0xae8] sm:$0xff]
    %v4516 = vld [vmem:[#allocation8 + $0xaf0] sm:$0xff]
    %v4517 = vld [vmem:[#allocation8 + $0xaf8] sm:$0xff]
    %v4518 = vld [vmem:[#allocation8 + $0xb00] sm:$0xff]
    %v4519 = vld [vmem:[#allocation8 + $0xb08] sm:$0xff]
    %v4520 = vld [vmem:[#allocation8 + $0xb10] sm:$0xff]
    %v4521 = vld [vmem:[#allocation8 + $0xb18] sm:$0xff]
    %v4522 = vld [vmem:[#allocation8 + $0xb20] sm:$0xff]
    %v4523 = vld [vmem:[#allocation8 + $0xb28] sm:$0xff]
    %v4524 = vld [vmem:[#allocation8 + $0xb30] sm:$0xff]
    %v4525 = vld [vmem:[#allocation8 + $0xb38] sm:$0xff]
    %v4526 = vld [vmem:[#allocation8 + $0xb40] sm:$0xff]
    %v4527 = vld [vmem:[#allocation8 + $0xb48] sm:$0xff]
    %v4528 = vld [vmem:[#allocation8 + $0xb50] sm:$0xff]
    %v4529 = vld [vmem:[#allocation8 + $0xb58] sm:$0xff]
    %v4530 = vld [vmem:[#allocation8 + $0xb60] sm:$0xff]
    %v4531 = vld [vmem:[#allocation8 + $0xb68] sm:$0xff]
    %v4532 = vld [vmem:[#allocation8 + $0xb70] sm:$0xff]
    %v4533 = vld [vmem:[#allocation8 + $0xb78] sm:$0xff]
    %v4534 = vld [vmem:[#allocation8 + $0xb80] sm:$0xff]
    %v4535 = vld [vmem:[#allocation8 + $0xb88] sm:$0xff]
    %v4536 = vld [vmem:[#allocation8 + $0xb90] sm:$0xff]
    %v4537 = vld [vmem:[#allocation8 + $0xb98] sm:$0xff]
    %v4538 = vld [vmem:[#allocation8 + $0xba0] sm:$0xff]
    %v4539 = vld [vmem:[#allocation8 + $0xba8] sm:$0xff]
    %v4540 = vld [vmem:[#allocation8 + $0xbb0] sm:$0xff]
    %v4541 = vld [vmem:[#allocation8 + $0xbb8] sm:$0xff]
    %v4542 = vld [vmem:[#allocation8 + $0xbc0] sm:$0xff]
    %v4543 = vld [vmem:[#allocation8 + $0xbc8] sm:$0xff]
    %v4544 = vld [vmem:[#allocation8 + $0xbd0] sm:$0xff]
    %v4545 = vld [vmem:[#allocation8 + $0xbd8] sm:$0xff]
    %v4546 = vld [vmem:[#allocation8 + $0xbe0] sm:$0xff]
    %v4547 = vld [vmem:[#allocation8 + $0xbe8] sm:$0xff]
    %v4548 = vld [vmem:[#allocation8 + $0xbf0] sm:$0xff]
    %v4549 = vld [vmem:[#allocation8 + $0xbf8] sm:$0xff]
    %v4550 = vld [vmem:[#allocation8 + $0xc00] sm:$0xff]
    %v4551 = vld [vmem:[#allocation8 + $0xc08] sm:$0xff]
    %v4552 = vld [vmem:[#allocation8 + $0xc10] sm:$0xff]
    %v4553 = vld [vmem:[#allocation8 + $0xc18] sm:$0xff]
    %v4554 = vld [vmem:[#allocation8 + $0xc20] sm:$0xff]
    %v4555 = vld [vmem:[#allocation8 + $0xc28] sm:$0xff]
    %v4556 = vld [vmem:[#allocation8 + $0xc30] sm:$0xff]
    %v4557 = vld [vmem:[#allocation8 + $0xc38] sm:$0xff]
    %v4558 = vld [vmem:[#allocation8 + $0xc40] sm:$0xff]
    %v4559 = vld [vmem:[#allocation8 + $0xc48] sm:$0xff]
    %v4560 = vld [vmem:[#allocation8 + $0xc50] sm:$0xff]
    %v4561 = vld [vmem:[#allocation8 + $0xc58] sm:$0xff]
    %v4562 = vld [vmem:[#allocation8 + $0xc60] sm:$0xff]
    %v4563 = vld [vmem:[#allocation8 + $0xc68] sm:$0xff]
    %v4564 = vld [vmem:[#allocation8 + $0xc70] sm:$0xff]
    %v4565 = vld [vmem:[#allocation8 + $0xc78] sm:$0xff]
    %v4566 = vld [vmem:[#allocation8 + $0xc80] sm:$0xff]
    %v4567 = vld [vmem:[#allocation8 + $0xc88] sm:$0xff]
    %v4568 = vld [vmem:[#allocation8 + $0xc90] sm:$0xff]
    %v4569 = vld [vmem:[#allocation8 + $0xc98] sm:$0xff]
    %v4570 = vld [vmem:[#allocation8 + $0xca0] sm:$0xff]
    %v4571 = vld [vmem:[#allocation8 + $0xca8] sm:$0xff]
    %v4572 = vld [vmem:[#allocation8 + $0xcb0] sm:$0xff]
    %v4573 = vld [vmem:[#allocation8 + $0xcb8] sm:$0xff]
    %v4574 = vld [vmem:[#allocation8 + $0xcc0] sm:$0xff]
    %v4575 = vld [vmem:[#allocation8 + $0xcc8] sm:$0xff]
    %v4576 = vld [vmem:[#allocation8 + $0xcd0] sm:$0xff]
    %v4577 = vld [vmem:[#allocation8 + $0xcd8] sm:$0xff]
    %v4578 = vld [vmem:[#allocation8 + $0xce0] sm:$0xff]
    %v4579 = vld [vmem:[#allocation8 + $0xce8] sm:$0xff]
    %v4580 = vld [vmem:[#allocation8 + $0xcf0] sm:$0xff]
    %v4581 = vld [vmem:[#allocation8 + $0xcf8] sm:$0xff]
    %v4582 = vld [vmem:[#allocation8 + $0xd00] sm:$0xff]
    %v4583 = vld [vmem:[#allocation8 + $0xd08] sm:$0xff]
    %v4584 = vld [vmem:[#allocation8 + $0xd10] sm:$0xff]
    %v4585 = vld [vmem:[#allocation8 + $0xd18] sm:$0xff]
    %v4586 = vld [vmem:[#allocation8 + $0xd20] sm:$0xff]
    %v4587 = vld [vmem:[#allocation8 + $0xd28] sm:$0xff]
    %v4588 = vld [vmem:[#allocation8 + $0xd30] sm:$0xff]
    %v4589 = vld [vmem:[#allocation8 + $0xd38] sm:$0xff]
    %v4590 = vld [vmem:[#allocation8 + $0xd40] sm:$0xff]
    %v4591 = vld [vmem:[#allocation8 + $0xd48] sm:$0xff]
    %v4592 = vld [vmem:[#allocation8 + $0xd50] sm:$0xff]
    %v4593 = vld [vmem:[#allocation8 + $0xd58] sm:$0xff]
    %v4594 = vld [vmem:[#allocation8 + $0xd60] sm:$0xff]
    %v4595 = vld [vmem:[#allocation8 + $0xd68] sm:$0xff]
    %v4596 = vld [vmem:[#allocation8 + $0xd70] sm:$0xff]
    %v4597 = vld [vmem:[#allocation8 + $0xd78] sm:$0xff]
    %v4598 = vld [vmem:[#allocation8 + $0xd80] sm:$0xff]
    %v4599 = vld [vmem:[#allocation8 + $0xd88] sm:$0xff]
    %v4600 = vld [vmem:[#allocation8 + $0xd90] sm:$0xff]
    %v4601 = vld [vmem:[#allocation8 + $0xd98] sm:$0xff]
    %v4602 = vld [vmem:[#allocation8 + $0xda0] sm:$0xff]
    %v4603 = vld [vmem:[#allocation8 + $0xda8] sm:$0xff]
    %v4604 = vld [vmem:[#allocation8 + $0xdb0] sm:$0xff]
    %v4605 = vld [vmem:[#allocation8 + $0xdb8] sm:$0xff]
    %v4606 = vld [vmem:[#allocation8 + $0xdc0] sm:$0xff]
    %v4607 = vld [vmem:[#allocation8 + $0xdc8] sm:$0xff]
    %v4608 = vld [vmem:[#allocation8 + $0xdd0] sm:$0xff]
    %v4609 = vld [vmem:[#allocation8 + $0xdd8] sm:$0xff]
    %v4610 = vld [vmem:[#allocation8 + $0xde0] sm:$0xff]
    %v4611 = vld [vmem:[#allocation8 + $0xde8] sm:$0xff]
    %v4612 = vld [vmem:[#allocation8 + $0xdf0] sm:$0xff]
    %v4613 = vld [vmem:[#allocation8 + $0xdf8] sm:$0xff]
    %v4614 = vld [vmem:[#allocation8 + $0xe00] sm:$0xff]
    %v4615 = vld [vmem:[#allocation8 + $0xe08] sm:$0xff]
    %v4616 = vld [vmem:[#allocation8 + $0xe10] sm:$0xff]
    %v4617 = vld [vmem:[#allocation8 + $0xe18] sm:$0xff]
    %v4618 = vld [vmem:[#allocation8 + $0xe20] sm:$0xff]
    %v4619 = vld [vmem:[#allocation8 + $0xe28] sm:$0xff]
    %v4620 = vld [vmem:[#allocation8 + $0xe30] sm:$0xff]
    %v4621 = vld [vmem:[#allocation8 + $0xe38] sm:$0xff]
    %v4622 = vld [vmem:[#allocation8 + $0xe40] sm:$0xff]
    %v4623 = vld [vmem:[#allocation8 + $0xe48] sm:$0xff]
    %v4624 = vld [vmem:[#allocation8 + $0xe50] sm:$0xff]
    %v4625 = vld [vmem:[#allocation8 + $0xe58] sm:$0xff]
    %v4626 = vld [vmem:[#allocation8 + $0xe60] sm:$0xff]
    %v4627 = vld [vmem:[#allocation8 + $0xe68] sm:$0xff]
    %v4628 = vld [vmem:[#allocation8 + $0xe70] sm:$0xff]
    %v4629 = vld [vmem:[#allocation8 + $0xe78] sm:$0xff]
    %v4630 = vld [vmem:[#allocation8 + $0xe80] sm:$0xff]
    %v4631 = vld [vmem:[#allocation8 + $0xe88] sm:$0xff]
    %v4632 = vld [vmem:[#allocation8 + $0xe90] sm:$0xff]
    %v4633 = vld [vmem:[#allocation8 + $0xe98] sm:$0xff]
    %v4634 = vld [vmem:[#allocation8 + $0xea0] sm:$0xff]
    %v4635 = vld [vmem:[#allocation8 + $0xea8] sm:$0xff]
    %v4636 = vld [vmem:[#allocation8 + $0xeb0] sm:$0xff]
    %v4637 = vld [vmem:[#allocation8 + $0xeb8] sm:$0xff]
    %v4638 = vld [vmem:[#allocation8 + $0xec0] sm:$0xff]
    %v4639 = vld [vmem:[#allocation8 + $0xec8] sm:$0xff]
    %v4640 = vld [vmem:[#allocation8 + $0xed0] sm:$0xff]
    %v4641 = vld [vmem:[#allocation8 + $0xed8] sm:$0xff]
    %v4642 = vld [vmem:[#allocation8 + $0xee0] sm:$0xff]
    %v4643 = vld [vmem:[#allocation8 + $0xee8] sm:$0xff]
    %v4644 = vld [vmem:[#allocation8 + $0xef0] sm:$0xff]
    %v4645 = vld [vmem:[#allocation8 + $0xef8] sm:$0xff]
    %v4646 = vld [vmem:[#allocation8 + $0xf00] sm:$0xff]
    %v4647 = vld [vmem:[#allocation8 + $0xf08] sm:$0xff]
    %v4648 = vld [vmem:[#allocation8 + $0xf10] sm:$0xff]
    %v4649 = vld [vmem:[#allocation8 + $0xf18] sm:$0xff]
    %v4650 = vld [vmem:[#allocation8 + $0xf20] sm:$0xff]
    %v4651 = vld [vmem:[#allocation8 + $0xf28] sm:$0xff]
    %v4652 = vld [vmem:[#allocation8 + $0xf30] sm:$0xff]
    %v4653 = vld [vmem:[#allocation8 + $0xf38] sm:$0xff]
    %v4654 = vld [vmem:[#allocation8 + $0xf40] sm:$0xff]
    %v4655 = vld [vmem:[#allocation8 + $0xf48] sm:$0xff]
    %v4656 = vld [vmem:[#allocation8 + $0xf50] sm:$0xff]
    %v4657 = vld [vmem:[#allocation8 + $0xf58] sm:$0xff]
    %v4658 = vld [vmem:[#allocation8 + $0xf60] sm:$0xff]
    %v4659 = vld [vmem:[#allocation8 + $0xf68] sm:$0xff]
    %v4660 = vld [vmem:[#allocation8 + $0xf70] sm:$0xff]
    %v4661 = vld [vmem:[#allocation8 + $0xf78] sm:$0xff]
    %v4662 = vld [vmem:[#allocation8 + $0xf80] sm:$0xff]
    %v4663 = vld [vmem:[#allocation8 + $0xf88] sm:$0xff]
    %v4664 = vld [vmem:[#allocation8 + $0xf90] sm:$0xff]
    %v4665 = vld [vmem:[#allocation8 + $0xf98] sm:$0xff]
    %v4666 = vld [vmem:[#allocation8 + $0xfa0] sm:$0xff]
    %v4667 = vld [vmem:[#allocation8 + $0xfa8] sm:$0xff]
    %v4668 = vld [vmem:[#allocation8 + $0xfb0] sm:$0xff]
    %v4669 = vld [vmem:[#allocation8 + $0xfb8] sm:$0xff]
    %v4670 = vld [vmem:[#allocation8 + $0xfc0] sm:$0xff]
    %v4671 = vld [vmem:[#allocation8 + $0xfc8] sm:$0xff]
    %v4672 = vld [vmem:[#allocation8 + $0xfd0] sm:$0xff]
    %v4673 = vld [vmem:[#allocation8 + $0xfd8] sm:$0xff]
    %v4674 = vld [vmem:[#allocation8 + $0xfe0] sm:$0xff]
    %v4675 = vld [vmem:[#allocation8 + $0xfe8] sm:$0xff]
    %v4676 = vld [vmem:[#allocation8 + $0xff0] sm:$0xff]
    %v4677 = vld [vmem:[#allocation8 + $0xff8] sm:$0xff]
    %v4678 = vld [vmem:[#allocation8 + $0x1000] sm:$0xff]
    %v4679 = vld [vmem:[#allocation8 + $0x1008] sm:$0xff]
    %v4680 = vld [vmem:[#allocation8 + $0x1010] sm:$0xff]
    %v4681 = vld [vmem:[#allocation8 + $0x1018] sm:$0xff]
    %v4682 = vld [vmem:[#allocation8 + $0x1020] sm:$0xff]
    %v4683 = vld [vmem:[#allocation8 + $0x1028] sm:$0xff]
    %v4684 = vld [vmem:[#allocation8 + $0x1030] sm:$0xff]
    %v4685 = vld [vmem:[#allocation8 + $0x1038] sm:$0xff]
    %v4686 = vld [vmem:[#allocation8 + $0x1040] sm:$0xff]
    %v4687 = vld [vmem:[#allocation8 + $0x1048] sm:$0xff]
    %v4688 = vld [vmem:[#allocation8 + $0x1050] sm:$0xff]
    %v4689 = vld [vmem:[#allocation8 + $0x1058] sm:$0xff]
    %v4690 = vld [vmem:[#allocation8 + $0x1060] sm:$0xff]
    %v4691 = vld [vmem:[#allocation8 + $0x1068] sm:$0xff]
    %v4692 = vld [vmem:[#allocation8 + $0x1070] sm:$0xff]
    %v4693 = vld [vmem:[#allocation8 + $0x1078] sm:$0xff]
    %v4694 = vld [vmem:[#allocation8 + $0x1080] sm:$0xff]
    %v4695 = vld [vmem:[#allocation8 + $0x1088] sm:$0xff]
    %v4696 = vld [vmem:[#allocation8 + $0x1090] sm:$0xff]
    %v4697 = vld [vmem:[#allocation8 + $0x1098] sm:$0xff]
    %v4698 = vld [vmem:[#allocation8 + $0x10a0] sm:$0xff]
    %v4699 = vld [vmem:[#allocation8 + $0x10a8] sm:$0xff]
    %v4700 = vld [vmem:[#allocation8 + $0x10b0] sm:$0xff]
    %v4701 = vld [vmem:[#allocation8 + $0x10b8] sm:$0xff]
    %v4702 = vld [vmem:[#allocation8 + $0x10c0] sm:$0xff]
    %v4703 = vld [vmem:[#allocation8 + $0x10c8] sm:$0xff]
    %v4704 = vld [vmem:[#allocation8 + $0x10d0] sm:$0xff]
    %v4705 = vld [vmem:[#allocation8 + $0x10d8] sm:$0xff]
    %v4706 = vld [vmem:[#allocation8 + $0x10e0] sm:$0xff]
    %v4707 = vld [vmem:[#allocation8 + $0x10e8] sm:$0xff]
    %v4708 = vld [vmem:[#allocation8 + $0x10f0] sm:$0xff]
    %v4709 = vld [vmem:[#allocation8 + $0x10f8] sm:$0xff]
    %v4710 = vld [vmem:[#allocation8 + $0x1100] sm:$0xff]
    %v4711 = vld [vmem:[#allocation8 + $0x1108] sm:$0xff]
    %v4712 = vld [vmem:[#allocation8 + $0x1110] sm:$0xff]
    %v4713 = vld [vmem:[#allocation8 + $0x1118] sm:$0xff]
    %v4714 = vld [vmem:[#allocation8 + $0x1120] sm:$0xff]
    %v4715 = vld [vmem:[#allocation8 + $0x1128] sm:$0xff]
    %v4716 = vld [vmem:[#allocation8 + $0x1130] sm:$0xff]
    %v4717 = vld [vmem:[#allocation8 + $0x1138] sm:$0xff]
    %v4718 = vld [vmem:[#allocation8 + $0x1140] sm:$0xff]
    %v4719 = vld [vmem:[#allocation8 + $0x1148] sm:$0xff]
    %v4720 = vld [vmem:[#allocation8 + $0x1150] sm:$0xff]
    %v4721 = vld [vmem:[#allocation8 + $0x1158] sm:$0xff]
    %v4722 = vld [vmem:[#allocation8 + $0x1160] sm:$0xff]
    %v4723 = vld [vmem:[#allocation8 + $0x1168] sm:$0xff]
    %v4724 = vld [vmem:[#allocation8 + $0x1170] sm:$0xff]
    %v4725 = vld [vmem:[#allocation8 + $0x1178] sm:$0xff]
    %v4726 = vld [vmem:[#allocation8 + $0x1180] sm:$0xff]
    %v4727 = vld [vmem:[#allocation8 + $0x1188] sm:$0xff]
    %v4728 = vld [vmem:[#allocation8 + $0x1190] sm:$0xff]
    %v4729 = vld [vmem:[#allocation8 + $0x1198] sm:$0xff]
    %v4730 = vld [vmem:[#allocation8 + $0x11a0] sm:$0xff]
    %v4731 = vld [vmem:[#allocation8 + $0x11a8] sm:$0xff]
    %v4732 = vld [vmem:[#allocation8 + $0x11b0] sm:$0xff]
    %v4733 = vld [vmem:[#allocation8 + $0x11b8] sm:$0xff]
    %v4734 = vld [vmem:[#allocation8 + $0x11c0] sm:$0xff]
    %v4735 = vld [vmem:[#allocation8 + $0x11c8] sm:$0xff]
    %v4736 = vld [vmem:[#allocation8 + $0x11d0] sm:$0xff]
    %v4737 = vld [vmem:[#allocation8 + $0x11d8] sm:$0xff]
    %v4738 = vld [vmem:[#allocation8 + $0x11e0] sm:$0xff]
    %v4739 = vld [vmem:[#allocation8 + $0x11e8] sm:$0xff]
    %v4740 = vld [vmem:[#allocation8 + $0x11f0] sm:$0xff]
    %v4741 = vld [vmem:[#allocation8 + $0x11f8] sm:$0xff]
    %v4742 = vld [vmem:[#allocation8 + $0x1200] sm:$0xff]
    %v4743 = vld [vmem:[#allocation8 + $0x1208] sm:$0xff]
    %v4744 = vld [vmem:[#allocation8 + $0x1210] sm:$0xff]
    %v4745 = vld [vmem:[#allocation8 + $0x1218] sm:$0xff]
    %v4746 = vld [vmem:[#allocation8 + $0x1220] sm:$0xff]
    %v4747 = vld [vmem:[#allocation8 + $0x1228] sm:$0xff]
    %v4748 = vld [vmem:[#allocation8 + $0x1230] sm:$0xff]
    %v4749 = vld [vmem:[#allocation8 + $0x1238] sm:$0xff]
    %v4750 = vld [vmem:[#allocation8 + $0x1240] sm:$0xff]
    %v4751 = vld [vmem:[#allocation8 + $0x1248] sm:$0xff]
    %v4752 = vld [vmem:[#allocation8 + $0x1250] sm:$0xff]
    %v4753 = vld [vmem:[#allocation8 + $0x1258] sm:$0xff]
    %v4754 = vld [vmem:[#allocation8 + $0x1260] sm:$0xff]
    %v4755 = vld [vmem:[#allocation8 + $0x1268] sm:$0xff]
    %v4756 = vld [vmem:[#allocation8 + $0x1270] sm:$0xff]
    %v4757 = vld [vmem:[#allocation8 + $0x1278] sm:$0xff]
    %v4758 = vld [vmem:[#allocation8 + $0x1280] sm:$0xff]
    %v4759 = vld [vmem:[#allocation8 + $0x1288] sm:$0xff]
    %v4760 = vld [vmem:[#allocation8 + $0x1290] sm:$0xff]
    %v4761 = vld [vmem:[#allocation8 + $0x1298] sm:$0xff]
    %v4762 = vld [vmem:[#allocation8 + $0x12a0] sm:$0xff]
    %v4763 = vld [vmem:[#allocation8 + $0x12a8] sm:$0xff]
    %v4764 = vld [vmem:[#allocation8 + $0x12b0] sm:$0xff]
    %v4765 = vld [vmem:[#allocation8 + $0x12b8] sm:$0xff]
    %v4766 = vld [vmem:[#allocation8 + $0x12c0] sm:$0xff]
    %v4767 = vld [vmem:[#allocation8 + $0x12c8] sm:$0xff]
    %v4768 = vld [vmem:[#allocation8 + $0x12d0] sm:$0xff]
    %v4769 = vld [vmem:[#allocation8 + $0x12d8] sm:$0xff]
    %v4770 = vld [vmem:[#allocation8 + $0x12e0] sm:$0xff]
    %v4771 = vld [vmem:[#allocation8 + $0x12e8] sm:$0xff]
    %v4772 = vld [vmem:[#allocation8 + $0x12f0] sm:$0xff]
    %v4773 = vld [vmem:[#allocation8 + $0x12f8] sm:$0xff]
    %v4774 = vld [vmem:[#allocation8 + $0x1300] sm:$0xff]
    %v4775 = vld [vmem:[#allocation8 + $0x1308] sm:$0xff]
    %v4776 = vld [vmem:[#allocation8 + $0x1310] sm:$0xff]
    %v4777 = vld [vmem:[#allocation8 + $0x1318] sm:$0xff]
    %v4778 = vld [vmem:[#allocation8 + $0x1320] sm:$0xff]
    %v4779 = vld [vmem:[#allocation8 + $0x1328] sm:$0xff]
    %v4780 = vld [vmem:[#allocation8 + $0x1330] sm:$0xff]
    %v4781 = vld [vmem:[#allocation8 + $0x1338] sm:$0xff]
    %v4782 = vld [vmem:[#allocation8 + $0x1340] sm:$0xff]
    %v4783 = vld [vmem:[#allocation8 + $0x1348] sm:$0xff]
    %v4784 = vld [vmem:[#allocation8 + $0x1350] sm:$0xff]
    %v4785 = vld [vmem:[#allocation8 + $0x1358] sm:$0xff]
    %v4786 = vld [vmem:[#allocation8 + $0x1360] sm:$0xff]
    %v4787 = vld [vmem:[#allocation8 + $0x1368] sm:$0xff]
    %v4788 = vld [vmem:[#allocation8 + $0x1370] sm:$0xff]
    %v4789 = vld [vmem:[#allocation8 + $0x1378] sm:$0xff]
    %v4790 = vld [vmem:[#allocation8 + $0x1380] sm:$0xff]
    %v4791 = vld [vmem:[#allocation8 + $0x1388] sm:$0xff]
    %v4792 = vld [vmem:[#allocation8 + $0x1390] sm:$0xff]
    %v4793 = vld [vmem:[#allocation8 + $0x1398] sm:$0xff]
    %v4794 = vld [vmem:[#allocation8 + $0x13a0] sm:$0xff]
    %v4795 = vld [vmem:[#allocation8 + $0x13a8] sm:$0xff]
    %v4796 = vld [vmem:[#allocation8 + $0x13b0] sm:$0xff]
    %v4797 = vld [vmem:[#allocation8 + $0x13b8] sm:$0xff]
    %v4798 = vld [vmem:[#allocation8 + $0x13c0] sm:$0xff]
    %v4799 = vld [vmem:[#allocation8 + $0x13c8] sm:$0xff]
    %v4800 = vld [vmem:[#allocation8 + $0x13d0] sm:$0xff]
    %v4801 = vld [vmem:[#allocation8 + $0x13d8] sm:$0xff]
    %v4802 = vld [vmem:[#allocation8 + $0x13e0] sm:$0xff]
    %v4803 = vld [vmem:[#allocation8 + $0x13e8] sm:$0xff]
    %v4804 = vld [vmem:[#allocation8 + $0x13f0] sm:$0xff]
    %v4805 = vld [vmem:[#allocation8 + $0x13f8] sm:$0xff]
    %v4806 = vld [vmem:[#allocation8 + $0x1400] sm:$0xff]
    %v4807 = vld [vmem:[#allocation8 + $0x1408] sm:$0xff]
    %v4808 = vld [vmem:[#allocation8 + $0x1410] sm:$0xff]
    %v4809 = vld [vmem:[#allocation8 + $0x1418] sm:$0xff]
    %v4810 = vld [vmem:[#allocation8 + $0x1420] sm:$0xff]
    %v4811 = vld [vmem:[#allocation8 + $0x1428] sm:$0xff]
    %v4812 = vld [vmem:[#allocation8 + $0x1430] sm:$0xff]
    %v4813 = vld [vmem:[#allocation8 + $0x1438] sm:$0xff]
    %v4814 = vld [vmem:[#allocation8 + $0x1440] sm:$0xff]
    %v4815 = vld [vmem:[#allocation8 + $0x1448] sm:$0xff]
    %v4816 = vld [vmem:[#allocation8 + $0x1450] sm:$0xff]
    %v4817 = vld [vmem:[#allocation8 + $0x1458] sm:$0xff]
    %v4818 = vld [vmem:[#allocation8 + $0x1460] sm:$0xff]
    %v4819 = vld [vmem:[#allocation8 + $0x1468] sm:$0xff]
    %v4820 = vld [vmem:[#allocation8 + $0x1470] sm:$0xff]
    %v4821 = vld [vmem:[#allocation8 + $0x1478] sm:$0xff]
    %v4822 = vld [vmem:[#allocation8 + $0x1480] sm:$0xff]
    %v4823 = vld [vmem:[#allocation8 + $0x1488] sm:$0xff]
    %v4824 = vld [vmem:[#allocation8 + $0x1490] sm:$0xff]
    %v4825 = vld [vmem:[#allocation8 + $0x1498] sm:$0xff]
    %v4826 = vld [vmem:[#allocation8 + $0x14a0] sm:$0xff]
    %v4827 = vld [vmem:[#allocation8 + $0x14a8] sm:$0xff]
    %v4828 = vld [vmem:[#allocation8 + $0x14b0] sm:$0xff]
    %v4829 = vld [vmem:[#allocation8 + $0x14b8] sm:$0xff]
    %v4830 = vld [vmem:[#allocation8 + $0x14c0] sm:$0xff]
    %v4831 = vld [vmem:[#allocation8 + $0x14c8] sm:$0xff]
    %v4832 = vld [vmem:[#allocation8 + $0x14d0] sm:$0xff]
    %v4833 = vld [vmem:[#allocation8 + $0x14d8] sm:$0xff]
    %v4834 = vld [vmem:[#allocation8 + $0x14e0] sm:$0xff]
    %v4835 = vld [vmem:[#allocation8 + $0x14e8] sm:$0xff]
    %v4836 = vld [vmem:[#allocation8 + $0x14f0] sm:$0xff]
    %v4837 = vld [vmem:[#allocation8 + $0x14f8] sm:$0xff]
    %v4838 = vld [vmem:[#allocation8 + $0x1500] sm:$0xff]
    %v4839 = vld [vmem:[#allocation8 + $0x1508] sm:$0xff]
    %v4840 = vld [vmem:[#allocation8 + $0x1510] sm:$0xff]
    %v4841 = vld [vmem:[#allocation8 + $0x1518] sm:$0xff]
    %v4842 = vld [vmem:[#allocation8 + $0x1520] sm:$0xff]
    %v4843 = vld [vmem:[#allocation8 + $0x1528] sm:$0xff]
    %v4844 = vld [vmem:[#allocation8 + $0x1530] sm:$0xff]
    %v4845 = vld [vmem:[#allocation8 + $0x1538] sm:$0xff]
    %v4846 = vld [vmem:[#allocation8 + $0x1540] sm:$0xff]
    %v4847 = vld [vmem:[#allocation8 + $0x1548] sm:$0xff]
    %v4848 = vld [vmem:[#allocation8 + $0x1550] sm:$0xff]
    %v4849 = vld [vmem:[#allocation8 + $0x1558] sm:$0xff]
    %v4850 = vld [vmem:[#allocation8 + $0x1560] sm:$0xff]
    %v4851 = vld [vmem:[#allocation8 + $0x1568] sm:$0xff]
    %v4852 = vld [vmem:[#allocation8 + $0x1570] sm:$0xff]
    %v4853 = vld [vmem:[#allocation8 + $0x1578] sm:$0xff]
    %v4854 = vld [vmem:[#allocation8 + $0x1580] sm:$0xff]
    %v4855 = vld [vmem:[#allocation8 + $0x1588] sm:$0xff]
    %v4856 = vld [vmem:[#allocation8 + $0x1590] sm:$0xff]
    %v4857 = vld [vmem:[#allocation8 + $0x1598] sm:$0xff]
    %v4858 = vld [vmem:[#allocation8 + $0x15a0] sm:$0xff]
    %v4859 = vld [vmem:[#allocation8 + $0x15a8] sm:$0xff]
    %v4860 = vld [vmem:[#allocation8 + $0x15b0] sm:$0xff]
    %v4861 = vld [vmem:[#allocation8 + $0x15b8] sm:$0xff]
    %v4862 = vld [vmem:[#allocation8 + $0x15c0] sm:$0xff]
    %v4863 = vld [vmem:[#allocation8 + $0x15c8] sm:$0xff]
    %v4864 = vld [vmem:[#allocation8 + $0x15d0] sm:$0xff]
    %v4865 = vld [vmem:[#allocation8 + $0x15d8] sm:$0xff]
    %v4866 = vld [vmem:[#allocation8 + $0x15e0] sm:$0xff]
    %v4867 = vld [vmem:[#allocation8 + $0x15e8] sm:$0xff]
    %v4868 = vld [vmem:[#allocation8 + $0x15f0] sm:$0xff]
    %v4869 = vld [vmem:[#allocation8 + $0x15f8] sm:$0xff]
    %v4870 = vld [vmem:[#allocation8 + $0x1600] sm:$0xff]
    %v4871 = vld [vmem:[#allocation8 + $0x1608] sm:$0xff]
    %v4872 = vld [vmem:[#allocation8 + $0x1610] sm:$0xff]
    %v4873 = vld [vmem:[#allocation8 + $0x1618] sm:$0xff]
    %v4874 = vld [vmem:[#allocation8 + $0x1620] sm:$0xff]
    %v4875 = vld [vmem:[#allocation8 + $0x1628] sm:$0xff]
    %v4876 = vld [vmem:[#allocation8 + $0x1630] sm:$0xff]
    %v4877 = vld [vmem:[#allocation8 + $0x1638] sm:$0xff]
    %v4878 = vld [vmem:[#allocation8 + $0x1640] sm:$0xff]
    %v4879 = vld [vmem:[#allocation8 + $0x1648] sm:$0xff]
    %v4880 = vld [vmem:[#allocation8 + $0x1650] sm:$0xff]
    %v4881 = vld [vmem:[#allocation8 + $0x1658] sm:$0xff]
    %v4882 = vld [vmem:[#allocation8 + $0x1660] sm:$0xff]
    %v4883 = vld [vmem:[#allocation8 + $0x1668] sm:$0xff]
    %v4884 = vld [vmem:[#allocation8 + $0x1670] sm:$0xff]
    %v4885 = vld [vmem:[#allocation8 + $0x1678] sm:$0xff]
    %v4886 = vld [vmem:[#allocation8 + $0x1680] sm:$0xff]
    %v4887 = vld [vmem:[#allocation8 + $0x1688] sm:$0xff]
    %v4888 = vld [vmem:[#allocation8 + $0x1690] sm:$0xff]
    %v4889 = vld [vmem:[#allocation8 + $0x1698] sm:$0xff]
    %v4890 = vld [vmem:[#allocation8 + $0x16a0] sm:$0xff]
    %v4891 = vld [vmem:[#allocation8 + $0x16a8] sm:$0xff]
    %v4892 = vld [vmem:[#allocation8 + $0x16b0] sm:$0xff]
    %v4893 = vld [vmem:[#allocation8 + $0x16b8] sm:$0xff]
    %v4894 = vld [vmem:[#allocation8 + $0x16c0] sm:$0xff]
    %v4895 = vld [vmem:[#allocation8 + $0x16c8] sm:$0xff]
    %v4896 = vld [vmem:[#allocation8 + $0x16d0] sm:$0xff]
    %v4897 = vld [vmem:[#allocation8 + $0x16d8] sm:$0xff]
    %v4898 = vld [vmem:[#allocation8 + $0x16e0] sm:$0xff]
    %v4899 = vld [vmem:[#allocation8 + $0x16e8] sm:$0xff]
    %v4900 = vld [vmem:[#allocation8 + $0x16f0] sm:$0xff]
    %v4901 = vld [vmem:[#allocation8 + $0x16f8] sm:$0xff]
    %v4902 = vld [vmem:[#allocation8 + $0x1700] sm:$0xff]
    %v4903 = vld [vmem:[#allocation8 + $0x1708] sm:$0xff]
    %v4904 = vld [vmem:[#allocation8 + $0x1710] sm:$0xff]
    %v4905 = vld [vmem:[#allocation8 + $0x1718] sm:$0xff]
    %v4906 = vld [vmem:[#allocation8 + $0x1720] sm:$0xff]
    %v4907 = vld [vmem:[#allocation8 + $0x1728] sm:$0xff]
    %v4908 = vld [vmem:[#allocation8 + $0x1730] sm:$0xff]
    %v4909 = vld [vmem:[#allocation8 + $0x1738] sm:$0xff]
    %v4910 = vld [vmem:[#allocation8 + $0x1740] sm:$0xff]
    %v4911 = vld [vmem:[#allocation8 + $0x1748] sm:$0xff]
    %v4912 = vld [vmem:[#allocation8 + $0x1750] sm:$0xff]
    %v4913 = vld [vmem:[#allocation8 + $0x1758] sm:$0xff]
    %v4914 = vld [vmem:[#allocation8 + $0x1760] sm:$0xff]
    %v4915 = vld [vmem:[#allocation8 + $0x1768] sm:$0xff]
    %v4916 = vld [vmem:[#allocation8 + $0x1770] sm:$0xff]
    %v4917 = vld [vmem:[#allocation8 + $0x1778] sm:$0xff]
    %v4918 = vld [vmem:[#allocation8 + $0x1780] sm:$0xff]
    %v4919 = vld [vmem:[#allocation8 + $0x1788] sm:$0xff]
    %v4920 = vld [vmem:[#allocation8 + $0x1790] sm:$0xff]
    %v4921 = vld [vmem:[#allocation8 + $0x1798] sm:$0xff]
    %v4922 = vld [vmem:[#allocation8 + $0x17a0] sm:$0xff]
    %v4923 = vld [vmem:[#allocation8 + $0x17a8] sm:$0xff]
    %v4924 = vld [vmem:[#allocation8 + $0x17b0] sm:$0xff]
    %v4925 = vld [vmem:[#allocation8 + $0x17b8] sm:$0xff]
    %v4926 = vld [vmem:[#allocation8 + $0x17c0] sm:$0xff]
    %v4927 = vld [vmem:[#allocation8 + $0x17c8] sm:$0xff]
    %v4928 = vld [vmem:[#allocation8 + $0x17d0] sm:$0xff]
    %v4929 = vld [vmem:[#allocation8 + $0x17d8] sm:$0xff]
    %v4930 = vld [vmem:[#allocation8 + $0x17e0] sm:$0xff]
    %v4931 = vld [vmem:[#allocation8 + $0x17e8] sm:$0xff]
    %v4932 = vld [vmem:[#allocation8 + $0x17f0] sm:$0xff]
    %v4933 = vld [vmem:[#allocation8 + $0x17f8] sm:$0xff]
    %v4934 = vld [vmem:[#allocation8 + $0x1800] sm:$0xff]
    %v4935 = vld [vmem:[#allocation8 + $0x1808] sm:$0xff]
    %v4936 = vld [vmem:[#allocation8 + $0x1810] sm:$0xff]
    %v4937 = vld [vmem:[#allocation8 + $0x1818] sm:$0xff]
    %v4938 = vld [vmem:[#allocation8 + $0x1820] sm:$0xff]
    %v4939 = vld [vmem:[#allocation8 + $0x1828] sm:$0xff]
    %v4940 = vld [vmem:[#allocation8 + $0x1830] sm:$0xff]
    %v4941 = vld [vmem:[#allocation8 + $0x1838] sm:$0xff]
    %v4942 = vld [vmem:[#allocation8 + $0x1840] sm:$0xff]
    %v4943 = vld [vmem:[#allocation8 + $0x1848] sm:$0xff]
    %v4944 = vld [vmem:[#allocation8 + $0x1850] sm:$0xff]
    %v4945 = vld [vmem:[#allocation8 + $0x1858] sm:$0xff]
    %v4946 = vld [vmem:[#allocation8 + $0x1860] sm:$0xff]
    %v4947 = vld [vmem:[#allocation8 + $0x1868] sm:$0xff]
    %v4948 = vld [vmem:[#allocation8 + $0x1870] sm:$0xff]
    %v4949 = vld [vmem:[#allocation8 + $0x1878] sm:$0xff]
    %v4950 = vld [vmem:[#allocation8 + $0x1880] sm:$0xff]
    %v4951 = vld [vmem:[#allocation8 + $0x1888] sm:$0xff]
    %v4952 = vld [vmem:[#allocation8 + $0x1890] sm:$0xff]
    %v4953 = vld [vmem:[#allocation8 + $0x1898] sm:$0xff]
    %v4954 = vld [vmem:[#allocation8 + $0x18a0] sm:$0xff]
    %v4955 = vld [vmem:[#allocation8 + $0x18a8] sm:$0xff]
    %v4956 = vld [vmem:[#allocation8 + $0x18b0] sm:$0xff]
    %v4957 = vld [vmem:[#allocation8 + $0x18b8] sm:$0xff]
    %v4958 = vld [vmem:[#allocation8 + $0x18c0] sm:$0xff]
    %v4959 = vld [vmem:[#allocation8 + $0x18c8] sm:$0xff]
    %v4960 = vld [vmem:[#allocation8 + $0x18d0] sm:$0xff]
    %v4961 = vld [vmem:[#allocation8 + $0x18d8] sm:$0xff]
    %v4962 = vld [vmem:[#allocation8 + $0x18e0] sm:$0xff]
    %v4963 = vld [vmem:[#allocation8 + $0x18e8] sm:$0xff]
    %v4964 = vld [vmem:[#allocation8 + $0x18f0] sm:$0xff]
    %v4965 = vld [vmem:[#allocation8 + $0x18f8] sm:$0xff]
    %v4966 = vld [vmem:[#allocation8 + $0x1900] sm:$0xff]
    %v4967 = vld [vmem:[#allocation8 + $0x1908] sm:$0xff]
    %v4968 = vld [vmem:[#allocation8 + $0x1910] sm:$0xff]
    %v4969 = vld [vmem:[#allocation8 + $0x1918] sm:$0xff]
    %v4970 = vld [vmem:[#allocation8 + $0x1920] sm:$0xff]
    %v4971 = vld [vmem:[#allocation8 + $0x1928] sm:$0xff]
    %v4972 = vld [vmem:[#allocation8 + $0x1930] sm:$0xff]
    %v4973 = vld [vmem:[#allocation8 + $0x1938] sm:$0xff]
    %v4974 = vld [vmem:[#allocation8 + $0x1940] sm:$0xff]
    %v4975 = vld [vmem:[#allocation8 + $0x1948] sm:$0xff]
    %v4976 = vld [vmem:[#allocation8 + $0x1950] sm:$0xff]
    %v4977 = vld [vmem:[#allocation8 + $0x1958] sm:$0xff]
    %v4978 = vld [vmem:[#allocation8 + $0x1960] sm:$0xff]
    %v4979 = vld [vmem:[#allocation8 + $0x1968] sm:$0xff]
    %v4980 = vld [vmem:[#allocation8 + $0x1970] sm:$0xff]
    %v4981 = vld [vmem:[#allocation8 + $0x1978] sm:$0xff]
    %v4982 = vld [vmem:[#allocation8 + $0x1980] sm:$0xff]
    %v4983 = vld [vmem:[#allocation8 + $0x1988] sm:$0xff]
    %v4984 = vld [vmem:[#allocation8 + $0x1990] sm:$0xff]
    %v4985 = vld [vmem:[#allocation8 + $0x1998] sm:$0xff]
    %v4986 = vld [vmem:[#allocation8 + $0x19a0] sm:$0xff]
    %v4987 = vld [vmem:[#allocation8 + $0x19a8] sm:$0xff]
    %v4988 = vld [vmem:[#allocation8 + $0x19b0] sm:$0xff]
    %v4989 = vld [vmem:[#allocation8 + $0x19b8] sm:$0xff]
    %v4990 = vld [vmem:[#allocation8 + $0x19c0] sm:$0xff]
    %v4991 = vld [vmem:[#allocation8 + $0x19c8] sm:$0xff]
    %v4992 = vld [vmem:[#allocation8 + $0x19d0] sm:$0xff]
    %v4993 = vld [vmem:[#allocation8 + $0x19d8] sm:$0xff]
    %v4994 = vld [vmem:[#allocation8 + $0x19e0] sm:$0xff]
    %v4995 = vld [vmem:[#allocation8 + $0x19e8] sm:$0xff]
    %v4996 = vld [vmem:[#allocation8 + $0x19f0] sm:$0xff]
    %v4997 = vld [vmem:[#allocation8 + $0x19f8] sm:$0xff]
    %v4998 = vld [vmem:[#allocation8 + $0x1a00] sm:$0xff]
    %v4999 = vld [vmem:[#allocation8 + $0x1a08] sm:$0xff]
    %v5000 = vld [vmem:[#allocation8 + $0x1a10] sm:$0xff]
    %v5001 = vld [vmem:[#allocation8 + $0x1a18] sm:$0xff]
    %v5002 = vld [vmem:[#allocation8 + $0x1a20] sm:$0xff]
    %v5003 = vld [vmem:[#allocation8 + $0x1a28] sm:$0xff]
    %v5004 = vld [vmem:[#allocation8 + $0x1a30] sm:$0xff]
    %v5005 = vld [vmem:[#allocation8 + $0x1a38] sm:$0xff]
    %v5006 = vld [vmem:[#allocation8 + $0x1a40] sm:$0xff]
    %v5007 = vld [vmem:[#allocation8 + $0x1a48] sm:$0xff]
    %v5008 = vld [vmem:[#allocation8 + $0x1a50] sm:$0xff]
    %v5009 = vld [vmem:[#allocation8 + $0x1a58] sm:$0xff]
    %v5010 = vld [vmem:[#allocation8 + $0x1a60] sm:$0xff]
    %v5011 = vld [vmem:[#allocation8 + $0x1a68] sm:$0xff]
    %v5012 = vld [vmem:[#allocation8 + $0x1a70] sm:$0xff]
    %v5013 = vld [vmem:[#allocation8 + $0x1a78] sm:$0xff]
    %v5014 = vld [vmem:[#allocation8 + $0x1a80] sm:$0xff]
    %v5015 = vld [vmem:[#allocation8 + $0x1a88] sm:$0xff]
    %v5016 = vld [vmem:[#allocation8 + $0x1a90] sm:$0xff]
    %v5017 = vld [vmem:[#allocation8 + $0x1a98] sm:$0xff]
    %v5018 = vld [vmem:[#allocation8 + $0x1aa0] sm:$0xff]
    %v5019 = vld [vmem:[#allocation8 + $0x1aa8] sm:$0xff]
    %v5020 = vld [vmem:[#allocation8 + $0x1ab0] sm:$0xff]
    %v5021 = vld [vmem:[#allocation8 + $0x1ab8] sm:$0xff]
    %v5022 = vld [vmem:[#allocation8 + $0x1ac0] sm:$0xff]
    %v5023 = vld [vmem:[#allocation8 + $0x1ac8] sm:$0xff]
    %v5024 = vld [vmem:[#allocation8 + $0x1ad0] sm:$0xff]
    %v5025 = vld [vmem:[#allocation8 + $0x1ad8] sm:$0xff]
    %v5026 = vld [vmem:[#allocation8 + $0x1ae0] sm:$0xff]
    %v5027 = vld [vmem:[#allocation8 + $0x1ae8] sm:$0xff]
    %v5028 = vld [vmem:[#allocation8 + $0x1af0] sm:$0xff]
    %v5029 = vld [vmem:[#allocation8 + $0x1af8] sm:$0xff]
    %v5030 = vld [vmem:[#allocation8 + $0x1b00] sm:$0xff]
    %v5031 = vld [vmem:[#allocation8 + $0x1b08] sm:$0xff]
    %v5032 = vld [vmem:[#allocation8 + $0x1b10] sm:$0xff]
    %v5033 = vld [vmem:[#allocation8 + $0x1b18] sm:$0xff]
    %v5034 = vld [vmem:[#allocation8 + $0x1b20] sm:$0xff]
    %v5035 = vld [vmem:[#allocation8 + $0x1b28] sm:$0xff]
    %v5036 = vld [vmem:[#allocation8 + $0x1b30] sm:$0xff]
    %v5037 = vld [vmem:[#allocation8 + $0x1b38] sm:$0xff]
    %v5038 = vld [vmem:[#allocation8 + $0x1b40] sm:$0xff]
    %v5039 = vld [vmem:[#allocation8 + $0x1b48] sm:$0xff]
    %v5040 = vld [vmem:[#allocation8 + $0x1b50] sm:$0xff]
    %v5041 = vld [vmem:[#allocation8 + $0x1b58] sm:$0xff]
    %v5042 = vld [vmem:[#allocation8 + $0x1b60] sm:$0xff]
    %v5043 = vld [vmem:[#allocation8 + $0x1b68] sm:$0xff]
    %v5044 = vld [vmem:[#allocation8 + $0x1b70] sm:$0xff]
    %v5045 = vld [vmem:[#allocation8 + $0x1b78] sm:$0xff]
    %v5046 = vld [vmem:[#allocation8 + $0x1b80] sm:$0xff]
    %v5047 = vld [vmem:[#allocation8 + $0x1b88] sm:$0xff]
    %v5048 = vld [vmem:[#allocation8 + $0x1b90] sm:$0xff]
    %v5049 = vld [vmem:[#allocation8 + $0x1b98] sm:$0xff]
    %v5050 = vld [vmem:[#allocation8 + $0x1ba0] sm:$0xff]
    %v5051 = vld [vmem:[#allocation8 + $0x1ba8] sm:$0xff]
    %v5052 = vld [vmem:[#allocation8 + $0x1bb0] sm:$0xff]
    %v5053 = vld [vmem:[#allocation8 + $0x1bb8] sm:$0xff]
    %v5054 = vld [vmem:[#allocation8 + $0x1bc0] sm:$0xff]
    %v5055 = vld [vmem:[#allocation8 + $0x1bc8] sm:$0xff]
    %v5056 = vld [vmem:[#allocation8 + $0x1bd0] sm:$0xff]
    %v5057 = vld [vmem:[#allocation8 + $0x1bd8] sm:$0xff]
    %v5058 = vld [vmem:[#allocation8 + $0x1be0] sm:$0xff]
    %v5059 = vld [vmem:[#allocation8 + $0x1be8] sm:$0xff]
    %v5060 = vld [vmem:[#allocation8 + $0x1bf0] sm:$0xff]
    %v5061 = vld [vmem:[#allocation8 + $0x1bf8] sm:$0xff]
    %v5062 = vld [vmem:[#allocation8 + $0x1c00] sm:$0xff]
    %v5063 = vld [vmem:[#allocation8 + $0x1c08] sm:$0xff]
    %v5064 = vld [vmem:[#allocation8 + $0x1c10] sm:$0xff]
    %v5065 = vld [vmem:[#allocation8 + $0x1c18] sm:$0xff]
    %v5066 = vld [vmem:[#allocation8 + $0x1c20] sm:$0xff]
    %v5067 = vld [vmem:[#allocation8 + $0x1c28] sm:$0xff]
    %v5068 = vld [vmem:[#allocation8 + $0x1c30] sm:$0xff]
    %v5069 = vld [vmem:[#allocation8 + $0x1c38] sm:$0xff]
    %v5070 = vld [vmem:[#allocation8 + $0x1c40] sm:$0xff]
    %v5071 = vld [vmem:[#allocation8 + $0x1c48] sm:$0xff]
    %v5072 = vld [vmem:[#allocation8 + $0x1c50] sm:$0xff]
    %v5073 = vld [vmem:[#allocation8 + $0x1c58] sm:$0xff]
    %v5074 = vld [vmem:[#allocation8 + $0x1c60] sm:$0xff]
    %v5075 = vld [vmem:[#allocation8 + $0x1c68] sm:$0xff]
    %v5076 = vld [vmem:[#allocation8 + $0x1c70] sm:$0xff]
    %v5077 = vld [vmem:[#allocation8 + $0x1c78] sm:$0xff]
    %v5078 = vld [vmem:[#allocation8 + $0x1c80] sm:$0xff]
    %v5079 = vld [vmem:[#allocation8 + $0x1c88] sm:$0xff]
    %v5080 = vld [vmem:[#allocation8 + $0x1c90] sm:$0xff]
    %v5081 = vld [vmem:[#allocation8 + $0x1c98] sm:$0xff]
    %v5082 = vld [vmem:[#allocation8 + $0x1ca0] sm:$0xff]
    %v5083 = vld [vmem:[#allocation8 + $0x1ca8] sm:$0xff]
    %v5084 = vld [vmem:[#allocation8 + $0x1cb0] sm:$0xff]
    %v5085 = vld [vmem:[#allocation8 + $0x1cb8] sm:$0xff]
    %v5086 = vld [vmem:[#allocation8 + $0x1cc0] sm:$0xff]
    %v5087 = vld [vmem:[#allocation8 + $0x1cc8] sm:$0xff]
    %v5088 = vld [vmem:[#allocation8 + $0x1cd0] sm:$0xff]
    %v5089 = vld [vmem:[#allocation8 + $0x1cd8] sm:$0xff]
    %v5090 = vld [vmem:[#allocation8 + $0x1ce0] sm:$0xff]
    %v5091 = vld [vmem:[#allocation8 + $0x1ce8] sm:$0xff]
    %v5092 = vld [vmem:[#allocation8 + $0x1cf0] sm:$0xff]
    %v5093 = vld [vmem:[#allocation8 + $0x1cf8] sm:$0xff]
    %v5094 = vld [vmem:[#allocation8 + $0x1d00] sm:$0xff]
    %v5095 = vld [vmem:[#allocation8 + $0x1d08] sm:$0xff]
    %v5096 = vld [vmem:[#allocation8 + $0x1d10] sm:$0xff]
    %v5097 = vld [vmem:[#allocation8 + $0x1d18] sm:$0xff]
    %v5098 = vld [vmem:[#allocation8 + $0x1d20] sm:$0xff]
    %v5099 = vld [vmem:[#allocation8 + $0x1d28] sm:$0xff]
    %v5100 = vld [vmem:[#allocation8 + $0x1d30] sm:$0xff]
    %v5101 = vld [vmem:[#allocation8 + $0x1d38] sm:$0xff]
    %v5102 = vld [vmem:[#allocation8 + $0x1d40] sm:$0xff]
    %v5103 = vld [vmem:[#allocation8 + $0x1d48] sm:$0xff]
    %v5104 = vld [vmem:[#allocation8 + $0x1d50] sm:$0xff]
    %v5105 = vld [vmem:[#allocation8 + $0x1d58] sm:$0xff]
    %v5106 = vld [vmem:[#allocation8 + $0x1d60] sm:$0xff]
    %v5107 = vld [vmem:[#allocation8 + $0x1d68] sm:$0xff]
    %v5108 = vld [vmem:[#allocation8 + $0x1d70] sm:$0xff]
    %v5109 = vld [vmem:[#allocation8 + $0x1d78] sm:$0xff]
    %v5110 = vld [vmem:[#allocation8 + $0x1d80] sm:$0xff]
    %v5111 = vld [vmem:[#allocation8 + $0x1d88] sm:$0xff]
    %v5112 = vld [vmem:[#allocation8 + $0x1d90] sm:$0xff]
    %v5113 = vld [vmem:[#allocation8 + $0x1d98] sm:$0xff]
    %v5114 = vld [vmem:[#allocation8 + $0x1da0] sm:$0xff]
    %v5115 = vld [vmem:[#allocation8 + $0x1da8] sm:$0xff]
    %v5116 = vld [vmem:[#allocation8 + $0x1db0] sm:$0xff]
    %v5117 = vld [vmem:[#allocation8 + $0x1db8] sm:$0xff]
    %v5118 = vld [vmem:[#allocation8 + $0x1dc0] sm:$0xff]
    %v5119 = vld [vmem:[#allocation8 + $0x1dc8] sm:$0xff]
    %v5120 = vld [vmem:[#allocation8 + $0x1dd0] sm:$0xff]
    %v5121 = vld [vmem:[#allocation8 + $0x1dd8] sm:$0xff]
    %v5122 = vld [vmem:[#allocation8 + $0x1de0] sm:$0xff]
    %v5123 = vld [vmem:[#allocation8 + $0x1de8] sm:$0xff]
    %v5124 = vld [vmem:[#allocation8 + $0x1df0] sm:$0xff]
    %v5125 = vld [vmem:[#allocation8 + $0x1df8] sm:$0xff]
    %v5126 = vld [vmem:[#allocation8 + $0x1e00] sm:$0xff]
    %v5127 = vld [vmem:[#allocation8 + $0x1e08] sm:$0xff]
    %v5128 = vld [vmem:[#allocation8 + $0x1e10] sm:$0xff]
    %v5129 = vld [vmem:[#allocation8 + $0x1e18] sm:$0xff]
    %v5130 = vld [vmem:[#allocation8 + $0x1e20] sm:$0xff]
    %v5131 = vld [vmem:[#allocation8 + $0x1e28] sm:$0xff]
    %v5132 = vld [vmem:[#allocation8 + $0x1e30] sm:$0xff]
    %v5133 = vld [vmem:[#allocation8 + $0x1e38] sm:$0xff]
    %v5134 = vld [vmem:[#allocation8 + $0x1e40] sm:$0xff]
    %v5135 = vld [vmem:[#allocation8 + $0x1e48] sm:$0xff]
    %v5136 = vld [vmem:[#allocation8 + $0x1e50] sm:$0xff]
    %v5137 = vld [vmem:[#allocation8 + $0x1e58] sm:$0xff]
    %v5138 = vld [vmem:[#allocation8 + $0x1e60] sm:$0xff]
    %v5139 = vld [vmem:[#allocation8 + $0x1e68] sm:$0xff]
    %v5140 = vld [vmem:[#allocation8 + $0x1e70] sm:$0xff]
    %v5141 = vld [vmem:[#allocation8 + $0x1e78] sm:$0xff]
    %v5142 = vld [vmem:[#allocation8 + $0x1e80] sm:$0xff]
    %v5143 = vld [vmem:[#allocation8 + $0x1e88] sm:$0xff]
    %v5144 = vld [vmem:[#allocation8 + $0x1e90] sm:$0xff]
    %v5145 = vld [vmem:[#allocation8 + $0x1e98] sm:$0xff]
    %v5146 = vld [vmem:[#allocation8 + $0x1ea0] sm:$0xff]
    %v5147 = vld [vmem:[#allocation8 + $0x1ea8] sm:$0xff]
    %v5148 = vld [vmem:[#allocation8 + $0x1eb0] sm:$0xff]
    %v5149 = vld [vmem:[#allocation8 + $0x1eb8] sm:$0xff]
    %v5150 = vld [vmem:[#allocation8 + $0x1ec0] sm:$0xff]
    %v5151 = vld [vmem:[#allocation8 + $0x1ec8] sm:$0xff]
    %v5152 = vld [vmem:[#allocation8 + $0x1ed0] sm:$0xff]
    %v5153 = vld [vmem:[#allocation8 + $0x1ed8] sm:$0xff]
    %v5154 = vld [vmem:[#allocation8 + $0x1ee0] sm:$0xff]
    %v5155 = vld [vmem:[#allocation8 + $0x1ee8] sm:$0xff]
    %v5156 = vld [vmem:[#allocation8 + $0x1ef0] sm:$0xff]
    %v5157 = vld [vmem:[#allocation8 + $0x1ef8] sm:$0xff]
    %v5158 = vld [vmem:[#allocation8 + $0x1f00] sm:$0xff]
    %v5159 = vld [vmem:[#allocation8 + $0x1f08] sm:$0xff]
    %v5160 = vld [vmem:[#allocation8 + $0x1f10] sm:$0xff]
    %v5161 = vld [vmem:[#allocation8 + $0x1f18] sm:$0xff]
    %v5162 = vld [vmem:[#allocation8 + $0x1f20] sm:$0xff]
    %v5163 = vld [vmem:[#allocation8 + $0x1f28] sm:$0xff]
    %v5164 = vld [vmem:[#allocation8 + $0x1f30] sm:$0xff]
    %v5165 = vld [vmem:[#allocation8 + $0x1f38] sm:$0xff]
    %v5166 = vld [vmem:[#allocation8 + $0x1f40] sm:$0xff]
    %v5167 = vld [vmem:[#allocation8 + $0x1f48] sm:$0xff]
    %v5168 = vld [vmem:[#allocation8 + $0x1f50] sm:$0xff]
    %v5169 = vld [vmem:[#allocation8 + $0x1f58] sm:$0xff]
    %v5170 = vld [vmem:[#allocation8 + $0x1f60] sm:$0xff]
    %v5171 = vld [vmem:[#allocation8 + $0x1f68] sm:$0xff]
    %v5172 = vld [vmem:[#allocation8 + $0x1f70] sm:$0xff]
    %v5173 = vld [vmem:[#allocation8 + $0x1f78] sm:$0xff]
    %v5174 = vld [vmem:[#allocation8 + $0x1f80] sm:$0xff]
    %v5175 = vld [vmem:[#allocation8 + $0x1f88] sm:$0xff]
    %v5176 = vld [vmem:[#allocation8 + $0x1f90] sm:$0xff]
    %v5177 = vld [vmem:[#allocation8 + $0x1f98] sm:$0xff]
    %v5178 = vld [vmem:[#allocation8 + $0x1fa0] sm:$0xff]
    %v5179 = vld [vmem:[#allocation8 + $0x1fa8] sm:$0xff]
    %v5180 = vld [vmem:[#allocation8 + $0x1fb0] sm:$0xff]
    %v5181 = vld [vmem:[#allocation8 + $0x1fb8] sm:$0xff]
    %v5182 = vld [vmem:[#allocation8 + $0x1fc0] sm:$0xff]
    %v5183 = vld [vmem:[#allocation8 + $0x1fc8] sm:$0xff]
    %v5184 = vld [vmem:[#allocation8 + $0x1fd0] sm:$0xff]
    %v5185 = vld [vmem:[#allocation8 + $0x1fd8] sm:$0xff]
    %v5186 = vld [vmem:[#allocation8 + $0x1fe0] sm:$0xff]
    %v5187 = vld [vmem:[#allocation8 + $0x1fe8] sm:$0xff]
    %v5188 = vld [vmem:[#allocation8 + $0x1ff0] sm:$0xff]
    %v5189 = vld [vmem:[#allocation8 + $0x1ff8] sm:$0xff]
    %v6214 = vunpack.c.l.b16 %v4166
    %v6215 = vunpack.c.h.b16 %v4166
    %v6216 = vunpack.c.l.b16 %v4167
    %v6217 = vunpack.c.h.b16 %v4167
    %v6218 = vunpack.c.l.b16 %v4168
    %v6219 = vunpack.c.h.b16 %v4168
    %v6220 = vunpack.c.l.b16 %v4169
    %v6221 = vunpack.c.h.b16 %v4169
    %v6222 = vunpack.c.l.b16 %v4170
    %v6223 = vunpack.c.h.b16 %v4170
    %v6224 = vunpack.c.l.b16 %v4171
    %v6225 = vunpack.c.h.b16 %v4171
    %v6226 = vunpack.c.l.b16 %v4172
    %v6227 = vunpack.c.h.b16 %v4172
    %v6228 = vunpack.c.l.b16 %v4173
    %v6229 = vunpack.c.h.b16 %v4173
    %v6230 = vunpack.c.l.b16 %v4174
    %v6231 = vunpack.c.h.b16 %v4174
    %v6232 = vunpack.c.l.b16 %v4175
    %v6233 = vunpack.c.h.b16 %v4175
    %v6234 = vunpack.c.l.b16 %v4176
    %v6235 = vunpack.c.h.b16 %v4176
    %v6236 = vunpack.c.l.b16 %v4177
    %v6237 = vunpack.c.h.b16 %v4177
    %v6238 = vunpack.c.l.b16 %v4178
    %v6239 = vunpack.c.h.b16 %v4178
    %v6240 = vunpack.c.l.b16 %v4179
    %v6241 = vunpack.c.h.b16 %v4179
    %v6242 = vunpack.c.l.b16 %v4180
    %v6243 = vunpack.c.h.b16 %v4180
    %v6244 = vunpack.c.l.b16 %v4181
    %v6245 = vunpack.c.h.b16 %v4181
    %v6246 = vunpack.c.l.b16 %v4182
    %v6247 = vunpack.c.h.b16 %v4182
    %v6248 = vunpack.c.l.b16 %v4183
    %v6249 = vunpack.c.h.b16 %v4183
    %v6250 = vunpack.c.l.b16 %v4184
    %v6251 = vunpack.c.h.b16 %v4184
    %v6252 = vunpack.c.l.b16 %v4185
    %v6253 = vunpack.c.h.b16 %v4185
    %v6254 = vunpack.c.l.b16 %v4186
    %v6255 = vunpack.c.h.b16 %v4186
    %v6256 = vunpack.c.l.b16 %v4187
    %v6257 = vunpack.c.h.b16 %v4187
    %v6258 = vunpack.c.l.b16 %v4188
    %v6259 = vunpack.c.h.b16 %v4188
    %v6260 = vunpack.c.l.b16 %v4189
    %v6261 = vunpack.c.h.b16 %v4189
    %v6262 = vunpack.c.l.b16 %v4190
    %v6263 = vunpack.c.h.b16 %v4190
    %v6264 = vunpack.c.l.b16 %v4191
    %v6265 = vunpack.c.h.b16 %v4191
    %v6266 = vunpack.c.l.b16 %v4192
    %v6267 = vunpack.c.h.b16 %v4192
    %v6268 = vunpack.c.l.b16 %v4193
    %v6269 = vunpack.c.h.b16 %v4193
    %v6270 = vunpack.c.l.b16 %v4194
    %v6271 = vunpack.c.h.b16 %v4194
    %v6272 = vunpack.c.l.b16 %v4195
    %v6273 = vunpack.c.h.b16 %v4195
    %v6274 = vunpack.c.l.b16 %v4196
    %v6275 = vunpack.c.h.b16 %v4196
    %v6276 = vunpack.c.l.b16 %v4197
    %v6277 = vunpack.c.h.b16 %v4197
    %v6278 = vunpack.c.l.b16 %v4198
    %v6279 = vunpack.c.h.b16 %v4198
    %v6280 = vunpack.c.l.b16 %v4199
    %v6281 = vunpack.c.h.b16 %v4199
    %v6282 = vunpack.c.l.b16 %v4200
    %v6283 = vunpack.c.h.b16 %v4200
    %v6284 = vunpack.c.l.b16 %v4201
    %v6285 = vunpack.c.h.b16 %v4201
    %v6286 = vunpack.c.l.b16 %v4202
    %v6287 = vunpack.c.h.b16 %v4202
    %v6288 = vunpack.c.l.b16 %v4203
    %v6289 = vunpack.c.h.b16 %v4203
    %v6290 = vunpack.c.l.b16 %v4204
    %v6291 = vunpack.c.h.b16 %v4204
    %v6292 = vunpack.c.l.b16 %v4205
    %v6293 = vunpack.c.h.b16 %v4205
    %v6294 = vunpack.c.l.b16 %v4206
    %v6295 = vunpack.c.h.b16 %v4206
    %v6296 = vunpack.c.l.b16 %v4207
    %v6297 = vunpack.c.h.b16 %v4207
    %v6298 = vunpack.c.l.b16 %v4208
    %v6299 = vunpack.c.h.b16 %v4208
    %v6300 = vunpack.c.l.b16 %v4209
    %v6301 = vunpack.c.h.b16 %v4209
    %v6302 = vunpack.c.l.b16 %v4210
    %v6303 = vunpack.c.h.b16 %v4210
    %v6304 = vunpack.c.l.b16 %v4211
    %v6305 = vunpack.c.h.b16 %v4211
    %v6306 = vunpack.c.l.b16 %v4212
    %v6307 = vunpack.c.h.b16 %v4212
    %v6308 = vunpack.c.l.b16 %v4213
    %v6309 = vunpack.c.h.b16 %v4213
    %v6310 = vunpack.c.l.b16 %v4214
    %v6311 = vunpack.c.h.b16 %v4214
    %v6312 = vunpack.c.l.b16 %v4215
    %v6313 = vunpack.c.h.b16 %v4215
    %v6314 = vunpack.c.l.b16 %v4216
    %v6315 = vunpack.c.h.b16 %v4216
    %v6316 = vunpack.c.l.b16 %v4217
    %v6317 = vunpack.c.h.b16 %v4217
    %v6318 = vunpack.c.l.b16 %v4218
    %v6319 = vunpack.c.h.b16 %v4218
    %v6320 = vunpack.c.l.b16 %v4219
    %v6321 = vunpack.c.h.b16 %v4219
    %v6322 = vunpack.c.l.b16 %v4220
    %v6323 = vunpack.c.h.b16 %v4220
    %v6324 = vunpack.c.l.b16 %v4221
    %v6325 = vunpack.c.h.b16 %v4221
    %v6326 = vunpack.c.l.b16 %v4222
    %v6327 = vunpack.c.h.b16 %v4222
    %v6328 = vunpack.c.l.b16 %v4223
    %v6329 = vunpack.c.h.b16 %v4223
    %v6330 = vunpack.c.l.b16 %v4224
    %v6331 = vunpack.c.h.b16 %v4224
    %v6332 = vunpack.c.l.b16 %v4225
    %v6333 = vunpack.c.h.b16 %v4225
    %v6334 = vunpack.c.l.b16 %v4226
    %v6335 = vunpack.c.h.b16 %v4226
    %v6336 = vunpack.c.l.b16 %v4227
    %v6337 = vunpack.c.h.b16 %v4227
    %v6338 = vunpack.c.l.b16 %v4228
    %v6339 = vunpack.c.h.b16 %v4228
    %v6340 = vunpack.c.l.b16 %v4229
    %v6341 = vunpack.c.h.b16 %v4229
    %v6342 = vunpack.c.l.b16 %v4230
    %v6343 = vunpack.c.h.b16 %v4230
    %v6344 = vunpack.c.l.b16 %v4231
    %v6345 = vunpack.c.h.b16 %v4231
    %v6346 = vunpack.c.l.b16 %v4232
    %v6347 = vunpack.c.h.b16 %v4232
    %v6348 = vunpack.c.l.b16 %v4233
    %v6349 = vunpack.c.h.b16 %v4233
    %v6350 = vunpack.c.l.b16 %v4234
    %v6351 = vunpack.c.h.b16 %v4234
    %v6352 = vunpack.c.l.b16 %v4235
    %v6353 = vunpack.c.h.b16 %v4235
    %v6354 = vunpack.c.l.b16 %v4236
    %v6355 = vunpack.c.h.b16 %v4236
    %v6356 = vunpack.c.l.b16 %v4237
    %v6357 = vunpack.c.h.b16 %v4237
    %v6358 = vunpack.c.l.b16 %v4238
    %v6359 = vunpack.c.h.b16 %v4238
    %v6360 = vunpack.c.l.b16 %v4239
    %v6361 = vunpack.c.h.b16 %v4239
    %v6362 = vunpack.c.l.b16 %v4240
    %v6363 = vunpack.c.h.b16 %v4240
    %v6364 = vunpack.c.l.b16 %v4241
    %v6365 = vunpack.c.h.b16 %v4241
    %v6366 = vunpack.c.l.b16 %v4242
    %v6367 = vunpack.c.h.b16 %v4242
    %v6368 = vunpack.c.l.b16 %v4243
    %v6369 = vunpack.c.h.b16 %v4243
    %v6370 = vunpack.c.l.b16 %v4244
    %v6371 = vunpack.c.h.b16 %v4244
    %v6372 = vunpack.c.l.b16 %v4245
    %v6373 = vunpack.c.h.b16 %v4245
    %v6374 = vunpack.c.l.b16 %v4246
    %v6375 = vunpack.c.h.b16 %v4246
    %v6376 = vunpack.c.l.b16 %v4247
    %v6377 = vunpack.c.h.b16 %v4247
    %v6378 = vunpack.c.l.b16 %v4248
    %v6379 = vunpack.c.h.b16 %v4248
    %v6380 = vunpack.c.l.b16 %v4249
    %v6381 = vunpack.c.h.b16 %v4249
    %v6382 = vunpack.c.l.b16 %v4250
    %v6383 = vunpack.c.h.b16 %v4250
    %v6384 = vunpack.c.l.b16 %v4251
    %v6385 = vunpack.c.h.b16 %v4251
    %v6386 = vunpack.c.l.b16 %v4252
    %v6387 = vunpack.c.h.b16 %v4252
    %v6388 = vunpack.c.l.b16 %v4253
    %v6389 = vunpack.c.h.b16 %v4253
    %v6390 = vunpack.c.l.b16 %v4254
    %v6391 = vunpack.c.h.b16 %v4254
    %v6392 = vunpack.c.l.b16 %v4255
    %v6393 = vunpack.c.h.b16 %v4255
    %v6394 = vunpack.c.l.b16 %v4256
    %v6395 = vunpack.c.h.b16 %v4256
    %v6396 = vunpack.c.l.b16 %v4257
    %v6397 = vunpack.c.h.b16 %v4257
    %v6398 = vunpack.c.l.b16 %v4258
    %v6399 = vunpack.c.h.b16 %v4258
    %v6400 = vunpack.c.l.b16 %v4259
    %v6401 = vunpack.c.h.b16 %v4259
    %v6402 = vunpack.c.l.b16 %v4260
    %v6403 = vunpack.c.h.b16 %v4260
    %v6404 = vunpack.c.l.b16 %v4261
    %v6405 = vunpack.c.h.b16 %v4261
    %v6406 = vunpack.c.l.b16 %v4262
    %v6407 = vunpack.c.h.b16 %v4262
    %v6408 = vunpack.c.l.b16 %v4263
    %v6409 = vunpack.c.h.b16 %v4263
    %v6410 = vunpack.c.l.b16 %v4264
    %v6411 = vunpack.c.h.b16 %v4264
    %v6412 = vunpack.c.l.b16 %v4265
    %v6413 = vunpack.c.h.b16 %v4265
    %v6414 = vunpack.c.l.b16 %v4266
    %v6415 = vunpack.c.h.b16 %v4266
    %v6416 = vunpack.c.l.b16 %v4267
    %v6417 = vunpack.c.h.b16 %v4267
    %v6418 = vunpack.c.l.b16 %v4268
    %v6419 = vunpack.c.h.b16 %v4268
    %v6420 = vunpack.c.l.b16 %v4269
    %v6421 = vunpack.c.h.b16 %v4269
    %v6422 = vunpack.c.l.b16 %v4270
    %v6423 = vunpack.c.h.b16 %v4270
    %v6424 = vunpack.c.l.b16 %v4271
    %v6425 = vunpack.c.h.b16 %v4271
    %v6426 = vunpack.c.l.b16 %v4272
    %v6427 = vunpack.c.h.b16 %v4272
    %v6428 = vunpack.c.l.b16 %v4273
    %v6429 = vunpack.c.h.b16 %v4273
    %v6430 = vunpack.c.l.b16 %v4274
    %v6431 = vunpack.c.h.b16 %v4274
    %v6432 = vunpack.c.l.b16 %v4275
    %v6433 = vunpack.c.h.b16 %v4275
    %v6434 = vunpack.c.l.b16 %v4276
    %v6435 = vunpack.c.h.b16 %v4276
    %v6436 = vunpack.c.l.b16 %v4277
    %v6437 = vunpack.c.h.b16 %v4277
    %v6438 = vunpack.c.l.b16 %v4278
    %v6439 = vunpack.c.h.b16 %v4278
    %v6440 = vunpack.c.l.b16 %v4279
    %v6441 = vunpack.c.h.b16 %v4279
    %v6442 = vunpack.c.l.b16 %v4280
    %v6443 = vunpack.c.h.b16 %v4280
    %v6444 = vunpack.c.l.b16 %v4281
    %v6445 = vunpack.c.h.b16 %v4281
    %v6446 = vunpack.c.l.b16 %v4282
    %v6447 = vunpack.c.h.b16 %v4282
    %v6448 = vunpack.c.l.b16 %v4283
    %v6449 = vunpack.c.h.b16 %v4283
    %v6450 = vunpack.c.l.b16 %v4284
    %v6451 = vunpack.c.h.b16 %v4284
    %v6452 = vunpack.c.l.b16 %v4285
    %v6453 = vunpack.c.h.b16 %v4285
    %v6454 = vunpack.c.l.b16 %v4286
    %v6455 = vunpack.c.h.b16 %v4286
    %v6456 = vunpack.c.l.b16 %v4287
    %v6457 = vunpack.c.h.b16 %v4287
    %v6458 = vunpack.c.l.b16 %v4288
    %v6459 = vunpack.c.h.b16 %v4288
    %v6460 = vunpack.c.l.b16 %v4289
    %v6461 = vunpack.c.h.b16 %v4289
    %v6462 = vunpack.c.l.b16 %v4290
    %v6463 = vunpack.c.h.b16 %v4290
    %v6464 = vunpack.c.l.b16 %v4291
    %v6465 = vunpack.c.h.b16 %v4291
    %v6466 = vunpack.c.l.b16 %v4292
    %v6467 = vunpack.c.h.b16 %v4292
    %v6468 = vunpack.c.l.b16 %v4293
    %v6469 = vunpack.c.h.b16 %v4293
    %v6470 = vunpack.c.l.b16 %v4294
    %v6471 = vunpack.c.h.b16 %v4294
    %v6472 = vunpack.c.l.b16 %v4295
    %v6473 = vunpack.c.h.b16 %v4295
    %v6474 = vunpack.c.l.b16 %v4296
    %v6475 = vunpack.c.h.b16 %v4296
    %v6476 = vunpack.c.l.b16 %v4297
    %v6477 = vunpack.c.h.b16 %v4297
    %v6478 = vunpack.c.l.b16 %v4298
    %v6479 = vunpack.c.h.b16 %v4298
    %v6480 = vunpack.c.l.b16 %v4299
    %v6481 = vunpack.c.h.b16 %v4299
    %v6482 = vunpack.c.l.b16 %v4300
    %v6483 = vunpack.c.h.b16 %v4300
    %v6484 = vunpack.c.l.b16 %v4301
    %v6485 = vunpack.c.h.b16 %v4301
    %v6486 = vunpack.c.l.b16 %v4302
    %v6487 = vunpack.c.h.b16 %v4302
    %v6488 = vunpack.c.l.b16 %v4303
    %v6489 = vunpack.c.h.b16 %v4303
    %v6490 = vunpack.c.l.b16 %v4304
    %v6491 = vunpack.c.h.b16 %v4304
    %v6492 = vunpack.c.l.b16 %v4305
    %v6493 = vunpack.c.h.b16 %v4305
    %v6494 = vunpack.c.l.b16 %v4306
    %v6495 = vunpack.c.h.b16 %v4306
    %v6496 = vunpack.c.l.b16 %v4307
    %v6497 = vunpack.c.h.b16 %v4307
    %v6498 = vunpack.c.l.b16 %v4308
    %v6499 = vunpack.c.h.b16 %v4308
    %v6500 = vunpack.c.l.b16 %v4309
    %v6501 = vunpack.c.h.b16 %v4309
    %v6502 = vunpack.c.l.b16 %v4310
    %v6503 = vunpack.c.h.b16 %v4310
    %v6504 = vunpack.c.l.b16 %v4311
    %v6505 = vunpack.c.h.b16 %v4311
    %v6506 = vunpack.c.l.b16 %v4312
    %v6507 = vunpack.c.h.b16 %v4312
    %v6508 = vunpack.c.l.b16 %v4313
    %v6509 = vunpack.c.h.b16 %v4313
    %v6510 = vunpack.c.l.b16 %v4314
    %v6511 = vunpack.c.h.b16 %v4314
    %v6512 = vunpack.c.l.b16 %v4315
    %v6513 = vunpack.c.h.b16 %v4315
    %v6514 = vunpack.c.l.b16 %v4316
    %v6515 = vunpack.c.h.b16 %v4316
    %v6516 = vunpack.c.l.b16 %v4317
    %v6517 = vunpack.c.h.b16 %v4317
    %v6518 = vunpack.c.l.b16 %v4318
    %v6519 = vunpack.c.h.b16 %v4318
    %v6520 = vunpack.c.l.b16 %v4319
    %v6521 = vunpack.c.h.b16 %v4319
    %v6522 = vunpack.c.l.b16 %v4320
    %v6523 = vunpack.c.h.b16 %v4320
    %v6524 = vunpack.c.l.b16 %v4321
    %v6525 = vunpack.c.h.b16 %v4321
    %v6526 = vunpack.c.l.b16 %v4322
    %v6527 = vunpack.c.h.b16 %v4322
    %v6528 = vunpack.c.l.b16 %v4323
    %v6529 = vunpack.c.h.b16 %v4323
    %v6530 = vunpack.c.l.b16 %v4324
    %v6531 = vunpack.c.h.b16 %v4324
    %v6532 = vunpack.c.l.b16 %v4325
    %v6533 = vunpack.c.h.b16 %v4325
    %v6534 = vunpack.c.l.b16 %v4326
    %v6535 = vunpack.c.h.b16 %v4326
    %v6536 = vunpack.c.l.b16 %v4327
    %v6537 = vunpack.c.h.b16 %v4327
    %v6538 = vunpack.c.l.b16 %v4328
    %v6539 = vunpack.c.h.b16 %v4328
    %v6540 = vunpack.c.l.b16 %v4329
    %v6541 = vunpack.c.h.b16 %v4329
    %v6542 = vunpack.c.l.b16 %v4330
    %v6543 = vunpack.c.h.b16 %v4330
    %v6544 = vunpack.c.l.b16 %v4331
    %v6545 = vunpack.c.h.b16 %v4331
    %v6546 = vunpack.c.l.b16 %v4332
    %v6547 = vunpack.c.h.b16 %v4332
    %v6548 = vunpack.c.l.b16 %v4333
    %v6549 = vunpack.c.h.b16 %v4333
    %v6550 = vunpack.c.l.b16 %v4334
    %v6551 = vunpack.c.h.b16 %v4334
    %v6552 = vunpack.c.l.b16 %v4335
    %v6553 = vunpack.c.h.b16 %v4335
    %v6554 = vunpack.c.l.b16 %v4336
    %v6555 = vunpack.c.h.b16 %v4336
    %v6556 = vunpack.c.l.b16 %v4337
    %v6557 = vunpack.c.h.b16 %v4337
    %v6558 = vunpack.c.l.b16 %v4338
    %v6559 = vunpack.c.h.b16 %v4338
    %v6560 = vunpack.c.l.b16 %v4339
    %v6561 = vunpack.c.h.b16 %v4339
    %v6562 = vunpack.c.l.b16 %v4340
    %v6563 = vunpack.c.h.b16 %v4340
    %v6564 = vunpack.c.l.b16 %v4341
    %v6565 = vunpack.c.h.b16 %v4341
    %v6566 = vunpack.c.l.b16 %v4342
    %v6567 = vunpack.c.h.b16 %v4342
    %v6568 = vunpack.c.l.b16 %v4343
    %v6569 = vunpack.c.h.b16 %v4343
    %v6570 = vunpack.c.l.b16 %v4344
    %v6571 = vunpack.c.h.b16 %v4344
    %v6572 = vunpack.c.l.b16 %v4345
    %v6573 = vunpack.c.h.b16 %v4345
    %v6574 = vunpack.c.l.b16 %v4346
    %v6575 = vunpack.c.h.b16 %v4346
    %v6576 = vunpack.c.l.b16 %v4347
    %v6577 = vunpack.c.h.b16 %v4347
    %v6578 = vunpack.c.l.b16 %v4348
    %v6579 = vunpack.c.h.b16 %v4348
    %v6580 = vunpack.c.l.b16 %v4349
    %v6581 = vunpack.c.h.b16 %v4349
    %v6582 = vunpack.c.l.b16 %v4350
    %v6583 = vunpack.c.h.b16 %v4350
    %v6584 = vunpack.c.l.b16 %v4351
    %v6585 = vunpack.c.h.b16 %v4351
    %v6586 = vunpack.c.l.b16 %v4352
    %v6587 = vunpack.c.h.b16 %v4352
    %v6588 = vunpack.c.l.b16 %v4353
    %v6589 = vunpack.c.h.b16 %v4353
    %v6590 = vunpack.c.l.b16 %v4354
    %v6591 = vunpack.c.h.b16 %v4354
    %v6592 = vunpack.c.l.b16 %v4355
    %v6593 = vunpack.c.h.b16 %v4355
    %v6594 = vunpack.c.l.b16 %v4356
    %v6595 = vunpack.c.h.b16 %v4356
    %v6596 = vunpack.c.l.b16 %v4357
    %v6597 = vunpack.c.h.b16 %v4357
    %v6598 = vunpack.c.l.b16 %v4358
    %v6599 = vunpack.c.h.b16 %v4358
    %v6600 = vunpack.c.l.b16 %v4359
    %v6601 = vunpack.c.h.b16 %v4359
    %v6602 = vunpack.c.l.b16 %v4360
    %v6603 = vunpack.c.h.b16 %v4360
    %v6604 = vunpack.c.l.b16 %v4361
    %v6605 = vunpack.c.h.b16 %v4361
    %v6606 = vunpack.c.l.b16 %v4362
    %v6607 = vunpack.c.h.b16 %v4362
    %v6608 = vunpack.c.l.b16 %v4363
    %v6609 = vunpack.c.h.b16 %v4363
    %v6610 = vunpack.c.l.b16 %v4364
    %v6611 = vunpack.c.h.b16 %v4364
    %v6612 = vunpack.c.l.b16 %v4365
    %v6613 = vunpack.c.h.b16 %v4365
    %v6614 = vunpack.c.l.b16 %v4366
    %v6615 = vunpack.c.h.b16 %v4366
    %v6616 = vunpack.c.l.b16 %v4367
    %v6617 = vunpack.c.h.b16 %v4367
    %v6618 = vunpack.c.l.b16 %v4368
    %v6619 = vunpack.c.h.b16 %v4368
    %v6620 = vunpack.c.l.b16 %v4369
    %v6621 = vunpack.c.h.b16 %v4369
    %v6622 = vunpack.c.l.b16 %v4370
    %v6623 = vunpack.c.h.b16 %v4370
    %v6624 = vunpack.c.l.b16 %v4371
    %v6625 = vunpack.c.h.b16 %v4371
    %v6626 = vunpack.c.l.b16 %v4372
    %v6627 = vunpack.c.h.b16 %v4372
    %v6628 = vunpack.c.l.b16 %v4373
    %v6629 = vunpack.c.h.b16 %v4373
    %v6630 = vunpack.c.l.b16 %v4374
    %v6631 = vunpack.c.h.b16 %v4374
    %v6632 = vunpack.c.l.b16 %v4375
    %v6633 = vunpack.c.h.b16 %v4375
    %v6634 = vunpack.c.l.b16 %v4376
    %v6635 = vunpack.c.h.b16 %v4376
    %v6636 = vunpack.c.l.b16 %v4377
    %v6637 = vunpack.c.h.b16 %v4377
    %v6638 = vunpack.c.l.b16 %v4378
    %v6639 = vunpack.c.h.b16 %v4378
    %v6640 = vunpack.c.l.b16 %v4379
    %v6641 = vunpack.c.h.b16 %v4379
    %v6642 = vunpack.c.l.b16 %v4380
    %v6643 = vunpack.c.h.b16 %v4380
    %v6644 = vunpack.c.l.b16 %v4381
    %v6645 = vunpack.c.h.b16 %v4381
    %v6646 = vunpack.c.l.b16 %v4382
    %v6647 = vunpack.c.h.b16 %v4382
    %v6648 = vunpack.c.l.b16 %v4383
    %v6649 = vunpack.c.h.b16 %v4383
    %v6650 = vunpack.c.l.b16 %v4384
    %v6651 = vunpack.c.h.b16 %v4384
    %v6652 = vunpack.c.l.b16 %v4385
    %v6653 = vunpack.c.h.b16 %v4385
    %v6654 = vunpack.c.l.b16 %v4386
    %v6655 = vunpack.c.h.b16 %v4386
    %v6656 = vunpack.c.l.b16 %v4387
    %v6657 = vunpack.c.h.b16 %v4387
    %v6658 = vunpack.c.l.b16 %v4388
    %v6659 = vunpack.c.h.b16 %v4388
    %v6660 = vunpack.c.l.b16 %v4389
    %v6661 = vunpack.c.h.b16 %v4389
    %v6662 = vunpack.c.l.b16 %v4390
    %v6663 = vunpack.c.h.b16 %v4390
    %v6664 = vunpack.c.l.b16 %v4391
    %v6665 = vunpack.c.h.b16 %v4391
    %v6666 = vunpack.c.l.b16 %v4392
    %v6667 = vunpack.c.h.b16 %v4392
    %v6668 = vunpack.c.l.b16 %v4393
    %v6669 = vunpack.c.h.b16 %v4393
    %v6670 = vunpack.c.l.b16 %v4394
    %v6671 = vunpack.c.h.b16 %v4394
    %v6672 = vunpack.c.l.b16 %v4395
    %v6673 = vunpack.c.h.b16 %v4395
    %v6674 = vunpack.c.l.b16 %v4396
    %v6675 = vunpack.c.h.b16 %v4396
    %v6676 = vunpack.c.l.b16 %v4397
    %v6677 = vunpack.c.h.b16 %v4397
    %v6678 = vunpack.c.l.b16 %v4398
    %v6679 = vunpack.c.h.b16 %v4398
    %v6680 = vunpack.c.l.b16 %v4399
    %v6681 = vunpack.c.h.b16 %v4399
    %v6682 = vunpack.c.l.b16 %v4400
    %v6683 = vunpack.c.h.b16 %v4400
    %v6684 = vunpack.c.l.b16 %v4401
    %v6685 = vunpack.c.h.b16 %v4401
    %v6686 = vunpack.c.l.b16 %v4402
    %v6687 = vunpack.c.h.b16 %v4402
    %v6688 = vunpack.c.l.b16 %v4403
    %v6689 = vunpack.c.h.b16 %v4403
    %v6690 = vunpack.c.l.b16 %v4404
    %v6691 = vunpack.c.h.b16 %v4404
    %v6692 = vunpack.c.l.b16 %v4405
    %v6693 = vunpack.c.h.b16 %v4405
    %v6694 = vunpack.c.l.b16 %v4406
    %v6695 = vunpack.c.h.b16 %v4406
    %v6696 = vunpack.c.l.b16 %v4407
    %v6697 = vunpack.c.h.b16 %v4407
    %v6698 = vunpack.c.l.b16 %v4408
    %v6699 = vunpack.c.h.b16 %v4408
    %v6700 = vunpack.c.l.b16 %v4409
    %v6701 = vunpack.c.h.b16 %v4409
    %v6702 = vunpack.c.l.b16 %v4410
    %v6703 = vunpack.c.h.b16 %v4410
    %v6704 = vunpack.c.l.b16 %v4411
    %v6705 = vunpack.c.h.b16 %v4411
    %v6706 = vunpack.c.l.b16 %v4412
    %v6707 = vunpack.c.h.b16 %v4412
    %v6708 = vunpack.c.l.b16 %v4413
    %v6709 = vunpack.c.h.b16 %v4413
    %v6710 = vunpack.c.l.b16 %v4414
    %v6711 = vunpack.c.h.b16 %v4414
    %v6712 = vunpack.c.l.b16 %v4415
    %v6713 = vunpack.c.h.b16 %v4415
    %v6714 = vunpack.c.l.b16 %v4416
    %v6715 = vunpack.c.h.b16 %v4416
    %v6716 = vunpack.c.l.b16 %v4417
    %v6717 = vunpack.c.h.b16 %v4417
    %v6718 = vunpack.c.l.b16 %v4418
    %v6719 = vunpack.c.h.b16 %v4418
    %v6720 = vunpack.c.l.b16 %v4419
    %v6721 = vunpack.c.h.b16 %v4419
    %v6722 = vunpack.c.l.b16 %v4420
    %v6723 = vunpack.c.h.b16 %v4420
    %v6724 = vunpack.c.l.b16 %v4421
    %v6725 = vunpack.c.h.b16 %v4421
    %v6726 = vunpack.c.l.b16 %v4422
    %v6727 = vunpack.c.h.b16 %v4422
    %v6728 = vunpack.c.l.b16 %v4423
    %v6729 = vunpack.c.h.b16 %v4423
    %v6730 = vunpack.c.l.b16 %v4424
    %v6731 = vunpack.c.h.b16 %v4424
    %v6732 = vunpack.c.l.b16 %v4425
    %v6733 = vunpack.c.h.b16 %v4425
    %v6734 = vunpack.c.l.b16 %v4426
    %v6735 = vunpack.c.h.b16 %v4426
    %v6736 = vunpack.c.l.b16 %v4427
    %v6737 = vunpack.c.h.b16 %v4427
    %v6738 = vunpack.c.l.b16 %v4428
    %v6739 = vunpack.c.h.b16 %v4428
    %v6740 = vunpack.c.l.b16 %v4429
    %v6741 = vunpack.c.h.b16 %v4429
    %v6742 = vunpack.c.l.b16 %v4430
    %v6743 = vunpack.c.h.b16 %v4430
    %v6744 = vunpack.c.l.b16 %v4431
    %v6745 = vunpack.c.h.b16 %v4431
    %v6746 = vunpack.c.l.b16 %v4432
    %v6747 = vunpack.c.h.b16 %v4432
    %v6748 = vunpack.c.l.b16 %v4433
    %v6749 = vunpack.c.h.b16 %v4433
    %v6750 = vunpack.c.l.b16 %v4434
    %v6751 = vunpack.c.h.b16 %v4434
    %v6752 = vunpack.c.l.b16 %v4435
    %v6753 = vunpack.c.h.b16 %v4435
    %v6754 = vunpack.c.l.b16 %v4436
    %v6755 = vunpack.c.h.b16 %v4436
    %v6756 = vunpack.c.l.b16 %v4437
    %v6757 = vunpack.c.h.b16 %v4437
    %v6758 = vunpack.c.l.b16 %v4438
    %v6759 = vunpack.c.h.b16 %v4438
    %v6760 = vunpack.c.l.b16 %v4439
    %v6761 = vunpack.c.h.b16 %v4439
    %v6762 = vunpack.c.l.b16 %v4440
    %v6763 = vunpack.c.h.b16 %v4440
    %v6764 = vunpack.c.l.b16 %v4441
    %v6765 = vunpack.c.h.b16 %v4441
    %v6766 = vunpack.c.l.b16 %v4442
    %v6767 = vunpack.c.h.b16 %v4442
    %v6768 = vunpack.c.l.b16 %v4443
    %v6769 = vunpack.c.h.b16 %v4443
    %v6770 = vunpack.c.l.b16 %v4444
    %v6771 = vunpack.c.h.b16 %v4444
    %v6772 = vunpack.c.l.b16 %v4445
    %v6773 = vunpack.c.h.b16 %v4445
    %v6774 = vunpack.c.l.b16 %v4446
    %v6775 = vunpack.c.h.b16 %v4446
    %v6776 = vunpack.c.l.b16 %v4447
    %v6777 = vunpack.c.h.b16 %v4447
    %v6778 = vunpack.c.l.b16 %v4448
    %v6779 = vunpack.c.h.b16 %v4448
    %v6780 = vunpack.c.l.b16 %v4449
    %v6781 = vunpack.c.h.b16 %v4449
    %v6782 = vunpack.c.l.b16 %v4450
    %v6783 = vunpack.c.h.b16 %v4450
    %v6784 = vunpack.c.l.b16 %v4451
    %v6785 = vunpack.c.h.b16 %v4451
    %v6786 = vunpack.c.l.b16 %v4452
    %v6787 = vunpack.c.h.b16 %v4452
    %v6788 = vunpack.c.l.b16 %v4453
    %v6789 = vunpack.c.h.b16 %v4453
    %v6790 = vunpack.c.l.b16 %v4454
    %v6791 = vunpack.c.h.b16 %v4454
    %v6792 = vunpack.c.l.b16 %v4455
    %v6793 = vunpack.c.h.b16 %v4455
    %v6794 = vunpack.c.l.b16 %v4456
    %v6795 = vunpack.c.h.b16 %v4456
    %v6796 = vunpack.c.l.b16 %v4457
    %v6797 = vunpack.c.h.b16 %v4457
    %v6798 = vunpack.c.l.b16 %v4458
    %v6799 = vunpack.c.h.b16 %v4458
    %v6800 = vunpack.c.l.b16 %v4459
    %v6801 = vunpack.c.h.b16 %v4459
    %v6802 = vunpack.c.l.b16 %v4460
    %v6803 = vunpack.c.h.b16 %v4460
    %v6804 = vunpack.c.l.b16 %v4461
    %v6805 = vunpack.c.h.b16 %v4461
    %v6806 = vunpack.c.l.b16 %v4462
    %v6807 = vunpack.c.h.b16 %v4462
    %v6808 = vunpack.c.l.b16 %v4463
    %v6809 = vunpack.c.h.b16 %v4463
    %v6810 = vunpack.c.l.b16 %v4464
    %v6811 = vunpack.c.h.b16 %v4464
    %v6812 = vunpack.c.l.b16 %v4465
    %v6813 = vunpack.c.h.b16 %v4465
    %v6814 = vunpack.c.l.b16 %v4466
    %v6815 = vunpack.c.h.b16 %v4466
    %v6816 = vunpack.c.l.b16 %v4467
    %v6817 = vunpack.c.h.b16 %v4467
    %v6818 = vunpack.c.l.b16 %v4468
    %v6819 = vunpack.c.h.b16 %v4468
    %v6820 = vunpack.c.l.b16 %v4469
    %v6821 = vunpack.c.h.b16 %v4469
    %v6822 = vunpack.c.l.b16 %v4470
    %v6823 = vunpack.c.h.b16 %v4470
    %v6824 = vunpack.c.l.b16 %v4471
    %v6825 = vunpack.c.h.b16 %v4471
    %v6826 = vunpack.c.l.b16 %v4472
    %v6827 = vunpack.c.h.b16 %v4472
    %v6828 = vunpack.c.l.b16 %v4473
    %v6829 = vunpack.c.h.b16 %v4473
    %v6830 = vunpack.c.l.b16 %v4474
    %v6831 = vunpack.c.h.b16 %v4474
    %v6832 = vunpack.c.l.b16 %v4475
    %v6833 = vunpack.c.h.b16 %v4475
    %v6834 = vunpack.c.l.b16 %v4476
    %v6835 = vunpack.c.h.b16 %v4476
    %v6836 = vunpack.c.l.b16 %v4477
    %v6837 = vunpack.c.h.b16 %v4477
    %v6838 = vunpack.c.l.b16 %v4478
    %v6839 = vunpack.c.h.b16 %v4478
    %v6840 = vunpack.c.l.b16 %v4479
    %v6841 = vunpack.c.h.b16 %v4479
    %v6842 = vunpack.c.l.b16 %v4480
    %v6843 = vunpack.c.h.b16 %v4480
    %v6844 = vunpack.c.l.b16 %v4481
    %v6845 = vunpack.c.h.b16 %v4481
    %v6846 = vunpack.c.l.b16 %v4482
    %v6847 = vunpack.c.h.b16 %v4482
    %v6848 = vunpack.c.l.b16 %v4483
    %v6849 = vunpack.c.h.b16 %v4483
    %v6850 = vunpack.c.l.b16 %v4484
    %v6851 = vunpack.c.h.b16 %v4484
    %v6852 = vunpack.c.l.b16 %v4485
    %v6853 = vunpack.c.h.b16 %v4485
    %v6854 = vunpack.c.l.b16 %v4486
    %v6855 = vunpack.c.h.b16 %v4486
    %v6856 = vunpack.c.l.b16 %v4487
    %v6857 = vunpack.c.h.b16 %v4487
    %v6858 = vunpack.c.l.b16 %v4488
    %v6859 = vunpack.c.h.b16 %v4488
    %v6860 = vunpack.c.l.b16 %v4489
    %v6861 = vunpack.c.h.b16 %v4489
    %v6862 = vunpack.c.l.b16 %v4490
    %v6863 = vunpack.c.h.b16 %v4490
    %v6864 = vunpack.c.l.b16 %v4491
    %v6865 = vunpack.c.h.b16 %v4491
    %v6866 = vunpack.c.l.b16 %v4492
    %v6867 = vunpack.c.h.b16 %v4492
    %v6868 = vunpack.c.l.b16 %v4493
    %v6869 = vunpack.c.h.b16 %v4493
    %v6870 = vunpack.c.l.b16 %v4494
    %v6871 = vunpack.c.h.b16 %v4494
    %v6872 = vunpack.c.l.b16 %v4495
    %v6873 = vunpack.c.h.b16 %v4495
    %v6874 = vunpack.c.l.b16 %v4496
    %v6875 = vunpack.c.h.b16 %v4496
    %v6876 = vunpack.c.l.b16 %v4497
    %v6877 = vunpack.c.h.b16 %v4497
    %v6878 = vunpack.c.l.b16 %v4498
    %v6879 = vunpack.c.h.b16 %v4498
    %v6880 = vunpack.c.l.b16 %v4499
    %v6881 = vunpack.c.h.b16 %v4499
    %v6882 = vunpack.c.l.b16 %v4500
    %v6883 = vunpack.c.h.b16 %v4500
    %v6884 = vunpack.c.l.b16 %v4501
    %v6885 = vunpack.c.h.b16 %v4501
    %v6886 = vunpack.c.l.b16 %v4502
    %v6887 = vunpack.c.h.b16 %v4502
    %v6888 = vunpack.c.l.b16 %v4503
    %v6889 = vunpack.c.h.b16 %v4503
    %v6890 = vunpack.c.l.b16 %v4504
    %v6891 = vunpack.c.h.b16 %v4504
    %v6892 = vunpack.c.l.b16 %v4505
    %v6893 = vunpack.c.h.b16 %v4505
    %v6894 = vunpack.c.l.b16 %v4506
    %v6895 = vunpack.c.h.b16 %v4506
    %v6896 = vunpack.c.l.b16 %v4507
    %v6897 = vunpack.c.h.b16 %v4507
    %v6898 = vunpack.c.l.b16 %v4508
    %v6899 = vunpack.c.h.b16 %v4508
    %v6900 = vunpack.c.l.b16 %v4509
    %v6901 = vunpack.c.h.b16 %v4509
    %v6902 = vunpack.c.l.b16 %v4510
    %v6903 = vunpack.c.h.b16 %v4510
    %v6904 = vunpack.c.l.b16 %v4511
    %v6905 = vunpack.c.h.b16 %v4511
    %v6906 = vunpack.c.l.b16 %v4512
    %v6907 = vunpack.c.h.b16 %v4512
    %v6908 = vunpack.c.l.b16 %v4513
    %v6909 = vunpack.c.h.b16 %v4513
    %v6910 = vunpack.c.l.b16 %v4514
    %v6911 = vunpack.c.h.b16 %v4514
    %v6912 = vunpack.c.l.b16 %v4515
    %v6913 = vunpack.c.h.b16 %v4515
    %v6914 = vunpack.c.l.b16 %v4516
    %v6915 = vunpack.c.h.b16 %v4516
    %v6916 = vunpack.c.l.b16 %v4517
    %v6917 = vunpack.c.h.b16 %v4517
    %v6918 = vunpack.c.l.b16 %v4518
    %v6919 = vunpack.c.h.b16 %v4518
    %v6920 = vunpack.c.l.b16 %v4519
    %v6921 = vunpack.c.h.b16 %v4519
    %v6922 = vunpack.c.l.b16 %v4520
    %v6923 = vunpack.c.h.b16 %v4520
    %v6924 = vunpack.c.l.b16 %v4521
    %v6925 = vunpack.c.h.b16 %v4521
    %v6926 = vunpack.c.l.b16 %v4522
    %v6927 = vunpack.c.h.b16 %v4522
    %v6928 = vunpack.c.l.b16 %v4523
    %v6929 = vunpack.c.h.b16 %v4523
    %v6930 = vunpack.c.l.b16 %v4524
    %v6931 = vunpack.c.h.b16 %v4524
    %v6932 = vunpack.c.l.b16 %v4525
    %v6933 = vunpack.c.h.b16 %v4525
    %v6934 = vunpack.c.l.b16 %v4526
    %v6935 = vunpack.c.h.b16 %v4526
    %v6936 = vunpack.c.l.b16 %v4527
    %v6937 = vunpack.c.h.b16 %v4527
    %v6938 = vunpack.c.l.b16 %v4528
    %v6939 = vunpack.c.h.b16 %v4528
    %v6940 = vunpack.c.l.b16 %v4529
    %v6941 = vunpack.c.h.b16 %v4529
    %v6942 = vunpack.c.l.b16 %v4530
    %v6943 = vunpack.c.h.b16 %v4530
    %v6944 = vunpack.c.l.b16 %v4531
    %v6945 = vunpack.c.h.b16 %v4531
    %v6946 = vunpack.c.l.b16 %v4532
    %v6947 = vunpack.c.h.b16 %v4532
    %v6948 = vunpack.c.l.b16 %v4533
    %v6949 = vunpack.c.h.b16 %v4533
    %v6950 = vunpack.c.l.b16 %v4534
    %v6951 = vunpack.c.h.b16 %v4534
    %v6952 = vunpack.c.l.b16 %v4535
    %v6953 = vunpack.c.h.b16 %v4535
    %v6954 = vunpack.c.l.b16 %v4536
    %v6955 = vunpack.c.h.b16 %v4536
    %v6956 = vunpack.c.l.b16 %v4537
    %v6957 = vunpack.c.h.b16 %v4537
    %v6958 = vunpack.c.l.b16 %v4538
    %v6959 = vunpack.c.h.b16 %v4538
    %v6960 = vunpack.c.l.b16 %v4539
    %v6961 = vunpack.c.h.b16 %v4539
    %v6962 = vunpack.c.l.b16 %v4540
    %v6963 = vunpack.c.h.b16 %v4540
    %v6964 = vunpack.c.l.b16 %v4541
    %v6965 = vunpack.c.h.b16 %v4541
    %v6966 = vunpack.c.l.b16 %v4542
    %v6967 = vunpack.c.h.b16 %v4542
    %v6968 = vunpack.c.l.b16 %v4543
    %v6969 = vunpack.c.h.b16 %v4543
    %v6970 = vunpack.c.l.b16 %v4544
    %v6971 = vunpack.c.h.b16 %v4544
    %v6972 = vunpack.c.l.b16 %v4545
    %v6973 = vunpack.c.h.b16 %v4545
    %v6974 = vunpack.c.l.b16 %v4546
    %v6975 = vunpack.c.h.b16 %v4546
    %v6976 = vunpack.c.l.b16 %v4547
    %v6977 = vunpack.c.h.b16 %v4547
    %v6978 = vunpack.c.l.b16 %v4548
    %v6979 = vunpack.c.h.b16 %v4548
    %v6980 = vunpack.c.l.b16 %v4549
    %v6981 = vunpack.c.h.b16 %v4549
    %v6982 = vunpack.c.l.b16 %v4550
    %v6983 = vunpack.c.h.b16 %v4550
    %v6984 = vunpack.c.l.b16 %v4551
    %v6985 = vunpack.c.h.b16 %v4551
    %v6986 = vunpack.c.l.b16 %v4552
    %v6987 = vunpack.c.h.b16 %v4552
    %v6988 = vunpack.c.l.b16 %v4553
    %v6989 = vunpack.c.h.b16 %v4553
    %v6990 = vunpack.c.l.b16 %v4554
    %v6991 = vunpack.c.h.b16 %v4554
    %v6992 = vunpack.c.l.b16 %v4555
    %v6993 = vunpack.c.h.b16 %v4555
    %v6994 = vunpack.c.l.b16 %v4556
    %v6995 = vunpack.c.h.b16 %v4556
    %v6996 = vunpack.c.l.b16 %v4557
    %v6997 = vunpack.c.h.b16 %v4557
    %v6998 = vunpack.c.l.b16 %v4558
    %v6999 = vunpack.c.h.b16 %v4558
    %v7000 = vunpack.c.l.b16 %v4559
    %v7001 = vunpack.c.h.b16 %v4559
    %v7002 = vunpack.c.l.b16 %v4560
    %v7003 = vunpack.c.h.b16 %v4560
    %v7004 = vunpack.c.l.b16 %v4561
    %v7005 = vunpack.c.h.b16 %v4561
    %v7006 = vunpack.c.l.b16 %v4562
    %v7007 = vunpack.c.h.b16 %v4562
    %v7008 = vunpack.c.l.b16 %v4563
    %v7009 = vunpack.c.h.b16 %v4563
    %v7010 = vunpack.c.l.b16 %v4564
    %v7011 = vunpack.c.h.b16 %v4564
    %v7012 = vunpack.c.l.b16 %v4565
    %v7013 = vunpack.c.h.b16 %v4565
    %v7014 = vunpack.c.l.b16 %v4566
    %v7015 = vunpack.c.h.b16 %v4566
    %v7016 = vunpack.c.l.b16 %v4567
    %v7017 = vunpack.c.h.b16 %v4567
    %v7018 = vunpack.c.l.b16 %v4568
    %v7019 = vunpack.c.h.b16 %v4568
    %v7020 = vunpack.c.l.b16 %v4569
    %v7021 = vunpack.c.h.b16 %v4569
    %v7022 = vunpack.c.l.b16 %v4570
    %v7023 = vunpack.c.h.b16 %v4570
    %v7024 = vunpack.c.l.b16 %v4571
    %v7025 = vunpack.c.h.b16 %v4571
    %v7026 = vunpack.c.l.b16 %v4572
    %v7027 = vunpack.c.h.b16 %v4572
    %v7028 = vunpack.c.l.b16 %v4573
    %v7029 = vunpack.c.h.b16 %v4573
    %v7030 = vunpack.c.l.b16 %v4574
    %v7031 = vunpack.c.h.b16 %v4574
    %v7032 = vunpack.c.l.b16 %v4575
    %v7033 = vunpack.c.h.b16 %v4575
    %v7034 = vunpack.c.l.b16 %v4576
    %v7035 = vunpack.c.h.b16 %v4576
    %v7036 = vunpack.c.l.b16 %v4577
    %v7037 = vunpack.c.h.b16 %v4577
    %v7038 = vunpack.c.l.b16 %v4578
    %v7039 = vunpack.c.h.b16 %v4578
    %v7040 = vunpack.c.l.b16 %v4579
    %v7041 = vunpack.c.h.b16 %v4579
    %v7042 = vunpack.c.l.b16 %v4580
    %v7043 = vunpack.c.h.b16 %v4580
    %v7044 = vunpack.c.l.b16 %v4581
    %v7045 = vunpack.c.h.b16 %v4581
    %v7046 = vunpack.c.l.b16 %v4582
    %v7047 = vunpack.c.h.b16 %v4582
    %v7048 = vunpack.c.l.b16 %v4583
    %v7049 = vunpack.c.h.b16 %v4583
    %v7050 = vunpack.c.l.b16 %v4584
    %v7051 = vunpack.c.h.b16 %v4584
    %v7052 = vunpack.c.l.b16 %v4585
    %v7053 = vunpack.c.h.b16 %v4585
    %v7054 = vunpack.c.l.b16 %v4586
    %v7055 = vunpack.c.h.b16 %v4586
    %v7056 = vunpack.c.l.b16 %v4587
    %v7057 = vunpack.c.h.b16 %v4587
    %v7058 = vunpack.c.l.b16 %v4588
    %v7059 = vunpack.c.h.b16 %v4588
    %v7060 = vunpack.c.l.b16 %v4589
    %v7061 = vunpack.c.h.b16 %v4589
    %v7062 = vunpack.c.l.b16 %v4590
    %v7063 = vunpack.c.h.b16 %v4590
    %v7064 = vunpack.c.l.b16 %v4591
    %v7065 = vunpack.c.h.b16 %v4591
    %v7066 = vunpack.c.l.b16 %v4592
    %v7067 = vunpack.c.h.b16 %v4592
    %v7068 = vunpack.c.l.b16 %v4593
    %v7069 = vunpack.c.h.b16 %v4593
    %v7070 = vunpack.c.l.b16 %v4594
    %v7071 = vunpack.c.h.b16 %v4594
    %v7072 = vunpack.c.l.b16 %v4595
    %v7073 = vunpack.c.h.b16 %v4595
    %v7074 = vunpack.c.l.b16 %v4596
    %v7075 = vunpack.c.h.b16 %v4596
    %v7076 = vunpack.c.l.b16 %v4597
    %v7077 = vunpack.c.h.b16 %v4597
    %v7078 = vunpack.c.l.b16 %v4598
    %v7079 = vunpack.c.h.b16 %v4598
    %v7080 = vunpack.c.l.b16 %v4599
    %v7081 = vunpack.c.h.b16 %v4599
    %v7082 = vunpack.c.l.b16 %v4600
    %v7083 = vunpack.c.h.b16 %v4600
    %v7084 = vunpack.c.l.b16 %v4601
    %v7085 = vunpack.c.h.b16 %v4601
    %v7086 = vunpack.c.l.b16 %v4602
    %v7087 = vunpack.c.h.b16 %v4602
    %v7088 = vunpack.c.l.b16 %v4603
    %v7089 = vunpack.c.h.b16 %v4603
    %v7090 = vunpack.c.l.b16 %v4604
    %v7091 = vunpack.c.h.b16 %v4604
    %v7092 = vunpack.c.l.b16 %v4605
    %v7093 = vunpack.c.h.b16 %v4605
    %v7094 = vunpack.c.l.b16 %v4606
    %v7095 = vunpack.c.h.b16 %v4606
    %v7096 = vunpack.c.l.b16 %v4607
    %v7097 = vunpack.c.h.b16 %v4607
    %v7098 = vunpack.c.l.b16 %v4608
    %v7099 = vunpack.c.h.b16 %v4608
    %v7100 = vunpack.c.l.b16 %v4609
    %v7101 = vunpack.c.h.b16 %v4609
    %v7102 = vunpack.c.l.b16 %v4610
    %v7103 = vunpack.c.h.b16 %v4610
    %v7104 = vunpack.c.l.b16 %v4611
    %v7105 = vunpack.c.h.b16 %v4611
    %v7106 = vunpack.c.l.b16 %v4612
    %v7107 = vunpack.c.h.b16 %v4612
    %v7108 = vunpack.c.l.b16 %v4613
    %v7109 = vunpack.c.h.b16 %v4613
    %v7110 = vunpack.c.l.b16 %v4614
    %v7111 = vunpack.c.h.b16 %v4614
    %v7112 = vunpack.c.l.b16 %v4615
    %v7113 = vunpack.c.h.b16 %v4615
    %v7114 = vunpack.c.l.b16 %v4616
    %v7115 = vunpack.c.h.b16 %v4616
    %v7116 = vunpack.c.l.b16 %v4617
    %v7117 = vunpack.c.h.b16 %v4617
    %v7118 = vunpack.c.l.b16 %v4618
    %v7119 = vunpack.c.h.b16 %v4618
    %v7120 = vunpack.c.l.b16 %v4619
    %v7121 = vunpack.c.h.b16 %v4619
    %v7122 = vunpack.c.l.b16 %v4620
    %v7123 = vunpack.c.h.b16 %v4620
    %v7124 = vunpack.c.l.b16 %v4621
    %v7125 = vunpack.c.h.b16 %v4621
    %v7126 = vunpack.c.l.b16 %v4622
    %v7127 = vunpack.c.h.b16 %v4622
    %v7128 = vunpack.c.l.b16 %v4623
    %v7129 = vunpack.c.h.b16 %v4623
    %v7130 = vunpack.c.l.b16 %v4624
    %v7131 = vunpack.c.h.b16 %v4624
    %v7132 = vunpack.c.l.b16 %v4625
    %v7133 = vunpack.c.h.b16 %v4625
    %v7134 = vunpack.c.l.b16 %v4626
    %v7135 = vunpack.c.h.b16 %v4626
    %v7136 = vunpack.c.l.b16 %v4627
    %v7137 = vunpack.c.h.b16 %v4627
    %v7138 = vunpack.c.l.b16 %v4628
    %v7139 = vunpack.c.h.b16 %v4628
    %v7140 = vunpack.c.l.b16 %v4629
    %v7141 = vunpack.c.h.b16 %v4629
    %v7142 = vunpack.c.l.b16 %v4630
    %v7143 = vunpack.c.h.b16 %v4630
    %v7144 = vunpack.c.l.b16 %v4631
    %v7145 = vunpack.c.h.b16 %v4631
    %v7146 = vunpack.c.l.b16 %v4632
    %v7147 = vunpack.c.h.b16 %v4632
    %v7148 = vunpack.c.l.b16 %v4633
    %v7149 = vunpack.c.h.b16 %v4633
    %v7150 = vunpack.c.l.b16 %v4634
    %v7151 = vunpack.c.h.b16 %v4634
    %v7152 = vunpack.c.l.b16 %v4635
    %v7153 = vunpack.c.h.b16 %v4635
    %v7154 = vunpack.c.l.b16 %v4636
    %v7155 = vunpack.c.h.b16 %v4636
    %v7156 = vunpack.c.l.b16 %v4637
    %v7157 = vunpack.c.h.b16 %v4637
    %v7158 = vunpack.c.l.b16 %v4638
    %v7159 = vunpack.c.h.b16 %v4638
    %v7160 = vunpack.c.l.b16 %v4639
    %v7161 = vunpack.c.h.b16 %v4639
    %v7162 = vunpack.c.l.b16 %v4640
    %v7163 = vunpack.c.h.b16 %v4640
    %v7164 = vunpack.c.l.b16 %v4641
    %v7165 = vunpack.c.h.b16 %v4641
    %v7166 = vunpack.c.l.b16 %v4642
    %v7167 = vunpack.c.h.b16 %v4642
    %v7168 = vunpack.c.l.b16 %v4643
    %v7169 = vunpack.c.h.b16 %v4643
    %v7170 = vunpack.c.l.b16 %v4644
    %v7171 = vunpack.c.h.b16 %v4644
    %v7172 = vunpack.c.l.b16 %v4645
    %v7173 = vunpack.c.h.b16 %v4645
    %v7174 = vunpack.c.l.b16 %v4646
    %v7175 = vunpack.c.h.b16 %v4646
    %v7176 = vunpack.c.l.b16 %v4647
    %v7177 = vunpack.c.h.b16 %v4647
    %v7178 = vunpack.c.l.b16 %v4648
    %v7179 = vunpack.c.h.b16 %v4648
    %v7180 = vunpack.c.l.b16 %v4649
    %v7181 = vunpack.c.h.b16 %v4649
    %v7182 = vunpack.c.l.b16 %v4650
    %v7183 = vunpack.c.h.b16 %v4650
    %v7184 = vunpack.c.l.b16 %v4651
    %v7185 = vunpack.c.h.b16 %v4651
    %v7186 = vunpack.c.l.b16 %v4652
    %v7187 = vunpack.c.h.b16 %v4652
    %v7188 = vunpack.c.l.b16 %v4653
    %v7189 = vunpack.c.h.b16 %v4653
    %v7190 = vunpack.c.l.b16 %v4654
    %v7191 = vunpack.c.h.b16 %v4654
    %v7192 = vunpack.c.l.b16 %v4655
    %v7193 = vunpack.c.h.b16 %v4655
    %v7194 = vunpack.c.l.b16 %v4656
    %v7195 = vunpack.c.h.b16 %v4656
    %v7196 = vunpack.c.l.b16 %v4657
    %v7197 = vunpack.c.h.b16 %v4657
    %v7198 = vunpack.c.l.b16 %v4658
    %v7199 = vunpack.c.h.b16 %v4658
    %v7200 = vunpack.c.l.b16 %v4659
    %v7201 = vunpack.c.h.b16 %v4659
    %v7202 = vunpack.c.l.b16 %v4660
    %v7203 = vunpack.c.h.b16 %v4660
    %v7204 = vunpack.c.l.b16 %v4661
    %v7205 = vunpack.c.h.b16 %v4661
    %v7206 = vunpack.c.l.b16 %v4662
    %v7207 = vunpack.c.h.b16 %v4662
    %v7208 = vunpack.c.l.b16 %v4663
    %v7209 = vunpack.c.h.b16 %v4663
    %v7210 = vunpack.c.l.b16 %v4664
    %v7211 = vunpack.c.h.b16 %v4664
    %v7212 = vunpack.c.l.b16 %v4665
    %v7213 = vunpack.c.h.b16 %v4665
    %v7214 = vunpack.c.l.b16 %v4666
    %v7215 = vunpack.c.h.b16 %v4666
    %v7216 = vunpack.c.l.b16 %v4667
    %v7217 = vunpack.c.h.b16 %v4667
    %v7218 = vunpack.c.l.b16 %v4668
    %v7219 = vunpack.c.h.b16 %v4668
    %v7220 = vunpack.c.l.b16 %v4669
    %v7221 = vunpack.c.h.b16 %v4669
    %v7222 = vunpack.c.l.b16 %v4670
    %v7223 = vunpack.c.h.b16 %v4670
    %v7224 = vunpack.c.l.b16 %v4671
    %v7225 = vunpack.c.h.b16 %v4671
    %v7226 = vunpack.c.l.b16 %v4672
    %v7227 = vunpack.c.h.b16 %v4672
    %v7228 = vunpack.c.l.b16 %v4673
    %v7229 = vunpack.c.h.b16 %v4673
    %v7230 = vunpack.c.l.b16 %v4674
    %v7231 = vunpack.c.h.b16 %v4674
    %v7232 = vunpack.c.l.b16 %v4675
    %v7233 = vunpack.c.h.b16 %v4675
    %v7234 = vunpack.c.l.b16 %v4676
    %v7235 = vunpack.c.h.b16 %v4676
    %v7236 = vunpack.c.l.b16 %v4677
    %v7237 = vunpack.c.h.b16 %v4677
    %v7238 = vunpack.c.l.b16 %v4678
    %v7239 = vunpack.c.h.b16 %v4678
    %v7240 = vunpack.c.l.b16 %v4679
    %v7241 = vunpack.c.h.b16 %v4679
    %v7242 = vunpack.c.l.b16 %v4680
    %v7243 = vunpack.c.h.b16 %v4680
    %v7244 = vunpack.c.l.b16 %v4681
    %v7245 = vunpack.c.h.b16 %v4681
    %v7246 = vunpack.c.l.b16 %v4682
    %v7247 = vunpack.c.h.b16 %v4682
    %v7248 = vunpack.c.l.b16 %v4683
    %v7249 = vunpack.c.h.b16 %v4683
    %v7250 = vunpack.c.l.b16 %v4684
    %v7251 = vunpack.c.h.b16 %v4684
    %v7252 = vunpack.c.l.b16 %v4685
    %v7253 = vunpack.c.h.b16 %v4685
    %v7254 = vunpack.c.l.b16 %v4686
    %v7255 = vunpack.c.h.b16 %v4686
    %v7256 = vunpack.c.l.b16 %v4687
    %v7257 = vunpack.c.h.b16 %v4687
    %v7258 = vunpack.c.l.b16 %v4688
    %v7259 = vunpack.c.h.b16 %v4688
    %v7260 = vunpack.c.l.b16 %v4689
    %v7261 = vunpack.c.h.b16 %v4689
    %v7262 = vunpack.c.l.b16 %v4690
    %v7263 = vunpack.c.h.b16 %v4690
    %v7264 = vunpack.c.l.b16 %v4691
    %v7265 = vunpack.c.h.b16 %v4691
    %v7266 = vunpack.c.l.b16 %v4692
    %v7267 = vunpack.c.h.b16 %v4692
    %v7268 = vunpack.c.l.b16 %v4693
    %v7269 = vunpack.c.h.b16 %v4693
    %v7270 = vunpack.c.l.b16 %v4694
    %v7271 = vunpack.c.h.b16 %v4694
    %v7272 = vunpack.c.l.b16 %v4695
    %v7273 = vunpack.c.h.b16 %v4695
    %v7274 = vunpack.c.l.b16 %v4696
    %v7275 = vunpack.c.h.b16 %v4696
    %v7276 = vunpack.c.l.b16 %v4697
    %v7277 = vunpack.c.h.b16 %v4697
    %v7278 = vunpack.c.l.b16 %v4698
    %v7279 = vunpack.c.h.b16 %v4698
    %v7280 = vunpack.c.l.b16 %v4699
    %v7281 = vunpack.c.h.b16 %v4699
    %v7282 = vunpack.c.l.b16 %v4700
    %v7283 = vunpack.c.h.b16 %v4700
    %v7284 = vunpack.c.l.b16 %v4701
    %v7285 = vunpack.c.h.b16 %v4701
    %v7286 = vunpack.c.l.b16 %v4702
    %v7287 = vunpack.c.h.b16 %v4702
    %v7288 = vunpack.c.l.b16 %v4703
    %v7289 = vunpack.c.h.b16 %v4703
    %v7290 = vunpack.c.l.b16 %v4704
    %v7291 = vunpack.c.h.b16 %v4704
    %v7292 = vunpack.c.l.b16 %v4705
    %v7293 = vunpack.c.h.b16 %v4705
    %v7294 = vunpack.c.l.b16 %v4706
    %v7295 = vunpack.c.h.b16 %v4706
    %v7296 = vunpack.c.l.b16 %v4707
    %v7297 = vunpack.c.h.b16 %v4707
    %v7298 = vunpack.c.l.b16 %v4708
    %v7299 = vunpack.c.h.b16 %v4708
    %v7300 = vunpack.c.l.b16 %v4709
    %v7301 = vunpack.c.h.b16 %v4709
    %v7302 = vunpack.c.l.b16 %v4710
    %v7303 = vunpack.c.h.b16 %v4710
    %v7304 = vunpack.c.l.b16 %v4711
    %v7305 = vunpack.c.h.b16 %v4711
    %v7306 = vunpack.c.l.b16 %v4712
    %v7307 = vunpack.c.h.b16 %v4712
    %v7308 = vunpack.c.l.b16 %v4713
    %v7309 = vunpack.c.h.b16 %v4713
    %v7310 = vunpack.c.l.b16 %v4714
    %v7311 = vunpack.c.h.b16 %v4714
    %v7312 = vunpack.c.l.b16 %v4715
    %v7313 = vunpack.c.h.b16 %v4715
    %v7314 = vunpack.c.l.b16 %v4716
    %v7315 = vunpack.c.h.b16 %v4716
    %v7316 = vunpack.c.l.b16 %v4717
    %v7317 = vunpack.c.h.b16 %v4717
    %v7318 = vunpack.c.l.b16 %v4718
    %v7319 = vunpack.c.h.b16 %v4718
    %v7320 = vunpack.c.l.b16 %v4719
    %v7321 = vunpack.c.h.b16 %v4719
    %v7322 = vunpack.c.l.b16 %v4720
    %v7323 = vunpack.c.h.b16 %v4720
    %v7324 = vunpack.c.l.b16 %v4721
    %v7325 = vunpack.c.h.b16 %v4721
    %v7326 = vunpack.c.l.b16 %v4722
    %v7327 = vunpack.c.h.b16 %v4722
    %v7328 = vunpack.c.l.b16 %v4723
    %v7329 = vunpack.c.h.b16 %v4723
    %v7330 = vunpack.c.l.b16 %v4724
    %v7331 = vunpack.c.h.b16 %v4724
    %v7332 = vunpack.c.l.b16 %v4725
    %v7333 = vunpack.c.h.b16 %v4725
    %v7334 = vunpack.c.l.b16 %v4726
    %v7335 = vunpack.c.h.b16 %v4726
    %v7336 = vunpack.c.l.b16 %v4727
    %v7337 = vunpack.c.h.b16 %v4727
    %v7338 = vunpack.c.l.b16 %v4728
    %v7339 = vunpack.c.h.b16 %v4728
    %v7340 = vunpack.c.l.b16 %v4729
    %v7341 = vunpack.c.h.b16 %v4729
    %v7342 = vunpack.c.l.b16 %v4730
    %v7343 = vunpack.c.h.b16 %v4730
    %v7344 = vunpack.c.l.b16 %v4731
    %v7345 = vunpack.c.h.b16 %v4731
    %v7346 = vunpack.c.l.b16 %v4732
    %v7347 = vunpack.c.h.b16 %v4732
    %v7348 = vunpack.c.l.b16 %v4733
    %v7349 = vunpack.c.h.b16 %v4733
    %v7350 = vunpack.c.l.b16 %v4734
    %v7351 = vunpack.c.h.b16 %v4734
    %v7352 = vunpack.c.l.b16 %v4735
    %v7353 = vunpack.c.h.b16 %v4735
    %v7354 = vunpack.c.l.b16 %v4736
    %v7355 = vunpack.c.h.b16 %v4736
    %v7356 = vunpack.c.l.b16 %v4737
    %v7357 = vunpack.c.h.b16 %v4737
    %v7358 = vunpack.c.l.b16 %v4738
    %v7359 = vunpack.c.h.b16 %v4738
    %v7360 = vunpack.c.l.b16 %v4739
    %v7361 = vunpack.c.h.b16 %v4739
    %v7362 = vunpack.c.l.b16 %v4740
    %v7363 = vunpack.c.h.b16 %v4740
    %v7364 = vunpack.c.l.b16 %v4741
    %v7365 = vunpack.c.h.b16 %v4741
    %v7366 = vunpack.c.l.b16 %v4742
    %v7367 = vunpack.c.h.b16 %v4742
    %v7368 = vunpack.c.l.b16 %v4743
    %v7369 = vunpack.c.h.b16 %v4743
    %v7370 = vunpack.c.l.b16 %v4744
    %v7371 = vunpack.c.h.b16 %v4744
    %v7372 = vunpack.c.l.b16 %v4745
    %v7373 = vunpack.c.h.b16 %v4745
    %v7374 = vunpack.c.l.b16 %v4746
    %v7375 = vunpack.c.h.b16 %v4746
    %v7376 = vunpack.c.l.b16 %v4747
    %v7377 = vunpack.c.h.b16 %v4747
    %v7378 = vunpack.c.l.b16 %v4748
    %v7379 = vunpack.c.h.b16 %v4748
    %v7380 = vunpack.c.l.b16 %v4749
    %v7381 = vunpack.c.h.b16 %v4749
    %v7382 = vunpack.c.l.b16 %v4750
    %v7383 = vunpack.c.h.b16 %v4750
    %v7384 = vunpack.c.l.b16 %v4751
    %v7385 = vunpack.c.h.b16 %v4751
    %v7386 = vunpack.c.l.b16 %v4752
    %v7387 = vunpack.c.h.b16 %v4752
    %v7388 = vunpack.c.l.b16 %v4753
    %v7389 = vunpack.c.h.b16 %v4753
    %v7390 = vunpack.c.l.b16 %v4754
    %v7391 = vunpack.c.h.b16 %v4754
    %v7392 = vunpack.c.l.b16 %v4755
    %v7393 = vunpack.c.h.b16 %v4755
    %v7394 = vunpack.c.l.b16 %v4756
    %v7395 = vunpack.c.h.b16 %v4756
    %v7396 = vunpack.c.l.b16 %v4757
    %v7397 = vunpack.c.h.b16 %v4757
    %v7398 = vunpack.c.l.b16 %v4758
    %v7399 = vunpack.c.h.b16 %v4758
    %v7400 = vunpack.c.l.b16 %v4759
    %v7401 = vunpack.c.h.b16 %v4759
    %v7402 = vunpack.c.l.b16 %v4760
    %v7403 = vunpack.c.h.b16 %v4760
    %v7404 = vunpack.c.l.b16 %v4761
    %v7405 = vunpack.c.h.b16 %v4761
    %v7406 = vunpack.c.l.b16 %v4762
    %v7407 = vunpack.c.h.b16 %v4762
    %v7408 = vunpack.c.l.b16 %v4763
    %v7409 = vunpack.c.h.b16 %v4763
    %v7410 = vunpack.c.l.b16 %v4764
    %v7411 = vunpack.c.h.b16 %v4764
    %v7412 = vunpack.c.l.b16 %v4765
    %v7413 = vunpack.c.h.b16 %v4765
    %v7414 = vunpack.c.l.b16 %v4766
    %v7415 = vunpack.c.h.b16 %v4766
    %v7416 = vunpack.c.l.b16 %v4767
    %v7417 = vunpack.c.h.b16 %v4767
    %v7418 = vunpack.c.l.b16 %v4768
    %v7419 = vunpack.c.h.b16 %v4768
    %v7420 = vunpack.c.l.b16 %v4769
    %v7421 = vunpack.c.h.b16 %v4769
    %v7422 = vunpack.c.l.b16 %v4770
    %v7423 = vunpack.c.h.b16 %v4770
    %v7424 = vunpack.c.l.b16 %v4771
    %v7425 = vunpack.c.h.b16 %v4771
    %v7426 = vunpack.c.l.b16 %v4772
    %v7427 = vunpack.c.h.b16 %v4772
    %v7428 = vunpack.c.l.b16 %v4773
    %v7429 = vunpack.c.h.b16 %v4773
    %v7430 = vunpack.c.l.b16 %v4774
    %v7431 = vunpack.c.h.b16 %v4774
    %v7432 = vunpack.c.l.b16 %v4775
    %v7433 = vunpack.c.h.b16 %v4775
    %v7434 = vunpack.c.l.b16 %v4776
    %v7435 = vunpack.c.h.b16 %v4776
    %v7436 = vunpack.c.l.b16 %v4777
    %v7437 = vunpack.c.h.b16 %v4777
    %v7438 = vunpack.c.l.b16 %v4778
    %v7439 = vunpack.c.h.b16 %v4778
    %v7440 = vunpack.c.l.b16 %v4779
    %v7441 = vunpack.c.h.b16 %v4779
    %v7442 = vunpack.c.l.b16 %v4780
    %v7443 = vunpack.c.h.b16 %v4780
    %v7444 = vunpack.c.l.b16 %v4781
    %v7445 = vunpack.c.h.b16 %v4781
    %v7446 = vunpack.c.l.b16 %v4782
    %v7447 = vunpack.c.h.b16 %v4782
    %v7448 = vunpack.c.l.b16 %v4783
    %v7449 = vunpack.c.h.b16 %v4783
    %v7450 = vunpack.c.l.b16 %v4784
    %v7451 = vunpack.c.h.b16 %v4784
    %v7452 = vunpack.c.l.b16 %v4785
    %v7453 = vunpack.c.h.b16 %v4785
    %v7454 = vunpack.c.l.b16 %v4786
    %v7455 = vunpack.c.h.b16 %v4786
    %v7456 = vunpack.c.l.b16 %v4787
    %v7457 = vunpack.c.h.b16 %v4787
    %v7458 = vunpack.c.l.b16 %v4788
    %v7459 = vunpack.c.h.b16 %v4788
    %v7460 = vunpack.c.l.b16 %v4789
    %v7461 = vunpack.c.h.b16 %v4789
    %v7462 = vunpack.c.l.b16 %v4790
    %v7463 = vunpack.c.h.b16 %v4790
    %v7464 = vunpack.c.l.b16 %v4791
    %v7465 = vunpack.c.h.b16 %v4791
    %v7466 = vunpack.c.l.b16 %v4792
    %v7467 = vunpack.c.h.b16 %v4792
    %v7468 = vunpack.c.l.b16 %v4793
    %v7469 = vunpack.c.h.b16 %v4793
    %v7470 = vunpack.c.l.b16 %v4794
    %v7471 = vunpack.c.h.b16 %v4794
    %v7472 = vunpack.c.l.b16 %v4795
    %v7473 = vunpack.c.h.b16 %v4795
    %v7474 = vunpack.c.l.b16 %v4796
    %v7475 = vunpack.c.h.b16 %v4796
    %v7476 = vunpack.c.l.b16 %v4797
    %v7477 = vunpack.c.h.b16 %v4797
    %v7478 = vunpack.c.l.b16 %v4798
    %v7479 = vunpack.c.h.b16 %v4798
    %v7480 = vunpack.c.l.b16 %v4799
    %v7481 = vunpack.c.h.b16 %v4799
    %v7482 = vunpack.c.l.b16 %v4800
    %v7483 = vunpack.c.h.b16 %v4800
    %v7484 = vunpack.c.l.b16 %v4801
    %v7485 = vunpack.c.h.b16 %v4801
    %v7486 = vunpack.c.l.b16 %v4802
    %v7487 = vunpack.c.h.b16 %v4802
    %v7488 = vunpack.c.l.b16 %v4803
    %v7489 = vunpack.c.h.b16 %v4803
    %v7490 = vunpack.c.l.b16 %v4804
    %v7491 = vunpack.c.h.b16 %v4804
    %v7492 = vunpack.c.l.b16 %v4805
    %v7493 = vunpack.c.h.b16 %v4805
    %v7494 = vunpack.c.l.b16 %v4806
    %v7495 = vunpack.c.h.b16 %v4806
    %v7496 = vunpack.c.l.b16 %v4807
    %v7497 = vunpack.c.h.b16 %v4807
    %v7498 = vunpack.c.l.b16 %v4808
    %v7499 = vunpack.c.h.b16 %v4808
    %v7500 = vunpack.c.l.b16 %v4809
    %v7501 = vunpack.c.h.b16 %v4809
    %v7502 = vunpack.c.l.b16 %v4810
    %v7503 = vunpack.c.h.b16 %v4810
    %v7504 = vunpack.c.l.b16 %v4811
    %v7505 = vunpack.c.h.b16 %v4811
    %v7506 = vunpack.c.l.b16 %v4812
    %v7507 = vunpack.c.h.b16 %v4812
    %v7508 = vunpack.c.l.b16 %v4813
    %v7509 = vunpack.c.h.b16 %v4813
    %v7510 = vunpack.c.l.b16 %v4814
    %v7511 = vunpack.c.h.b16 %v4814
    %v7512 = vunpack.c.l.b16 %v4815
    %v7513 = vunpack.c.h.b16 %v4815
    %v7514 = vunpack.c.l.b16 %v4816
    %v7515 = vunpack.c.h.b16 %v4816
    %v7516 = vunpack.c.l.b16 %v4817
    %v7517 = vunpack.c.h.b16 %v4817
    %v7518 = vunpack.c.l.b16 %v4818
    %v7519 = vunpack.c.h.b16 %v4818
    %v7520 = vunpack.c.l.b16 %v4819
    %v7521 = vunpack.c.h.b16 %v4819
    %v7522 = vunpack.c.l.b16 %v4820
    %v7523 = vunpack.c.h.b16 %v4820
    %v7524 = vunpack.c.l.b16 %v4821
    %v7525 = vunpack.c.h.b16 %v4821
    %v7526 = vunpack.c.l.b16 %v4822
    %v7527 = vunpack.c.h.b16 %v4822
    %v7528 = vunpack.c.l.b16 %v4823
    %v7529 = vunpack.c.h.b16 %v4823
    %v7530 = vunpack.c.l.b16 %v4824
    %v7531 = vunpack.c.h.b16 %v4824
    %v7532 = vunpack.c.l.b16 %v4825
    %v7533 = vunpack.c.h.b16 %v4825
    %v7534 = vunpack.c.l.b16 %v4826
    %v7535 = vunpack.c.h.b16 %v4826
    %v7536 = vunpack.c.l.b16 %v4827
    %v7537 = vunpack.c.h.b16 %v4827
    %v7538 = vunpack.c.l.b16 %v4828
    %v7539 = vunpack.c.h.b16 %v4828
    %v7540 = vunpack.c.l.b16 %v4829
    %v7541 = vunpack.c.h.b16 %v4829
    %v7542 = vunpack.c.l.b16 %v4830
    %v7543 = vunpack.c.h.b16 %v4830
    %v7544 = vunpack.c.l.b16 %v4831
    %v7545 = vunpack.c.h.b16 %v4831
    %v7546 = vunpack.c.l.b16 %v4832
    %v7547 = vunpack.c.h.b16 %v4832
    %v7548 = vunpack.c.l.b16 %v4833
    %v7549 = vunpack.c.h.b16 %v4833
    %v7550 = vunpack.c.l.b16 %v4834
    %v7551 = vunpack.c.h.b16 %v4834
    %v7552 = vunpack.c.l.b16 %v4835
    %v7553 = vunpack.c.h.b16 %v4835
    %v7554 = vunpack.c.l.b16 %v4836
    %v7555 = vunpack.c.h.b16 %v4836
    %v7556 = vunpack.c.l.b16 %v4837
    %v7557 = vunpack.c.h.b16 %v4837
    %v7558 = vunpack.c.l.b16 %v4838
    %v7559 = vunpack.c.h.b16 %v4838
    %v7560 = vunpack.c.l.b16 %v4839
    %v7561 = vunpack.c.h.b16 %v4839
    %v7562 = vunpack.c.l.b16 %v4840
    %v7563 = vunpack.c.h.b16 %v4840
    %v7564 = vunpack.c.l.b16 %v4841
    %v7565 = vunpack.c.h.b16 %v4841
    %v7566 = vunpack.c.l.b16 %v4842
    %v7567 = vunpack.c.h.b16 %v4842
    %v7568 = vunpack.c.l.b16 %v4843
    %v7569 = vunpack.c.h.b16 %v4843
    %v7570 = vunpack.c.l.b16 %v4844
    %v7571 = vunpack.c.h.b16 %v4844
    %v7572 = vunpack.c.l.b16 %v4845
    %v7573 = vunpack.c.h.b16 %v4845
    %v7574 = vunpack.c.l.b16 %v4846
    %v7575 = vunpack.c.h.b16 %v4846
    %v7576 = vunpack.c.l.b16 %v4847
    %v7577 = vunpack.c.h.b16 %v4847
    %v7578 = vunpack.c.l.b16 %v4848
    %v7579 = vunpack.c.h.b16 %v4848
    %v7580 = vunpack.c.l.b16 %v4849
    %v7581 = vunpack.c.h.b16 %v4849
    %v7582 = vunpack.c.l.b16 %v4850
    %v7583 = vunpack.c.h.b16 %v4850
    %v7584 = vunpack.c.l.b16 %v4851
    %v7585 = vunpack.c.h.b16 %v4851
    %v7586 = vunpack.c.l.b16 %v4852
    %v7587 = vunpack.c.h.b16 %v4852
    %v7588 = vunpack.c.l.b16 %v4853
    %v7589 = vunpack.c.h.b16 %v4853
    %v7590 = vunpack.c.l.b16 %v4854
    %v7591 = vunpack.c.h.b16 %v4854
    %v7592 = vunpack.c.l.b16 %v4855
    %v7593 = vunpack.c.h.b16 %v4855
    %v7594 = vunpack.c.l.b16 %v4856
    %v7595 = vunpack.c.h.b16 %v4856
    %v7596 = vunpack.c.l.b16 %v4857
    %v7597 = vunpack.c.h.b16 %v4857
    %v7598 = vunpack.c.l.b16 %v4858
    %v7599 = vunpack.c.h.b16 %v4858
    %v7600 = vunpack.c.l.b16 %v4859
    %v7601 = vunpack.c.h.b16 %v4859
    %v7602 = vunpack.c.l.b16 %v4860
    %v7603 = vunpack.c.h.b16 %v4860
    %v7604 = vunpack.c.l.b16 %v4861
    %v7605 = vunpack.c.h.b16 %v4861
    %v7606 = vunpack.c.l.b16 %v4862
    %v7607 = vunpack.c.h.b16 %v4862
    %v7608 = vunpack.c.l.b16 %v4863
    %v7609 = vunpack.c.h.b16 %v4863
    %v7610 = vunpack.c.l.b16 %v4864
    %v7611 = vunpack.c.h.b16 %v4864
    %v7612 = vunpack.c.l.b16 %v4865
    %v7613 = vunpack.c.h.b16 %v4865
    %v7614 = vunpack.c.l.b16 %v4866
    %v7615 = vunpack.c.h.b16 %v4866
    %v7616 = vunpack.c.l.b16 %v4867
    %v7617 = vunpack.c.h.b16 %v4867
    %v7618 = vunpack.c.l.b16 %v4868
    %v7619 = vunpack.c.h.b16 %v4868
    %v7620 = vunpack.c.l.b16 %v4869
    %v7621 = vunpack.c.h.b16 %v4869
    %v7622 = vunpack.c.l.b16 %v4870
    %v7623 = vunpack.c.h.b16 %v4870
    %v7624 = vunpack.c.l.b16 %v4871
    %v7625 = vunpack.c.h.b16 %v4871
    %v7626 = vunpack.c.l.b16 %v4872
    %v7627 = vunpack.c.h.b16 %v4872
    %v7628 = vunpack.c.l.b16 %v4873
    %v7629 = vunpack.c.h.b16 %v4873
    %v7630 = vunpack.c.l.b16 %v4874
    %v7631 = vunpack.c.h.b16 %v4874
    %v7632 = vunpack.c.l.b16 %v4875
    %v7633 = vunpack.c.h.b16 %v4875
    %v7634 = vunpack.c.l.b16 %v4876
    %v7635 = vunpack.c.h.b16 %v4876
    %v7636 = vunpack.c.l.b16 %v4877
    %v7637 = vunpack.c.h.b16 %v4877
    %v7638 = vunpack.c.l.b16 %v4878
    %v7639 = vunpack.c.h.b16 %v4878
    %v7640 = vunpack.c.l.b16 %v4879
    %v7641 = vunpack.c.h.b16 %v4879
    %v7642 = vunpack.c.l.b16 %v4880
    %v7643 = vunpack.c.h.b16 %v4880
    %v7644 = vunpack.c.l.b16 %v4881
    %v7645 = vunpack.c.h.b16 %v4881
    %v7646 = vunpack.c.l.b16 %v4882
    %v7647 = vunpack.c.h.b16 %v4882
    %v7648 = vunpack.c.l.b16 %v4883
    %v7649 = vunpack.c.h.b16 %v4883
    %v7650 = vunpack.c.l.b16 %v4884
    %v7651 = vunpack.c.h.b16 %v4884
    %v7652 = vunpack.c.l.b16 %v4885
    %v7653 = vunpack.c.h.b16 %v4885
    %v7654 = vunpack.c.l.b16 %v4886
    %v7655 = vunpack.c.h.b16 %v4886
    %v7656 = vunpack.c.l.b16 %v4887
    %v7657 = vunpack.c.h.b16 %v4887
    %v7658 = vunpack.c.l.b16 %v4888
    %v7659 = vunpack.c.h.b16 %v4888
    %v7660 = vunpack.c.l.b16 %v4889
    %v7661 = vunpack.c.h.b16 %v4889
    %v7662 = vunpack.c.l.b16 %v4890
    %v7663 = vunpack.c.h.b16 %v4890
    %v7664 = vunpack.c.l.b16 %v4891
    %v7665 = vunpack.c.h.b16 %v4891
    %v7666 = vunpack.c.l.b16 %v4892
    %v7667 = vunpack.c.h.b16 %v4892
    %v7668 = vunpack.c.l.b16 %v4893
    %v7669 = vunpack.c.h.b16 %v4893
    %v7670 = vunpack.c.l.b16 %v4894
    %v7671 = vunpack.c.h.b16 %v4894
    %v7672 = vunpack.c.l.b16 %v4895
    %v7673 = vunpack.c.h.b16 %v4895
    %v7674 = vunpack.c.l.b16 %v4896
    %v7675 = vunpack.c.h.b16 %v4896
    %v7676 = vunpack.c.l.b16 %v4897
    %v7677 = vunpack.c.h.b16 %v4897
    %v7678 = vunpack.c.l.b16 %v4898
    %v7679 = vunpack.c.h.b16 %v4898
    %v7680 = vunpack.c.l.b16 %v4899
    %v7681 = vunpack.c.h.b16 %v4899
    %v7682 = vunpack.c.l.b16 %v4900
    %v7683 = vunpack.c.h.b16 %v4900
    %v7684 = vunpack.c.l.b16 %v4901
    %v7685 = vunpack.c.h.b16 %v4901
    %v7686 = vunpack.c.l.b16 %v4902
    %v7687 = vunpack.c.h.b16 %v4902
    %v7688 = vunpack.c.l.b16 %v4903
    %v7689 = vunpack.c.h.b16 %v4903
    %v7690 = vunpack.c.l.b16 %v4904
    %v7691 = vunpack.c.h.b16 %v4904
    %v7692 = vunpack.c.l.b16 %v4905
    %v7693 = vunpack.c.h.b16 %v4905
    %v7694 = vunpack.c.l.b16 %v4906
    %v7695 = vunpack.c.h.b16 %v4906
    %v7696 = vunpack.c.l.b16 %v4907
    %v7697 = vunpack.c.h.b16 %v4907
    %v7698 = vunpack.c.l.b16 %v4908
    %v7699 = vunpack.c.h.b16 %v4908
    %v7700 = vunpack.c.l.b16 %v4909
    %v7701 = vunpack.c.h.b16 %v4909
    %v7702 = vunpack.c.l.b16 %v4910
    %v7703 = vunpack.c.h.b16 %v4910
    %v7704 = vunpack.c.l.b16 %v4911
    %v7705 = vunpack.c.h.b16 %v4911
    %v7706 = vunpack.c.l.b16 %v4912
    %v7707 = vunpack.c.h.b16 %v4912
    %v7708 = vunpack.c.l.b16 %v4913
    %v7709 = vunpack.c.h.b16 %v4913
    %v7710 = vunpack.c.l.b16 %v4914
    %v7711 = vunpack.c.h.b16 %v4914
    %v7712 = vunpack.c.l.b16 %v4915
    %v7713 = vunpack.c.h.b16 %v4915
    %v7714 = vunpack.c.l.b16 %v4916
    %v7715 = vunpack.c.h.b16 %v4916
    %v7716 = vunpack.c.l.b16 %v4917
    %v7717 = vunpack.c.h.b16 %v4917
    %v7718 = vunpack.c.l.b16 %v4918
    %v7719 = vunpack.c.h.b16 %v4918
    %v7720 = vunpack.c.l.b16 %v4919
    %v7721 = vunpack.c.h.b16 %v4919
    %v7722 = vunpack.c.l.b16 %v4920
    %v7723 = vunpack.c.h.b16 %v4920
    %v7724 = vunpack.c.l.b16 %v4921
    %v7725 = vunpack.c.h.b16 %v4921
    %v7726 = vunpack.c.l.b16 %v4922
    %v7727 = vunpack.c.h.b16 %v4922
    %v7728 = vunpack.c.l.b16 %v4923
    %v7729 = vunpack.c.h.b16 %v4923
    %v7730 = vunpack.c.l.b16 %v4924
    %v7731 = vunpack.c.h.b16 %v4924
    %v7732 = vunpack.c.l.b16 %v4925
    %v7733 = vunpack.c.h.b16 %v4925
    %v7734 = vunpack.c.l.b16 %v4926
    %v7735 = vunpack.c.h.b16 %v4926
    %v7736 = vunpack.c.l.b16 %v4927
    %v7737 = vunpack.c.h.b16 %v4927
    %v7738 = vunpack.c.l.b16 %v4928
    %v7739 = vunpack.c.h.b16 %v4928
    %v7740 = vunpack.c.l.b16 %v4929
    %v7741 = vunpack.c.h.b16 %v4929
    %v7742 = vunpack.c.l.b16 %v4930
    %v7743 = vunpack.c.h.b16 %v4930
    %v7744 = vunpack.c.l.b16 %v4931
    %v7745 = vunpack.c.h.b16 %v4931
    %v7746 = vunpack.c.l.b16 %v4932
    %v7747 = vunpack.c.h.b16 %v4932
    %v7748 = vunpack.c.l.b16 %v4933
    %v7749 = vunpack.c.h.b16 %v4933
    %v7750 = vunpack.c.l.b16 %v4934
    %v7751 = vunpack.c.h.b16 %v4934
    %v7752 = vunpack.c.l.b16 %v4935
    %v7753 = vunpack.c.h.b16 %v4935
    %v7754 = vunpack.c.l.b16 %v4936
    %v7755 = vunpack.c.h.b16 %v4936
    %v7756 = vunpack.c.l.b16 %v4937
    %v7757 = vunpack.c.h.b16 %v4937
    %v7758 = vunpack.c.l.b16 %v4938
    %v7759 = vunpack.c.h.b16 %v4938
    %v7760 = vunpack.c.l.b16 %v4939
    %v7761 = vunpack.c.h.b16 %v4939
    %v7762 = vunpack.c.l.b16 %v4940
    %v7763 = vunpack.c.h.b16 %v4940
    %v7764 = vunpack.c.l.b16 %v4941
    %v7765 = vunpack.c.h.b16 %v4941
    %v7766 = vunpack.c.l.b16 %v4942
    %v7767 = vunpack.c.h.b16 %v4942
    %v7768 = vunpack.c.l.b16 %v4943
    %v7769 = vunpack.c.h.b16 %v4943
    %v7770 = vunpack.c.l.b16 %v4944
    %v7771 = vunpack.c.h.b16 %v4944
    %v7772 = vunpack.c.l.b16 %v4945
    %v7773 = vunpack.c.h.b16 %v4945
    %v7774 = vunpack.c.l.b16 %v4946
    %v7775 = vunpack.c.h.b16 %v4946
    %v7776 = vunpack.c.l.b16 %v4947
    %v7777 = vunpack.c.h.b16 %v4947
    %v7778 = vunpack.c.l.b16 %v4948
    %v7779 = vunpack.c.h.b16 %v4948
    %v7780 = vunpack.c.l.b16 %v4949
    %v7781 = vunpack.c.h.b16 %v4949
    %v7782 = vunpack.c.l.b16 %v4950
    %v7783 = vunpack.c.h.b16 %v4950
    %v7784 = vunpack.c.l.b16 %v4951
    %v7785 = vunpack.c.h.b16 %v4951
    %v7786 = vunpack.c.l.b16 %v4952
    %v7787 = vunpack.c.h.b16 %v4952
    %v7788 = vunpack.c.l.b16 %v4953
    %v7789 = vunpack.c.h.b16 %v4953
    %v7790 = vunpack.c.l.b16 %v4954
    %v7791 = vunpack.c.h.b16 %v4954
    %v7792 = vunpack.c.l.b16 %v4955
    %v7793 = vunpack.c.h.b16 %v4955
    %v7794 = vunpack.c.l.b16 %v4956
    %v7795 = vunpack.c.h.b16 %v4956
    %v7796 = vunpack.c.l.b16 %v4957
    %v7797 = vunpack.c.h.b16 %v4957
    %v7798 = vunpack.c.l.b16 %v4958
    %v7799 = vunpack.c.h.b16 %v4958
    %v7800 = vunpack.c.l.b16 %v4959
    %v7801 = vunpack.c.h.b16 %v4959
    %v7802 = vunpack.c.l.b16 %v4960
    %v7803 = vunpack.c.h.b16 %v4960
    %v7804 = vunpack.c.l.b16 %v4961
    %v7805 = vunpack.c.h.b16 %v4961
    %v7806 = vunpack.c.l.b16 %v4962
    %v7807 = vunpack.c.h.b16 %v4962
    %v7808 = vunpack.c.l.b16 %v4963
    %v7809 = vunpack.c.h.b16 %v4963
    %v7810 = vunpack.c.l.b16 %v4964
    %v7811 = vunpack.c.h.b16 %v4964
    %v7812 = vunpack.c.l.b16 %v4965
    %v7813 = vunpack.c.h.b16 %v4965
    %v7814 = vunpack.c.l.b16 %v4966
    %v7815 = vunpack.c.h.b16 %v4966
    %v7816 = vunpack.c.l.b16 %v4967
    %v7817 = vunpack.c.h.b16 %v4967
    %v7818 = vunpack.c.l.b16 %v4968
    %v7819 = vunpack.c.h.b16 %v4968
    %v7820 = vunpack.c.l.b16 %v4969
    %v7821 = vunpack.c.h.b16 %v4969
    %v7822 = vunpack.c.l.b16 %v4970
    %v7823 = vunpack.c.h.b16 %v4970
    %v7824 = vunpack.c.l.b16 %v4971
    %v7825 = vunpack.c.h.b16 %v4971
    %v7826 = vunpack.c.l.b16 %v4972
    %v7827 = vunpack.c.h.b16 %v4972
    %v7828 = vunpack.c.l.b16 %v4973
    %v7829 = vunpack.c.h.b16 %v4973
    %v7830 = vunpack.c.l.b16 %v4974
    %v7831 = vunpack.c.h.b16 %v4974
    %v7832 = vunpack.c.l.b16 %v4975
    %v7833 = vunpack.c.h.b16 %v4975
    %v7834 = vunpack.c.l.b16 %v4976
    %v7835 = vunpack.c.h.b16 %v4976
    %v7836 = vunpack.c.l.b16 %v4977
    %v7837 = vunpack.c.h.b16 %v4977
    %v7838 = vunpack.c.l.b16 %v4978
    %v7839 = vunpack.c.h.b16 %v4978
    %v7840 = vunpack.c.l.b16 %v4979
    %v7841 = vunpack.c.h.b16 %v4979
    %v7842 = vunpack.c.l.b16 %v4980
    %v7843 = vunpack.c.h.b16 %v4980
    %v7844 = vunpack.c.l.b16 %v4981
    %v7845 = vunpack.c.h.b16 %v4981
    %v7846 = vunpack.c.l.b16 %v4982
    %v7847 = vunpack.c.h.b16 %v4982
    %v7848 = vunpack.c.l.b16 %v4983
    %v7849 = vunpack.c.h.b16 %v4983
    %v7850 = vunpack.c.l.b16 %v4984
    %v7851 = vunpack.c.h.b16 %v4984
    %v7852 = vunpack.c.l.b16 %v4985
    %v7853 = vunpack.c.h.b16 %v4985
    %v7854 = vunpack.c.l.b16 %v4986
    %v7855 = vunpack.c.h.b16 %v4986
    %v7856 = vunpack.c.l.b16 %v4987
    %v7857 = vunpack.c.h.b16 %v4987
    %v7858 = vunpack.c.l.b16 %v4988
    %v7859 = vunpack.c.h.b16 %v4988
    %v7860 = vunpack.c.l.b16 %v4989
    %v7861 = vunpack.c.h.b16 %v4989
    %v7862 = vunpack.c.l.b16 %v4990
    %v7863 = vunpack.c.h.b16 %v4990
    %v7864 = vunpack.c.l.b16 %v4991
    %v7865 = vunpack.c.h.b16 %v4991
    %v7866 = vunpack.c.l.b16 %v4992
    %v7867 = vunpack.c.h.b16 %v4992
    %v7868 = vunpack.c.l.b16 %v4993
    %v7869 = vunpack.c.h.b16 %v4993
    %v7870 = vunpack.c.l.b16 %v4994
    %v7871 = vunpack.c.h.b16 %v4994
    %v7872 = vunpack.c.l.b16 %v4995
    %v7873 = vunpack.c.h.b16 %v4995
    %v7874 = vunpack.c.l.b16 %v4996
    %v7875 = vunpack.c.h.b16 %v4996
    %v7876 = vunpack.c.l.b16 %v4997
    %v7877 = vunpack.c.h.b16 %v4997
    %v7878 = vunpack.c.l.b16 %v4998
    %v7879 = vunpack.c.h.b16 %v4998
    %v7880 = vunpack.c.l.b16 %v4999
    %v7881 = vunpack.c.h.b16 %v4999
    %v7882 = vunpack.c.l.b16 %v5000
    %v7883 = vunpack.c.h.b16 %v5000
    %v7884 = vunpack.c.l.b16 %v5001
    %v7885 = vunpack.c.h.b16 %v5001
    %v7886 = vunpack.c.l.b16 %v5002
    %v7887 = vunpack.c.h.b16 %v5002
    %v7888 = vunpack.c.l.b16 %v5003
    %v7889 = vunpack.c.h.b16 %v5003
    %v7890 = vunpack.c.l.b16 %v5004
    %v7891 = vunpack.c.h.b16 %v5004
    %v7892 = vunpack.c.l.b16 %v5005
    %v7893 = vunpack.c.h.b16 %v5005
    %v7894 = vunpack.c.l.b16 %v5006
    %v7895 = vunpack.c.h.b16 %v5006
    %v7896 = vunpack.c.l.b16 %v5007
    %v7897 = vunpack.c.h.b16 %v5007
    %v7898 = vunpack.c.l.b16 %v5008
    %v7899 = vunpack.c.h.b16 %v5008
    %v7900 = vunpack.c.l.b16 %v5009
    %v7901 = vunpack.c.h.b16 %v5009
    %v7902 = vunpack.c.l.b16 %v5010
    %v7903 = vunpack.c.h.b16 %v5010
    %v7904 = vunpack.c.l.b16 %v5011
    %v7905 = vunpack.c.h.b16 %v5011
    %v7906 = vunpack.c.l.b16 %v5012
    %v7907 = vunpack.c.h.b16 %v5012
    %v7908 = vunpack.c.l.b16 %v5013
    %v7909 = vunpack.c.h.b16 %v5013
    %v7910 = vunpack.c.l.b16 %v5014
    %v7911 = vunpack.c.h.b16 %v5014
    %v7912 = vunpack.c.l.b16 %v5015
    %v7913 = vunpack.c.h.b16 %v5015
    %v7914 = vunpack.c.l.b16 %v5016
    %v7915 = vunpack.c.h.b16 %v5016
    %v7916 = vunpack.c.l.b16 %v5017
    %v7917 = vunpack.c.h.b16 %v5017
    %v7918 = vunpack.c.l.b16 %v5018
    %v7919 = vunpack.c.h.b16 %v5018
    %v7920 = vunpack.c.l.b16 %v5019
    %v7921 = vunpack.c.h.b16 %v5019
    %v7922 = vunpack.c.l.b16 %v5020
    %v7923 = vunpack.c.h.b16 %v5020
    %v7924 = vunpack.c.l.b16 %v5021
    %v7925 = vunpack.c.h.b16 %v5021
    %v7926 = vunpack.c.l.b16 %v5022
    %v7927 = vunpack.c.h.b16 %v5022
    %v7928 = vunpack.c.l.b16 %v5023
    %v7929 = vunpack.c.h.b16 %v5023
    %v7930 = vunpack.c.l.b16 %v5024
    %v7931 = vunpack.c.h.b16 %v5024
    %v7932 = vunpack.c.l.b16 %v5025
    %v7933 = vunpack.c.h.b16 %v5025
    %v7934 = vunpack.c.l.b16 %v5026
    %v7935 = vunpack.c.h.b16 %v5026
    %v7936 = vunpack.c.l.b16 %v5027
    %v7937 = vunpack.c.h.b16 %v5027
    %v7938 = vunpack.c.l.b16 %v5028
    %v7939 = vunpack.c.h.b16 %v5028
    %v7940 = vunpack.c.l.b16 %v5029
    %v7941 = vunpack.c.h.b16 %v5029
    %v7942 = vunpack.c.l.b16 %v5030
    %v7943 = vunpack.c.h.b16 %v5030
    %v7944 = vunpack.c.l.b16 %v5031
    %v7945 = vunpack.c.h.b16 %v5031
    %v7946 = vunpack.c.l.b16 %v5032
    %v7947 = vunpack.c.h.b16 %v5032
    %v7948 = vunpack.c.l.b16 %v5033
    %v7949 = vunpack.c.h.b16 %v5033
    %v7950 = vunpack.c.l.b16 %v5034
    %v7951 = vunpack.c.h.b16 %v5034
    %v7952 = vunpack.c.l.b16 %v5035
    %v7953 = vunpack.c.h.b16 %v5035
    %v7954 = vunpack.c.l.b16 %v5036
    %v7955 = vunpack.c.h.b16 %v5036
    %v7956 = vunpack.c.l.b16 %v5037
    %v7957 = vunpack.c.h.b16 %v5037
    %v7958 = vunpack.c.l.b16 %v5038
    %v7959 = vunpack.c.h.b16 %v5038
    %v7960 = vunpack.c.l.b16 %v5039
    %v7961 = vunpack.c.h.b16 %v5039
    %v7962 = vunpack.c.l.b16 %v5040
    %v7963 = vunpack.c.h.b16 %v5040
    %v7964 = vunpack.c.l.b16 %v5041
    %v7965 = vunpack.c.h.b16 %v5041
    %v7966 = vunpack.c.l.b16 %v5042
    %v7967 = vunpack.c.h.b16 %v5042
    %v7968 = vunpack.c.l.b16 %v5043
    %v7969 = vunpack.c.h.b16 %v5043
    %v7970 = vunpack.c.l.b16 %v5044
    %v7971 = vunpack.c.h.b16 %v5044
    %v7972 = vunpack.c.l.b16 %v5045
    %v7973 = vunpack.c.h.b16 %v5045
    %v7974 = vunpack.c.l.b16 %v5046
    %v7975 = vunpack.c.h.b16 %v5046
    %v7976 = vunpack.c.l.b16 %v5047
    %v7977 = vunpack.c.h.b16 %v5047
    %v7978 = vunpack.c.l.b16 %v5048
    %v7979 = vunpack.c.h.b16 %v5048
    %v7980 = vunpack.c.l.b16 %v5049
    %v7981 = vunpack.c.h.b16 %v5049
    %v7982 = vunpack.c.l.b16 %v5050
    %v7983 = vunpack.c.h.b16 %v5050
    %v7984 = vunpack.c.l.b16 %v5051
    %v7985 = vunpack.c.h.b16 %v5051
    %v7986 = vunpack.c.l.b16 %v5052
    %v7987 = vunpack.c.h.b16 %v5052
    %v7988 = vunpack.c.l.b16 %v5053
    %v7989 = vunpack.c.h.b16 %v5053
    %v7990 = vunpack.c.l.b16 %v5054
    %v7991 = vunpack.c.h.b16 %v5054
    %v7992 = vunpack.c.l.b16 %v5055
    %v7993 = vunpack.c.h.b16 %v5055
    %v7994 = vunpack.c.l.b16 %v5056
    %v7995 = vunpack.c.h.b16 %v5056
    %v7996 = vunpack.c.l.b16 %v5057
    %v7997 = vunpack.c.h.b16 %v5057
    %v7998 = vunpack.c.l.b16 %v5058
    %v7999 = vunpack.c.h.b16 %v5058
    %v8000 = vunpack.c.l.b16 %v5059
    %v8001 = vunpack.c.h.b16 %v5059
    %v8002 = vunpack.c.l.b16 %v5060
    %v8003 = vunpack.c.h.b16 %v5060
    %v8004 = vunpack.c.l.b16 %v5061
    %v8005 = vunpack.c.h.b16 %v5061
    %v8006 = vunpack.c.l.b16 %v5062
    %v8007 = vunpack.c.h.b16 %v5062
    %v8008 = vunpack.c.l.b16 %v5063
    %v8009 = vunpack.c.h.b16 %v5063
    %v8010 = vunpack.c.l.b16 %v5064
    %v8011 = vunpack.c.h.b16 %v5064
    %v8012 = vunpack.c.l.b16 %v5065
    %v8013 = vunpack.c.h.b16 %v5065
    %v8014 = vunpack.c.l.b16 %v5066
    %v8015 = vunpack.c.h.b16 %v5066
    %v8016 = vunpack.c.l.b16 %v5067
    %v8017 = vunpack.c.h.b16 %v5067
    %v8018 = vunpack.c.l.b16 %v5068
    %v8019 = vunpack.c.h.b16 %v5068
    %v8020 = vunpack.c.l.b16 %v5069
    %v8021 = vunpack.c.h.b16 %v5069
    %v8022 = vunpack.c.l.b16 %v5070
    %v8023 = vunpack.c.h.b16 %v5070
    %v8024 = vunpack.c.l.b16 %v5071
    %v8025 = vunpack.c.h.b16 %v5071
    %v8026 = vunpack.c.l.b16 %v5072
    %v8027 = vunpack.c.h.b16 %v5072
    %v8028 = vunpack.c.l.b16 %v5073
    %v8029 = vunpack.c.h.b16 %v5073
    %v8030 = vunpack.c.l.b16 %v5074
    %v8031 = vunpack.c.h.b16 %v5074
    %v8032 = vunpack.c.l.b16 %v5075
    %v8033 = vunpack.c.h.b16 %v5075
    %v8034 = vunpack.c.l.b16 %v5076
    %v8035 = vunpack.c.h.b16 %v5076
    %v8036 = vunpack.c.l.b16 %v5077
    %v8037 = vunpack.c.h.b16 %v5077
    %v8038 = vunpack.c.l.b16 %v5078
    %v8039 = vunpack.c.h.b16 %v5078
    %v8040 = vunpack.c.l.b16 %v5079
    %v8041 = vunpack.c.h.b16 %v5079
    %v8042 = vunpack.c.l.b16 %v5080
    %v8043 = vunpack.c.h.b16 %v5080
    %v8044 = vunpack.c.l.b16 %v5081
    %v8045 = vunpack.c.h.b16 %v5081
    %v8046 = vunpack.c.l.b16 %v5082
    %v8047 = vunpack.c.h.b16 %v5082
    %v8048 = vunpack.c.l.b16 %v5083
    %v8049 = vunpack.c.h.b16 %v5083
    %v8050 = vunpack.c.l.b16 %v5084
    %v8051 = vunpack.c.h.b16 %v5084
    %v8052 = vunpack.c.l.b16 %v5085
    %v8053 = vunpack.c.h.b16 %v5085
    %v8054 = vunpack.c.l.b16 %v5086
    %v8055 = vunpack.c.h.b16 %v5086
    %v8056 = vunpack.c.l.b16 %v5087
    %v8057 = vunpack.c.h.b16 %v5087
    %v8058 = vunpack.c.l.b16 %v5088
    %v8059 = vunpack.c.h.b16 %v5088
    %v8060 = vunpack.c.l.b16 %v5089
    %v8061 = vunpack.c.h.b16 %v5089
    %v8062 = vunpack.c.l.b16 %v5090
    %v8063 = vunpack.c.h.b16 %v5090
    %v8064 = vunpack.c.l.b16 %v5091
    %v8065 = vunpack.c.h.b16 %v5091
    %v8066 = vunpack.c.l.b16 %v5092
    %v8067 = vunpack.c.h.b16 %v5092
    %v8068 = vunpack.c.l.b16 %v5093
    %v8069 = vunpack.c.h.b16 %v5093
    %v8070 = vunpack.c.l.b16 %v5094
    %v8071 = vunpack.c.h.b16 %v5094
    %v8072 = vunpack.c.l.b16 %v5095
    %v8073 = vunpack.c.h.b16 %v5095
    %v8074 = vunpack.c.l.b16 %v5096
    %v8075 = vunpack.c.h.b16 %v5096
    %v8076 = vunpack.c.l.b16 %v5097
    %v8077 = vunpack.c.h.b16 %v5097
    %v8078 = vunpack.c.l.b16 %v5098
    %v8079 = vunpack.c.h.b16 %v5098
    %v8080 = vunpack.c.l.b16 %v5099
    %v8081 = vunpack.c.h.b16 %v5099
    %v8082 = vunpack.c.l.b16 %v5100
    %v8083 = vunpack.c.h.b16 %v5100
    %v8084 = vunpack.c.l.b16 %v5101
    %v8085 = vunpack.c.h.b16 %v5101
    %v8086 = vunpack.c.l.b16 %v5102
    %v8087 = vunpack.c.h.b16 %v5102
    %v8088 = vunpack.c.l.b16 %v5103
    %v8089 = vunpack.c.h.b16 %v5103
    %v8090 = vunpack.c.l.b16 %v5104
    %v8091 = vunpack.c.h.b16 %v5104
    %v8092 = vunpack.c.l.b16 %v5105
    %v8093 = vunpack.c.h.b16 %v5105
    %v8094 = vunpack.c.l.b16 %v5106
    %v8095 = vunpack.c.h.b16 %v5106
    %v8096 = vunpack.c.l.b16 %v5107
    %v8097 = vunpack.c.h.b16 %v5107
    %v8098 = vunpack.c.l.b16 %v5108
    %v8099 = vunpack.c.h.b16 %v5108
    %v8100 = vunpack.c.l.b16 %v5109
    %v8101 = vunpack.c.h.b16 %v5109
    %v8102 = vunpack.c.l.b16 %v5110
    %v8103 = vunpack.c.h.b16 %v5110
    %v8104 = vunpack.c.l.b16 %v5111
    %v8105 = vunpack.c.h.b16 %v5111
    %v8106 = vunpack.c.l.b16 %v5112
    %v8107 = vunpack.c.h.b16 %v5112
    %v8108 = vunpack.c.l.b16 %v5113
    %v8109 = vunpack.c.h.b16 %v5113
    %v8110 = vunpack.c.l.b16 %v5114
    %v8111 = vunpack.c.h.b16 %v5114
    %v8112 = vunpack.c.l.b16 %v5115
    %v8113 = vunpack.c.h.b16 %v5115
    %v8114 = vunpack.c.l.b16 %v5116
    %v8115 = vunpack.c.h.b16 %v5116
    %v8116 = vunpack.c.l.b16 %v5117
    %v8117 = vunpack.c.h.b16 %v5117
    %v8118 = vunpack.c.l.b16 %v5118
    %v8119 = vunpack.c.h.b16 %v5118
    %v8120 = vunpack.c.l.b16 %v5119
    %v8121 = vunpack.c.h.b16 %v5119
    %v8122 = vunpack.c.l.b16 %v5120
    %v8123 = vunpack.c.h.b16 %v5120
    %v8124 = vunpack.c.l.b16 %v5121
    %v8125 = vunpack.c.h.b16 %v5121
    %v8126 = vunpack.c.l.b16 %v5122
    %v8127 = vunpack.c.h.b16 %v5122
    %v8128 = vunpack.c.l.b16 %v5123
    %v8129 = vunpack.c.h.b16 %v5123
    %v8130 = vunpack.c.l.b16 %v5124
    %v8131 = vunpack.c.h.b16 %v5124
    %v8132 = vunpack.c.l.b16 %v5125
    %v8133 = vunpack.c.h.b16 %v5125
    %v8134 = vunpack.c.l.b16 %v5126
    %v8135 = vunpack.c.h.b16 %v5126
    %v8136 = vunpack.c.l.b16 %v5127
    %v8137 = vunpack.c.h.b16 %v5127
    %v8138 = vunpack.c.l.b16 %v5128
    %v8139 = vunpack.c.h.b16 %v5128
    %v8140 = vunpack.c.l.b16 %v5129
    %v8141 = vunpack.c.h.b16 %v5129
    %v8142 = vunpack.c.l.b16 %v5130
    %v8143 = vunpack.c.h.b16 %v5130
    %v8144 = vunpack.c.l.b16 %v5131
    %v8145 = vunpack.c.h.b16 %v5131
    %v8146 = vunpack.c.l.b16 %v5132
    %v8147 = vunpack.c.h.b16 %v5132
    %v8148 = vunpack.c.l.b16 %v5133
    %v8149 = vunpack.c.h.b16 %v5133
    %v8150 = vunpack.c.l.b16 %v5134
    %v8151 = vunpack.c.h.b16 %v5134
    %v8152 = vunpack.c.l.b16 %v5135
    %v8153 = vunpack.c.h.b16 %v5135
    %v8154 = vunpack.c.l.b16 %v5136
    %v8155 = vunpack.c.h.b16 %v5136
    %v8156 = vunpack.c.l.b16 %v5137
    %v8157 = vunpack.c.h.b16 %v5137
    %v8158 = vunpack.c.l.b16 %v5138
    %v8159 = vunpack.c.h.b16 %v5138
    %v8160 = vunpack.c.l.b16 %v5139
    %v8161 = vunpack.c.h.b16 %v5139
    %v8162 = vunpack.c.l.b16 %v5140
    %v8163 = vunpack.c.h.b16 %v5140
    %v8164 = vunpack.c.l.b16 %v5141
    %v8165 = vunpack.c.h.b16 %v5141
    %v8166 = vunpack.c.l.b16 %v5142
    %v8167 = vunpack.c.h.b16 %v5142
    %v8168 = vunpack.c.l.b16 %v5143
    %v8169 = vunpack.c.h.b16 %v5143
    %v8170 = vunpack.c.l.b16 %v5144
    %v8171 = vunpack.c.h.b16 %v5144
    %v8172 = vunpack.c.l.b16 %v5145
    %v8173 = vunpack.c.h.b16 %v5145
    %v8174 = vunpack.c.l.b16 %v5146
    %v8175 = vunpack.c.h.b16 %v5146
    %v8176 = vunpack.c.l.b16 %v5147
    %v8177 = vunpack.c.h.b16 %v5147
    %v8178 = vunpack.c.l.b16 %v5148
    %v8179 = vunpack.c.h.b16 %v5148
    %v8180 = vunpack.c.l.b16 %v5149
    %v8181 = vunpack.c.h.b16 %v5149
    %v8182 = vunpack.c.l.b16 %v5150
    %v8183 = vunpack.c.h.b16 %v5150
    %v8184 = vunpack.c.l.b16 %v5151
    %v8185 = vunpack.c.h.b16 %v5151
    %v8186 = vunpack.c.l.b16 %v5152
    %v8187 = vunpack.c.h.b16 %v5152
    %v8188 = vunpack.c.l.b16 %v5153
    %v8189 = vunpack.c.h.b16 %v5153
    %v8190 = vunpack.c.l.b16 %v5154
    %v8191 = vunpack.c.h.b16 %v5154
    %v8192 = vunpack.c.l.b16 %v5155
    %v8193 = vunpack.c.h.b16 %v5155
    %v8194 = vunpack.c.l.b16 %v5156
    %v8195 = vunpack.c.h.b16 %v5156
    %v8196 = vunpack.c.l.b16 %v5157
    %v8197 = vunpack.c.h.b16 %v5157
    %v8198 = vunpack.c.l.b16 %v5158
    %v8199 = vunpack.c.h.b16 %v5158
    %v8200 = vunpack.c.l.b16 %v5159
    %v8201 = vunpack.c.h.b16 %v5159
    %v8202 = vunpack.c.l.b16 %v5160
    %v8203 = vunpack.c.h.b16 %v5160
    %v8204 = vunpack.c.l.b16 %v5161
    %v8205 = vunpack.c.h.b16 %v5161
    %v8206 = vunpack.c.l.b16 %v5162
    %v8207 = vunpack.c.h.b16 %v5162
    %v8208 = vunpack.c.l.b16 %v5163
    %v8209 = vunpack.c.h.b16 %v5163
    %v8210 = vunpack.c.l.b16 %v5164
    %v8211 = vunpack.c.h.b16 %v5164
    %v8212 = vunpack.c.l.b16 %v5165
    %v8213 = vunpack.c.h.b16 %v5165
    %v8214 = vunpack.c.l.b16 %v5166
    %v8215 = vunpack.c.h.b16 %v5166
    %v8216 = vunpack.c.l.b16 %v5167
    %v8217 = vunpack.c.h.b16 %v5167
    %v8218 = vunpack.c.l.b16 %v5168
    %v8219 = vunpack.c.h.b16 %v5168
    %v8220 = vunpack.c.l.b16 %v5169
    %v8221 = vunpack.c.h.b16 %v5169
    %v8222 = vunpack.c.l.b16 %v5170
    %v8223 = vunpack.c.h.b16 %v5170
    %v8224 = vunpack.c.l.b16 %v5171
    %v8225 = vunpack.c.h.b16 %v5171
    %v8226 = vunpack.c.l.b16 %v5172
    %v8227 = vunpack.c.h.b16 %v5172
    %v8228 = vunpack.c.l.b16 %v5173
    %v8229 = vunpack.c.h.b16 %v5173
    %v8230 = vunpack.c.l.b16 %v5174
    %v8231 = vunpack.c.h.b16 %v5174
    %v8232 = vunpack.c.l.b16 %v5175
    %v8233 = vunpack.c.h.b16 %v5175
    %v8234 = vunpack.c.l.b16 %v5176
    %v8235 = vunpack.c.h.b16 %v5176
    %v8236 = vunpack.c.l.b16 %v5177
    %v8237 = vunpack.c.h.b16 %v5177
    %v8238 = vunpack.c.l.b16 %v5178
    %v8239 = vunpack.c.h.b16 %v5178
    %v8240 = vunpack.c.l.b16 %v5179
    %v8241 = vunpack.c.h.b16 %v5179
    %v8242 = vunpack.c.l.b16 %v5180
    %v8243 = vunpack.c.h.b16 %v5180
    %v8244 = vunpack.c.l.b16 %v5181
    %v8245 = vunpack.c.h.b16 %v5181
    %v8246 = vunpack.c.l.b16 %v5182
    %v8247 = vunpack.c.h.b16 %v5182
    %v8248 = vunpack.c.l.b16 %v5183
    %v8249 = vunpack.c.h.b16 %v5183
    %v8250 = vunpack.c.l.b16 %v5184
    %v8251 = vunpack.c.h.b16 %v5184
    %v8252 = vunpack.c.l.b16 %v5185
    %v8253 = vunpack.c.h.b16 %v5185
    %v8254 = vunpack.c.l.b16 %v5186
    %v8255 = vunpack.c.h.b16 %v5186
    %v8256 = vunpack.c.l.b16 %v5187
    %v8257 = vunpack.c.h.b16 %v5187
    %v8258 = vunpack.c.l.b16 %v5188
    %v8259 = vunpack.c.h.b16 %v5188
    %v8260 = vunpack.c.l.b16 %v5189
    %v8261 = vunpack.c.h.b16 %v5189
    %v8262 = vpack.c.b16 %v6230, %v6214
    %v8263 = vpack.c.b16 %v6231, %v6215
    %v8264 = vpack.c.b16 %v6232, %v6216
    %v8265 = vpack.c.b16 %v6233, %v6217
    %v8266 = vpack.c.b16 %v6234, %v6218
    %v8267 = vpack.c.b16 %v6235, %v6219
    %v8268 = vpack.c.b16 %v6236, %v6220
    %v8269 = vpack.c.b16 %v6237, %v6221
    %v8270 = vpack.c.b16 %v6238, %v6222
    %v8271 = vpack.c.b16 %v6239, %v6223
    %v8272 = vpack.c.b16 %v6240, %v6224
    %v8273 = vpack.c.b16 %v6241, %v6225
    %v8274 = vpack.c.b16 %v6242, %v6226
    %v8275 = vpack.c.b16 %v6243, %v6227
    %v8276 = vpack.c.b16 %v6244, %v6228
    %v8277 = vpack.c.b16 %v6245, %v6229
    %v8278 = vpack.c.b16 %v6262, %v6246
    %v8279 = vpack.c.b16 %v6263, %v6247
    %v8280 = vpack.c.b16 %v6264, %v6248
    %v8281 = vpack.c.b16 %v6265, %v6249
    %v8282 = vpack.c.b16 %v6266, %v6250
    %v8283 = vpack.c.b16 %v6267, %v6251
    %v8284 = vpack.c.b16 %v6268, %v6252
    %v8285 = vpack.c.b16 %v6269, %v6253
    %v8286 = vpack.c.b16 %v6270, %v6254
    %v8287 = vpack.c.b16 %v6271, %v6255
    %v8288 = vpack.c.b16 %v6272, %v6256
    %v8289 = vpack.c.b16 %v6273, %v6257
    %v8290 = vpack.c.b16 %v6274, %v6258
    %v8291 = vpack.c.b16 %v6275, %v6259
    %v8292 = vpack.c.b16 %v6276, %v6260
    %v8293 = vpack.c.b16 %v6277, %v6261
    %v8294 = vpack.c.b16 %v6294, %v6278
    %v8295 = vpack.c.b16 %v6295, %v6279
    %v8296 = vpack.c.b16 %v6296, %v6280
    %v8297 = vpack.c.b16 %v6297, %v6281
    %v8298 = vpack.c.b16 %v6298, %v6282
    %v8299 = vpack.c.b16 %v6299, %v6283
    %v8300 = vpack.c.b16 %v6300, %v6284
    %v8301 = vpack.c.b16 %v6301, %v6285
    %v8302 = vpack.c.b16 %v6302, %v6286
    %v8303 = vpack.c.b16 %v6303, %v6287
    %v8304 = vpack.c.b16 %v6304, %v6288
    %v8305 = vpack.c.b16 %v6305, %v6289
    %v8306 = vpack.c.b16 %v6306, %v6290
    %v8307 = vpack.c.b16 %v6307, %v6291
    %v8308 = vpack.c.b16 %v6308, %v6292
    %v8309 = vpack.c.b16 %v6309, %v6293
    %v8310 = vpack.c.b16 %v6326, %v6310
    %v8311 = vpack.c.b16 %v6327, %v6311
    %v8312 = vpack.c.b16 %v6328, %v6312
    %v8313 = vpack.c.b16 %v6329, %v6313
    %v8314 = vpack.c.b16 %v6330, %v6314
    %v8315 = vpack.c.b16 %v6331, %v6315
    %v8316 = vpack.c.b16 %v6332, %v6316
    %v8317 = vpack.c.b16 %v6333, %v6317
    %v8318 = vpack.c.b16 %v6334, %v6318
    %v8319 = vpack.c.b16 %v6335, %v6319
    %v8320 = vpack.c.b16 %v6336, %v6320
    %v8321 = vpack.c.b16 %v6337, %v6321
    %v8322 = vpack.c.b16 %v6338, %v6322
    %v8323 = vpack.c.b16 %v6339, %v6323
    %v8324 = vpack.c.b16 %v6340, %v6324
    %v8325 = vpack.c.b16 %v6341, %v6325
    %v8326 = vpack.c.b16 %v6358, %v6342
    %v8327 = vpack.c.b16 %v6359, %v6343
    %v8328 = vpack.c.b16 %v6360, %v6344
    %v8329 = vpack.c.b16 %v6361, %v6345
    %v8330 = vpack.c.b16 %v6362, %v6346
    %v8331 = vpack.c.b16 %v6363, %v6347
    %v8332 = vpack.c.b16 %v6364, %v6348
    %v8333 = vpack.c.b16 %v6365, %v6349
    %v8334 = vpack.c.b16 %v6366, %v6350
    %v8335 = vpack.c.b16 %v6367, %v6351
    %v8336 = vpack.c.b16 %v6368, %v6352
    %v8337 = vpack.c.b16 %v6369, %v6353
    %v8338 = vpack.c.b16 %v6370, %v6354
    %v8339 = vpack.c.b16 %v6371, %v6355
    %v8340 = vpack.c.b16 %v6372, %v6356
    %v8341 = vpack.c.b16 %v6373, %v6357
    %v8342 = vpack.c.b16 %v6390, %v6374
    %v8343 = vpack.c.b16 %v6391, %v6375
    %v8344 = vpack.c.b16 %v6392, %v6376
    %v8345 = vpack.c.b16 %v6393, %v6377
    %v8346 = vpack.c.b16 %v6394, %v6378
    %v8347 = vpack.c.b16 %v6395, %v6379
    %v8348 = vpack.c.b16 %v6396, %v6380
    %v8349 = vpack.c.b16 %v6397, %v6381
    %v8350 = vpack.c.b16 %v6398, %v6382
    %v8351 = vpack.c.b16 %v6399, %v6383
    %v8352 = vpack.c.b16 %v6400, %v6384
    %v8353 = vpack.c.b16 %v6401, %v6385
    %v8354 = vpack.c.b16 %v6402, %v6386
    %v8355 = vpack.c.b16 %v6403, %v6387
    %v8356 = vpack.c.b16 %v6404, %v6388
    %v8357 = vpack.c.b16 %v6405, %v6389
    %v8358 = vpack.c.b16 %v6422, %v6406
    %v8359 = vpack.c.b16 %v6423, %v6407
    %v8360 = vpack.c.b16 %v6424, %v6408
    %v8361 = vpack.c.b16 %v6425, %v6409
    %v8362 = vpack.c.b16 %v6426, %v6410
    %v8363 = vpack.c.b16 %v6427, %v6411
    %v8364 = vpack.c.b16 %v6428, %v6412
    %v8365 = vpack.c.b16 %v6429, %v6413
    %v8366 = vpack.c.b16 %v6430, %v6414
    %v8367 = vpack.c.b16 %v6431, %v6415
    %v8368 = vpack.c.b16 %v6432, %v6416
    %v8369 = vpack.c.b16 %v6433, %v6417
    %v8370 = vpack.c.b16 %v6434, %v6418
    %v8371 = vpack.c.b16 %v6435, %v6419
    %v8372 = vpack.c.b16 %v6436, %v6420
    %v8373 = vpack.c.b16 %v6437, %v6421
    %v8374 = vpack.c.b16 %v6454, %v6438
    %v8375 = vpack.c.b16 %v6455, %v6439
    %v8376 = vpack.c.b16 %v6456, %v6440
    %v8377 = vpack.c.b16 %v6457, %v6441
    %v8378 = vpack.c.b16 %v6458, %v6442
    %v8379 = vpack.c.b16 %v6459, %v6443
    %v8380 = vpack.c.b16 %v6460, %v6444
    %v8381 = vpack.c.b16 %v6461, %v6445
    %v8382 = vpack.c.b16 %v6462, %v6446
    %v8383 = vpack.c.b16 %v6463, %v6447
    %v8384 = vpack.c.b16 %v6464, %v6448
    %v8385 = vpack.c.b16 %v6465, %v6449
    %v8386 = vpack.c.b16 %v6466, %v6450
    %v8387 = vpack.c.b16 %v6467, %v6451
    %v8388 = vpack.c.b16 %v6468, %v6452
    %v8389 = vpack.c.b16 %v6469, %v6453
    %v8390 = vpack.c.b16 %v6486, %v6470
    %v8391 = vpack.c.b16 %v6487, %v6471
    %v8392 = vpack.c.b16 %v6488, %v6472
    %v8393 = vpack.c.b16 %v6489, %v6473
    %v8394 = vpack.c.b16 %v6490, %v6474
    %v8395 = vpack.c.b16 %v6491, %v6475
    %v8396 = vpack.c.b16 %v6492, %v6476
    %v8397 = vpack.c.b16 %v6493, %v6477
    %v8398 = vpack.c.b16 %v6494, %v6478
    %v8399 = vpack.c.b16 %v6495, %v6479
    %v8400 = vpack.c.b16 %v6496, %v6480
    %v8401 = vpack.c.b16 %v6497, %v6481
    %v8402 = vpack.c.b16 %v6498, %v6482
    %v8403 = vpack.c.b16 %v6499, %v6483
    %v8404 = vpack.c.b16 %v6500, %v6484
    %v8405 = vpack.c.b16 %v6501, %v6485
    %v8406 = vpack.c.b16 %v6518, %v6502
    %v8407 = vpack.c.b16 %v6519, %v6503
    %v8408 = vpack.c.b16 %v6520, %v6504
    %v8409 = vpack.c.b16 %v6521, %v6505
    %v8410 = vpack.c.b16 %v6522, %v6506
    %v8411 = vpack.c.b16 %v6523, %v6507
    %v8412 = vpack.c.b16 %v6524, %v6508
    %v8413 = vpack.c.b16 %v6525, %v6509
    %v8414 = vpack.c.b16 %v6526, %v6510
    %v8415 = vpack.c.b16 %v6527, %v6511
    %v8416 = vpack.c.b16 %v6528, %v6512
    %v8417 = vpack.c.b16 %v6529, %v6513
    %v8418 = vpack.c.b16 %v6530, %v6514
    %v8419 = vpack.c.b16 %v6531, %v6515
    %v8420 = vpack.c.b16 %v6532, %v6516
    %v8421 = vpack.c.b16 %v6533, %v6517
    %v8422 = vpack.c.b16 %v6550, %v6534
    %v8423 = vpack.c.b16 %v6551, %v6535
    %v8424 = vpack.c.b16 %v6552, %v6536
    %v8425 = vpack.c.b16 %v6553, %v6537
    %v8426 = vpack.c.b16 %v6554, %v6538
    %v8427 = vpack.c.b16 %v6555, %v6539
    %v8428 = vpack.c.b16 %v6556, %v6540
    %v8429 = vpack.c.b16 %v6557, %v6541
    %v8430 = vpack.c.b16 %v6558, %v6542
    %v8431 = vpack.c.b16 %v6559, %v6543
    %v8432 = vpack.c.b16 %v6560, %v6544
    %v8433 = vpack.c.b16 %v6561, %v6545
    %v8434 = vpack.c.b16 %v6562, %v6546
    %v8435 = vpack.c.b16 %v6563, %v6547
    %v8436 = vpack.c.b16 %v6564, %v6548
    %v8437 = vpack.c.b16 %v6565, %v6549
    %v8438 = vpack.c.b16 %v6582, %v6566
    %v8439 = vpack.c.b16 %v6583, %v6567
    %v8440 = vpack.c.b16 %v6584, %v6568
    %v8441 = vpack.c.b16 %v6585, %v6569
    %v8442 = vpack.c.b16 %v6586, %v6570
    %v8443 = vpack.c.b16 %v6587, %v6571
    %v8444 = vpack.c.b16 %v6588, %v6572
    %v8445 = vpack.c.b16 %v6589, %v6573
    %v8446 = vpack.c.b16 %v6590, %v6574
    %v8447 = vpack.c.b16 %v6591, %v6575
    %v8448 = vpack.c.b16 %v6592, %v6576
    %v8449 = vpack.c.b16 %v6593, %v6577
    %v8450 = vpack.c.b16 %v6594, %v6578
    %v8451 = vpack.c.b16 %v6595, %v6579
    %v8452 = vpack.c.b16 %v6596, %v6580
    %v8453 = vpack.c.b16 %v6597, %v6581
    %v8454 = vpack.c.b16 %v6614, %v6598
    %v8455 = vpack.c.b16 %v6615, %v6599
    %v8456 = vpack.c.b16 %v6616, %v6600
    %v8457 = vpack.c.b16 %v6617, %v6601
    %v8458 = vpack.c.b16 %v6618, %v6602
    %v8459 = vpack.c.b16 %v6619, %v6603
    %v8460 = vpack.c.b16 %v6620, %v6604
    %v8461 = vpack.c.b16 %v6621, %v6605
    %v8462 = vpack.c.b16 %v6622, %v6606
    %v8463 = vpack.c.b16 %v6623, %v6607
    %v8464 = vpack.c.b16 %v6624, %v6608
    %v8465 = vpack.c.b16 %v6625, %v6609
    %v8466 = vpack.c.b16 %v6626, %v6610
    %v8467 = vpack.c.b16 %v6627, %v6611
    %v8468 = vpack.c.b16 %v6628, %v6612
    %v8469 = vpack.c.b16 %v6629, %v6613
    %v8470 = vpack.c.b16 %v6646, %v6630
    %v8471 = vpack.c.b16 %v6647, %v6631
    %v8472 = vpack.c.b16 %v6648, %v6632
    %v8473 = vpack.c.b16 %v6649, %v6633
    %v8474 = vpack.c.b16 %v6650, %v6634
    %v8475 = vpack.c.b16 %v6651, %v6635
    %v8476 = vpack.c.b16 %v6652, %v6636
    %v8477 = vpack.c.b16 %v6653, %v6637
    %v8478 = vpack.c.b16 %v6654, %v6638
    %v8479 = vpack.c.b16 %v6655, %v6639
    %v8480 = vpack.c.b16 %v6656, %v6640
    %v8481 = vpack.c.b16 %v6657, %v6641
    %v8482 = vpack.c.b16 %v6658, %v6642
    %v8483 = vpack.c.b16 %v6659, %v6643
    %v8484 = vpack.c.b16 %v6660, %v6644
    %v8485 = vpack.c.b16 %v6661, %v6645
    %v8486 = vpack.c.b16 %v6678, %v6662
    %v8487 = vpack.c.b16 %v6679, %v6663
    %v8488 = vpack.c.b16 %v6680, %v6664
    %v8489 = vpack.c.b16 %v6681, %v6665
    %v8490 = vpack.c.b16 %v6682, %v6666
    %v8491 = vpack.c.b16 %v6683, %v6667
    %v8492 = vpack.c.b16 %v6684, %v6668
    %v8493 = vpack.c.b16 %v6685, %v6669
    %v8494 = vpack.c.b16 %v6686, %v6670
    %v8495 = vpack.c.b16 %v6687, %v6671
    %v8496 = vpack.c.b16 %v6688, %v6672
    %v8497 = vpack.c.b16 %v6689, %v6673
    %v8498 = vpack.c.b16 %v6690, %v6674
    %v8499 = vpack.c.b16 %v6691, %v6675
    %v8500 = vpack.c.b16 %v6692, %v6676
    %v8501 = vpack.c.b16 %v6693, %v6677
    %v8502 = vpack.c.b16 %v6710, %v6694
    %v8503 = vpack.c.b16 %v6711, %v6695
    %v8504 = vpack.c.b16 %v6712, %v6696
    %v8505 = vpack.c.b16 %v6713, %v6697
    %v8506 = vpack.c.b16 %v6714, %v6698
    %v8507 = vpack.c.b16 %v6715, %v6699
    %v8508 = vpack.c.b16 %v6716, %v6700
    %v8509 = vpack.c.b16 %v6717, %v6701
    %v8510 = vpack.c.b16 %v6718, %v6702
    %v8511 = vpack.c.b16 %v6719, %v6703
    %v8512 = vpack.c.b16 %v6720, %v6704
    %v8513 = vpack.c.b16 %v6721, %v6705
    %v8514 = vpack.c.b16 %v6722, %v6706
    %v8515 = vpack.c.b16 %v6723, %v6707
    %v8516 = vpack.c.b16 %v6724, %v6708
    %v8517 = vpack.c.b16 %v6725, %v6709
    %v8518 = vpack.c.b16 %v6742, %v6726
    %v8519 = vpack.c.b16 %v6743, %v6727
    %v8520 = vpack.c.b16 %v6744, %v6728
    %v8521 = vpack.c.b16 %v6745, %v6729
    %v8522 = vpack.c.b16 %v6746, %v6730
    %v8523 = vpack.c.b16 %v6747, %v6731
    %v8524 = vpack.c.b16 %v6748, %v6732
    %v8525 = vpack.c.b16 %v6749, %v6733
    %v8526 = vpack.c.b16 %v6750, %v6734
    %v8527 = vpack.c.b16 %v6751, %v6735
    %v8528 = vpack.c.b16 %v6752, %v6736
    %v8529 = vpack.c.b16 %v6753, %v6737
    %v8530 = vpack.c.b16 %v6754, %v6738
    %v8531 = vpack.c.b16 %v6755, %v6739
    %v8532 = vpack.c.b16 %v6756, %v6740
    %v8533 = vpack.c.b16 %v6757, %v6741
    %v8534 = vpack.c.b16 %v6774, %v6758
    %v8535 = vpack.c.b16 %v6775, %v6759
    %v8536 = vpack.c.b16 %v6776, %v6760
    %v8537 = vpack.c.b16 %v6777, %v6761
    %v8538 = vpack.c.b16 %v6778, %v6762
    %v8539 = vpack.c.b16 %v6779, %v6763
    %v8540 = vpack.c.b16 %v6780, %v6764
    %v8541 = vpack.c.b16 %v6781, %v6765
    %v8542 = vpack.c.b16 %v6782, %v6766
    %v8543 = vpack.c.b16 %v6783, %v6767
    %v8544 = vpack.c.b16 %v6784, %v6768
    %v8545 = vpack.c.b16 %v6785, %v6769
    %v8546 = vpack.c.b16 %v6786, %v6770
    %v8547 = vpack.c.b16 %v6787, %v6771
    %v8548 = vpack.c.b16 %v6788, %v6772
    %v8549 = vpack.c.b16 %v6789, %v6773
    %v8550 = vpack.c.b16 %v6806, %v6790
    %v8551 = vpack.c.b16 %v6807, %v6791
    %v8552 = vpack.c.b16 %v6808, %v6792
    %v8553 = vpack.c.b16 %v6809, %v6793
    %v8554 = vpack.c.b16 %v6810, %v6794
    %v8555 = vpack.c.b16 %v6811, %v6795
    %v8556 = vpack.c.b16 %v6812, %v6796
    %v8557 = vpack.c.b16 %v6813, %v6797
    %v8558 = vpack.c.b16 %v6814, %v6798
    %v8559 = vpack.c.b16 %v6815, %v6799
    %v8560 = vpack.c.b16 %v6816, %v6800
    %v8561 = vpack.c.b16 %v6817, %v6801
    %v8562 = vpack.c.b16 %v6818, %v6802
    %v8563 = vpack.c.b16 %v6819, %v6803
    %v8564 = vpack.c.b16 %v6820, %v6804
    %v8565 = vpack.c.b16 %v6821, %v6805
    %v8566 = vpack.c.b16 %v6838, %v6822
    %v8567 = vpack.c.b16 %v6839, %v6823
    %v8568 = vpack.c.b16 %v6840, %v6824
    %v8569 = vpack.c.b16 %v6841, %v6825
    %v8570 = vpack.c.b16 %v6842, %v6826
    %v8571 = vpack.c.b16 %v6843, %v6827
    %v8572 = vpack.c.b16 %v6844, %v6828
    %v8573 = vpack.c.b16 %v6845, %v6829
    %v8574 = vpack.c.b16 %v6846, %v6830
    %v8575 = vpack.c.b16 %v6847, %v6831
    %v8576 = vpack.c.b16 %v6848, %v6832
    %v8577 = vpack.c.b16 %v6849, %v6833
    %v8578 = vpack.c.b16 %v6850, %v6834
    %v8579 = vpack.c.b16 %v6851, %v6835
    %v8580 = vpack.c.b16 %v6852, %v6836
    %v8581 = vpack.c.b16 %v6853, %v6837
    %v8582 = vpack.c.b16 %v6870, %v6854
    %v8583 = vpack.c.b16 %v6871, %v6855
    %v8584 = vpack.c.b16 %v6872, %v6856
    %v8585 = vpack.c.b16 %v6873, %v6857
    %v8586 = vpack.c.b16 %v6874, %v6858
    %v8587 = vpack.c.b16 %v6875, %v6859
    %v8588 = vpack.c.b16 %v6876, %v6860
    %v8589 = vpack.c.b16 %v6877, %v6861
    %v8590 = vpack.c.b16 %v6878, %v6862
    %v8591 = vpack.c.b16 %v6879, %v6863
    %v8592 = vpack.c.b16 %v6880, %v6864
    %v8593 = vpack.c.b16 %v6881, %v6865
    %v8594 = vpack.c.b16 %v6882, %v6866
    %v8595 = vpack.c.b16 %v6883, %v6867
    %v8596 = vpack.c.b16 %v6884, %v6868
    %v8597 = vpack.c.b16 %v6885, %v6869
    %v8598 = vpack.c.b16 %v6902, %v6886
    %v8599 = vpack.c.b16 %v6903, %v6887
    %v8600 = vpack.c.b16 %v6904, %v6888
    %v8601 = vpack.c.b16 %v6905, %v6889
    %v8602 = vpack.c.b16 %v6906, %v6890
    %v8603 = vpack.c.b16 %v6907, %v6891
    %v8604 = vpack.c.b16 %v6908, %v6892
    %v8605 = vpack.c.b16 %v6909, %v6893
    %v8606 = vpack.c.b16 %v6910, %v6894
    %v8607 = vpack.c.b16 %v6911, %v6895
    %v8608 = vpack.c.b16 %v6912, %v6896
    %v8609 = vpack.c.b16 %v6913, %v6897
    %v8610 = vpack.c.b16 %v6914, %v6898
    %v8611 = vpack.c.b16 %v6915, %v6899
    %v8612 = vpack.c.b16 %v6916, %v6900
    %v8613 = vpack.c.b16 %v6917, %v6901
    %v8614 = vpack.c.b16 %v6934, %v6918
    %v8615 = vpack.c.b16 %v6935, %v6919
    %v8616 = vpack.c.b16 %v6936, %v6920
    %v8617 = vpack.c.b16 %v6937, %v6921
    %v8618 = vpack.c.b16 %v6938, %v6922
    %v8619 = vpack.c.b16 %v6939, %v6923
    %v8620 = vpack.c.b16 %v6940, %v6924
    %v8621 = vpack.c.b16 %v6941, %v6925
    %v8622 = vpack.c.b16 %v6942, %v6926
    %v8623 = vpack.c.b16 %v6943, %v6927
    %v8624 = vpack.c.b16 %v6944, %v6928
    %v8625 = vpack.c.b16 %v6945, %v6929
    %v8626 = vpack.c.b16 %v6946, %v6930
    %v8627 = vpack.c.b16 %v6947, %v6931
    %v8628 = vpack.c.b16 %v6948, %v6932
    %v8629 = vpack.c.b16 %v6949, %v6933
    %v8630 = vpack.c.b16 %v6966, %v6950
    %v8631 = vpack.c.b16 %v6967, %v6951
    %v8632 = vpack.c.b16 %v6968, %v6952
    %v8633 = vpack.c.b16 %v6969, %v6953
    %v8634 = vpack.c.b16 %v6970, %v6954
    %v8635 = vpack.c.b16 %v6971, %v6955
    %v8636 = vpack.c.b16 %v6972, %v6956
    %v8637 = vpack.c.b16 %v6973, %v6957
    %v8638 = vpack.c.b16 %v6974, %v6958
    %v8639 = vpack.c.b16 %v6975, %v6959
    %v8640 = vpack.c.b16 %v6976, %v6960
    %v8641 = vpack.c.b16 %v6977, %v6961
    %v8642 = vpack.c.b16 %v6978, %v6962
    %v8643 = vpack.c.b16 %v6979, %v6963
    %v8644 = vpack.c.b16 %v6980, %v6964
    %v8645 = vpack.c.b16 %v6981, %v6965
    %v8646 = vpack.c.b16 %v6998, %v6982
    %v8647 = vpack.c.b16 %v6999, %v6983
    %v8648 = vpack.c.b16 %v7000, %v6984
    %v8649 = vpack.c.b16 %v7001, %v6985
    %v8650 = vpack.c.b16 %v7002, %v6986
    %v8651 = vpack.c.b16 %v7003, %v6987
    %v8652 = vpack.c.b16 %v7004, %v6988
    %v8653 = vpack.c.b16 %v7005, %v6989
    %v8654 = vpack.c.b16 %v7006, %v6990
    %v8655 = vpack.c.b16 %v7007, %v6991
    %v8656 = vpack.c.b16 %v7008, %v6992
    %v8657 = vpack.c.b16 %v7009, %v6993
    %v8658 = vpack.c.b16 %v7010, %v6994
    %v8659 = vpack.c.b16 %v7011, %v6995
    %v8660 = vpack.c.b16 %v7012, %v6996
    %v8661 = vpack.c.b16 %v7013, %v6997
    %v8662 = vpack.c.b16 %v7030, %v7014
    %v8663 = vpack.c.b16 %v7031, %v7015
    %v8664 = vpack.c.b16 %v7032, %v7016
    %v8665 = vpack.c.b16 %v7033, %v7017
    %v8666 = vpack.c.b16 %v7034, %v7018
    %v8667 = vpack.c.b16 %v7035, %v7019
    %v8668 = vpack.c.b16 %v7036, %v7020
    %v8669 = vpack.c.b16 %v7037, %v7021
    %v8670 = vpack.c.b16 %v7038, %v7022
    %v8671 = vpack.c.b16 %v7039, %v7023
    %v8672 = vpack.c.b16 %v7040, %v7024
    %v8673 = vpack.c.b16 %v7041, %v7025
    %v8674 = vpack.c.b16 %v7042, %v7026
    %v8675 = vpack.c.b16 %v7043, %v7027
    %v8676 = vpack.c.b16 %v7044, %v7028
    %v8677 = vpack.c.b16 %v7045, %v7029
    %v8678 = vpack.c.b16 %v7062, %v7046
    %v8679 = vpack.c.b16 %v7063, %v7047
    %v8680 = vpack.c.b16 %v7064, %v7048
    %v8681 = vpack.c.b16 %v7065, %v7049
    %v8682 = vpack.c.b16 %v7066, %v7050
    %v8683 = vpack.c.b16 %v7067, %v7051
    %v8684 = vpack.c.b16 %v7068, %v7052
    %v8685 = vpack.c.b16 %v7069, %v7053
    %v8686 = vpack.c.b16 %v7070, %v7054
    %v8687 = vpack.c.b16 %v7071, %v7055
    %v8688 = vpack.c.b16 %v7072, %v7056
    %v8689 = vpack.c.b16 %v7073, %v7057
    %v8690 = vpack.c.b16 %v7074, %v7058
    %v8691 = vpack.c.b16 %v7075, %v7059
    %v8692 = vpack.c.b16 %v7076, %v7060
    %v8693 = vpack.c.b16 %v7077, %v7061
    %v8694 = vpack.c.b16 %v7094, %v7078
    %v8695 = vpack.c.b16 %v7095, %v7079
    %v8696 = vpack.c.b16 %v7096, %v7080
    %v8697 = vpack.c.b16 %v7097, %v7081
    %v8698 = vpack.c.b16 %v7098, %v7082
    %v8699 = vpack.c.b16 %v7099, %v7083
    %v8700 = vpack.c.b16 %v7100, %v7084
    %v8701 = vpack.c.b16 %v7101, %v7085
    %v8702 = vpack.c.b16 %v7102, %v7086
    %v8703 = vpack.c.b16 %v7103, %v7087
    %v8704 = vpack.c.b16 %v7104, %v7088
    %v8705 = vpack.c.b16 %v7105, %v7089
    %v8706 = vpack.c.b16 %v7106, %v7090
    %v8707 = vpack.c.b16 %v7107, %v7091
    %v8708 = vpack.c.b16 %v7108, %v7092
    %v8709 = vpack.c.b16 %v7109, %v7093
    %v8710 = vpack.c.b16 %v7126, %v7110
    %v8711 = vpack.c.b16 %v7127, %v7111
    %v8712 = vpack.c.b16 %v7128, %v7112
    %v8713 = vpack.c.b16 %v7129, %v7113
    %v8714 = vpack.c.b16 %v7130, %v7114
    %v8715 = vpack.c.b16 %v7131, %v7115
    %v8716 = vpack.c.b16 %v7132, %v7116
    %v8717 = vpack.c.b16 %v7133, %v7117
    %v8718 = vpack.c.b16 %v7134, %v7118
    %v8719 = vpack.c.b16 %v7135, %v7119
    %v8720 = vpack.c.b16 %v7136, %v7120
    %v8721 = vpack.c.b16 %v7137, %v7121
    %v8722 = vpack.c.b16 %v7138, %v7122
    %v8723 = vpack.c.b16 %v7139, %v7123
    %v8724 = vpack.c.b16 %v7140, %v7124
    %v8725 = vpack.c.b16 %v7141, %v7125
    %v8726 = vpack.c.b16 %v7158, %v7142
    %v8727 = vpack.c.b16 %v7159, %v7143
    %v8728 = vpack.c.b16 %v7160, %v7144
    %v8729 = vpack.c.b16 %v7161, %v7145
    %v8730 = vpack.c.b16 %v7162, %v7146
    %v8731 = vpack.c.b16 %v7163, %v7147
    %v8732 = vpack.c.b16 %v7164, %v7148
    %v8733 = vpack.c.b16 %v7165, %v7149
    %v8734 = vpack.c.b16 %v7166, %v7150
    %v8735 = vpack.c.b16 %v7167, %v7151
    %v8736 = vpack.c.b16 %v7168, %v7152
    %v8737 = vpack.c.b16 %v7169, %v7153
    %v8738 = vpack.c.b16 %v7170, %v7154
    %v8739 = vpack.c.b16 %v7171, %v7155
    %v8740 = vpack.c.b16 %v7172, %v7156
    %v8741 = vpack.c.b16 %v7173, %v7157
    %v8742 = vpack.c.b16 %v7190, %v7174
    %v8743 = vpack.c.b16 %v7191, %v7175
    %v8744 = vpack.c.b16 %v7192, %v7176
    %v8745 = vpack.c.b16 %v7193, %v7177
    %v8746 = vpack.c.b16 %v7194, %v7178
    %v8747 = vpack.c.b16 %v7195, %v7179
    %v8748 = vpack.c.b16 %v7196, %v7180
    %v8749 = vpack.c.b16 %v7197, %v7181
    %v8750 = vpack.c.b16 %v7198, %v7182
    %v8751 = vpack.c.b16 %v7199, %v7183
    %v8752 = vpack.c.b16 %v7200, %v7184
    %v8753 = vpack.c.b16 %v7201, %v7185
    %v8754 = vpack.c.b16 %v7202, %v7186
    %v8755 = vpack.c.b16 %v7203, %v7187
    %v8756 = vpack.c.b16 %v7204, %v7188
    %v8757 = vpack.c.b16 %v7205, %v7189
    %v8758 = vpack.c.b16 %v7222, %v7206
    %v8759 = vpack.c.b16 %v7223, %v7207
    %v8760 = vpack.c.b16 %v7224, %v7208
    %v8761 = vpack.c.b16 %v7225, %v7209
    %v8762 = vpack.c.b16 %v7226, %v7210
    %v8763 = vpack.c.b16 %v7227, %v7211
    %v8764 = vpack.c.b16 %v7228, %v7212
    %v8765 = vpack.c.b16 %v7229, %v7213
    %v8766 = vpack.c.b16 %v7230, %v7214
    %v8767 = vpack.c.b16 %v7231, %v7215
    %v8768 = vpack.c.b16 %v7232, %v7216
    %v8769 = vpack.c.b16 %v7233, %v7217
    %v8770 = vpack.c.b16 %v7234, %v7218
    %v8771 = vpack.c.b16 %v7235, %v7219
    %v8772 = vpack.c.b16 %v7236, %v7220
    %v8773 = vpack.c.b16 %v7237, %v7221
    %v8774 = vpack.c.b16 %v7254, %v7238
    %v8775 = vpack.c.b16 %v7255, %v7239
    %v8776 = vpack.c.b16 %v7256, %v7240
    %v8777 = vpack.c.b16 %v7257, %v7241
    %v8778 = vpack.c.b16 %v7258, %v7242
    %v8779 = vpack.c.b16 %v7259, %v7243
    %v8780 = vpack.c.b16 %v7260, %v7244
    %v8781 = vpack.c.b16 %v7261, %v7245
    %v8782 = vpack.c.b16 %v7262, %v7246
    %v8783 = vpack.c.b16 %v7263, %v7247
    %v8784 = vpack.c.b16 %v7264, %v7248
    %v8785 = vpack.c.b16 %v7265, %v7249
    %v8786 = vpack.c.b16 %v7266, %v7250
    %v8787 = vpack.c.b16 %v7267, %v7251
    %v8788 = vpack.c.b16 %v7268, %v7252
    %v8789 = vpack.c.b16 %v7269, %v7253
    %v8790 = vpack.c.b16 %v7286, %v7270
    %v8791 = vpack.c.b16 %v7287, %v7271
    %v8792 = vpack.c.b16 %v7288, %v7272
    %v8793 = vpack.c.b16 %v7289, %v7273
    %v8794 = vpack.c.b16 %v7290, %v7274
    %v8795 = vpack.c.b16 %v7291, %v7275
    %v8796 = vpack.c.b16 %v7292, %v7276
    %v8797 = vpack.c.b16 %v7293, %v7277
    %v8798 = vpack.c.b16 %v7294, %v7278
    %v8799 = vpack.c.b16 %v7295, %v7279
    %v8800 = vpack.c.b16 %v7296, %v7280
    %v8801 = vpack.c.b16 %v7297, %v7281
    %v8802 = vpack.c.b16 %v7298, %v7282
    %v8803 = vpack.c.b16 %v7299, %v7283
    %v8804 = vpack.c.b16 %v7300, %v7284
    %v8805 = vpack.c.b16 %v7301, %v7285
    %v8806 = vpack.c.b16 %v7318, %v7302
    %v8807 = vpack.c.b16 %v7319, %v7303
    %v8808 = vpack.c.b16 %v7320, %v7304
    %v8809 = vpack.c.b16 %v7321, %v7305
    %v8810 = vpack.c.b16 %v7322, %v7306
    %v8811 = vpack.c.b16 %v7323, %v7307
    %v8812 = vpack.c.b16 %v7324, %v7308
    %v8813 = vpack.c.b16 %v7325, %v7309
    %v8814 = vpack.c.b16 %v7326, %v7310
    %v8815 = vpack.c.b16 %v7327, %v7311
    %v8816 = vpack.c.b16 %v7328, %v7312
    %v8817 = vpack.c.b16 %v7329, %v7313
    %v8818 = vpack.c.b16 %v7330, %v7314
    %v8819 = vpack.c.b16 %v7331, %v7315
    %v8820 = vpack.c.b16 %v7332, %v7316
    %v8821 = vpack.c.b16 %v7333, %v7317
    %v8822 = vpack.c.b16 %v7350, %v7334
    %v8823 = vpack.c.b16 %v7351, %v7335
    %v8824 = vpack.c.b16 %v7352, %v7336
    %v8825 = vpack.c.b16 %v7353, %v7337
    %v8826 = vpack.c.b16 %v7354, %v7338
    %v8827 = vpack.c.b16 %v7355, %v7339
    %v8828 = vpack.c.b16 %v7356, %v7340
    %v8829 = vpack.c.b16 %v7357, %v7341
    %v8830 = vpack.c.b16 %v7358, %v7342
    %v8831 = vpack.c.b16 %v7359, %v7343
    %v8832 = vpack.c.b16 %v7360, %v7344
    %v8833 = vpack.c.b16 %v7361, %v7345
    %v8834 = vpack.c.b16 %v7362, %v7346
    %v8835 = vpack.c.b16 %v7363, %v7347
    %v8836 = vpack.c.b16 %v7364, %v7348
    %v8837 = vpack.c.b16 %v7365, %v7349
    %v8838 = vpack.c.b16 %v7382, %v7366
    %v8839 = vpack.c.b16 %v7383, %v7367
    %v8840 = vpack.c.b16 %v7384, %v7368
    %v8841 = vpack.c.b16 %v7385, %v7369
    %v8842 = vpack.c.b16 %v7386, %v7370
    %v8843 = vpack.c.b16 %v7387, %v7371
    %v8844 = vpack.c.b16 %v7388, %v7372
    %v8845 = vpack.c.b16 %v7389, %v7373
    %v8846 = vpack.c.b16 %v7390, %v7374
    %v8847 = vpack.c.b16 %v7391, %v7375
    %v8848 = vpack.c.b16 %v7392, %v7376
    %v8849 = vpack.c.b16 %v7393, %v7377
    %v8850 = vpack.c.b16 %v7394, %v7378
    %v8851 = vpack.c.b16 %v7395, %v7379
    %v8852 = vpack.c.b16 %v7396, %v7380
    %v8853 = vpack.c.b16 %v7397, %v7381
    %v8854 = vpack.c.b16 %v7414, %v7398
    %v8855 = vpack.c.b16 %v7415, %v7399
    %v8856 = vpack.c.b16 %v7416, %v7400
    %v8857 = vpack.c.b16 %v7417, %v7401
    %v8858 = vpack.c.b16 %v7418, %v7402
    %v8859 = vpack.c.b16 %v7419, %v7403
    %v8860 = vpack.c.b16 %v7420, %v7404
    %v8861 = vpack.c.b16 %v7421, %v7405
    %v8862 = vpack.c.b16 %v7422, %v7406
    %v8863 = vpack.c.b16 %v7423, %v7407
    %v8864 = vpack.c.b16 %v7424, %v7408
    %v8865 = vpack.c.b16 %v7425, %v7409
    %v8866 = vpack.c.b16 %v7426, %v7410
    %v8867 = vpack.c.b16 %v7427, %v7411
    %v8868 = vpack.c.b16 %v7428, %v7412
    %v8869 = vpack.c.b16 %v7429, %v7413
    %v8870 = vpack.c.b16 %v7446, %v7430
    %v8871 = vpack.c.b16 %v7447, %v7431
    %v8872 = vpack.c.b16 %v7448, %v7432
    %v8873 = vpack.c.b16 %v7449, %v7433
    %v8874 = vpack.c.b16 %v7450, %v7434
    %v8875 = vpack.c.b16 %v7451, %v7435
    %v8876 = vpack.c.b16 %v7452, %v7436
    %v8877 = vpack.c.b16 %v7453, %v7437
    %v8878 = vpack.c.b16 %v7454, %v7438
    %v8879 = vpack.c.b16 %v7455, %v7439
    %v8880 = vpack.c.b16 %v7456, %v7440
    %v8881 = vpack.c.b16 %v7457, %v7441
    %v8882 = vpack.c.b16 %v7458, %v7442
    %v8883 = vpack.c.b16 %v7459, %v7443
    %v8884 = vpack.c.b16 %v7460, %v7444
    %v8885 = vpack.c.b16 %v7461, %v7445
    %v8886 = vpack.c.b16 %v7478, %v7462
    %v8887 = vpack.c.b16 %v7479, %v7463
    %v8888 = vpack.c.b16 %v7480, %v7464
    %v8889 = vpack.c.b16 %v7481, %v7465
    %v8890 = vpack.c.b16 %v7482, %v7466
    %v8891 = vpack.c.b16 %v7483, %v7467
    %v8892 = vpack.c.b16 %v7484, %v7468
    %v8893 = vpack.c.b16 %v7485, %v7469
    %v8894 = vpack.c.b16 %v7486, %v7470
    %v8895 = vpack.c.b16 %v7487, %v7471
    %v8896 = vpack.c.b16 %v7488, %v7472
    %v8897 = vpack.c.b16 %v7489, %v7473
    %v8898 = vpack.c.b16 %v7490, %v7474
    %v8899 = vpack.c.b16 %v7491, %v7475
    %v8900 = vpack.c.b16 %v7492, %v7476
    %v8901 = vpack.c.b16 %v7493, %v7477
    %v8902 = vpack.c.b16 %v7510, %v7494
    %v8903 = vpack.c.b16 %v7511, %v7495
    %v8904 = vpack.c.b16 %v7512, %v7496
    %v8905 = vpack.c.b16 %v7513, %v7497
    %v8906 = vpack.c.b16 %v7514, %v7498
    %v8907 = vpack.c.b16 %v7515, %v7499
    %v8908 = vpack.c.b16 %v7516, %v7500
    %v8909 = vpack.c.b16 %v7517, %v7501
    %v8910 = vpack.c.b16 %v7518, %v7502
    %v8911 = vpack.c.b16 %v7519, %v7503
    %v8912 = vpack.c.b16 %v7520, %v7504
    %v8913 = vpack.c.b16 %v7521, %v7505
    %v8914 = vpack.c.b16 %v7522, %v7506
    %v8915 = vpack.c.b16 %v7523, %v7507
    %v8916 = vpack.c.b16 %v7524, %v7508
    %v8917 = vpack.c.b16 %v7525, %v7509
    %v8918 = vpack.c.b16 %v7542, %v7526
    %v8919 = vpack.c.b16 %v7543, %v7527
    %v8920 = vpack.c.b16 %v7544, %v7528
    %v8921 = vpack.c.b16 %v7545, %v7529
    %v8922 = vpack.c.b16 %v7546, %v7530
    %v8923 = vpack.c.b16 %v7547, %v7531
    %v8924 = vpack.c.b16 %v7548, %v7532
    %v8925 = vpack.c.b16 %v7549, %v7533
    %v8926 = vpack.c.b16 %v7550, %v7534
    %v8927 = vpack.c.b16 %v7551, %v7535
    %v8928 = vpack.c.b16 %v7552, %v7536
    %v8929 = vpack.c.b16 %v7553, %v7537
    %v8930 = vpack.c.b16 %v7554, %v7538
    %v8931 = vpack.c.b16 %v7555, %v7539
    %v8932 = vpack.c.b16 %v7556, %v7540
    %v8933 = vpack.c.b16 %v7557, %v7541
    %v8934 = vpack.c.b16 %v7574, %v7558
    %v8935 = vpack.c.b16 %v7575, %v7559
    %v8936 = vpack.c.b16 %v7576, %v7560
    %v8937 = vpack.c.b16 %v7577, %v7561
    %v8938 = vpack.c.b16 %v7578, %v7562
    %v8939 = vpack.c.b16 %v7579, %v7563
    %v8940 = vpack.c.b16 %v7580, %v7564
    %v8941 = vpack.c.b16 %v7581, %v7565
    %v8942 = vpack.c.b16 %v7582, %v7566
    %v8943 = vpack.c.b16 %v7583, %v7567
    %v8944 = vpack.c.b16 %v7584, %v7568
    %v8945 = vpack.c.b16 %v7585, %v7569
    %v8946 = vpack.c.b16 %v7586, %v7570
    %v8947 = vpack.c.b16 %v7587, %v7571
    %v8948 = vpack.c.b16 %v7588, %v7572
    %v8949 = vpack.c.b16 %v7589, %v7573
    %v8950 = vpack.c.b16 %v7606, %v7590
    %v8951 = vpack.c.b16 %v7607, %v7591
    %v8952 = vpack.c.b16 %v7608, %v7592
    %v8953 = vpack.c.b16 %v7609, %v7593
    %v8954 = vpack.c.b16 %v7610, %v7594
    %v8955 = vpack.c.b16 %v7611, %v7595
    %v8956 = vpack.c.b16 %v7612, %v7596
    %v8957 = vpack.c.b16 %v7613, %v7597
    %v8958 = vpack.c.b16 %v7614, %v7598
    %v8959 = vpack.c.b16 %v7615, %v7599
    %v8960 = vpack.c.b16 %v7616, %v7600
    %v8961 = vpack.c.b16 %v7617, %v7601
    %v8962 = vpack.c.b16 %v7618, %v7602
    %v8963 = vpack.c.b16 %v7619, %v7603
    %v8964 = vpack.c.b16 %v7620, %v7604
    %v8965 = vpack.c.b16 %v7621, %v7605
    %v8966 = vpack.c.b16 %v7638, %v7622
    %v8967 = vpack.c.b16 %v7639, %v7623
    %v8968 = vpack.c.b16 %v7640, %v7624
    %v8969 = vpack.c.b16 %v7641, %v7625
    %v8970 = vpack.c.b16 %v7642, %v7626
    %v8971 = vpack.c.b16 %v7643, %v7627
    %v8972 = vpack.c.b16 %v7644, %v7628
    %v8973 = vpack.c.b16 %v7645, %v7629
    %v8974 = vpack.c.b16 %v7646, %v7630
    %v8975 = vpack.c.b16 %v7647, %v7631
    %v8976 = vpack.c.b16 %v7648, %v7632
    %v8977 = vpack.c.b16 %v7649, %v7633
    %v8978 = vpack.c.b16 %v7650, %v7634
    %v8979 = vpack.c.b16 %v7651, %v7635
    %v8980 = vpack.c.b16 %v7652, %v7636
    %v8981 = vpack.c.b16 %v7653, %v7637
    %v8982 = vpack.c.b16 %v7670, %v7654
    %v8983 = vpack.c.b16 %v7671, %v7655
    %v8984 = vpack.c.b16 %v7672, %v7656
    %v8985 = vpack.c.b16 %v7673, %v7657
    %v8986 = vpack.c.b16 %v7674, %v7658
    %v8987 = vpack.c.b16 %v7675, %v7659
    %v8988 = vpack.c.b16 %v7676, %v7660
    %v8989 = vpack.c.b16 %v7677, %v7661
    %v8990 = vpack.c.b16 %v7678, %v7662
    %v8991 = vpack.c.b16 %v7679, %v7663
    %v8992 = vpack.c.b16 %v7680, %v7664
    %v8993 = vpack.c.b16 %v7681, %v7665
    %v8994 = vpack.c.b16 %v7682, %v7666
    %v8995 = vpack.c.b16 %v7683, %v7667
    %v8996 = vpack.c.b16 %v7684, %v7668
    %v8997 = vpack.c.b16 %v7685, %v7669
    %v8998 = vpack.c.b16 %v7702, %v7686
    %v8999 = vpack.c.b16 %v7703, %v7687
    %v9000 = vpack.c.b16 %v7704, %v7688
    %v9001 = vpack.c.b16 %v7705, %v7689
    %v9002 = vpack.c.b16 %v7706, %v7690
    %v9003 = vpack.c.b16 %v7707, %v7691
    %v9004 = vpack.c.b16 %v7708, %v7692
    %v9005 = vpack.c.b16 %v7709, %v7693
    %v9006 = vpack.c.b16 %v7710, %v7694
    %v9007 = vpack.c.b16 %v7711, %v7695
    %v9008 = vpack.c.b16 %v7712, %v7696
    %v9009 = vpack.c.b16 %v7713, %v7697
    %v9010 = vpack.c.b16 %v7714, %v7698
    %v9011 = vpack.c.b16 %v7715, %v7699
    %v9012 = vpack.c.b16 %v7716, %v7700
    %v9013 = vpack.c.b16 %v7717, %v7701
    %v9014 = vpack.c.b16 %v7734, %v7718
    %v9015 = vpack.c.b16 %v7735, %v7719
    %v9016 = vpack.c.b16 %v7736, %v7720
    %v9017 = vpack.c.b16 %v7737, %v7721
    %v9018 = vpack.c.b16 %v7738, %v7722
    %v9019 = vpack.c.b16 %v7739, %v7723
    %v9020 = vpack.c.b16 %v7740, %v7724
    %v9021 = vpack.c.b16 %v7741, %v7725
    %v9022 = vpack.c.b16 %v7742, %v7726
    %v9023 = vpack.c.b16 %v7743, %v7727
    %v9024 = vpack.c.b16 %v7744, %v7728
    %v9025 = vpack.c.b16 %v7745, %v7729
    %v9026 = vpack.c.b16 %v7746, %v7730
    %v9027 = vpack.c.b16 %v7747, %v7731
    %v9028 = vpack.c.b16 %v7748, %v7732
    %v9029 = vpack.c.b16 %v7749, %v7733
    %v9030 = vpack.c.b16 %v7766, %v7750
    %v9031 = vpack.c.b16 %v7767, %v7751
    %v9032 = vpack.c.b16 %v7768, %v7752
    %v9033 = vpack.c.b16 %v7769, %v7753
    %v9034 = vpack.c.b16 %v7770, %v7754
    %v9035 = vpack.c.b16 %v7771, %v7755
    %v9036 = vpack.c.b16 %v7772, %v7756
    %v9037 = vpack.c.b16 %v7773, %v7757
    %v9038 = vpack.c.b16 %v7774, %v7758
    %v9039 = vpack.c.b16 %v7775, %v7759
    %v9040 = vpack.c.b16 %v7776, %v7760
    %v9041 = vpack.c.b16 %v7777, %v7761
    %v9042 = vpack.c.b16 %v7778, %v7762
    %v9043 = vpack.c.b16 %v7779, %v7763
    %v9044 = vpack.c.b16 %v7780, %v7764
    %v9045 = vpack.c.b16 %v7781, %v7765
    %v9046 = vpack.c.b16 %v7798, %v7782
    %v9047 = vpack.c.b16 %v7799, %v7783
    %v9048 = vpack.c.b16 %v7800, %v7784
    %v9049 = vpack.c.b16 %v7801, %v7785
    %v9050 = vpack.c.b16 %v7802, %v7786
    %v9051 = vpack.c.b16 %v7803, %v7787
    %v9052 = vpack.c.b16 %v7804, %v7788
    %v9053 = vpack.c.b16 %v7805, %v7789
    %v9054 = vpack.c.b16 %v7806, %v7790
    %v9055 = vpack.c.b16 %v7807, %v7791
    %v9056 = vpack.c.b16 %v7808, %v7792
    %v9057 = vpack.c.b16 %v7809, %v7793
    %v9058 = vpack.c.b16 %v7810, %v7794
    %v9059 = vpack.c.b16 %v7811, %v7795
    %v9060 = vpack.c.b16 %v7812, %v7796
    %v9061 = vpack.c.b16 %v7813, %v7797
    %v9062 = vpack.c.b16 %v7830, %v7814
    %v9063 = vpack.c.b16 %v7831, %v7815
    %v9064 = vpack.c.b16 %v7832, %v7816
    %v9065 = vpack.c.b16 %v7833, %v7817
    %v9066 = vpack.c.b16 %v7834, %v7818
    %v9067 = vpack.c.b16 %v7835, %v7819
    %v9068 = vpack.c.b16 %v7836, %v7820
    %v9069 = vpack.c.b16 %v7837, %v7821
    %v9070 = vpack.c.b16 %v7838, %v7822
    %v9071 = vpack.c.b16 %v7839, %v7823
    %v9072 = vpack.c.b16 %v7840, %v7824
    %v9073 = vpack.c.b16 %v7841, %v7825
    %v9074 = vpack.c.b16 %v7842, %v7826
    %v9075 = vpack.c.b16 %v7843, %v7827
    %v9076 = vpack.c.b16 %v7844, %v7828
    %v9077 = vpack.c.b16 %v7845, %v7829
    %v9078 = vpack.c.b16 %v7862, %v7846
    %v9079 = vpack.c.b16 %v7863, %v7847
    %v9080 = vpack.c.b16 %v7864, %v7848
    %v9081 = vpack.c.b16 %v7865, %v7849
    %v9082 = vpack.c.b16 %v7866, %v7850
    %v9083 = vpack.c.b16 %v7867, %v7851
    %v9084 = vpack.c.b16 %v7868, %v7852
    %v9085 = vpack.c.b16 %v7869, %v7853
    %v9086 = vpack.c.b16 %v7870, %v7854
    %v9087 = vpack.c.b16 %v7871, %v7855
    %v9088 = vpack.c.b16 %v7872, %v7856
    %v9089 = vpack.c.b16 %v7873, %v7857
    %v9090 = vpack.c.b16 %v7874, %v7858
    %v9091 = vpack.c.b16 %v7875, %v7859
    %v9092 = vpack.c.b16 %v7876, %v7860
    %v9093 = vpack.c.b16 %v7877, %v7861
    %v9094 = vpack.c.b16 %v7894, %v7878
    %v9095 = vpack.c.b16 %v7895, %v7879
    %v9096 = vpack.c.b16 %v7896, %v7880
    %v9097 = vpack.c.b16 %v7897, %v7881
    %v9098 = vpack.c.b16 %v7898, %v7882
    %v9099 = vpack.c.b16 %v7899, %v7883
    %v9100 = vpack.c.b16 %v7900, %v7884
    %v9101 = vpack.c.b16 %v7901, %v7885
    %v9102 = vpack.c.b16 %v7902, %v7886
    %v9103 = vpack.c.b16 %v7903, %v7887
    %v9104 = vpack.c.b16 %v7904, %v7888
    %v9105 = vpack.c.b16 %v7905, %v7889
    %v9106 = vpack.c.b16 %v7906, %v7890
    %v9107 = vpack.c.b16 %v7907, %v7891
    %v9108 = vpack.c.b16 %v7908, %v7892
    %v9109 = vpack.c.b16 %v7909, %v7893
    %v9110 = vpack.c.b16 %v7926, %v7910
    %v9111 = vpack.c.b16 %v7927, %v7911
    %v9112 = vpack.c.b16 %v7928, %v7912
    %v9113 = vpack.c.b16 %v7929, %v7913
    %v9114 = vpack.c.b16 %v7930, %v7914
    %v9115 = vpack.c.b16 %v7931, %v7915
    %v9116 = vpack.c.b16 %v7932, %v7916
    %v9117 = vpack.c.b16 %v7933, %v7917
    %v9118 = vpack.c.b16 %v7934, %v7918
    %v9119 = vpack.c.b16 %v7935, %v7919
    %v9120 = vpack.c.b16 %v7936, %v7920
    %v9121 = vpack.c.b16 %v7937, %v7921
    %v9122 = vpack.c.b16 %v7938, %v7922
    %v9123 = vpack.c.b16 %v7939, %v7923
    %v9124 = vpack.c.b16 %v7940, %v7924
    %v9125 = vpack.c.b16 %v7941, %v7925
    %v9126 = vpack.c.b16 %v7958, %v7942
    %v9127 = vpack.c.b16 %v7959, %v7943
    %v9128 = vpack.c.b16 %v7960, %v7944
    %v9129 = vpack.c.b16 %v7961, %v7945
    %v9130 = vpack.c.b16 %v7962, %v7946
    %v9131 = vpack.c.b16 %v7963, %v7947
    %v9132 = vpack.c.b16 %v7964, %v7948
    %v9133 = vpack.c.b16 %v7965, %v7949
    %v9134 = vpack.c.b16 %v7966, %v7950
    %v9135 = vpack.c.b16 %v7967, %v7951
    %v9136 = vpack.c.b16 %v7968, %v7952
    %v9137 = vpack.c.b16 %v7969, %v7953
    %v9138 = vpack.c.b16 %v7970, %v7954
    %v9139 = vpack.c.b16 %v7971, %v7955
    %v9140 = vpack.c.b16 %v7972, %v7956
    %v9141 = vpack.c.b16 %v7973, %v7957
    %v9142 = vpack.c.b16 %v7990, %v7974
    %v9143 = vpack.c.b16 %v7991, %v7975
    %v9144 = vpack.c.b16 %v7992, %v7976
    %v9145 = vpack.c.b16 %v7993, %v7977
    %v9146 = vpack.c.b16 %v7994, %v7978
    %v9147 = vpack.c.b16 %v7995, %v7979
    %v9148 = vpack.c.b16 %v7996, %v7980
    %v9149 = vpack.c.b16 %v7997, %v7981
    %v9150 = vpack.c.b16 %v7998, %v7982
    %v9151 = vpack.c.b16 %v7999, %v7983
    %v9152 = vpack.c.b16 %v8000, %v7984
    %v9153 = vpack.c.b16 %v8001, %v7985
    %v9154 = vpack.c.b16 %v8002, %v7986
    %v9155 = vpack.c.b16 %v8003, %v7987
    %v9156 = vpack.c.b16 %v8004, %v7988
    %v9157 = vpack.c.b16 %v8005, %v7989
    %v9158 = vpack.c.b16 %v8022, %v8006
    %v9159 = vpack.c.b16 %v8023, %v8007
    %v9160 = vpack.c.b16 %v8024, %v8008
    %v9161 = vpack.c.b16 %v8025, %v8009
    %v9162 = vpack.c.b16 %v8026, %v8010
    %v9163 = vpack.c.b16 %v8027, %v8011
    %v9164 = vpack.c.b16 %v8028, %v8012
    %v9165 = vpack.c.b16 %v8029, %v8013
    %v9166 = vpack.c.b16 %v8030, %v8014
    %v9167 = vpack.c.b16 %v8031, %v8015
    %v9168 = vpack.c.b16 %v8032, %v8016
    %v9169 = vpack.c.b16 %v8033, %v8017
    %v9170 = vpack.c.b16 %v8034, %v8018
    %v9171 = vpack.c.b16 %v8035, %v8019
    %v9172 = vpack.c.b16 %v8036, %v8020
    %v9173 = vpack.c.b16 %v8037, %v8021
    %v9174 = vpack.c.b16 %v8054, %v8038
    %v9175 = vpack.c.b16 %v8055, %v8039
    %v9176 = vpack.c.b16 %v8056, %v8040
    %v9177 = vpack.c.b16 %v8057, %v8041
    %v9178 = vpack.c.b16 %v8058, %v8042
    %v9179 = vpack.c.b16 %v8059, %v8043
    %v9180 = vpack.c.b16 %v8060, %v8044
    %v9181 = vpack.c.b16 %v8061, %v8045
    %v9182 = vpack.c.b16 %v8062, %v8046
    %v9183 = vpack.c.b16 %v8063, %v8047
    %v9184 = vpack.c.b16 %v8064, %v8048
    %v9185 = vpack.c.b16 %v8065, %v8049
    %v9186 = vpack.c.b16 %v8066, %v8050
    %v9187 = vpack.c.b16 %v8067, %v8051
    %v9188 = vpack.c.b16 %v8068, %v8052
    %v9189 = vpack.c.b16 %v8069, %v8053
    %v9190 = vpack.c.b16 %v8086, %v8070
    %v9191 = vpack.c.b16 %v8087, %v8071
    %v9192 = vpack.c.b16 %v8088, %v8072
    %v9193 = vpack.c.b16 %v8089, %v8073
    %v9194 = vpack.c.b16 %v8090, %v8074
    %v9195 = vpack.c.b16 %v8091, %v8075
    %v9196 = vpack.c.b16 %v8092, %v8076
    %v9197 = vpack.c.b16 %v8093, %v8077
    %v9198 = vpack.c.b16 %v8094, %v8078
    %v9199 = vpack.c.b16 %v8095, %v8079
    %v9200 = vpack.c.b16 %v8096, %v8080
    %v9201 = vpack.c.b16 %v8097, %v8081
    %v9202 = vpack.c.b16 %v8098, %v8082
    %v9203 = vpack.c.b16 %v8099, %v8083
    %v9204 = vpack.c.b16 %v8100, %v8084
    %v9205 = vpack.c.b16 %v8101, %v8085
    %v9206 = vpack.c.b16 %v8118, %v8102
    %v9207 = vpack.c.b16 %v8119, %v8103
    %v9208 = vpack.c.b16 %v8120, %v8104
    %v9209 = vpack.c.b16 %v8121, %v8105
    %v9210 = vpack.c.b16 %v8122, %v8106
    %v9211 = vpack.c.b16 %v8123, %v8107
    %v9212 = vpack.c.b16 %v8124, %v8108
    %v9213 = vpack.c.b16 %v8125, %v8109
    %v9214 = vpack.c.b16 %v8126, %v8110
    %v9215 = vpack.c.b16 %v8127, %v8111
    %v9216 = vpack.c.b16 %v8128, %v8112
    %v9217 = vpack.c.b16 %v8129, %v8113
    %v9218 = vpack.c.b16 %v8130, %v8114
    %v9219 = vpack.c.b16 %v8131, %v8115
    %v9220 = vpack.c.b16 %v8132, %v8116
    %v9221 = vpack.c.b16 %v8133, %v8117
    %v9222 = vpack.c.b16 %v8150, %v8134
    %v9223 = vpack.c.b16 %v8151, %v8135
    %v9224 = vpack.c.b16 %v8152, %v8136
    %v9225 = vpack.c.b16 %v8153, %v8137
    %v9226 = vpack.c.b16 %v8154, %v8138
    %v9227 = vpack.c.b16 %v8155, %v8139
    %v9228 = vpack.c.b16 %v8156, %v8140
    %v9229 = vpack.c.b16 %v8157, %v8141
    %v9230 = vpack.c.b16 %v8158, %v8142
    %v9231 = vpack.c.b16 %v8159, %v8143
    %v9232 = vpack.c.b16 %v8160, %v8144
    %v9233 = vpack.c.b16 %v8161, %v8145
    %v9234 = vpack.c.b16 %v8162, %v8146
    %v9235 = vpack.c.b16 %v8163, %v8147
    %v9236 = vpack.c.b16 %v8164, %v8148
    %v9237 = vpack.c.b16 %v8165, %v8149
    %v9238 = vpack.c.b16 %v8182, %v8166
    %v9239 = vpack.c.b16 %v8183, %v8167
    %v9240 = vpack.c.b16 %v8184, %v8168
    %v9241 = vpack.c.b16 %v8185, %v8169
    %v9242 = vpack.c.b16 %v8186, %v8170
    %v9243 = vpack.c.b16 %v8187, %v8171
    %v9244 = vpack.c.b16 %v8188, %v8172
    %v9245 = vpack.c.b16 %v8189, %v8173
    %v9246 = vpack.c.b16 %v8190, %v8174
    %v9247 = vpack.c.b16 %v8191, %v8175
    %v9248 = vpack.c.b16 %v8192, %v8176
    %v9249 = vpack.c.b16 %v8193, %v8177
    %v9250 = vpack.c.b16 %v8194, %v8178
    %v9251 = vpack.c.b16 %v8195, %v8179
    %v9252 = vpack.c.b16 %v8196, %v8180
    %v9253 = vpack.c.b16 %v8197, %v8181
    %v9254 = vpack.c.b16 %v8214, %v8198
    %v9255 = vpack.c.b16 %v8215, %v8199
    %v9256 = vpack.c.b16 %v8216, %v8200
    %v9257 = vpack.c.b16 %v8217, %v8201
    %v9258 = vpack.c.b16 %v8218, %v8202
    %v9259 = vpack.c.b16 %v8219, %v8203
    %v9260 = vpack.c.b16 %v8220, %v8204
    %v9261 = vpack.c.b16 %v8221, %v8205
    %v9262 = vpack.c.b16 %v8222, %v8206
    %v9263 = vpack.c.b16 %v8223, %v8207
    %v9264 = vpack.c.b16 %v8224, %v8208
    %v9265 = vpack.c.b16 %v8225, %v8209
    %v9266 = vpack.c.b16 %v8226, %v8210
    %v9267 = vpack.c.b16 %v8227, %v8211
    %v9268 = vpack.c.b16 %v8228, %v8212
    %v9269 = vpack.c.b16 %v8229, %v8213
    %v9270 = vpack.c.b16 %v8246, %v8230
    %v9271 = vpack.c.b16 %v8247, %v8231
    %v9272 = vpack.c.b16 %v8248, %v8232
    %v9273 = vpack.c.b16 %v8249, %v8233
    %v9274 = vpack.c.b16 %v8250, %v8234
    %v9275 = vpack.c.b16 %v8251, %v8235
    %v9276 = vpack.c.b16 %v8252, %v8236
    %v9277 = vpack.c.b16 %v8253, %v8237
    %v9278 = vpack.c.b16 %v8254, %v8238
    %v9279 = vpack.c.b16 %v8255, %v8239
    %v9280 = vpack.c.b16 %v8256, %v8240
    %v9281 = vpack.c.b16 %v8257, %v8241
    %v9282 = vpack.c.b16 %v8258, %v8242
    %v9283 = vpack.c.b16 %v8259, %v8243
    %v9284 = vpack.c.b16 %v8260, %v8244
    %v9285 = vpack.c.b16 %v8261, %v8245
    %10310 = vmatprep.subr.bf16.mxu0 %v8375
    %10311 = vmatpush1.bf16.msra.mxu0 %v8374
    %10312 = vmatprep.subr.bf16.mxu0 %v8359
    %10313 = vmatpush1.bf16.msra.mxu0 %v8358
    %10314 = vmatprep.subr.bf16.mxu0 %v8343
    %10315 = vmatpush1.bf16.msra.mxu0 %v8342
    %10316 = vmatprep.subr.bf16.mxu0 %v8327
    %10317 = vmatpush1.bf16.msra.mxu0 %v8326
    %10318 = vmatprep.subr.bf16.mxu0 %v8311
    %10319 = vmatpush1.bf16.msra.mxu0 %v8310
    %10320 = vmatprep.subr.bf16.mxu0 %v8295
    %10321 = vmatpush1.bf16.msra.mxu0 %v8294
    %10322 = vmatprep.subr.bf16.mxu0 %v8279
    %10323 = vmatpush1.bf16.msra.mxu0 %v8278
    %10324 = vmatprep.subr.bf16.mxu0 %v8263
    %10325 = vmatpush1.bf16.msra.mxu0 %v8262
    %10326 = vmatprep.subr.bf16.mxu0 %v8503
    %10327 = vmatpush2.bf16.msra.mxu0 %v8502
    %10328 = vmatprep.subr.bf16.mxu0 %v8487
    %10329 = vmatpush2.bf16.msra.mxu0 %v8486
    %10330 = vmatprep.subr.bf16.mxu0 %v8471
    %10331 = vmatpush2.bf16.msra.mxu0 %v8470
    %10332 = vmatprep.subr.bf16.mxu0 %v8455
    %10333 = vmatpush2.bf16.msra.mxu0 %v8454
    %10334 = vmatprep.subr.bf16.mxu0 %v8439
    %10335 = vmatpush2.bf16.msra.mxu0 %v8438
    %10336 = vmatprep.subr.bf16.mxu0 %v8423
    %10337 = vmatpush2.bf16.msra.mxu0 %v8422
    %10338 = vmatprep.subr.bf16.mxu0 %v8407
    %10339 = vmatpush2.bf16.msra.mxu0 %v8406
    %10340 = vmatprep.subr.bf16.mxu0 %v8391
    %10341 = vmatpush2.bf16.msra.mxu0 %v8390
    %10342 = vmatprep.mubr.bf16.mxu0 %v1159
    %10343 = vmatmul.mubr.bf16.gmra.mxu0 %v1158
    %v10344 = vpop.f32.mrf.mxu0
    %v10345 = vadd.f32 0.0, %v10344
    %v10346 = vpop.f32.mrf.mxu0
    %v10347 = vadd.f32 0.0, %v10346
    %v10348 = vpop.f32.mrf.mxu0
    %v10349 = vadd.f32 0.0, %v10348
    %v10350 = vpop.f32.mrf.mxu0
    %v10351 = vadd.f32 0.0, %v10350
    %10352 = vdwg.mxu0
    %10353 = vmatprep.subr.bf16.mxu0 %v8631
    %10354 = vmatpush1.bf16.msra.mxu0 %v8630
    %10355 = vmatprep.subr.bf16.mxu0 %v8615
    %10356 = vmatpush1.bf16.msra.mxu0 %v8614
    %10357 = vmatprep.subr.bf16.mxu0 %v8599
    %10358 = vmatpush1.bf16.msra.mxu0 %v8598
    %10359 = vmatprep.subr.bf16.mxu0 %v8583
    %10360 = vmatpush1.bf16.msra.mxu0 %v8582
    %10361 = vmatprep.subr.bf16.mxu0 %v8567
    %10362 = vmatpush1.bf16.msra.mxu0 %v8566
    %10363 = vmatprep.subr.bf16.mxu0 %v8551
    %10364 = vmatpush1.bf16.msra.mxu0 %v8550
    %10365 = vmatprep.subr.bf16.mxu0 %v8535
    %10366 = vmatpush1.bf16.msra.mxu0 %v8534
    %10367 = vmatprep.subr.bf16.mxu0 %v8519
    %10368 = vmatpush1.bf16.msra.mxu0 %v8518
    %10369 = vmatprep.subr.bf16.mxu0 %v8759
    %10370 = vmatpush2.bf16.msra.mxu0 %v8758
    %10371 = vmatprep.subr.bf16.mxu0 %v8743
    %10372 = vmatpush2.bf16.msra.mxu0 %v8742
    %10373 = vmatprep.subr.bf16.mxu0 %v8727
    %10374 = vmatpush2.bf16.msra.mxu0 %v8726
    %10375 = vmatprep.subr.bf16.mxu0 %v8711
    %10376 = vmatpush2.bf16.msra.mxu0 %v8710
    %10377 = vmatprep.subr.bf16.mxu0 %v8695
    %10378 = vmatpush2.bf16.msra.mxu0 %v8694
    %10379 = vmatprep.subr.bf16.mxu0 %v8679
    %10380 = vmatpush2.bf16.msra.mxu0 %v8678
    %10381 = vmatprep.subr.bf16.mxu0 %v8663
    %10382 = vmatpush2.bf16.msra.mxu0 %v8662
    %10383 = vmatprep.subr.bf16.mxu0 %v8647
    %10384 = vmatpush2.bf16.msra.mxu0 %v8646
    %10385 = vmatprep.mubr.bf16.mxu0 %v2161
    %10386 = vmatmul.mubr.bf16.gmra.mxu0 %v2160
    %v10387 = vpop.f32.mrf.mxu0
    %v10388 = vadd.f32 %v10345, %v10387
    %v10389 = vpop.f32.mrf.mxu0
    %v10390 = vadd.f32 %v10347, %v10389
    %v10391 = vpop.f32.mrf.mxu0
    %v10392 = vadd.f32 %v10349, %v10391
    %v10393 = vpop.f32.mrf.mxu0
    %v10394 = vadd.f32 %v10351, %v10393
    %10395 = vdwg.mxu0
    %10396 = vmatprep.subr.bf16.mxu0 %v8887
    %10397 = vmatpush1.bf16.msra.mxu0 %v8886
    %10398 = vmatprep.subr.bf16.mxu0 %v8871
    %10399 = vmatpush1.bf16.msra.mxu0 %v8870
    %10400 = vmatprep.subr.bf16.mxu0 %v8855
    %10401 = vmatpush1.bf16.msra.mxu0 %v8854
    %10402 = vmatprep.subr.bf16.mxu0 %v8839
    %10403 = vmatpush1.bf16.msra.mxu0 %v8838
    %10404 = vmatprep.subr.bf16.mxu0 %v8823
    %10405 = vmatpush1.bf16.msra.mxu0 %v8822
    %10406 = vmatprep.subr.bf16.mxu0 %v8807
    %10407 = vmatpush1.bf16.msra.mxu0 %v8806
    %10408 = vmatprep.subr.bf16.mxu0 %v8791
    %10409 = vmatpush1.bf16.msra.mxu0 %v8790
    %10410 = vmatprep.subr.bf16.mxu0 %v8775
    %10411 = vmatpush1.bf16.msra.mxu0 %v8774
    %10412 = vmatprep.subr.bf16.mxu0 %v9015
    %10413 = vmatpush2.bf16.msra.mxu0 %v9014
    %10414 = vmatprep.subr.bf16.mxu0 %v8999
    %10415 = vmatpush2.bf16.msra.mxu0 %v8998
    %10416 = vmatprep.subr.bf16.mxu0 %v8983
    %10417 = vmatpush2.bf16.msra.mxu0 %v8982
    %10418 = vmatprep.subr.bf16.mxu0 %v8967
    %10419 = vmatpush2.bf16.msra.mxu0 %v8966
    %10420 = vmatprep.subr.bf16.mxu0 %v8951
    %10421 = vmatpush2.bf16.msra.mxu0 %v8950
    %10422 = vmatprep.subr.bf16.mxu0 %v8935
    %10423 = vmatpush2.bf16.msra.mxu0 %v8934
    %10424 = vmatprep.subr.bf16.mxu0 %v8919
    %10425 = vmatpush2.bf16.msra.mxu0 %v8918
    %10426 = vmatprep.subr.bf16.mxu0 %v8903
    %10427 = vmatpush2.bf16.msra.mxu0 %v8902
    %10428 = vmatprep.mubr.bf16.mxu0 %v3163
    %10429 = vmatmul.mubr.bf16.gmra.mxu0 %v3162
    %v10430 = vpop.f32.mrf.mxu0
    %v10431 = vadd.f32 %v10388, %v10430
    %v10432 = vpop.f32.mrf.mxu0
    %v10433 = vadd.f32 %v10390, %v10432
    %v10434 = vpop.f32.mrf.mxu0
    %v10435 = vadd.f32 %v10392, %v10434
    %v10436 = vpop.f32.mrf.mxu0
    %v10437 = vadd.f32 %v10394, %v10436
    %10438 = vdwg.mxu0
    %10439 = vmatprep.subr.bf16.mxu0 %v9143
    %10440 = vmatpush1.bf16.msra.mxu0 %v9142
    %10441 = vmatprep.subr.bf16.mxu0 %v9127
    %10442 = vmatpush1.bf16.msra.mxu0 %v9126
    %10443 = vmatprep.subr.bf16.mxu0 %v9111
    %10444 = vmatpush1.bf16.msra.mxu0 %v9110
    %10445 = vmatprep.subr.bf16.mxu0 %v9095
    %10446 = vmatpush1.bf16.msra.mxu0 %v9094
    %10447 = vmatprep.subr.bf16.mxu0 %v9079
    %10448 = vmatpush1.bf16.msra.mxu0 %v9078
    %10449 = vmatprep.subr.bf16.mxu0 %v9063
    %10450 = vmatpush1.bf16.msra.mxu0 %v9062
    %10451 = vmatprep.subr.bf16.mxu0 %v9047
    %10452 = vmatpush1.bf16.msra.mxu0 %v9046
    %10453 = vmatprep.subr.bf16.mxu0 %v9031
    %10454 = vmatpush1.bf16.msra.mxu0 %v9030
    %10455 = vmatprep.subr.bf16.mxu0 %v9271
    %10456 = vmatpush2.bf16.msra.mxu0 %v9270
    %10457 = vmatprep.subr.bf16.mxu0 %v9255
    %10458 = vmatpush2.bf16.msra.mxu0 %v9254
    %10459 = vmatprep.subr.bf16.mxu0 %v9239
    %10460 = vmatpush2.bf16.msra.mxu0 %v9238
    %10461 = vmatprep.subr.bf16.mxu0 %v9223
    %10462 = vmatpush2.bf16.msra.mxu0 %v9222
    %10463 = vmatprep.subr.bf16.mxu0 %v9207
    %10464 = vmatpush2.bf16.msra.mxu0 %v9206
    %10465 = vmatprep.subr.bf16.mxu0 %v9191
    %10466 = vmatpush2.bf16.msra.mxu0 %v9190
    %10467 = vmatprep.subr.bf16.mxu0 %v9175
    %10468 = vmatpush2.bf16.msra.mxu0 %v9174
    %10469 = vmatprep.subr.bf16.mxu0 %v9159
    %10470 = vmatpush2.bf16.msra.mxu0 %v9158
    %10471 = vmatprep.mubr.bf16.mxu0 %v4165
    %10472 = vmatmul.mubr.bf16.gmra.mxu0 %v4164
    %v10473 = vpop.f32.mrf.mxu0
    %v10474 = vadd.f32 %v10431, %v10473
    %v10475 = vpop.f32.mrf.mxu0
    %v10476 = vadd.f32 %v10433, %v10475
    %v10477 = vpop.f32.mrf.mxu0
    %v10478 = vadd.f32 %v10435, %v10477
    %v10479 = vpop.f32.mrf.mxu0
    %v10480 = vadd.f32 %v10437, %v10479
    %10481 = vdwg.mxu0
    %10482 = vmatprep.subr.bf16.mxu0 %v8377
    %10483 = vmatpush1.bf16.msra.mxu0 %v8376
    %10484 = vmatprep.subr.bf16.mxu0 %v8361
    %10485 = vmatpush1.bf16.msra.mxu0 %v8360
    %10486 = vmatprep.subr.bf16.mxu0 %v8345
    %10487 = vmatpush1.bf16.msra.mxu0 %v8344
    %10488 = vmatprep.subr.bf16.mxu0 %v8329
    %10489 = vmatpush1.bf16.msra.mxu0 %v8328
    %10490 = vmatprep.subr.bf16.mxu0 %v8313
    %10491 = vmatpush1.bf16.msra.mxu0 %v8312
    %10492 = vmatprep.subr.bf16.mxu0 %v8297
    %10493 = vmatpush1.bf16.msra.mxu0 %v8296
    %10494 = vmatprep.subr.bf16.mxu0 %v8281
    %10495 = vmatpush1.bf16.msra.mxu0 %v8280
    %10496 = vmatprep.subr.bf16.mxu0 %v8265
    %10497 = vmatpush1.bf16.msra.mxu0 %v8264
    %10498 = vmatprep.subr.bf16.mxu0 %v8505
    %10499 = vmatpush2.bf16.msra.mxu0 %v8504
    %10500 = vmatprep.subr.bf16.mxu0 %v8489
    %10501 = vmatpush2.bf16.msra.mxu0 %v8488
    %10502 = vmatprep.subr.bf16.mxu0 %v8473
    %10503 = vmatpush2.bf16.msra.mxu0 %v8472
    %10504 = vmatprep.subr.bf16.mxu0 %v8457
    %10505 = vmatpush2.bf16.msra.mxu0 %v8456
    %10506 = vmatprep.subr.bf16.mxu0 %v8441
    %10507 = vmatpush2.bf16.msra.mxu0 %v8440
    %10508 = vmatprep.subr.bf16.mxu0 %v8425
    %10509 = vmatpush2.bf16.msra.mxu0 %v8424
    %10510 = vmatprep.subr.bf16.mxu0 %v8409
    %10511 = vmatpush2.bf16.msra.mxu0 %v8408
    %10512 = vmatprep.subr.bf16.mxu0 %v8393
    %10513 = vmatpush2.bf16.msra.mxu0 %v8392
    %10514 = vmatprep.mubr.bf16.mxu0 %v1159
    %10515 = vmatmul.mubr.bf16.gmra.mxu0 %v1158
    %v10516 = vpop.f32.mrf.mxu0
    %v10517 = vadd.f32 0.0, %v10516
    %v10518 = vpop.f32.mrf.mxu0
    %v10519 = vadd.f32 0.0, %v10518
    %v10520 = vpop.f32.mrf.mxu0
    %v10521 = vadd.f32 0.0, %v10520
    %v10522 = vpop.f32.mrf.mxu0
    %v10523 = vadd.f32 0.0, %v10522
    %10524 = vdwg.mxu0
    %10525 = vmatprep.subr.bf16.mxu0 %v8633
    %10526 = vmatpush1.bf16.msra.mxu0 %v8632
    %10527 = vmatprep.subr.bf16.mxu0 %v8617
    %10528 = vmatpush1.bf16.msra.mxu0 %v8616
    %10529 = vmatprep.subr.bf16.mxu0 %v8601
    %10530 = vmatpush1.bf16.msra.mxu0 %v8600
    %10531 = vmatprep.subr.bf16.mxu0 %v8585
    %10532 = vmatpush1.bf16.msra.mxu0 %v8584
    %10533 = vmatprep.subr.bf16.mxu0 %v8569
    %10534 = vmatpush1.bf16.msra.mxu0 %v8568
    %10535 = vmatprep.subr.bf16.mxu0 %v8553
    %10536 = vmatpush1.bf16.msra.mxu0 %v8552
    %10537 = vmatprep.subr.bf16.mxu0 %v8537
    %10538 = vmatpush1.bf16.msra.mxu0 %v8536
    %10539 = vmatprep.subr.bf16.mxu0 %v8521
    %10540 = vmatpush1.bf16.msra.mxu0 %v8520
    %10541 = vmatprep.subr.bf16.mxu0 %v8761
    %10542 = vmatpush2.bf16.msra.mxu0 %v8760
    %10543 = vmatprep.subr.bf16.mxu0 %v8745
    %10544 = vmatpush2.bf16.msra.mxu0 %v8744
    %10545 = vmatprep.subr.bf16.mxu0 %v8729
    %10546 = vmatpush2.bf16.msra.mxu0 %v8728
    %10547 = vmatprep.subr.bf16.mxu0 %v8713
    %10548 = vmatpush2.bf16.msra.mxu0 %v8712
    %10549 = vmatprep.subr.bf16.mxu0 %v8697
    %10550 = vmatpush2.bf16.msra.mxu0 %v8696
    %10551 = vmatprep.subr.bf16.mxu0 %v8681
    %10552 = vmatpush2.bf16.msra.mxu0 %v8680
    %10553 = vmatprep.subr.bf16.mxu0 %v8665
    %10554 = vmatpush2.bf16.msra.mxu0 %v8664
    %10555 = vmatprep.subr.bf16.mxu0 %v8649
    %10556 = vmatpush2.bf16.msra.mxu0 %v8648
    %10557 = vmatprep.mubr.bf16.mxu0 %v2161
    %10558 = vmatmul.mubr.bf16.gmra.mxu0 %v2160
    %v10559 = vpop.f32.mrf.mxu0
    %v10560 = vadd.f32 %v10517, %v10559
    %v10561 = vpop.f32.mrf.mxu0
    %v10562 = vadd.f32 %v10519, %v10561
    %v10563 = vpop.f32.mrf.mxu0
    %v10564 = vadd.f32 %v10521, %v10563
    %v10565 = vpop.f32.mrf.mxu0
    %v10566 = vadd.f32 %v10523, %v10565
    %10567 = vdwg.mxu0
    %10568 = vmatprep.subr.bf16.mxu0 %v8889
    %10569 = vmatpush1.bf16.msra.mxu0 %v8888
    %10570 = vmatprep.subr.bf16.mxu0 %v8873
    %10571 = vmatpush1.bf16.msra.mxu0 %v8872
    %10572 = vmatprep.subr.bf16.mxu0 %v8857
    %10573 = vmatpush1.bf16.msra.mxu0 %v8856
    %10574 = vmatprep.subr.bf16.mxu0 %v8841
    %10575 = vmatpush1.bf16.msra.mxu0 %v8840
    %10576 = vmatprep.subr.bf16.mxu0 %v8825
    %10577 = vmatpush1.bf16.msra.mxu0 %v8824
    %10578 = vmatprep.subr.bf16.mxu0 %v8809
    %10579 = vmatpush1.bf16.msra.mxu0 %v8808
    %10580 = vmatprep.subr.bf16.mxu0 %v8793
    %10581 = vmatpush1.bf16.msra.mxu0 %v8792
    %10582 = vmatprep.subr.bf16.mxu0 %v8777
    %10583 = vmatpush1.bf16.msra.mxu0 %v8776
    %10584 = vmatprep.subr.bf16.mxu0 %v9017
    %10585 = vmatpush2.bf16.msra.mxu0 %v9016
    %10586 = vmatprep.subr.bf16.mxu0 %v9001
    %10587 = vmatpush2.bf16.msra.mxu0 %v9000
    %10588 = vmatprep.subr.bf16.mxu0 %v8985
    %10589 = vmatpush2.bf16.msra.mxu0 %v8984
    %10590 = vmatprep.subr.bf16.mxu0 %v8969
    %10591 = vmatpush2.bf16.msra.mxu0 %v8968
    %10592 = vmatprep.subr.bf16.mxu0 %v8953
    %10593 = vmatpush2.bf16.msra.mxu0 %v8952
    %10594 = vmatprep.subr.bf16.mxu0 %v8937
    %10595 = vmatpush2.bf16.msra.mxu0 %v8936
    %10596 = vmatprep.subr.bf16.mxu0 %v8921
    %10597 = vmatpush2.bf16.msra.mxu0 %v8920
    %10598 = vmatprep.subr.bf16.mxu0 %v8905
    %10599 = vmatpush2.bf16.msra.mxu0 %v8904
    %10600 = vmatprep.mubr.bf16.mxu0 %v3163
    %10601 = vmatmul.mubr.bf16.gmra.mxu0 %v3162
    %v10602 = vpop.f32.mrf.mxu0
    %v10603 = vadd.f32 %v10560, %v10602
    %v10604 = vpop.f32.mrf.mxu0
    %v10605 = vadd.f32 %v10562, %v10604
    %v10606 = vpop.f32.mrf.mxu0
    %v10607 = vadd.f32 %v10564, %v10606
    %v10608 = vpop.f32.mrf.mxu0
    %v10609 = vadd.f32 %v10566, %v10608
    %10610 = vdwg.mxu0
    %10611 = vmatprep.subr.bf16.mxu0 %v9145
    %10612 = vmatpush1.bf16.msra.mxu0 %v9144
    %10613 = vmatprep.subr.bf16.mxu0 %v9129
    %10614 = vmatpush1.bf16.msra.mxu0 %v9128
    %10615 = vmatprep.subr.bf16.mxu0 %v9113
    %10616 = vmatpush1.bf16.msra.mxu0 %v9112
    %10617 = vmatprep.subr.bf16.mxu0 %v9097
    %10618 = vmatpush1.bf16.msra.mxu0 %v9096
    %10619 = vmatprep.subr.bf16.mxu0 %v9081
    %10620 = vmatpush1.bf16.msra.mxu0 %v9080
    %10621 = vmatprep.subr.bf16.mxu0 %v9065
    %10622 = vmatpush1.bf16.msra.mxu0 %v9064
    %10623 = vmatprep.subr.bf16.mxu0 %v9049
    %10624 = vmatpush1.bf16.msra.mxu0 %v9048
    %10625 = vmatprep.subr.bf16.mxu0 %v9033
    %10626 = vmatpush1.bf16.msra.mxu0 %v9032
    %10627 = vmatprep.subr.bf16.mxu0 %v9273
    %10628 = vmatpush2.bf16.msra.mxu0 %v9272
    %10629 = vmatprep.subr.bf16.mxu0 %v9257
    %10630 = vmatpush2.bf16.msra.mxu0 %v9256
    %10631 = vmatprep.subr.bf16.mxu0 %v9241
    %10632 = vmatpush2.bf16.msra.mxu0 %v9240
    %10633 = vmatprep.subr.bf16.mxu0 %v9225
    %10634 = vmatpush2.bf16.msra.mxu0 %v9224
    %10635 = vmatprep.subr.bf16.mxu0 %v9209
    %10636 = vmatpush2.bf16.msra.mxu0 %v9208
    %10637 = vmatprep.subr.bf16.mxu0 %v9193
    %10638 = vmatpush2.bf16.msra.mxu0 %v9192
    %10639 = vmatprep.subr.bf16.mxu0 %v9177
    %10640 = vmatpush2.bf16.msra.mxu0 %v9176
    %10641 = vmatprep.subr.bf16.mxu0 %v9161
    %10642 = vmatpush2.bf16.msra.mxu0 %v9160
    %10643 = vmatprep.mubr.bf16.mxu0 %v4165
    %10644 = vmatmul.mubr.bf16.gmra.mxu0 %v4164
    %v10645 = vpop.f32.mrf.mxu0
    %v10646 = vadd.f32 %v10603, %v10645
    %v10647 = vpop.f32.mrf.mxu0
    %v10648 = vadd.f32 %v10605, %v10647
    %v10649 = vpop.f32.mrf.mxu0
    %v10650 = vadd.f32 %v10607, %v10649
    %v10651 = vpop.f32.mrf.mxu0
    %v10652 = vadd.f32 %v10609, %v10651
    %10653 = vdwg.mxu0
    %10654 = vmatprep.subr.bf16.mxu0 %v8379
    %10655 = vmatpush1.bf16.msra.mxu0 %v8378
    %10656 = vmatprep.subr.bf16.mxu0 %v8363
    %10657 = vmatpush1.bf16.msra.mxu0 %v8362
    %10658 = vmatprep.subr.bf16.mxu0 %v8347
    %10659 = vmatpush1.bf16.msra.mxu0 %v8346
    %10660 = vmatprep.subr.bf16.mxu0 %v8331
    %10661 = vmatpush1.bf16.msra.mxu0 %v8330
    %10662 = vmatprep.subr.bf16.mxu0 %v8315
    %10663 = vmatpush1.bf16.msra.mxu0 %v8314
    %10664 = vmatprep.subr.bf16.mxu0 %v8299
    %10665 = vmatpush1.bf16.msra.mxu0 %v8298
    %10666 = vmatprep.subr.bf16.mxu0 %v8283
    %10667 = vmatpush1.bf16.msra.mxu0 %v8282
    %10668 = vmatprep.subr.bf16.mxu0 %v8267
    %10669 = vmatpush1.bf16.msra.mxu0 %v8266
    %10670 = vmatprep.subr.bf16.mxu0 %v8507
    %10671 = vmatpush2.bf16.msra.mxu0 %v8506
    %10672 = vmatprep.subr.bf16.mxu0 %v8491
    %10673 = vmatpush2.bf16.msra.mxu0 %v8490
    %10674 = vmatprep.subr.bf16.mxu0 %v8475
    %10675 = vmatpush2.bf16.msra.mxu0 %v8474
    %10676 = vmatprep.subr.bf16.mxu0 %v8459
    %10677 = vmatpush2.bf16.msra.mxu0 %v8458
    %10678 = vmatprep.subr.bf16.mxu0 %v8443
    %10679 = vmatpush2.bf16.msra.mxu0 %v8442
    %10680 = vmatprep.subr.bf16.mxu0 %v8427
    %10681 = vmatpush2.bf16.msra.mxu0 %v8426
    %10682 = vmatprep.subr.bf16.mxu0 %v8411
    %10683 = vmatpush2.bf16.msra.mxu0 %v8410
    %10684 = vmatprep.subr.bf16.mxu0 %v8395
    %10685 = vmatpush2.bf16.msra.mxu0 %v8394
    %10686 = vmatprep.mubr.bf16.mxu0 %v1159
    %10687 = vmatmul.mubr.bf16.gmra.mxu0 %v1158
    %v10688 = vpop.f32.mrf.mxu0
    %v10689 = vadd.f32 0.0, %v10688
    %v10690 = vpop.f32.mrf.mxu0
    %v10691 = vadd.f32 0.0, %v10690
    %v10692 = vpop.f32.mrf.mxu0
    %v10693 = vadd.f32 0.0, %v10692
    %v10694 = vpop.f32.mrf.mxu0
    %v10695 = vadd.f32 0.0, %v10694
    %10696 = vdwg.mxu0
    %10697 = vmatprep.subr.bf16.mxu0 %v8635
    %10698 = vmatpush1.bf16.msra.mxu0 %v8634
    %10699 = vmatprep.subr.bf16.mxu0 %v8619
    %10700 = vmatpush1.bf16.msra.mxu0 %v8618
    %10701 = vmatprep.subr.bf16.mxu0 %v8603
    %10702 = vmatpush1.bf16.msra.mxu0 %v8602
    %10703 = vmatprep.subr.bf16.mxu0 %v8587
    %10704 = vmatpush1.bf16.msra.mxu0 %v8586
    %10705 = vmatprep.subr.bf16.mxu0 %v8571
    %10706 = vmatpush1.bf16.msra.mxu0 %v8570
    %10707 = vmatprep.subr.bf16.mxu0 %v8555
    %10708 = vmatpush1.bf16.msra.mxu0 %v8554
    %10709 = vmatprep.subr.bf16.mxu0 %v8539
    %10710 = vmatpush1.bf16.msra.mxu0 %v8538
    %10711 = vmatprep.subr.bf16.mxu0 %v8523
    %10712 = vmatpush1.bf16.msra.mxu0 %v8522
    %10713 = vmatprep.subr.bf16.mxu0 %v8763
    %10714 = vmatpush2.bf16.msra.mxu0 %v8762
    %10715 = vmatprep.subr.bf16.mxu0 %v8747
    %10716 = vmatpush2.bf16.msra.mxu0 %v8746
    %10717 = vmatprep.subr.bf16.mxu0 %v8731
    %10718 = vmatpush2.bf16.msra.mxu0 %v8730
    %10719 = vmatprep.subr.bf16.mxu0 %v8715
    %10720 = vmatpush2.bf16.msra.mxu0 %v8714
    %10721 = vmatprep.subr.bf16.mxu0 %v8699
    %10722 = vmatpush2.bf16.msra.mxu0 %v8698
    %10723 = vmatprep.subr.bf16.mxu0 %v8683
    %10724 = vmatpush2.bf16.msra.mxu0 %v8682
    %10725 = vmatprep.subr.bf16.mxu0 %v8667
    %10726 = vmatpush2.bf16.msra.mxu0 %v8666
    %10727 = vmatprep.subr.bf16.mxu0 %v8651
    %10728 = vmatpush2.bf16.msra.mxu0 %v8650
    %10729 = vmatprep.mubr.bf16.mxu0 %v2161
    %10730 = vmatmul.mubr.bf16.gmra.mxu0 %v2160
    %v10731 = vpop.f32.mrf.mxu0
    %v10732 = vadd.f32 %v10689, %v10731
    %v10733 = vpop.f32.mrf.mxu0
    %v10734 = vadd.f32 %v10691, %v10733
    %v10735 = vpop.f32.mrf.mxu0
    %v10736 = vadd.f32 %v10693, %v10735
    %v10737 = vpop.f32.mrf.mxu0
    %v10738 = vadd.f32 %v10695, %v10737
    %10739 = vdwg.mxu0
    %10740 = vmatprep.subr.bf16.mxu0 %v8891
    %10741 = vmatpush1.bf16.msra.mxu0 %v8890
    %10742 = vmatprep.subr.bf16.mxu0 %v8875
    %10743 = vmatpush1.bf16.msra.mxu0 %v8874
    %10744 = vmatprep.subr.bf16.mxu0 %v8859
    %10745 = vmatpush1.bf16.msra.mxu0 %v8858
    %10746 = vmatprep.subr.bf16.mxu0 %v8843
    %10747 = vmatpush1.bf16.msra.mxu0 %v8842
    %10748 = vmatprep.subr.bf16.mxu0 %v8827
    %10749 = vmatpush1.bf16.msra.mxu0 %v8826
    %10750 = vmatprep.subr.bf16.mxu0 %v8811
    %10751 = vmatpush1.bf16.msra.mxu0 %v8810
    %10752 = vmatprep.subr.bf16.mxu0 %v8795
    %10753 = vmatpush1.bf16.msra.mxu0 %v8794
    %10754 = vmatprep.subr.bf16.mxu0 %v8779
    %10755 = vmatpush1.bf16.msra.mxu0 %v8778
    %10756 = vmatprep.subr.bf16.mxu0 %v9019
    %10757 = vmatpush2.bf16.msra.mxu0 %v9018
    %10758 = vmatprep.subr.bf16.mxu0 %v9003
    %10759 = vmatpush2.bf16.msra.mxu0 %v9002
    %10760 = vmatprep.subr.bf16.mxu0 %v8987
    %10761 = vmatpush2.bf16.msra.mxu0 %v8986
    %10762 = vmatprep.subr.bf16.mxu0 %v8971
    %10763 = vmatpush2.bf16.msra.mxu0 %v8970
    %10764 = vmatprep.subr.bf16.mxu0 %v8955
    %10765 = vmatpush2.bf16.msra.mxu0 %v8954
    %10766 = vmatprep.subr.bf16.mxu0 %v8939
    %10767 = vmatpush2.bf16.msra.mxu0 %v8938
    %10768 = vmatprep.subr.bf16.mxu0 %v8923
    %10769 = vmatpush2.bf16.msra.mxu0 %v8922
    %10770 = vmatprep.subr.bf16.mxu0 %v8907
    %10771 = vmatpush2.bf16.msra.mxu0 %v8906
    %10772 = vmatprep.mubr.bf16.mxu0 %v3163
    %10773 = vmatmul.mubr.bf16.gmra.mxu0 %v3162
    %v10774 = vpop.f32.mrf.mxu0
    %v10775 = vadd.f32 %v10732, %v10774
    %v10776 = vpop.f32.mrf.mxu0
    %v10777 = vadd.f32 %v10734, %v10776
    %v10778 = vpop.f32.mrf.mxu0
    %v10779 = vadd.f32 %v10736, %v10778
    %v10780 = vpop.f32.mrf.mxu0
    %v10781 = vadd.f32 %v10738, %v10780
    %10782 = vdwg.mxu0
    %10783 = vmatprep.subr.bf16.mxu0 %v9147
    %10784 = vmatpush1.bf16.msra.mxu0 %v9146
    %10785 = vmatprep.subr.bf16.mxu0 %v9131
    %10786 = vmatpush1.bf16.msra.mxu0 %v9130
    %10787 = vmatprep.subr.bf16.mxu0 %v9115
    %10788 = vmatpush1.bf16.msra.mxu0 %v9114
    %10789 = vmatprep.subr.bf16.mxu0 %v9099
    %10790 = vmatpush1.bf16.msra.mxu0 %v9098
    %10791 = vmatprep.subr.bf16.mxu0 %v9083
    %10792 = vmatpush1.bf16.msra.mxu0 %v9082
    %10793 = vmatprep.subr.bf16.mxu0 %v9067
    %10794 = vmatpush1.bf16.msra.mxu0 %v9066
    %10795 = vmatprep.subr.bf16.mxu0 %v9051
    %10796 = vmatpush1.bf16.msra.mxu0 %v9050
    %10797 = vmatprep.subr.bf16.mxu0 %v9035
    %10798 = vmatpush1.bf16.msra.mxu0 %v9034
    %10799 = vmatprep.subr.bf16.mxu0 %v9275
    %10800 = vmatpush2.bf16.msra.mxu0 %v9274
    %10801 = vmatprep.subr.bf16.mxu0 %v9259
    %10802 = vmatpush2.bf16.msra.mxu0 %v9258
    %10803 = vmatprep.subr.bf16.mxu0 %v9243
    %10804 = vmatpush2.bf16.msra.mxu0 %v9242
    %10805 = vmatprep.subr.bf16.mxu0 %v9227
    %10806 = vmatpush2.bf16.msra.mxu0 %v9226
    %10807 = vmatprep.subr.bf16.mxu0 %v9211
    %10808 = vmatpush2.bf16.msra.mxu0 %v9210
    %10809 = vmatprep.subr.bf16.mxu0 %v9195
    %10810 = vmatpush2.bf16.msra.mxu0 %v9194
    %10811 = vmatprep.subr.bf16.mxu0 %v9179
    %10812 = vmatpush2.bf16.msra.mxu0 %v9178
    %10813 = vmatprep.subr.bf16.mxu0 %v9163
    %10814 = vmatpush2.bf16.msra.mxu0 %v9162
    %10815 = vmatprep.mubr.bf16.mxu0 %v4165
    %10816 = vmatmul.mubr.bf16.gmra.mxu0 %v4164
    %v10817 = vpop.f32.mrf.mxu0
    %v10818 = vadd.f32 %v10775, %v10817
    %v10819 = vpop.f32.mrf.mxu0
    %v10820 = vadd.f32 %v10777, %v10819
    %v10821 = vpop.f32.mrf.mxu0
    %v10822 = vadd.f32 %v10779, %v10821
    %v10823 = vpop.f32.mrf.mxu0
    %v10824 = vadd.f32 %v10781, %v10823
    %10825 = vdwg.mxu0
    %10826 = vmatprep.subr.bf16.mxu0 %v8381
    %10827 = vmatpush1.bf16.msra.mxu0 %v8380
    %10828 = vmatprep.subr.bf16.mxu0 %v8365
    %10829 = vmatpush1.bf16.msra.mxu0 %v8364
    %10830 = vmatprep.subr.bf16.mxu0 %v8349
    %10831 = vmatpush1.bf16.msra.mxu0 %v8348
    %10832 = vmatprep.subr.bf16.mxu0 %v8333
    %10833 = vmatpush1.bf16.msra.mxu0 %v8332
    %10834 = vmatprep.subr.bf16.mxu0 %v8317
    %10835 = vmatpush1.bf16.msra.mxu0 %v8316
    %10836 = vmatprep.subr.bf16.mxu0 %v8301
    %10837 = vmatpush1.bf16.msra.mxu0 %v8300
    %10838 = vmatprep.subr.bf16.mxu0 %v8285
    %10839 = vmatpush1.bf16.msra.mxu0 %v8284
    %10840 = vmatprep.subr.bf16.mxu0 %v8269
    %10841 = vmatpush1.bf16.msra.mxu0 %v8268
    %10842 = vmatprep.subr.bf16.mxu0 %v8509
    %10843 = vmatpush2.bf16.msra.mxu0 %v8508
    %10844 = vmatprep.subr.bf16.mxu0 %v8493
    %10845 = vmatpush2.bf16.msra.mxu0 %v8492
    %10846 = vmatprep.subr.bf16.mxu0 %v8477
    %10847 = vmatpush2.bf16.msra.mxu0 %v8476
    %10848 = vmatprep.subr.bf16.mxu0 %v8461
    %10849 = vmatpush2.bf16.msra.mxu0 %v8460
    %10850 = vmatprep.subr.bf16.mxu0 %v8445
    %10851 = vmatpush2.bf16.msra.mxu0 %v8444
    %10852 = vmatprep.subr.bf16.mxu0 %v8429
    %10853 = vmatpush2.bf16.msra.mxu0 %v8428
    %10854 = vmatprep.subr.bf16.mxu0 %v8413
    %10855 = vmatpush2.bf16.msra.mxu0 %v8412
    %10856 = vmatprep.subr.bf16.mxu0 %v8397
    %10857 = vmatpush2.bf16.msra.mxu0 %v8396
    %10858 = vmatprep.mubr.bf16.mxu0 %v1159
    %10859 = vmatmul.mubr.bf16.gmra.mxu0 %v1158
    %v10860 = vpop.f32.mrf.mxu0
    %v10861 = vadd.f32 0.0, %v10860
    %v10862 = vpop.f32.mrf.mxu0
    %v10863 = vadd.f32 0.0, %v10862
    %v10864 = vpop.f32.mrf.mxu0
    %v10865 = vadd.f32 0.0, %v10864
    %v10866 = vpop.f32.mrf.mxu0
    %v10867 = vadd.f32 0.0, %v10866
    %10868 = vdwg.mxu0
    %10869 = vmatprep.subr.bf16.mxu0 %v8637
    %10870 = vmatpush1.bf16.msra.mxu0 %v8636
    %10871 = vmatprep.subr.bf16.mxu0 %v8621
    %10872 = vmatpush1.bf16.msra.mxu0 %v8620
    %10873 = vmatprep.subr.bf16.mxu0 %v8605
    %10874 = vmatpush1.bf16.msra.mxu0 %v8604
    %10875 = vmatprep.subr.bf16.mxu0 %v8589
    %10876 = vmatpush1.bf16.msra.mxu0 %v8588
    %10877 = vmatprep.subr.bf16.mxu0 %v8573
    %10878 = vmatpush1.bf16.msra.mxu0 %v8572
    %10879 = vmatprep.subr.bf16.mxu0 %v8557
    %10880 = vmatpush1.bf16.msra.mxu0 %v8556
    %10881 = vmatprep.subr.bf16.mxu0 %v8541
    %10882 = vmatpush1.bf16.msra.mxu0 %v8540
    %10883 = vmatprep.subr.bf16.mxu0 %v8525
    %10884 = vmatpush1.bf16.msra.mxu0 %v8524
    %10885 = vmatprep.subr.bf16.mxu0 %v8765
    %10886 = vmatpush2.bf16.msra.mxu0 %v8764
    %10887 = vmatprep.subr.bf16.mxu0 %v8749
    %10888 = vmatpush2.bf16.msra.mxu0 %v8748
    %10889 = vmatprep.subr.bf16.mxu0 %v8733
    %10890 = vmatpush2.bf16.msra.mxu0 %v8732
    %10891 = vmatprep.subr.bf16.mxu0 %v8717
    %10892 = vmatpush2.bf16.msra.mxu0 %v8716
    %10893 = vmatprep.subr.bf16.mxu0 %v8701
    %10894 = vmatpush2.bf16.msra.mxu0 %v8700
    %10895 = vmatprep.subr.bf16.mxu0 %v8685
    %10896 = vmatpush2.bf16.msra.mxu0 %v8684
    %10897 = vmatprep.subr.bf16.mxu0 %v8669
    %10898 = vmatpush2.bf16.msra.mxu0 %v8668
    %10899 = vmatprep.subr.bf16.mxu0 %v8653
    %10900 = vmatpush2.bf16.msra.mxu0 %v8652
    %10901 = vmatprep.mubr.bf16.mxu0 %v2161
    %10902 = vmatmul.mubr.bf16.gmra.mxu0 %v2160
    %v10903 = vpop.f32.mrf.mxu0
    %v10904 = vadd.f32 %v10861, %v10903
    %v10905 = vpop.f32.mrf.mxu0
    %v10906 = vadd.f32 %v10863, %v10905
    %v10907 = vpop.f32.mrf.mxu0
    %v10908 = vadd.f32 %v10865, %v10907
    %v10909 = vpop.f32.mrf.mxu0
    %v10910 = vadd.f32 %v10867, %v10909
    %10911 = vdwg.mxu0
    %10912 = vmatprep.subr.bf16.mxu0 %v8893
    %10913 = vmatpush1.bf16.msra.mxu0 %v8892
    %10914 = vmatprep.subr.bf16.mxu0 %v8877
    %10915 = vmatpush1.bf16.msra.mxu0 %v8876
    %10916 = vmatprep.subr.bf16.mxu0 %v8861
    %10917 = vmatpush1.bf16.msra.mxu0 %v8860
    %10918 = vmatprep.subr.bf16.mxu0 %v8845
    %10919 = vmatpush1.bf16.msra.mxu0 %v8844
    %10920 = vmatprep.subr.bf16.mxu0 %v8829
    %10921 = vmatpush1.bf16.msra.mxu0 %v8828
    %10922 = vmatprep.subr.bf16.mxu0 %v8813
    %10923 = vmatpush1.bf16.msra.mxu0 %v8812
    %10924 = vmatprep.subr.bf16.mxu0 %v8797
    %10925 = vmatpush1.bf16.msra.mxu0 %v8796
    %10926 = vmatprep.subr.bf16.mxu0 %v8781
    %10927 = vmatpush1.bf16.msra.mxu0 %v8780
    %10928 = vmatprep.subr.bf16.mxu0 %v9021
    %10929 = vmatpush2.bf16.msra.mxu0 %v9020
    %10930 = vmatprep.subr.bf16.mxu0 %v9005
    %10931 = vmatpush2.bf16.msra.mxu0 %v9004
    %10932 = vmatprep.subr.bf16.mxu0 %v8989
    %10933 = vmatpush2.bf16.msra.mxu0 %v8988
    %10934 = vmatprep.subr.bf16.mxu0 %v8973
    %10935 = vmatpush2.bf16.msra.mxu0 %v8972
    %10936 = vmatprep.subr.bf16.mxu0 %v8957
    %10937 = vmatpush2.bf16.msra.mxu0 %v8956
    %10938 = vmatprep.subr.bf16.mxu0 %v8941
    %10939 = vmatpush2.bf16.msra.mxu0 %v8940
    %10940 = vmatprep.subr.bf16.mxu0 %v8925
    %10941 = vmatpush2.bf16.msra.mxu0 %v8924
    %10942 = vmatprep.subr.bf16.mxu0 %v8909
    %10943 = vmatpush2.bf16.msra.mxu0 %v8908
    %10944 = vmatprep.mubr.bf16.mxu0 %v3163
    %10945 = vmatmul.mubr.bf16.gmra.mxu0 %v3162
    %v10946 = vpop.f32.mrf.mxu0
    %v10947 = vadd.f32 %v10904, %v10946
    %v10948 = vpop.f32.mrf.mxu0
    %v10949 = vadd.f32 %v10906, %v10948
    %v10950 = vpop.f32.mrf.mxu0
    %v10951 = vadd.f32 %v10908, %v10950
    %v10952 = vpop.f32.mrf.mxu0
    %v10953 = vadd.f32 %v10910, %v10952
    %10954 = vdwg.mxu0
    %10955 = vmatprep.subr.bf16.mxu0 %v9149
    %10956 = vmatpush1.bf16.msra.mxu0 %v9148
    %10957 = vmatprep.subr.bf16.mxu0 %v9133
    %10958 = vmatpush1.bf16.msra.mxu0 %v9132
    %10959 = vmatprep.subr.bf16.mxu0 %v9117
    %10960 = vmatpush1.bf16.msra.mxu0 %v9116
    %10961 = vmatprep.subr.bf16.mxu0 %v9101
    %10962 = vmatpush1.bf16.msra.mxu0 %v9100
    %10963 = vmatprep.subr.bf16.mxu0 %v9085
    %10964 = vmatpush1.bf16.msra.mxu0 %v9084
    %10965 = vmatprep.subr.bf16.mxu0 %v9069
    %10966 = vmatpush1.bf16.msra.mxu0 %v9068
    %10967 = vmatprep.subr.bf16.mxu0 %v9053
    %10968 = vmatpush1.bf16.msra.mxu0 %v9052
    %10969 = vmatprep.subr.bf16.mxu0 %v9037
    %10970 = vmatpush1.bf16.msra.mxu0 %v9036
    %10971 = vmatprep.subr.bf16.mxu0 %v9277
    %10972 = vmatpush2.bf16.msra.mxu0 %v9276
    %10973 = vmatprep.subr.bf16.mxu0 %v9261
    %10974 = vmatpush2.bf16.msra.mxu0 %v9260
    %10975 = vmatprep.subr.bf16.mxu0 %v9245
    %10976 = vmatpush2.bf16.msra.mxu0 %v9244
    %10977 = vmatprep.subr.bf16.mxu0 %v9229
    %10978 = vmatpush2.bf16.msra.mxu0 %v9228
    %10979 = vmatprep.subr.bf16.mxu0 %v9213
    %10980 = vmatpush2.bf16.msra.mxu0 %v9212
    %10981 = vmatprep.subr.bf16.mxu0 %v9197
    %10982 = vmatpush2.bf16.msra.mxu0 %v9196
    %10983 = vmatprep.subr.bf16.mxu0 %v9181
    %10984 = vmatpush2.bf16.msra.mxu0 %v9180
    %10985 = vmatprep.subr.bf16.mxu0 %v9165
    %10986 = vmatpush2.bf16.msra.mxu0 %v9164
    %10987 = vmatprep.mubr.bf16.mxu0 %v4165
    %10988 = vmatmul.mubr.bf16.gmra.mxu0 %v4164
    %v10989 = vpop.f32.mrf.mxu0
    %v10990 = vadd.f32 %v10947, %v10989
    %v10991 = vpop.f32.mrf.mxu0
    %v10992 = vadd.f32 %v10949, %v10991
    %v10993 = vpop.f32.mrf.mxu0
    %v10994 = vadd.f32 %v10951, %v10993
    %v10995 = vpop.f32.mrf.mxu0
    %v10996 = vadd.f32 %v10953, %v10995
    %10997 = vdwg.mxu0
    %10998 = vmatprep.subr.bf16.mxu0 %v8383
    %10999 = vmatpush1.bf16.msra.mxu0 %v8382
    %11000 = vmatprep.subr.bf16.mxu0 %v8367
    %11001 = vmatpush1.bf16.msra.mxu0 %v8366
    %11002 = vmatprep.subr.bf16.mxu0 %v8351
    %11003 = vmatpush1.bf16.msra.mxu0 %v8350
    %11004 = vmatprep.subr.bf16.mxu0 %v8335
    %11005 = vmatpush1.bf16.msra.mxu0 %v8334
    %11006 = vmatprep.subr.bf16.mxu0 %v8319
    %11007 = vmatpush1.bf16.msra.mxu0 %v8318
    %11008 = vmatprep.subr.bf16.mxu0 %v8303
    %11009 = vmatpush1.bf16.msra.mxu0 %v8302
    %11010 = vmatprep.subr.bf16.mxu0 %v8287
    %11011 = vmatpush1.bf16.msra.mxu0 %v8286
    %11012 = vmatprep.subr.bf16.mxu0 %v8271
    %11013 = vmatpush1.bf16.msra.mxu0 %v8270
    %11014 = vmatprep.subr.bf16.mxu0 %v8511
    %11015 = vmatpush2.bf16.msra.mxu0 %v8510
    %11016 = vmatprep.subr.bf16.mxu0 %v8495
    %11017 = vmatpush2.bf16.msra.mxu0 %v8494
    %11018 = vmatprep.subr.bf16.mxu0 %v8479
    %11019 = vmatpush2.bf16.msra.mxu0 %v8478
    %11020 = vmatprep.subr.bf16.mxu0 %v8463
    %11021 = vmatpush2.bf16.msra.mxu0 %v8462
    %11022 = vmatprep.subr.bf16.mxu0 %v8447
    %11023 = vmatpush2.bf16.msra.mxu0 %v8446
    %11024 = vmatprep.subr.bf16.mxu0 %v8431
    %11025 = vmatpush2.bf16.msra.mxu0 %v8430
    %11026 = vmatprep.subr.bf16.mxu0 %v8415
    %11027 = vmatpush2.bf16.msra.mxu0 %v8414
    %11028 = vmatprep.subr.bf16.mxu0 %v8399
    %11029 = vmatpush2.bf16.msra.mxu0 %v8398
    %11030 = vmatprep.mubr.bf16.mxu0 %v1159
    %11031 = vmatmul.mubr.bf16.gmra.mxu0 %v1158
    %v11032 = vpop.f32.mrf.mxu0
    %v11033 = vadd.f32 0.0, %v11032
    %v11034 = vpop.f32.mrf.mxu0
    %v11035 = vadd.f32 0.0, %v11034
    %v11036 = vpop.f32.mrf.mxu0
    %v11037 = vadd.f32 0.0, %v11036
    %v11038 = vpop.f32.mrf.mxu0
    %v11039 = vadd.f32 0.0, %v11038
    %11040 = vdwg.mxu0
    %11041 = vmatprep.subr.bf16.mxu0 %v8639
    %11042 = vmatpush1.bf16.msra.mxu0 %v8638
    %11043 = vmatprep.subr.bf16.mxu0 %v8623
    %11044 = vmatpush1.bf16.msra.mxu0 %v8622
    %11045 = vmatprep.subr.bf16.mxu0 %v8607
    %11046 = vmatpush1.bf16.msra.mxu0 %v8606
    %11047 = vmatprep.subr.bf16.mxu0 %v8591
    %11048 = vmatpush1.bf16.msra.mxu0 %v8590
    %11049 = vmatprep.subr.bf16.mxu0 %v8575
    %11050 = vmatpush1.bf16.msra.mxu0 %v8574
    %11051 = vmatprep.subr.bf16.mxu0 %v8559
    %11052 = vmatpush1.bf16.msra.mxu0 %v8558
    %11053 = vmatprep.subr.bf16.mxu0 %v8543
    %11054 = vmatpush1.bf16.msra.mxu0 %v8542
    %11055 = vmatprep.subr.bf16.mxu0 %v8527
    %11056 = vmatpush1.bf16.msra.mxu0 %v8526
    %11057 = vmatprep.subr.bf16.mxu0 %v8767
    %11058 = vmatpush2.bf16.msra.mxu0 %v8766
    %11059 = vmatprep.subr.bf16.mxu0 %v8751
    %11060 = vmatpush2.bf16.msra.mxu0 %v8750
    %11061 = vmatprep.subr.bf16.mxu0 %v8735
    %11062 = vmatpush2.bf16.msra.mxu0 %v8734
    %11063 = vmatprep.subr.bf16.mxu0 %v8719
    %11064 = vmatpush2.bf16.msra.mxu0 %v8718
    %11065 = vmatprep.subr.bf16.mxu0 %v8703
    %11066 = vmatpush2.bf16.msra.mxu0 %v8702
    %11067 = vmatprep.subr.bf16.mxu0 %v8687
    %11068 = vmatpush2.bf16.msra.mxu0 %v8686
    %11069 = vmatprep.subr.bf16.mxu0 %v8671
    %11070 = vmatpush2.bf16.msra.mxu0 %v8670
    %11071 = vmatprep.subr.bf16.mxu0 %v8655
    %11072 = vmatpush2.bf16.msra.mxu0 %v8654
    %11073 = vmatprep.mubr.bf16.mxu0 %v2161
    %11074 = vmatmul.mubr.bf16.gmra.mxu0 %v2160
    %v11075 = vpop.f32.mrf.mxu0
    %v11076 = vadd.f32 %v11033, %v11075
    %v11077 = vpop.f32.mrf.mxu0
    %v11078 = vadd.f32 %v11035, %v11077
    %v11079 = vpop.f32.mrf.mxu0
    %v11080 = vadd.f32 %v11037, %v11079
    %v11081 = vpop.f32.mrf.mxu0
    %v11082 = vadd.f32 %v11039, %v11081
    %11083 = vdwg.mxu0
    %11084 = vmatprep.subr.bf16.mxu0 %v8895
    %11085 = vmatpush1.bf16.msra.mxu0 %v8894
    %11086 = vmatprep.subr.bf16.mxu0 %v8879
    %11087 = vmatpush1.bf16.msra.mxu0 %v8878
    %11088 = vmatprep.subr.bf16.mxu0 %v8863
    %11089 = vmatpush1.bf16.msra.mxu0 %v8862
    %11090 = vmatprep.subr.bf16.mxu0 %v8847
    %11091 = vmatpush1.bf16.msra.mxu0 %v8846
    %11092 = vmatprep.subr.bf16.mxu0 %v8831
    %11093 = vmatpush1.bf16.msra.mxu0 %v8830
    %11094 = vmatprep.subr.bf16.mxu0 %v8815
    %11095 = vmatpush1.bf16.msra.mxu0 %v8814
    %11096 = vmatprep.subr.bf16.mxu0 %v8799
    %11097 = vmatpush1.bf16.msra.mxu0 %v8798
    %11098 = vmatprep.subr.bf16.mxu0 %v8783
    %11099 = vmatpush1.bf16.msra.mxu0 %v8782
    %11100 = vmatprep.subr.bf16.mxu0 %v9023
    %11101 = vmatpush2.bf16.msra.mxu0 %v9022
    %11102 = vmatprep.subr.bf16.mxu0 %v9007
    %11103 = vmatpush2.bf16.msra.mxu0 %v9006
    %11104 = vmatprep.subr.bf16.mxu0 %v8991
    %11105 = vmatpush2.bf16.msra.mxu0 %v8990
    %11106 = vmatprep.subr.bf16.mxu0 %v8975
    %11107 = vmatpush2.bf16.msra.mxu0 %v8974
    %11108 = vmatprep.subr.bf16.mxu0 %v8959
    %11109 = vmatpush2.bf16.msra.mxu0 %v8958
    %11110 = vmatprep.subr.bf16.mxu0 %v8943
    %11111 = vmatpush2.bf16.msra.mxu0 %v8942
    %11112 = vmatprep.subr.bf16.mxu0 %v8927
    %11113 = vmatpush2.bf16.msra.mxu0 %v8926
    %11114 = vmatprep.subr.bf16.mxu0 %v8911
    %11115 = vmatpush2.bf16.msra.mxu0 %v8910
    %11116 = vmatprep.mubr.bf16.mxu0 %v3163
    %11117 = vmatmul.mubr.bf16.gmra.mxu0 %v3162
    %v11118 = vpop.f32.mrf.mxu0
    %v11119 = vadd.f32 %v11076, %v11118
    %v11120 = vpop.f32.mrf.mxu0
    %v11121 = vadd.f32 %v11078, %v11120
    %v11122 = vpop.f32.mrf.mxu0
    %v11123 = vadd.f32 %v11080, %v11122
    %v11124 = vpop.f32.mrf.mxu0
    %v11125 = vadd.f32 %v11082, %v11124
    %11126 = vdwg.mxu0
    %11127 = vmatprep.subr.bf16.mxu0 %v9151
    %11128 = vmatpush1.bf16.msra.mxu0 %v9150
    %11129 = vmatprep.subr.bf16.mxu0 %v9135
    %11130 = vmatpush1.bf16.msra.mxu0 %v9134
    %11131 = vmatprep.subr.bf16.mxu0 %v9119
    %11132 = vmatpush1.bf16.msra.mxu0 %v9118
    %11133 = vmatprep.subr.bf16.mxu0 %v9103
    %11134 = vmatpush1.bf16.msra.mxu0 %v9102
    %11135 = vmatprep.subr.bf16.mxu0 %v9087
    %11136 = vmatpush1.bf16.msra.mxu0 %v9086
    %11137 = vmatprep.subr.bf16.mxu0 %v9071
    %11138 = vmatpush1.bf16.msra.mxu0 %v9070
    %11139 = vmatprep.subr.bf16.mxu0 %v9055
    %11140 = vmatpush1.bf16.msra.mxu0 %v9054
    %11141 = vmatprep.subr.bf16.mxu0 %v9039
    %11142 = vmatpush1.bf16.msra.mxu0 %v9038
    %11143 = vmatprep.subr.bf16.mxu0 %v9279
    %11144 = vmatpush2.bf16.msra.mxu0 %v9278
    %11145 = vmatprep.subr.bf16.mxu0 %v9263
    %11146 = vmatpush2.bf16.msra.mxu0 %v9262
    %11147 = vmatprep.subr.bf16.mxu0 %v9247
    %11148 = vmatpush2.bf16.msra.mxu0 %v9246
    %11149 = vmatprep.subr.bf16.mxu0 %v9231
    %11150 = vmatpush2.bf16.msra.mxu0 %v9230
    %11151 = vmatprep.subr.bf16.mxu0 %v9215
    %11152 = vmatpush2.bf16.msra.mxu0 %v9214
    %11153 = vmatprep.subr.bf16.mxu0 %v9199
    %11154 = vmatpush2.bf16.msra.mxu0 %v9198
    %11155 = vmatprep.subr.bf16.mxu0 %v9183
    %11156 = vmatpush2.bf16.msra.mxu0 %v9182
    %11157 = vmatprep.subr.bf16.mxu0 %v9167
    %11158 = vmatpush2.bf16.msra.mxu0 %v9166
    %11159 = vmatprep.mubr.bf16.mxu0 %v4165
    %11160 = vmatmul.mubr.bf16.gmra.mxu0 %v4164
    %v11161 = vpop.f32.mrf.mxu0
    %v11162 = vadd.f32 %v11119, %v11161
    %v11163 = vpop.f32.mrf.mxu0
    %v11164 = vadd.f32 %v11121, %v11163
    %v11165 = vpop.f32.mrf.mxu0
    %v11166 = vadd.f32 %v11123, %v11165
    %v11167 = vpop.f32.mrf.mxu0
    %v11168 = vadd.f32 %v11125, %v11167
    %11169 = vdwg.mxu0
    %11170 = vmatprep.subr.bf16.mxu0 %v8385
    %11171 = vmatpush1.bf16.msra.mxu0 %v8384
    %11172 = vmatprep.subr.bf16.mxu0 %v8369
    %11173 = vmatpush1.bf16.msra.mxu0 %v8368
    %11174 = vmatprep.subr.bf16.mxu0 %v8353
    %11175 = vmatpush1.bf16.msra.mxu0 %v8352
    %11176 = vmatprep.subr.bf16.mxu0 %v8337
    %11177 = vmatpush1.bf16.msra.mxu0 %v8336
    %11178 = vmatprep.subr.bf16.mxu0 %v8321
    %11179 = vmatpush1.bf16.msra.mxu0 %v8320
    %11180 = vmatprep.subr.bf16.mxu0 %v8305
    %11181 = vmatpush1.bf16.msra.mxu0 %v8304
    %11182 = vmatprep.subr.bf16.mxu0 %v8289
    %11183 = vmatpush1.bf16.msra.mxu0 %v8288
    %11184 = vmatprep.subr.bf16.mxu0 %v8273
    %11185 = vmatpush1.bf16.msra.mxu0 %v8272
    %11186 = vmatprep.subr.bf16.mxu0 %v8513
    %11187 = vmatpush2.bf16.msra.mxu0 %v8512
    %11188 = vmatprep.subr.bf16.mxu0 %v8497
    %11189 = vmatpush2.bf16.msra.mxu0 %v8496
    %11190 = vmatprep.subr.bf16.mxu0 %v8481
    %11191 = vmatpush2.bf16.msra.mxu0 %v8480
    %11192 = vmatprep.subr.bf16.mxu0 %v8465
    %11193 = vmatpush2.bf16.msra.mxu0 %v8464
    %11194 = vmatprep.subr.bf16.mxu0 %v8449
    %11195 = vmatpush2.bf16.msra.mxu0 %v8448
    %11196 = vmatprep.subr.bf16.mxu0 %v8433
    %11197 = vmatpush2.bf16.msra.mxu0 %v8432
    %11198 = vmatprep.subr.bf16.mxu0 %v8417
    %11199 = vmatpush2.bf16.msra.mxu0 %v8416
    %11200 = vmatprep.subr.bf16.mxu0 %v8401
    %11201 = vmatpush2.bf16.msra.mxu0 %v8400
    %11202 = vmatprep.mubr.bf16.mxu0 %v1159
    %11203 = vmatmul.mubr.bf16.gmra.mxu0 %v1158
    %v11204 = vpop.f32.mrf.mxu0
    %v11205 = vadd.f32 0.0, %v11204
    %v11206 = vpop.f32.mrf.mxu0
    %v11207 = vadd.f32 0.0, %v11206
    %v11208 = vpop.f32.mrf.mxu0
    %v11209 = vadd.f32 0.0, %v11208
    %v11210 = vpop.f32.mrf.mxu0
    %v11211 = vadd.f32 0.0, %v11210
    %11212 = vdwg.mxu0
    %11213 = vmatprep.subr.bf16.mxu0 %v8641
    %11214 = vmatpush1.bf16.msra.mxu0 %v8640
    %11215 = vmatprep.subr.bf16.mxu0 %v8625
    %11216 = vmatpush1.bf16.msra.mxu0 %v8624
    %11217 = vmatprep.subr.bf16.mxu0 %v8609
    %11218 = vmatpush1.bf16.msra.mxu0 %v8608
    %11219 = vmatprep.subr.bf16.mxu0 %v8593
    %11220 = vmatpush1.bf16.msra.mxu0 %v8592
    %11221 = vmatprep.subr.bf16.mxu0 %v8577
    %11222 = vmatpush1.bf16.msra.mxu0 %v8576
    %11223 = vmatprep.subr.bf16.mxu0 %v8561
    %11224 = vmatpush1.bf16.msra.mxu0 %v8560
    %11225 = vmatprep.subr.bf16.mxu0 %v8545
    %11226 = vmatpush1.bf16.msra.mxu0 %v8544
    %11227 = vmatprep.subr.bf16.mxu0 %v8529
    %11228 = vmatpush1.bf16.msra.mxu0 %v8528
    %11229 = vmatprep.subr.bf16.mxu0 %v8769
    %11230 = vmatpush2.bf16.msra.mxu0 %v8768
    %11231 = vmatprep.subr.bf16.mxu0 %v8753
    %11232 = vmatpush2.bf16.msra.mxu0 %v8752
    %11233 = vmatprep.subr.bf16.mxu0 %v8737
    %11234 = vmatpush2.bf16.msra.mxu0 %v8736
    %11235 = vmatprep.subr.bf16.mxu0 %v8721
    %11236 = vmatpush2.bf16.msra.mxu0 %v8720
    %11237 = vmatprep.subr.bf16.mxu0 %v8705
    %11238 = vmatpush2.bf16.msra.mxu0 %v8704
    %11239 = vmatprep.subr.bf16.mxu0 %v8689
    %11240 = vmatpush2.bf16.msra.mxu0 %v8688
    %11241 = vmatprep.subr.bf16.mxu0 %v8673
    %11242 = vmatpush2.bf16.msra.mxu0 %v8672
    %11243 = vmatprep.subr.bf16.mxu0 %v8657
    %11244 = vmatpush2.bf16.msra.mxu0 %v8656
    %11245 = vmatprep.mubr.bf16.mxu0 %v2161
    %11246 = vmatmul.mubr.bf16.gmra.mxu0 %v2160
    %v11247 = vpop.f32.mrf.mxu0
    %v11248 = vadd.f32 %v11205, %v11247
    %v11249 = vpop.f32.mrf.mxu0
    %v11250 = vadd.f32 %v11207, %v11249
    %v11251 = vpop.f32.mrf.mxu0
    %v11252 = vadd.f32 %v11209, %v11251
    %v11253 = vpop.f32.mrf.mxu0
    %v11254 = vadd.f32 %v11211, %v11253
    %11255 = vdwg.mxu0
    %11256 = vmatprep.subr.bf16.mxu0 %v8897
    %11257 = vmatpush1.bf16.msra.mxu0 %v8896
    %11258 = vmatprep.subr.bf16.mxu0 %v8881
    %11259 = vmatpush1.bf16.msra.mxu0 %v8880
    %11260 = vmatprep.subr.bf16.mxu0 %v8865
    %11261 = vmatpush1.bf16.msra.mxu0 %v8864
    %11262 = vmatprep.subr.bf16.mxu0 %v8849
    %11263 = vmatpush1.bf16.msra.mxu0 %v8848
    %11264 = vmatprep.subr.bf16.mxu0 %v8833
    %11265 = vmatpush1.bf16.msra.mxu0 %v8832
    %11266 = vmatprep.subr.bf16.mxu0 %v8817
    %11267 = vmatpush1.bf16.msra.mxu0 %v8816
    %11268 = vmatprep.subr.bf16.mxu0 %v8801
    %11269 = vmatpush1.bf16.msra.mxu0 %v8800
    %11270 = vmatprep.subr.bf16.mxu0 %v8785
    %11271 = vmatpush1.bf16.msra.mxu0 %v8784
    %11272 = vmatprep.subr.bf16.mxu0 %v9025
    %11273 = vmatpush2.bf16.msra.mxu0 %v9024
    %11274 = vmatprep.subr.bf16.mxu0 %v9009
    %11275 = vmatpush2.bf16.msra.mxu0 %v9008
    %11276 = vmatprep.subr.bf16.mxu0 %v8993
    %11277 = vmatpush2.bf16.msra.mxu0 %v8992
    %11278 = vmatprep.subr.bf16.mxu0 %v8977
    %11279 = vmatpush2.bf16.msra.mxu0 %v8976
    %11280 = vmatprep.subr.bf16.mxu0 %v8961
    %11281 = vmatpush2.bf16.msra.mxu0 %v8960
    %11282 = vmatprep.subr.bf16.mxu0 %v8945
    %11283 = vmatpush2.bf16.msra.mxu0 %v8944
    %11284 = vmatprep.subr.bf16.mxu0 %v8929
    %11285 = vmatpush2.bf16.msra.mxu0 %v8928
    %11286 = vmatprep.subr.bf16.mxu0 %v8913
    %11287 = vmatpush2.bf16.msra.mxu0 %v8912
    %11288 = vmatprep.mubr.bf16.mxu0 %v3163
    %11289 = vmatmul.mubr.bf16.gmra.mxu0 %v3162
    %v11290 = vpop.f32.mrf.mxu0
    %v11291 = vadd.f32 %v11248, %v11290
    %v11292 = vpop.f32.mrf.mxu0
    %v11293 = vadd.f32 %v11250, %v11292
    %v11294 = vpop.f32.mrf.mxu0
    %v11295 = vadd.f32 %v11252, %v11294
    %v11296 = vpop.f32.mrf.mxu0
    %v11297 = vadd.f32 %v11254, %v11296
    %11298 = vdwg.mxu0
    %11299 = vmatprep.subr.bf16.mxu0 %v9153
    %11300 = vmatpush1.bf16.msra.mxu0 %v9152
    %11301 = vmatprep.subr.bf16.mxu0 %v9137
    %11302 = vmatpush1.bf16.msra.mxu0 %v9136
    %11303 = vmatprep.subr.bf16.mxu0 %v9121
    %11304 = vmatpush1.bf16.msra.mxu0 %v9120
    %11305 = vmatprep.subr.bf16.mxu0 %v9105
    %11306 = vmatpush1.bf16.msra.mxu0 %v9104
    %11307 = vmatprep.subr.bf16.mxu0 %v9089
    %11308 = vmatpush1.bf16.msra.mxu0 %v9088
    %11309 = vmatprep.subr.bf16.mxu0 %v9073
    %11310 = vmatpush1.bf16.msra.mxu0 %v9072
    %11311 = vmatprep.subr.bf16.mxu0 %v9057
    %11312 = vmatpush1.bf16.msra.mxu0 %v9056
    %11313 = vmatprep.subr.bf16.mxu0 %v9041
    %11314 = vmatpush1.bf16.msra.mxu0 %v9040
    %11315 = vmatprep.subr.bf16.mxu0 %v9281
    %11316 = vmatpush2.bf16.msra.mxu0 %v9280
    %11317 = vmatprep.subr.bf16.mxu0 %v9265
    %11318 = vmatpush2.bf16.msra.mxu0 %v9264
    %11319 = vmatprep.subr.bf16.mxu0 %v9249
    %11320 = vmatpush2.bf16.msra.mxu0 %v9248
    %11321 = vmatprep.subr.bf16.mxu0 %v9233
    %11322 = vmatpush2.bf16.msra.mxu0 %v9232
    %11323 = vmatprep.subr.bf16.mxu0 %v9217
    %11324 = vmatpush2.bf16.msra.mxu0 %v9216
    %11325 = vmatprep.subr.bf16.mxu0 %v9201
    %11326 = vmatpush2.bf16.msra.mxu0 %v9200
    %11327 = vmatprep.subr.bf16.mxu0 %v9185
    %11328 = vmatpush2.bf16.msra.mxu0 %v9184
    %11329 = vmatprep.subr.bf16.mxu0 %v9169
    %11330 = vmatpush2.bf16.msra.mxu0 %v9168
    %11331 = vmatprep.mubr.bf16.mxu0 %v4165
    %11332 = vmatmul.mubr.bf16.gmra.mxu0 %v4164
    %v11333 = vpop.f32.mrf.mxu0
    %v11334 = vadd.f32 %v11291, %v11333
    %v11335 = vpop.f32.mrf.mxu0
    %v11336 = vadd.f32 %v11293, %v11335
    %v11337 = vpop.f32.mrf.mxu0
    %v11338 = vadd.f32 %v11295, %v11337
    %v11339 = vpop.f32.mrf.mxu0
    %v11340 = vadd.f32 %v11297, %v11339
    %11341 = vdwg.mxu0
    %11342 = vmatprep.subr.bf16.mxu0 %v8387
    %11343 = vmatpush1.bf16.msra.mxu0 %v8386
    %11344 = vmatprep.subr.bf16.mxu0 %v8371
    %11345 = vmatpush1.bf16.msra.mxu0 %v8370
    %11346 = vmatprep.subr.bf16.mxu0 %v8355
    %11347 = vmatpush1.bf16.msra.mxu0 %v8354
    %11348 = vmatprep.subr.bf16.mxu0 %v8339
    %11349 = vmatpush1.bf16.msra.mxu0 %v8338
    %11350 = vmatprep.subr.bf16.mxu0 %v8323
    %11351 = vmatpush1.bf16.msra.mxu0 %v8322
    %11352 = vmatprep.subr.bf16.mxu0 %v8307
    %11353 = vmatpush1.bf16.msra.mxu0 %v8306
    %11354 = vmatprep.subr.bf16.mxu0 %v8291
    %11355 = vmatpush1.bf16.msra.mxu0 %v8290
    %11356 = vmatprep.subr.bf16.mxu0 %v8275
    %11357 = vmatpush1.bf16.msra.mxu0 %v8274
    %11358 = vmatprep.subr.bf16.mxu0 %v8515
    %11359 = vmatpush2.bf16.msra.mxu0 %v8514
    %11360 = vmatprep.subr.bf16.mxu0 %v8499
    %11361 = vmatpush2.bf16.msra.mxu0 %v8498
    %11362 = vmatprep.subr.bf16.mxu0 %v8483
    %11363 = vmatpush2.bf16.msra.mxu0 %v8482
    %11364 = vmatprep.subr.bf16.mxu0 %v8467
    %11365 = vmatpush2.bf16.msra.mxu0 %v8466
    %11366 = vmatprep.subr.bf16.mxu0 %v8451
    %11367 = vmatpush2.bf16.msra.mxu0 %v8450
    %11368 = vmatprep.subr.bf16.mxu0 %v8435
    %11369 = vmatpush2.bf16.msra.mxu0 %v8434
    %11370 = vmatprep.subr.bf16.mxu0 %v8419
    %11371 = vmatpush2.bf16.msra.mxu0 %v8418
    %11372 = vmatprep.subr.bf16.mxu0 %v8403
    %11373 = vmatpush2.bf16.msra.mxu0 %v8402
    %11374 = vmatprep.mubr.bf16.mxu0 %v1159
    %11375 = vmatmul.mubr.bf16.gmra.mxu0 %v1158
    %v11376 = vpop.f32.mrf.mxu0
    %v11377 = vadd.f32 0.0, %v11376
    %v11378 = vpop.f32.mrf.mxu0
    %v11379 = vadd.f32 0.0, %v11378
    %v11380 = vpop.f32.mrf.mxu0
    %v11381 = vadd.f32 0.0, %v11380
    %v11382 = vpop.f32.mrf.mxu0
    %v11383 = vadd.f32 0.0, %v11382
    %11384 = vdwg.mxu0
    %11385 = vmatprep.subr.bf16.mxu0 %v8643
    %11386 = vmatpush1.bf16.msra.mxu0 %v8642
    %11387 = vmatprep.subr.bf16.mxu0 %v8627
    %11388 = vmatpush1.bf16.msra.mxu0 %v8626
    %11389 = vmatprep.subr.bf16.mxu0 %v8611
    %11390 = vmatpush1.bf16.msra.mxu0 %v8610
    %11391 = vmatprep.subr.bf16.mxu0 %v8595
    %11392 = vmatpush1.bf16.msra.mxu0 %v8594
    %11393 = vmatprep.subr.bf16.mxu0 %v8579
    %11394 = vmatpush1.bf16.msra.mxu0 %v8578
    %11395 = vmatprep.subr.bf16.mxu0 %v8563
    %11396 = vmatpush1.bf16.msra.mxu0 %v8562
    %11397 = vmatprep.subr.bf16.mxu0 %v8547
    %11398 = vmatpush1.bf16.msra.mxu0 %v8546
    %11399 = vmatprep.subr.bf16.mxu0 %v8531
    %11400 = vmatpush1.bf16.msra.mxu0 %v8530
    %11401 = vmatprep.subr.bf16.mxu0 %v8771
    %11402 = vmatpush2.bf16.msra.mxu0 %v8770
    %11403 = vmatprep.subr.bf16.mxu0 %v8755
    %11404 = vmatpush2.bf16.msra.mxu0 %v8754
    %11405 = vmatprep.subr.bf16.mxu0 %v8739
    %11406 = vmatpush2.bf16.msra.mxu0 %v8738
    %11407 = vmatprep.subr.bf16.mxu0 %v8723
    %11408 = vmatpush2.bf16.msra.mxu0 %v8722
    %11409 = vmatprep.subr.bf16.mxu0 %v8707
    %11410 = vmatpush2.bf16.msra.mxu0 %v8706
    %11411 = vmatprep.subr.bf16.mxu0 %v8691
    %11412 = vmatpush2.bf16.msra.mxu0 %v8690
    %11413 = vmatprep.subr.bf16.mxu0 %v8675
    %11414 = vmatpush2.bf16.msra.mxu0 %v8674
    %11415 = vmatprep.subr.bf16.mxu0 %v8659
    %11416 = vmatpush2.bf16.msra.mxu0 %v8658
    %11417 = vmatprep.mubr.bf16.mxu0 %v2161
    %11418 = vmatmul.mubr.bf16.gmra.mxu0 %v2160
    %v11419 = vpop.f32.mrf.mxu0
    %v11420 = vadd.f32 %v11377, %v11419
    %v11421 = vpop.f32.mrf.mxu0
    %v11422 = vadd.f32 %v11379, %v11421
    %v11423 = vpop.f32.mrf.mxu0
    %v11424 = vadd.f32 %v11381, %v11423
    %v11425 = vpop.f32.mrf.mxu0
    %v11426 = vadd.f32 %v11383, %v11425
    %11427 = vdwg.mxu0
    %11428 = vmatprep.subr.bf16.mxu0 %v8899
    %11429 = vmatpush1.bf16.msra.mxu0 %v8898
    %11430 = vmatprep.subr.bf16.mxu0 %v8883
    %11431 = vmatpush1.bf16.msra.mxu0 %v8882
    %11432 = vmatprep.subr.bf16.mxu0 %v8867
    %11433 = vmatpush1.bf16.msra.mxu0 %v8866
    %11434 = vmatprep.subr.bf16.mxu0 %v8851
    %11435 = vmatpush1.bf16.msra.mxu0 %v8850
    %11436 = vmatprep.subr.bf16.mxu0 %v8835
    %11437 = vmatpush1.bf16.msra.mxu0 %v8834
    %11438 = vmatprep.subr.bf16.mxu0 %v8819
    %11439 = vmatpush1.bf16.msra.mxu0 %v8818
    %11440 = vmatprep.subr.bf16.mxu0 %v8803
    %11441 = vmatpush1.bf16.msra.mxu0 %v8802
    %11442 = vmatprep.subr.bf16.mxu0 %v8787
    %11443 = vmatpush1.bf16.msra.mxu0 %v8786
    %11444 = vmatprep.subr.bf16.mxu0 %v9027
    %11445 = vmatpush2.bf16.msra.mxu0 %v9026
    %11446 = vmatprep.subr.bf16.mxu0 %v9011
    %11447 = vmatpush2.bf16.msra.mxu0 %v9010
    %11448 = vmatprep.subr.bf16.mxu0 %v8995
    %11449 = vmatpush2.bf16.msra.mxu0 %v8994
    %11450 = vmatprep.subr.bf16.mxu0 %v8979
    %11451 = vmatpush2.bf16.msra.mxu0 %v8978
    %11452 = vmatprep.subr.bf16.mxu0 %v8963
    %11453 = vmatpush2.bf16.msra.mxu0 %v8962
    %11454 = vmatprep.subr.bf16.mxu0 %v8947
    %11455 = vmatpush2.bf16.msra.mxu0 %v8946
    %11456 = vmatprep.subr.bf16.mxu0 %v8931
    %11457 = vmatpush2.bf16.msra.mxu0 %v8930
    %11458 = vmatprep.subr.bf16.mxu0 %v8915
    %11459 = vmatpush2.bf16.msra.mxu0 %v8914
    %11460 = vmatprep.mubr.bf16.mxu0 %v3163
    %11461 = vmatmul.mubr.bf16.gmra.mxu0 %v3162
    %v11462 = vpop.f32.mrf.mxu0
    %v11463 = vadd.f32 %v11420, %v11462
    %v11464 = vpop.f32.mrf.mxu0
    %v11465 = vadd.f32 %v11422, %v11464
    %v11466 = vpop.f32.mrf.mxu0
    %v11467 = vadd.f32 %v11424, %v11466
    %v11468 = vpop.f32.mrf.mxu0
    %v11469 = vadd.f32 %v11426, %v11468
    %11470 = vdwg.mxu0
    %11471 = vmatprep.subr.bf16.mxu0 %v9155
    %11472 = vmatpush1.bf16.msra.mxu0 %v9154
    %11473 = vmatprep.subr.bf16.mxu0 %v9139
    %11474 = vmatpush1.bf16.msra.mxu0 %v9138
    %11475 = vmatprep.subr.bf16.mxu0 %v9123
    %11476 = vmatpush1.bf16.msra.mxu0 %v9122
    %11477 = vmatprep.subr.bf16.mxu0 %v9107
    %11478 = vmatpush1.bf16.msra.mxu0 %v9106
    %11479 = vmatprep.subr.bf16.mxu0 %v9091
    %11480 = vmatpush1.bf16.msra.mxu0 %v9090
    %11481 = vmatprep.subr.bf16.mxu0 %v9075
    %11482 = vmatpush1.bf16.msra.mxu0 %v9074
    %11483 = vmatprep.subr.bf16.mxu0 %v9059
    %11484 = vmatpush1.bf16.msra.mxu0 %v9058
    %11485 = vmatprep.subr.bf16.mxu0 %v9043
    %11486 = vmatpush1.bf16.msra.mxu0 %v9042
    %11487 = vmatprep.subr.bf16.mxu0 %v9283
    %11488 = vmatpush2.bf16.msra.mxu0 %v9282
    %11489 = vmatprep.subr.bf16.mxu0 %v9267
    %11490 = vmatpush2.bf16.msra.mxu0 %v9266
    %11491 = vmatprep.subr.bf16.mxu0 %v9251
    %11492 = vmatpush2.bf16.msra.mxu0 %v9250
    %11493 = vmatprep.subr.bf16.mxu0 %v9235
    %11494 = vmatpush2.bf16.msra.mxu0 %v9234
    %11495 = vmatprep.subr.bf16.mxu0 %v9219
    %11496 = vmatpush2.bf16.msra.mxu0 %v9218
    %11497 = vmatprep.subr.bf16.mxu0 %v9203
    %11498 = vmatpush2.bf16.msra.mxu0 %v9202
    %11499 = vmatprep.subr.bf16.mxu0 %v9187
    %11500 = vmatpush2.bf16.msra.mxu0 %v9186
    %11501 = vmatprep.subr.bf16.mxu0 %v9171
    %11502 = vmatpush2.bf16.msra.mxu0 %v9170
    %11503 = vmatprep.mubr.bf16.mxu0 %v4165
    %11504 = vmatmul.mubr.bf16.gmra.mxu0 %v4164
    %v11505 = vpop.f32.mrf.mxu0
    %v11506 = vadd.f32 %v11463, %v11505
    %v11507 = vpop.f32.mrf.mxu0
    %v11508 = vadd.f32 %v11465, %v11507
    %v11509 = vpop.f32.mrf.mxu0
    %v11510 = vadd.f32 %v11467, %v11509
    %v11511 = vpop.f32.mrf.mxu0
    %v11512 = vadd.f32 %v11469, %v11511
    %11513 = vdwg.mxu0
    %11514 = vmatprep.subr.bf16.mxu0 %v8389
    %11515 = vmatpush1.bf16.msra.mxu0 %v8388
    %11516 = vmatprep.subr.bf16.mxu0 %v8373
    %11517 = vmatpush1.bf16.msra.mxu0 %v8372
    %11518 = vmatprep.subr.bf16.mxu0 %v8357
    %11519 = vmatpush1.bf16.msra.mxu0 %v8356
    %11520 = vmatprep.subr.bf16.mxu0 %v8341
    %11521 = vmatpush1.bf16.msra.mxu0 %v8340
    %11522 = vmatprep.subr.bf16.mxu0 %v8325
    %11523 = vmatpush1.bf16.msra.mxu0 %v8324
    %11524 = vmatprep.subr.bf16.mxu0 %v8309
    %11525 = vmatpush1.bf16.msra.mxu0 %v8308
    %11526 = vmatprep.subr.bf16.mxu0 %v8293
    %11527 = vmatpush1.bf16.msra.mxu0 %v8292
    %11528 = vmatprep.subr.bf16.mxu0 %v8277
    %11529 = vmatpush1.bf16.msra.mxu0 %v8276
    %11530 = vmatprep.subr.bf16.mxu0 %v8517
    %11531 = vmatpush2.bf16.msra.mxu0 %v8516
    %11532 = vmatprep.subr.bf16.mxu0 %v8501
    %11533 = vmatpush2.bf16.msra.mxu0 %v8500
    %11534 = vmatprep.subr.bf16.mxu0 %v8485
    %11535 = vmatpush2.bf16.msra.mxu0 %v8484
    %11536 = vmatprep.subr.bf16.mxu0 %v8469
    %11537 = vmatpush2.bf16.msra.mxu0 %v8468
    %11538 = vmatprep.subr.bf16.mxu0 %v8453
    %11539 = vmatpush2.bf16.msra.mxu0 %v8452
    %11540 = vmatprep.subr.bf16.mxu0 %v8437
    %11541 = vmatpush2.bf16.msra.mxu0 %v8436
    %11542 = vmatprep.subr.bf16.mxu0 %v8421
    %11543 = vmatpush2.bf16.msra.mxu0 %v8420
    %11544 = vmatprep.subr.bf16.mxu0 %v8405
    %11545 = vmatpush2.bf16.msra.mxu0 %v8404
    %11546 = vmatprep.mubr.bf16.mxu0 %v1159
    %11547 = vmatmul.mubr.bf16.gmra.mxu0 %v1158
    %v11548 = vpop.f32.mrf.mxu0
    %v11549 = vadd.f32 0.0, %v11548
    %v11550 = vpop.f32.mrf.mxu0
    %v11551 = vadd.f32 0.0, %v11550
    %v11552 = vpop.f32.mrf.mxu0
    %v11553 = vadd.f32 0.0, %v11552
    %v11554 = vpop.f32.mrf.mxu0
    %v11555 = vadd.f32 0.0, %v11554
    %11556 = vdwg.mxu0
    %11557 = vmatprep.subr.bf16.mxu0 %v8645
    %11558 = vmatpush1.bf16.msra.mxu0 %v8644
    %11559 = vmatprep.subr.bf16.mxu0 %v8629
    %11560 = vmatpush1.bf16.msra.mxu0 %v8628
    %11561 = vmatprep.subr.bf16.mxu0 %v8613
    %11562 = vmatpush1.bf16.msra.mxu0 %v8612
    %11563 = vmatprep.subr.bf16.mxu0 %v8597
    %11564 = vmatpush1.bf16.msra.mxu0 %v8596
    %11565 = vmatprep.subr.bf16.mxu0 %v8581
    %11566 = vmatpush1.bf16.msra.mxu0 %v8580
    %11567 = vmatprep.subr.bf16.mxu0 %v8565
    %11568 = vmatpush1.bf16.msra.mxu0 %v8564
    %11569 = vmatprep.subr.bf16.mxu0 %v8549
    %11570 = vmatpush1.bf16.msra.mxu0 %v8548
    %11571 = vmatprep.subr.bf16.mxu0 %v8533
    %11572 = vmatpush1.bf16.msra.mxu0 %v8532
    %11573 = vmatprep.subr.bf16.mxu0 %v8773
    %11574 = vmatpush2.bf16.msra.mxu0 %v8772
    %11575 = vmatprep.subr.bf16.mxu0 %v8757
    %11576 = vmatpush2.bf16.msra.mxu0 %v8756
    %11577 = vmatprep.subr.bf16.mxu0 %v8741
    %11578 = vmatpush2.bf16.msra.mxu0 %v8740
    %11579 = vmatprep.subr.bf16.mxu0 %v8725
    %11580 = vmatpush2.bf16.msra.mxu0 %v8724
    %11581 = vmatprep.subr.bf16.mxu0 %v8709
    %11582 = vmatpush2.bf16.msra.mxu0 %v8708
    %11583 = vmatprep.subr.bf16.mxu0 %v8693
    %11584 = vmatpush2.bf16.msra.mxu0 %v8692
    %11585 = vmatprep.subr.bf16.mxu0 %v8677
    %11586 = vmatpush2.bf16.msra.mxu0 %v8676
    %11587 = vmatprep.subr.bf16.mxu0 %v8661
    %11588 = vmatpush2.bf16.msra.mxu0 %v8660
    %11589 = vmatprep.mubr.bf16.mxu0 %v2161
    %11590 = vmatmul.mubr.bf16.gmra.mxu0 %v2160
    %v11591 = vpop.f32.mrf.mxu0
    %v11592 = vadd.f32 %v11549, %v11591
    %v11593 = vpop.f32.mrf.mxu0
    %v11594 = vadd.f32 %v11551, %v11593
    %v11595 = vpop.f32.mrf.mxu0
    %v11596 = vadd.f32 %v11553, %v11595
    %v11597 = vpop.f32.mrf.mxu0
    %v11598 = vadd.f32 %v11555, %v11597
    %11599 = vdwg.mxu0
    %11600 = vmatprep.subr.bf16.mxu0 %v8901
    %11601 = vmatpush1.bf16.msra.mxu0 %v8900
    %11602 = vmatprep.subr.bf16.mxu0 %v8885
    %11603 = vmatpush1.bf16.msra.mxu0 %v8884
    %11604 = vmatprep.subr.bf16.mxu0 %v8869
    %11605 = vmatpush1.bf16.msra.mxu0 %v8868
    %11606 = vmatprep.subr.bf16.mxu0 %v8853
    %11607 = vmatpush1.bf16.msra.mxu0 %v8852
    %11608 = vmatprep.subr.bf16.mxu0 %v8837
    %11609 = vmatpush1.bf16.msra.mxu0 %v8836
    %11610 = vmatprep.subr.bf16.mxu0 %v8821
    %11611 = vmatpush1.bf16.msra.mxu0 %v8820
    %11612 = vmatprep.subr.bf16.mxu0 %v8805
    %11613 = vmatpush1.bf16.msra.mxu0 %v8804
    %11614 = vmatprep.subr.bf16.mxu0 %v8789
    %11615 = vmatpush1.bf16.msra.mxu0 %v8788
    %11616 = vmatprep.subr.bf16.mxu0 %v9029
    %11617 = vmatpush2.bf16.msra.mxu0 %v9028
    %11618 = vmatprep.subr.bf16.mxu0 %v9013
    %11619 = vmatpush2.bf16.msra.mxu0 %v9012
    %11620 = vmatprep.subr.bf16.mxu0 %v8997
    %11621 = vmatpush2.bf16.msra.mxu0 %v8996
    %11622 = vmatprep.subr.bf16.mxu0 %v8981
    %11623 = vmatpush2.bf16.msra.mxu0 %v8980
    %11624 = vmatprep.subr.bf16.mxu0 %v8965
    %11625 = vmatpush2.bf16.msra.mxu0 %v8964
    %11626 = vmatprep.subr.bf16.mxu0 %v8949
    %11627 = vmatpush2.bf16.msra.mxu0 %v8948
    %11628 = vmatprep.subr.bf16.mxu0 %v8933
    %11629 = vmatpush2.bf16.msra.mxu0 %v8932
    %11630 = vmatprep.subr.bf16.mxu0 %v8917
    %11631 = vmatpush2.bf16.msra.mxu0 %v8916
    %11632 = vmatprep.mubr.bf16.mxu0 %v3163
    %11633 = vmatmul.mubr.bf16.gmra.mxu0 %v3162
    %v11634 = vpop.f32.mrf.mxu0
    %v11635 = vadd.f32 %v11592, %v11634
    %v11636 = vpop.f32.mrf.mxu0
    %v11637 = vadd.f32 %v11594, %v11636
    %v11638 = vpop.f32.mrf.mxu0
    %v11639 = vadd.f32 %v11596, %v11638
    %v11640 = vpop.f32.mrf.mxu0
    %v11641 = vadd.f32 %v11598, %v11640
    %11642 = vdwg.mxu0
    %11643 = vmatprep.subr.bf16.mxu0 %v9157
    %11644 = vmatpush1.bf16.msra.mxu0 %v9156
    %11645 = vmatprep.subr.bf16.mxu0 %v9141
    %11646 = vmatpush1.bf16.msra.mxu0 %v9140
    %11647 = vmatprep.subr.bf16.mxu0 %v9125
    %11648 = vmatpush1.bf16.msra.mxu0 %v9124
    %11649 = vmatprep.subr.bf16.mxu0 %v9109
    %11650 = vmatpush1.bf16.msra.mxu0 %v9108
    %11651 = vmatprep.subr.bf16.mxu0 %v9093
    %11652 = vmatpush1.bf16.msra.mxu0 %v9092
    %11653 = vmatprep.subr.bf16.mxu0 %v9077
    %11654 = vmatpush1.bf16.msra.mxu0 %v9076
    %11655 = vmatprep.subr.bf16.mxu0 %v9061
    %11656 = vmatpush1.bf16.msra.mxu0 %v9060
    %11657 = vmatprep.subr.bf16.mxu0 %v9045
    %11658 = vmatpush1.bf16.msra.mxu0 %v9044
    %11659 = vmatprep.subr.bf16.mxu0 %v9285
    %11660 = vmatpush2.bf16.msra.mxu0 %v9284
    %11661 = vmatprep.subr.bf16.mxu0 %v9269
    %11662 = vmatpush2.bf16.msra.mxu0 %v9268
    %11663 = vmatprep.subr.bf16.mxu0 %v9253
    %11664 = vmatpush2.bf16.msra.mxu0 %v9252
    %11665 = vmatprep.subr.bf16.mxu0 %v9237
    %11666 = vmatpush2.bf16.msra.mxu0 %v9236
    %11667 = vmatprep.subr.bf16.mxu0 %v9221
    %11668 = vmatpush2.bf16.msra.mxu0 %v9220
    %11669 = vmatprep.subr.bf16.mxu0 %v9205
    %11670 = vmatpush2.bf16.msra.mxu0 %v9204
    %11671 = vmatprep.subr.bf16.mxu0 %v9189
    %11672 = vmatpush2.bf16.msra.mxu0 %v9188
    %11673 = vmatprep.subr.bf16.mxu0 %v9173
    %11674 = vmatpush2.bf16.msra.mxu0 %v9172
    %11675 = vmatprep.mubr.bf16.mxu0 %v4165
    %11676 = vmatmul.mubr.bf16.gmra.mxu0 %v4164
    %v11677 = vpop.f32.mrf.mxu0
    %v11678 = vadd.f32 %v11635, %v11677
    %v11679 = vpop.f32.mrf.mxu0
    %v11680 = vadd.f32 %v11637, %v11679
    %v11681 = vpop.f32.mrf.mxu0
    %v11682 = vadd.f32 %v11639, %v11681
    %v11683 = vpop.f32.mrf.mxu0
    %v11684 = vadd.f32 %v11641, %v11683
    %11685 = vdwg.mxu0
    %v11686 = vmax.f32 %v10474, %v10818
    %v11687 = vmax.f32 %v10476, %v10820
    %v11688 = vmax.f32 %v10646, %v10990
    %v11689 = vmax.f32 %v10648, %v10992
    %v11690 = vmax.f32 %v10478, %v10822
    %v11691 = vmax.f32 %v10480, %v10824
    %v11692 = vmax.f32 %v10650, %v10994
    %v11693 = vmax.f32 %v10652, %v10996
    %v11694 = vmax.f32 %v11162, %v11506
    %v11695 = vmax.f32 %v11164, %v11508
    %v11696 = vmax.f32 %v11334, %v11678
    %v11697 = vmax.f32 %v11336, %v11680
    %v11698 = vmax.f32 %v11166, %v11510
    %v11699 = vmax.f32 %v11168, %v11512
    %v11700 = vmax.f32 %v11338, %v11682
    %v11701 = vmax.f32 %v11340, %v11684
    %v11702 = vmax.f32 %v11686, %v11694
    %v11703 = vmax.f32 %v11687, %v11695
    %v11704 = vmax.f32 %v11688, %v11696
    %v11705 = vmax.f32 %v11689, %v11697
    %v11706 = vmax.f32 %v11690, %v11698
    %v11707 = vmax.f32 %v11691, %v11699
    %v11708 = vmax.f32 %v11692, %v11700
    %v11709 = vmax.f32 %v11693, %v11701
    %v11710 = vld [vmem:[#allocation10] sm:$0xf]
    %v11712 = vlaneseq
    %v11713 = vshrl.u32 %v11712, 7
    %v11714 = vsub.s32 0, %v11713
    %v11715 = vrot.slane %v11710, %v11714
    %v11716 = vlaneseq
    %v11717 = vshrl.u32 %v11716, 7
    %v11718 = vsub.s32 1, %v11717
    %v11719 = vrot.slane %v11710, %v11718
    %v11720 = vlaneseq
    %v11721 = vshrl.u32 %v11720, 7
    %v11722 = vsub.s32 2, %v11721
    %v11723 = vrot.slane %v11710, %v11722
    %v11724 = vlaneseq
    %v11725 = vshrl.u32 %v11724, 7
    %v11726 = vsub.s32 3, %v11725
    %v11727 = vrot.slane %v11710, %v11726
    %v11732 = vadd.f32 %v11702, %v11715
    %v11733 = vadd.f32 %v11703, %v11719
    %v11734 = vadd.f32 %v11704, %v11723
    %v11735 = vadd.f32 %v11705, %v11727
    %v11736 = vadd.f32 %v11706, %v11715
    %v11737 = vadd.f32 %v11707, %v11719
    %v11738 = vadd.f32 %v11708, %v11723
    %v11739 = vadd.f32 %v11709, %v11727
    %v11740 = vmax.f32 %v11732, 0.0
    %v11741 = vmax.f32 %v11733, 0.0
    %v11742 = vmax.f32 %v11734, 0.0
    %v11743 = vmax.f32 %v11735, 0.0
    %v11744 = vmax.f32 %v11736, 0.0
    %v11745 = vmax.f32 %v11737, 0.0
    %v11746 = vmax.f32 %v11738, 0.0
    %v11747 = vmax.f32 %v11739, 0.0
    %v11748 = vpack.c.bf16 %v11744, %v11740
    %v11749 = vpack.c.bf16 %v11745, %v11741
    %v11750 = vpack.c.bf16 %v11746, %v11742
    %v11751 = vpack.c.bf16 %v11747, %v11743
    %v11752 = vld [vmem:[#allocation11] sm:$0xff]
    %v11753 = vld [vmem:[#allocation11 + $0x8] sm:$0xff]
    %v11754 = vld [vmem:[#allocation11 + $0x10] sm:$0xff]
    %v11755 = vld [vmem:[#allocation11 + $0x18] sm:$0xff]
    %v11756 = vld [vmem:[#allocation11 + $0x20] sm:$0xff]
    %v11757 = vld [vmem:[#allocation11 + $0x28] sm:$0xff]
    %v11758 = vld [vmem:[#allocation11 + $0x30] sm:$0xff]
    %v11759 = vld [vmem:[#allocation11 + $0x38] sm:$0xff]
    %v11760 = vld [vmem:[#allocation11 + $0x40] sm:$0xff]
    %v11761 = vld [vmem:[#allocation11 + $0x48] sm:$0xff]
    %v11762 = vld [vmem:[#allocation11 + $0x50] sm:$0xff]
    %v11763 = vld [vmem:[#allocation11 + $0x58] sm:$0xff]
    %v11764 = vld [vmem:[#allocation11 + $0x60] sm:$0xff]
    %v11765 = vld [vmem:[#allocation11 + $0x68] sm:$0xff]
    %v11766 = vld [vmem:[#allocation11 + $0x70] sm:$0xff]
    %v11767 = vld [vmem:[#allocation11 + $0x78] sm:$0xff]
    %v11768 = vld [vmem:[#allocation11 + $0x80] sm:$0xff]
    %v11769 = vld [vmem:[#allocation11 + $0x88] sm:$0xff]
    %v11770 = vld [vmem:[#allocation11 + $0x90] sm:$0xff]
    %v11771 = vld [vmem:[#allocation11 + $0x98] sm:$0xff]
    %v11772 = vld [vmem:[#allocation11 + $0xa0] sm:$0xff]
    %v11773 = vld [vmem:[#allocation11 + $0xa8] sm:$0xff]
    %v11774 = vld [vmem:[#allocation11 + $0xb0] sm:$0xff]
    %v11775 = vld [vmem:[#allocation11 + $0xb8] sm:$0xff]
    %v11776 = vld [vmem:[#allocation11 + $0xc0] sm:$0xff]
    %v11777 = vld [vmem:[#allocation11 + $0xc8] sm:$0xff]
    %v11778 = vld [vmem:[#allocation11 + $0xd0] sm:$0xff]
    %v11779 = vld [vmem:[#allocation11 + $0xd8] sm:$0xff]
    %v11780 = vld [vmem:[#allocation11 + $0xe0] sm:$0xff]
    %v11781 = vld [vmem:[#allocation11 + $0xe8] sm:$0xff]
    %v11782 = vld [vmem:[#allocation11 + $0xf0] sm:$0xff]
    %v11783 = vld [vmem:[#allocation11 + $0xf8] sm:$0xff]
    %v11784 = vld [vmem:[#allocation11 + $0x100] sm:$0xff]
    %v11785 = vld [vmem:[#allocation11 + $0x108] sm:$0xff]
    %v11786 = vld [vmem:[#allocation11 + $0x110] sm:$0xff]
    %v11787 = vld [vmem:[#allocation11 + $0x118] sm:$0xff]
    %v11788 = vld [vmem:[#allocation11 + $0x120] sm:$0xff]
    %v11789 = vld [vmem:[#allocation11 + $0x128] sm:$0xff]
    %v11790 = vld [vmem:[#allocation11 + $0x130] sm:$0xff]
    %v11791 = vld [vmem:[#allocation11 + $0x138] sm:$0xff]
    %v11792 = vld [vmem:[#allocation11 + $0x140] sm:$0xff]
    %v11793 = vld [vmem:[#allocation11 + $0x148] sm:$0xff]
    %v11794 = vld [vmem:[#allocation11 + $0x150] sm:$0xff]
    %v11795 = vld [vmem:[#allocation11 + $0x158] sm:$0xff]
    %v11796 = vld [vmem:[#allocation11 + $0x160] sm:$0xff]
    %v11797 = vld [vmem:[#allocation11 + $0x168] sm:$0xff]
    %v11798 = vld [vmem:[#allocation11 + $0x170] sm:$0xff]
    %v11799 = vld [vmem:[#allocation11 + $0x178] sm:$0xff]
    %v11800 = vld [vmem:[#allocation11 + $0x180] sm:$0xff]
    %v11801 = vld [vmem:[#allocation11 + $0x188] sm:$0xff]
    %v11802 = vld [vmem:[#allocation11 + $0x190] sm:$0xff]
    %v11803 = vld [vmem:[#allocation11 + $0x198] sm:$0xff]
    %v11804 = vld [vmem:[#allocation11 + $0x1a0] sm:$0xff]
    %v11805 = vld [vmem:[#allocation11 + $0x1a8] sm:$0xff]
    %v11806 = vld [vmem:[#allocation11 + $0x1b0] sm:$0xff]
    %v11807 = vld [vmem:[#allocation11 + $0x1b8] sm:$0xff]
    %v11808 = vld [vmem:[#allocation11 + $0x1c0] sm:$0xff]
    %v11809 = vld [vmem:[#allocation11 + $0x1c8] sm:$0xff]
    %v11810 = vld [vmem:[#allocation11 + $0x1d0] sm:$0xff]
    %v11811 = vld [vmem:[#allocation11 + $0x1d8] sm:$0xff]
    %v11812 = vld [vmem:[#allocation11 + $0x1e0] sm:$0xff]
    %v11813 = vld [vmem:[#allocation11 + $0x1e8] sm:$0xff]
    %v11814 = vld [vmem:[#allocation11 + $0x1f0] sm:$0xff]
    %v11815 = vld [vmem:[#allocation11 + $0x1f8] sm:$0xff]
    %v11816 = vld [vmem:[#allocation13] sm:$0x3]
    %v11818 = vlaneseq
    %v11819 = vshrl.u32 %v11818, 7
    %v11820 = vsub.s32 0, %v11819
    %v11821 = vrot.slane %v11816, %v11820
    %v11822 = vlaneseq
    %v11823 = vshrl.u32 %v11822, 7
    %v11824 = vsub.s32 1, %v11823
    %v11825 = vrot.slane %v11816, %v11824
    %v11892 = vunpack.c.l.b16 %v11752
    %v11893 = vunpack.c.h.b16 %v11752
    %v11894 = vunpack.c.l.b16 %v11753
    %v11895 = vunpack.c.h.b16 %v11753
    %v11896 = vunpack.c.l.b16 %v11754
    %v11897 = vunpack.c.h.b16 %v11754
    %v11898 = vunpack.c.l.b16 %v11755
    %v11899 = vunpack.c.h.b16 %v11755
    %v11900 = vunpack.c.l.b16 %v11756
    %v11901 = vunpack.c.h.b16 %v11756
    %v11902 = vunpack.c.l.b16 %v11757
    %v11903 = vunpack.c.h.b16 %v11757
    %v11904 = vunpack.c.l.b16 %v11758
    %v11905 = vunpack.c.h.b16 %v11758
    %v11906 = vunpack.c.l.b16 %v11759
    %v11907 = vunpack.c.h.b16 %v11759
    %v11908 = vunpack.c.l.b16 %v11760
    %v11909 = vunpack.c.h.b16 %v11760
    %v11910 = vunpack.c.l.b16 %v11761
    %v11911 = vunpack.c.h.b16 %v11761
    %v11912 = vunpack.c.l.b16 %v11762
    %v11913 = vunpack.c.h.b16 %v11762
    %v11914 = vunpack.c.l.b16 %v11763
    %v11915 = vunpack.c.h.b16 %v11763
    %v11916 = vunpack.c.l.b16 %v11764
    %v11917 = vunpack.c.h.b16 %v11764
    %v11918 = vunpack.c.l.b16 %v11765
    %v11919 = vunpack.c.h.b16 %v11765
    %v11920 = vunpack.c.l.b16 %v11766
    %v11921 = vunpack.c.h.b16 %v11766
    %v11922 = vunpack.c.l.b16 %v11767
    %v11923 = vunpack.c.h.b16 %v11767
    %v11924 = vunpack.c.l.b16 %v11768
    %v11925 = vunpack.c.h.b16 %v11768
    %v11926 = vunpack.c.l.b16 %v11769
    %v11927 = vunpack.c.h.b16 %v11769
    %v11928 = vunpack.c.l.b16 %v11770
    %v11929 = vunpack.c.h.b16 %v11770
    %v11930 = vunpack.c.l.b16 %v11771
    %v11931 = vunpack.c.h.b16 %v11771
    %v11932 = vunpack.c.l.b16 %v11772
    %v11933 = vunpack.c.h.b16 %v11772
    %v11934 = vunpack.c.l.b16 %v11773
    %v11935 = vunpack.c.h.b16 %v11773
    %v11936 = vunpack.c.l.b16 %v11774
    %v11937 = vunpack.c.h.b16 %v11774
    %v11938 = vunpack.c.l.b16 %v11775
    %v11939 = vunpack.c.h.b16 %v11775
    %v11940 = vunpack.c.l.b16 %v11776
    %v11941 = vunpack.c.h.b16 %v11776
    %v11942 = vunpack.c.l.b16 %v11777
    %v11943 = vunpack.c.h.b16 %v11777
    %v11944 = vunpack.c.l.b16 %v11778
    %v11945 = vunpack.c.h.b16 %v11778
    %v11946 = vunpack.c.l.b16 %v11779
    %v11947 = vunpack.c.h.b16 %v11779
    %v11948 = vunpack.c.l.b16 %v11780
    %v11949 = vunpack.c.h.b16 %v11780
    %v11950 = vunpack.c.l.b16 %v11781
    %v11951 = vunpack.c.h.b16 %v11781
    %v11952 = vunpack.c.l.b16 %v11782
    %v11953 = vunpack.c.h.b16 %v11782
    %v11954 = vunpack.c.l.b16 %v11783
    %v11955 = vunpack.c.h.b16 %v11783
    %v11956 = vunpack.c.l.b16 %v11784
    %v11957 = vunpack.c.h.b16 %v11784
    %v11958 = vunpack.c.l.b16 %v11785
    %v11959 = vunpack.c.h.b16 %v11785
    %v11960 = vunpack.c.l.b16 %v11786
    %v11961 = vunpack.c.h.b16 %v11786
    %v11962 = vunpack.c.l.b16 %v11787
    %v11963 = vunpack.c.h.b16 %v11787
    %v11964 = vunpack.c.l.b16 %v11788
    %v11965 = vunpack.c.h.b16 %v11788
    %v11966 = vunpack.c.l.b16 %v11789
    %v11967 = vunpack.c.h.b16 %v11789
    %v11968 = vunpack.c.l.b16 %v11790
    %v11969 = vunpack.c.h.b16 %v11790
    %v11970 = vunpack.c.l.b16 %v11791
    %v11971 = vunpack.c.h.b16 %v11791
    %v11972 = vunpack.c.l.b16 %v11792
    %v11973 = vunpack.c.h.b16 %v11792
    %v11974 = vunpack.c.l.b16 %v11793
    %v11975 = vunpack.c.h.b16 %v11793
    %v11976 = vunpack.c.l.b16 %v11794
    %v11977 = vunpack.c.h.b16 %v11794
    %v11978 = vunpack.c.l.b16 %v11795
    %v11979 = vunpack.c.h.b16 %v11795
    %v11980 = vunpack.c.l.b16 %v11796
    %v11981 = vunpack.c.h.b16 %v11796
    %v11982 = vunpack.c.l.b16 %v11797
    %v11983 = vunpack.c.h.b16 %v11797
    %v11984 = vunpack.c.l.b16 %v11798
    %v11985 = vunpack.c.h.b16 %v11798
    %v11986 = vunpack.c.l.b16 %v11799
    %v11987 = vunpack.c.h.b16 %v11799
    %v11988 = vunpack.c.l.b16 %v11800
    %v11989 = vunpack.c.h.b16 %v11800
    %v11990 = vunpack.c.l.b16 %v11801
    %v11991 = vunpack.c.h.b16 %v11801
    %v11992 = vunpack.c.l.b16 %v11802
    %v11993 = vunpack.c.h.b16 %v11802
    %v11994 = vunpack.c.l.b16 %v11803
    %v11995 = vunpack.c.h.b16 %v11803
    %v11996 = vunpack.c.l.b16 %v11804
    %v11997 = vunpack.c.h.b16 %v11804
    %v11998 = vunpack.c.l.b16 %v11805
    %v11999 = vunpack.c.h.b16 %v11805
    %v12000 = vunpack.c.l.b16 %v11806
    %v12001 = vunpack.c.h.b16 %v11806
    %v12002 = vunpack.c.l.b16 %v11807
    %v12003 = vunpack.c.h.b16 %v11807
    %v12004 = vunpack.c.l.b16 %v11808
    %v12005 = vunpack.c.h.b16 %v11808
    %v12006 = vunpack.c.l.b16 %v11809
    %v12007 = vunpack.c.h.b16 %v11809
    %v12008 = vunpack.c.l.b16 %v11810
    %v12009 = vunpack.c.h.b16 %v11810
    %v12010 = vunpack.c.l.b16 %v11811
    %v12011 = vunpack.c.h.b16 %v11811
    %v12012 = vunpack.c.l.b16 %v11812
    %v12013 = vunpack.c.h.b16 %v11812
    %v12014 = vunpack.c.l.b16 %v11813
    %v12015 = vunpack.c.h.b16 %v11813
    %v12016 = vunpack.c.l.b16 %v11814
    %v12017 = vunpack.c.h.b16 %v11814
    %v12018 = vunpack.c.l.b16 %v11815
    %v12019 = vunpack.c.h.b16 %v11815
    %v12020 = vpack.c.b16 %v11894, %v11892
    %v12021 = vpack.c.b16 %v11895, %v11893
    %v12022 = vpack.c.b16 %v11898, %v11896
    %v12023 = vpack.c.b16 %v11899, %v11897
    %v12024 = vpack.c.b16 %v11902, %v11900
    %v12025 = vpack.c.b16 %v11903, %v11901
    %v12026 = vpack.c.b16 %v11906, %v11904
    %v12027 = vpack.c.b16 %v11907, %v11905
    %v12028 = vpack.c.b16 %v11910, %v11908
    %v12029 = vpack.c.b16 %v11911, %v11909
    %v12030 = vpack.c.b16 %v11914, %v11912
    %v12031 = vpack.c.b16 %v11915, %v11913
    %v12032 = vpack.c.b16 %v11918, %v11916
    %v12033 = vpack.c.b16 %v11919, %v11917
    %v12034 = vpack.c.b16 %v11922, %v11920
    %v12035 = vpack.c.b16 %v11923, %v11921
    %v12036 = vpack.c.b16 %v11926, %v11924
    %v12037 = vpack.c.b16 %v11927, %v11925
    %v12038 = vpack.c.b16 %v11930, %v11928
    %v12039 = vpack.c.b16 %v11931, %v11929
    %v12040 = vpack.c.b16 %v11934, %v11932
    %v12041 = vpack.c.b16 %v11935, %v11933
    %v12042 = vpack.c.b16 %v11938, %v11936
    %v12043 = vpack.c.b16 %v11939, %v11937
    %v12044 = vpack.c.b16 %v11942, %v11940
    %v12045 = vpack.c.b16 %v11943, %v11941
    %v12046 = vpack.c.b16 %v11946, %v11944
    %v12047 = vpack.c.b16 %v11947, %v11945
    %v12048 = vpack.c.b16 %v11950, %v11948
    %v12049 = vpack.c.b16 %v11951, %v11949
    %v12050 = vpack.c.b16 %v11954, %v11952
    %v12051 = vpack.c.b16 %v11955, %v11953
    %v12052 = vpack.c.b16 %v11958, %v11956
    %v12053 = vpack.c.b16 %v11959, %v11957
    %v12054 = vpack.c.b16 %v11962, %v11960
    %v12055 = vpack.c.b16 %v11963, %v11961
    %v12056 = vpack.c.b16 %v11966, %v11964
    %v12057 = vpack.c.b16 %v11967, %v11965
    %v12058 = vpack.c.b16 %v11970, %v11968
    %v12059 = vpack.c.b16 %v11971, %v11969
    %v12060 = vpack.c.b16 %v11974, %v11972
    %v12061 = vpack.c.b16 %v11975, %v11973
    %v12062 = vpack.c.b16 %v11978, %v11976
    %v12063 = vpack.c.b16 %v11979, %v11977
    %v12064 = vpack.c.b16 %v11982, %v11980
    %v12065 = vpack.c.b16 %v11983, %v11981
    %v12066 = vpack.c.b16 %v11986, %v11984
    %v12067 = vpack.c.b16 %v11987, %v11985
    %v12068 = vpack.c.b16 %v11990, %v11988
    %v12069 = vpack.c.b16 %v11991, %v11989
    %v12070 = vpack.c.b16 %v11994, %v11992
    %v12071 = vpack.c.b16 %v11995, %v11993
    %v12072 = vpack.c.b16 %v11998, %v11996
    %v12073 = vpack.c.b16 %v11999, %v11997
    %v12074 = vpack.c.b16 %v12002, %v12000
    %v12075 = vpack.c.b16 %v12003, %v12001
    %v12076 = vpack.c.b16 %v12006, %v12004
    %v12077 = vpack.c.b16 %v12007, %v12005
    %v12078 = vpack.c.b16 %v12010, %v12008
    %v12079 = vpack.c.b16 %v12011, %v12009
    %v12080 = vpack.c.b16 %v12014, %v12012
    %v12081 = vpack.c.b16 %v12015, %v12013
    %v12082 = vpack.c.b16 %v12018, %v12016
    %v12083 = vpack.c.b16 %v12019, %v12017
    %12148 = vmatprep.subr.bf16.mxu0 %v12035
    %12149 = vmatpush1.bf16.msra.mxu0 %v12034
    %12150 = vmatprep.subr.bf16.mxu0 %v12033
    %12151 = vmatpush1.bf16.msra.mxu0 %v12032
    %12152 = vmatprep.subr.bf16.mxu0 %v12031
    %12153 = vmatpush1.bf16.msra.mxu0 %v12030
    %12154 = vmatprep.subr.bf16.mxu0 %v12029
    %12155 = vmatpush1.bf16.msra.mxu0 %v12028
    %12156 = vmatprep.subr.bf16.mxu0 %v12027
    %12157 = vmatpush1.bf16.msra.mxu0 %v12026
    %12158 = vmatprep.subr.bf16.mxu0 %v12025
    %12159 = vmatpush1.bf16.msra.mxu0 %v12024
    %12160 = vmatprep.subr.bf16.mxu0 %v12023
    %12161 = vmatpush1.bf16.msra.mxu0 %v12022
    %12162 = vmatprep.subr.bf16.mxu0 %v12021
    %12163 = vmatpush1.bf16.msra.mxu0 %v12020
    %12164 = vmatprep.subr.bf16.mxu0 %v12051
    %12165 = vmatpush2.bf16.msra.mxu0 %v12050
    %12166 = vmatprep.subr.bf16.mxu0 %v12049
    %12167 = vmatpush2.bf16.msra.mxu0 %v12048
    %12168 = vmatprep.subr.bf16.mxu0 %v12047
    %12169 = vmatpush2.bf16.msra.mxu0 %v12046
    %12170 = vmatprep.subr.bf16.mxu0 %v12045
    %12171 = vmatpush2.bf16.msra.mxu0 %v12044
    %12172 = vmatprep.subr.bf16.mxu0 %v12043
    %12173 = vmatpush2.bf16.msra.mxu0 %v12042
    %12174 = vmatprep.subr.bf16.mxu0 %v12041
    %12175 = vmatpush2.bf16.msra.mxu0 %v12040
    %12176 = vmatprep.subr.bf16.mxu0 %v12039
    %12177 = vmatpush2.bf16.msra.mxu0 %v12038
    %12178 = vmatprep.subr.bf16.mxu0 %v12037
    %12179 = vmatpush2.bf16.msra.mxu0 %v12036
    %12180 = vmatprep.mubr.bf16.mxu0 %v11749
    %12181 = vmatmul.mubr.bf16.gmra.mxu0 %v11748
    %v12182 = vpop.f32.mrf.mxu0
    %v12183 = vadd.f32 %v11821, %v12182
    %v12184 = vpop.f32.mrf.mxu0
    %v12185 = vadd.f32 %v11825, %v12184
    %v12186 = vpop.f32.mrf.mxu0
    %v12187 = vadd.f32 %v11821, %v12186
    %v12188 = vpop.f32.mrf.mxu0
    %v12189 = vadd.f32 %v11825, %v12188
    %12190 = vdwg.mxu0
    %12191 = vmatprep.subr.bf16.mxu0 %v12067
    %12192 = vmatpush1.bf16.msra.mxu0 %v12066
    %12193 = vmatprep.subr.bf16.mxu0 %v12065
    %12194 = vmatpush1.bf16.msra.mxu0 %v12064
    %12195 = vmatprep.subr.bf16.mxu0 %v12063
    %12196 = vmatpush1.bf16.msra.mxu0 %v12062
    %12197 = vmatprep.subr.bf16.mxu0 %v12061
    %12198 = vmatpush1.bf16.msra.mxu0 %v12060
    %12199 = vmatprep.subr.bf16.mxu0 %v12059
    %12200 = vmatpush1.bf16.msra.mxu0 %v12058
    %12201 = vmatprep.subr.bf16.mxu0 %v12057
    %12202 = vmatpush1.bf16.msra.mxu0 %v12056
    %12203 = vmatprep.subr.bf16.mxu0 %v12055
    %12204 = vmatpush1.bf16.msra.mxu0 %v12054
    %12205 = vmatprep.subr.bf16.mxu0 %v12053
    %12206 = vmatpush1.bf16.msra.mxu0 %v12052
    %12207 = vmatprep.subr.bf16.mxu0 %v12083
    %12208 = vmatpush2.bf16.msra.mxu0 %v12082
    %12209 = vmatprep.subr.bf16.mxu0 %v12081
    %12210 = vmatpush2.bf16.msra.mxu0 %v12080
    %12211 = vmatprep.subr.bf16.mxu0 %v12079
    %12212 = vmatpush2.bf16.msra.mxu0 %v12078
    %12213 = vmatprep.subr.bf16.mxu0 %v12077
    %12214 = vmatpush2.bf16.msra.mxu0 %v12076
    %12215 = vmatprep.subr.bf16.mxu0 %v12075
    %12216 = vmatpush2.bf16.msra.mxu0 %v12074
    %12217 = vmatprep.subr.bf16.mxu0 %v12073
    %12218 = vmatpush2.bf16.msra.mxu0 %v12072
    %12219 = vmatprep.subr.bf16.mxu0 %v12071
    %12220 = vmatpush2.bf16.msra.mxu0 %v12070
    %12221 = vmatprep.subr.bf16.mxu0 %v12069
    %12222 = vmatpush2.bf16.msra.mxu0 %v12068
    %12223 = vmatprep.mubr.bf16.mxu0 %v11751
    %12224 = vmatmul.mubr.bf16.gmra.mxu0 %v11750
    %v12225 = vpop.f32.mrf.mxu0
    %v12226 = vadd.f32 %v12183, %v12225
    %v12227 = vpop.f32.mrf.mxu0
    %v12228 = vadd.f32 %v12185, %v12227
    %v12229 = vpop.f32.mrf.mxu0
    %v12230 = vadd.f32 %v12187, %v12229
    %v12231 = vpop.f32.mrf.mxu0
    %v12232 = vadd.f32 %v12189, %v12231
    %12233 = vdwg.mxu0
    %v12234 = vmax.f32 %v12226, 0.0
    %v12235 = vmax.f32 %v12228, 0.0
    %v12236 = vmax.f32 %v12230, 0.0
    %v12237 = vmax.f32 %v12232, 0.0
    %v12238 = vpack.c.bf16 %v12236, %v12234
    %v12239 = vpack.c.bf16 %v12237, %v12235
    %v12240 = vld [vmem:[#allocation14] sm:$0xf]
    %v12241 = vld [vmem:[#allocation14 + $0x4] sm:$0xf]
    %v12242 = vld [vmem:[#allocation14 + $0x8] sm:$0xf]
    %v12243 = vld [vmem:[#allocation14 + $0xc] sm:$0xf]
    %v12244 = vld [vmem:[#allocation14 + $0x10] sm:$0xf]
    %v12245 = vld [vmem:[#allocation14 + $0x14] sm:$0xf]
    %v12246 = vld [vmem:[#allocation14 + $0x18] sm:$0xf]
    %v12247 = vld [vmem:[#allocation14 + $0x1c] sm:$0xf]
    %v12248 = vld [vmem:[#allocation14 + $0x20] sm:$0xf]
    %v12249 = vld [vmem:[#allocation14 + $0x24] sm:$0xf]
    %v12250 = vld [vmem:[#allocation14 + $0x28] sm:$0xf]
    %v12251 = vld [vmem:[#allocation14 + $0x2c] sm:$0xf]
    %v12252 = vld [vmem:[#allocation14 + $0x30] sm:$0xf]
    %v12253 = vld [vmem:[#allocation14 + $0x34] sm:$0xf]
    %v12254 = vld [vmem:[#allocation14 + $0x38] sm:$0xf]
    %v12255 = vld [vmem:[#allocation14 + $0x3c] sm:$0xf]
    %v12256 = vld [vmem:[#allocation14 + $0x40] sm:$0xf]
    %v12257 = vld [vmem:[#allocation14 + $0x44] sm:$0xf]
    %v12258 = vld [vmem:[#allocation14 + $0x48] sm:$0xf]
    %v12259 = vld [vmem:[#allocation14 + $0x4c] sm:$0xf]
    %v12260 = vld [vmem:[#allocation14 + $0x50] sm:$0xf]
    %v12261 = vld [vmem:[#allocation14 + $0x54] sm:$0xf]
    %v12262 = vld [vmem:[#allocation14 + $0x58] sm:$0xf]
    %v12263 = vld [vmem:[#allocation14 + $0x5c] sm:$0xf]
    %v12264 = vld [vmem:[#allocation14 + $0x60] sm:$0xf]
    %v12265 = vld [vmem:[#allocation14 + $0x64] sm:$0xf]
    %v12266 = vld [vmem:[#allocation14 + $0x68] sm:$0xf]
    %v12267 = vld [vmem:[#allocation14 + $0x6c] sm:$0xf]
    %v12268 = vld [vmem:[#allocation14 + $0x70] sm:$0xf]
    %v12269 = vld [vmem:[#allocation14 + $0x74] sm:$0xf]
    %v12270 = vld [vmem:[#allocation14 + $0x78] sm:$0xf]
    %v12271 = vld [vmem:[#allocation14 + $0x7c] sm:$0xf]
    %v12272 = vld [vmem:[#allocation16] sm:$0x1]
    %v12274 = vlaneseq
    %v12275 = vshrl.u32 %v12274, 7
    %v12276 = vsub.s32 0, %v12275
    %v12277 = vrot.slane %v12272, %v12276
    %v12311 = vunpack.c.l.b16 %v12240
    %v12312 = vunpack.c.l.b16 %v12241
    %v12313 = vunpack.c.l.b16 %v12242
    %v12314 = vunpack.c.l.b16 %v12243
    %v12315 = vunpack.c.l.b16 %v12244
    %v12316 = vunpack.c.l.b16 %v12245
    %v12317 = vunpack.c.l.b16 %v12246
    %v12318 = vunpack.c.l.b16 %v12247
    %v12319 = vunpack.c.l.b16 %v12248
    %v12320 = vunpack.c.l.b16 %v12249
    %v12321 = vunpack.c.l.b16 %v12250
    %v12322 = vunpack.c.l.b16 %v12251
    %v12323 = vunpack.c.l.b16 %v12252
    %v12324 = vunpack.c.l.b16 %v12253
    %v12325 = vunpack.c.l.b16 %v12254
    %v12326 = vunpack.c.l.b16 %v12255
    %v12327 = vunpack.c.l.b16 %v12256
    %v12328 = vunpack.c.l.b16 %v12257
    %v12329 = vunpack.c.l.b16 %v12258
    %v12330 = vunpack.c.l.b16 %v12259
    %v12331 = vunpack.c.l.b16 %v12260
    %v12332 = vunpack.c.l.b16 %v12261
    %v12333 = vunpack.c.l.b16 %v12262
    %v12334 = vunpack.c.l.b16 %v12263
    %v12335 = vunpack.c.l.b16 %v12264
    %v12336 = vunpack.c.l.b16 %v12265
    %v12337 = vunpack.c.l.b16 %v12266
    %v12338 = vunpack.c.l.b16 %v12267
    %v12339 = vunpack.c.l.b16 %v12268
    %v12340 = vunpack.c.l.b16 %v12269
    %v12341 = vunpack.c.l.b16 %v12270
    %v12342 = vunpack.c.l.b16 %v12271
    %v12343 = vpack.c.b16 %v12312, %v12311
    %v12344 = vpack.c.b16 %v12314, %v12313
    %v12345 = vpack.c.b16 %v12316, %v12315
    %v12346 = vpack.c.b16 %v12318, %v12317
    %v12347 = vpack.c.b16 %v12320, %v12319
    %v12348 = vpack.c.b16 %v12322, %v12321
    %v12349 = vpack.c.b16 %v12324, %v12323
    %v12350 = vpack.c.b16 %v12326, %v12325
    %v12351 = vpack.c.b16 %v12328, %v12327
    %v12352 = vpack.c.b16 %v12330, %v12329
    %v12353 = vpack.c.b16 %v12332, %v12331
    %v12354 = vpack.c.b16 %v12334, %v12333
    %v12355 = vpack.c.b16 %v12336, %v12335
    %v12356 = vpack.c.b16 %v12338, %v12337
    %v12357 = vpack.c.b16 %v12340, %v12339
    %v12358 = vpack.c.b16 %v12342, %v12341
    %12375 = vmatprep.subr.bf16.mxu0 0
    %12376 = vmatpush1.bf16.msra.mxu0 %v12350
    %12377 = vmatprep.subr.bf16.mxu0 0
    %12378 = vmatpush1.bf16.msra.mxu0 %v12349
    %12379 = vmatprep.subr.bf16.mxu0 0
    %12380 = vmatpush1.bf16.msra.mxu0 %v12348
    %12381 = vmatprep.subr.bf16.mxu0 0
    %12382 = vmatpush1.bf16.msra.mxu0 %v12347
    %12383 = vmatprep.subr.bf16.mxu0 0
    %12384 = vmatpush1.bf16.msra.mxu0 %v12346
    %12385 = vmatprep.subr.bf16.mxu0 0
    %12386 = vmatpush1.bf16.msra.mxu0 %v12345
    %12387 = vmatprep.subr.bf16.mxu0 0
    %12388 = vmatpush1.bf16.msra.mxu0 %v12344
    %12389 = vmatprep.subr.bf16.mxu0 0
    %12390 = vmatpush1.bf16.msra.mxu0 %v12343
    %12391 = vmatprep.subr.bf16.mxu0 0
    %12392 = vmatpush2.bf16.msra.mxu0 %v12358
    %12393 = vmatprep.subr.bf16.mxu0 0
    %12394 = vmatpush2.bf16.msra.mxu0 %v12357
    %12395 = vmatprep.subr.bf16.mxu0 0
    %12396 = vmatpush2.bf16.msra.mxu0 %v12356
    %12397 = vmatprep.subr.bf16.mxu0 0
    %12398 = vmatpush2.bf16.msra.mxu0 %v12355
    %12399 = vmatprep.subr.bf16.mxu0 0
    %12400 = vmatpush2.bf16.msra.mxu0 %v12354
    %12401 = vmatprep.subr.bf16.mxu0 0
    %12402 = vmatpush2.bf16.msra.mxu0 %v12353
    %12403 = vmatprep.subr.bf16.mxu0 0
    %12404 = vmatpush2.bf16.msra.mxu0 %v12352
    %12405 = vmatprep.subr.bf16.mxu0 0
    %12406 = vmatpush2.bf16.msra.mxu0 %v12351
    %12407 = vmatprep.mubr.bf16.mxu0 %v12239
    %12408 = vmatmul.mubr.bf16.gmra.mxu0 %v12238
    %v12409 = vpop.f32.mrf.mxu0
    %v12410 = vadd.f32 %v12277, %v12409
    %v12411 = vpop.f32.mrf.mxu0
    %v12412 = vpop.f32.mrf.mxu0
    %v12413 = vadd.f32 %v12277, %v12412
    %v12414 = vpop.f32.mrf.mxu0
    %12415 = vdwg.mxu0
    %12416 = vst [vmem:[#allocation17] sm:$0xff] %v12410
    %12417 = vst [vmem:[#allocation17 + $0x8] sm:$0xff] %v12413
    // Predicated region
    $region74: #{tpu_custom_call.1} parent=1 // pred_check
      _
    $region75: #{tpu_custom_call.1} parent=1 // pred_check_branch
      %12419 = sbr.rel (0) target = $region77
    $region76: #{tpu_custom_call.1} parent=1 // pred_region
      %s12421 = ssub.s32 256, 256
      %12422 = vsyncadd [#allocation4], %s12421
      %s12423 = sshll.u32 [#allocation17], 4
      %s12424 = int_to_ptr.vmem [resolvable:$true] %s12423
      %12429 = dma.vmem_to_hbm [thread:$0]  %s12424, 256, %s9, [#allocation4], 128, 128, 8
    $region77: #{tpu_custom_call.1} parent=1 // pred_fallthru
      _
    // Predicated region
    $region78: #{tpu_custom_call.1} parent=1 // pred_check
      _
    $region79: #{tpu_custom_call.1} parent=1 // pred_check_branch
      %12431 = sbr.rel (0) target = $region81
    $region80: #{tpu_custom_call.1} parent=1 // pred_region
      %12432 = dma.done [#allocation4], 256
    $region81: #{tpu_custom_call.1} parent=1 // pred_fallthru
      _
    %12433 = vsyncpa [#allocation3], 1
    %12434 = vsyncpa [#allocation6], 1
    %12435 = vsyncpa [#allocation9], 1
    %12436 = vsyncpa [#allocation12], 1
    %12437 = vsyncpa [#allocation15], 1
    %12438 = vsyncpa [#allocation4], 1

</llo_original>
